<compile_context>
chip_gen: v6e
topology: v6e:2x2x1
jax: 0.10.0
libtpu: 0.0.40
codegen_flags: <defaults>
</compile_context>

<pallas_src>
import jax
import jax.numpy as jnp
from jax.experimental import pallas as pl
from jax.experimental.pallas import tpu as pltpu

_SQRT_2_OVER_PI = 0.7978845608028654  # sqrt(2/pi), hoisted constant


def _gelu_tanh(x):
    # 0.5 * x * (1 + tanh(sqrt(2/pi) * (x + 0.044715 * x**3))) -- matches the
    # hand-written tanh GELU module in the PyTorch reference exactly.
    c = jnp.float32(_SQRT_2_OVER_PI)
    return 0.5 * x * (1.0 + jnp.tanh(c * (x + 0.044715 * (x * x * x))))


def _ffn_kernel(x_ref, w1_ref, b1_ref, w2_ref, o_ref):
    # x_ref:  (tm, d)    f32   activation row tile
    # w1_ref: (d, hs)    bf16  first-layer weight slice (VMEM-resident per split)
    # b1_ref: (1, hs)    f32   first-layer bias slice
    # w2_ref: (hs, d)    bf16  second-layer weight slice (VMEM-resident per split)
    # o_ref:  (1, tm, d) f32   partial output for this hidden split (b2 added in wrapper)
    x = x_ref[...].astype(w1_ref.dtype)                       # bf16 for MXU
    h = jnp.dot(x, w1_ref[...], preferred_element_type=jnp.float32)
    h = _gelu_tanh(h + b1_ref[...])                           # f32 GELU (EUP tanh)
    acc = jnp.dot(h.astype(w2_ref.dtype), w2_ref[...],
                  preferred_element_type=jnp.float32)
    o_ref[0] = acc.astype(o_ref.dtype)


def feed_forward(x, params, *, tile_m=256):
    """x: (..., emb).  params = (w1 (emb,4emb) bf16, b1 (1,4emb) f32,
                                 w2 (4emb,emb) bf16, b2 (1,emb) f32)."""
    w1, b1, w2, b2 = params
    *lead, d = x.shape
    hdim = w1.shape[1]
    assert w1.shape == (d, hdim) and w2.shape == (hdim, d)
    assert b1.shape == (1, hdim) and b2.shape == (1, d)
    assert d % 128 == 0 and hdim % 128 == 0, (d, hdim)
    assert tile_m % 16 == 0

    # Resident-weights variant: both weight matrices live in VMEM for the whole
    # kernel (9.4 MB in bf16 at emb=768).  For much larger models a hidden-
    # reduction-tiled fallback would be needed instead.
    weight_bytes = 2 * d * hdim * w1.dtype.itemsize
    assert weight_bytes <= 48 * 1024 * 1024, weight_bytes

    x2d = x.reshape(-1, d)
    m = x2d.shape[0]

    # Rows padded to a multiple of 16 (safe for bf16 sublane packing).
    m_pad = ((m + 15) // 16) * 16
    if m_pad <= tile_m:
        tm = m_pad
    else:
        tm = tile_m
        m_pad = ((m + tm - 1) // tm) * tm
    if m_pad != m:
        x2d = jnp.pad(x2d, ((0, m_pad - m), (0, 0)))
    m_tiles = m_pad // tm

    # Decode-like shapes (one row tile): split the hidden dim across a leading
    # parallel axis so both v7x TensorCores each stream half of W1/W2.
    n_split = 2 if (m_tiles == 1 and (hdim // 2) % 128 == 0) else 1
    hs = hdim // n_split

    bytes_accessed = (
        2 * d * hdim * w1.dtype.itemsize        # W1 + W2 streamed exactly once
        + n_split * m_pad * d * 4               # x read (re-read per split)
        + hdim * 4                              # b1
        + n_split * m_pad * d * 4               # partial outputs written
    )

    partial = pl.pallas_call(
        _ffn_kernel,
        out_shape=jax.ShapeDtypeStruct((n_split, m_pad, d), jnp.float32),
        grid_spec=pltpu.PrefetchScalarGridSpec(
            num_scalar_prefetch=0,
            grid=(n_split, m_tiles),
            in_specs=[
                pl.BlockSpec((tm, d), lambda c, i: (i, 0)),    # x rows
                pl.BlockSpec((d, hs), lambda c, i: (0, c)),    # W1 split (resident)
                pl.BlockSpec((1, hs), lambda c, i: (0, c)),    # b1 split
                pl.BlockSpec((hs, d), lambda c, i: (c, 0)),    # W2 split (resident)
            ],
            out_specs=pl.BlockSpec((1, tm, d), lambda c, i: (c, i, 0)),
        ),
        compiler_params=pltpu.CompilerParams(
            dimension_semantics=("parallel", "parallel"),
            vmem_limit_bytes=64 * 1024 * 1024,
        ),
        cost_estimate=pl.CostEstimate(
            flops=4 * m_pad * d * hdim,
            transcendentals=m_pad * hdim,
            bytes_accessed=bytes_accessed,
        ),
    )(x2d, w1, b1, w2)

    out = partial.sum(axis=0) + b2          # combine hidden splits, add b2 once
    return out[:m].reshape(*lead, d)


def init_params(key, emb_dim):
    """PyTorch-Linear-style init, weights stored (in, out) in bf16, biases f32."""
    hid = 4 * emb_dim
    k1, k2, k3, k4 = jax.random.split(key, 4)
    bnd1 = 1.0 / float(emb_dim) ** 0.5
    bnd2 = 1.0 / float(hid) ** 0.5
    w1 = jax.random.uniform(k1, (emb_dim, hid), jnp.float32, -bnd1, bnd1).astype(jnp.bfloat16)
    b1 = jax.random.uniform(k2, (1, hid), jnp.float32, -bnd1, bnd1)
    w2 = jax.random.uniform(k3, (hid, emb_dim), jnp.float32, -bnd2, bnd2).astype(jnp.bfloat16)
    b2 = jax.random.uniform(k4, (1, emb_dim), jnp.float32, -bnd2, bnd2)
    return (w1, b1, w2, b2)


def reference_forward(x, params):
    """Pure-JAX f32 reference for correctness checking."""
    w1, b1, w2, b2 = params
    h = _gelu_tanh(x @ w1.astype(jnp.float32) + b1)
    return h @ w2.astype(jnp.float32) + b2


if __name__ == "__main__":
    key = jax.random.PRNGKey(0)
    key, kx = jax.random.split(key)

    cfg = {"emb_dim": 768}
    # Same shape as the PyTorch spec: x = torch.rand(2, 4, 768)
    x = jax.random.uniform(kx, (2, 4, cfg["emb_dim"]), jnp.float32)
    params = init_params(key, cfg["emb_dim"])

    out = jax.block_until_ready(feed_forward(x, params))
    ref = reference_forward(x, params)

    assert out.shape == x.shape, out.shape
    max_err = float(jnp.max(jnp.abs(out - ref)))
    # bf16 weight streaming (+ bf16 x / GELU casts) with f32 accumulation.
    assert jnp.allclose(out, ref, atol=1e-2, rtol=1e-2), max_err

    print("KERNEL_OK")
</pallas_src>

<mosaic_0001>
module attributes {stable_mosaic.version = 11 : i64} {
  func.func @_ffn_kernel(%arg0: i32, %arg1: i32, %arg2: memref<16x768xf32, #tpu.memory_space<vmem>>, %arg3: memref<768x1536xbf16, #tpu.memory_space<vmem>>, %arg4: memref<1x1536xf32, #tpu.memory_space<vmem>>, %arg5: memref<1536x768xbf16, #tpu.memory_space<vmem>>, %arg6: memref<1x16x768xf32, #tpu.memory_space<vmem>>) attributes {dimension_semantics = [#tpu.dimension_semantics<parallel>, #tpu.dimension_semantics<parallel>], iteration_bounds = array<i64: 2, 1>, scalar_prefetch = 0 : i64, scratch_operands = 0 : i64, tpu.core_type = #tpu.core_type<tc>, window_params = [{transform_indices = @transform_0, window_bounds = array<i64: 16, 768>}, {transform_indices = @transform_1, window_bounds = array<i64: 768, 1536>}, {transform_indices = @transform_2, window_bounds = array<i64: 1, 1536>}, {transform_indices = @transform_3, window_bounds = array<i64: 1536, 768>}, {transform_indices = @transform_4, window_bounds = array<i64: 1, 16, 768>}]} {
    %c0 = arith.constant 0 : index
    %c0_0 = arith.constant 0 : index
    %0 = vector.load %arg2[%c0, %c0_0] : memref<16x768xf32, #tpu.memory_space<vmem>>, vector<16x768xf32>
    %1 = arith.truncf %0 : vector<16x768xf32> to vector<16x768xbf16>
    %c0_1 = arith.constant 0 : index
    %c0_2 = arith.constant 0 : index
    %2 = vector.load %arg3[%c0_1, %c0_2] : memref<768x1536xbf16, #tpu.memory_space<vmem>>, vector<768x1536xbf16>
    %cst = arith.constant dense<0.000000e+00> : vector<16x1536xf32>
    %3 = tpu.matmul %1, %2, %cst {dimension_numbers = #tpu.dot_dimension_numbers<[1], [0], [0], [1], [0, 0, 1, 1], [], []>} : vector<16x768xbf16>, vector<768x1536xbf16>, vector<16x1536xf32> -> vector<16x1536xf32>
    %c0_3 = arith.constant 0 : index
    %c0_4 = arith.constant 0 : index
    %4 = vector.load %arg4[%c0_3, %c0_4] : memref<1x1536xf32, #tpu.memory_space<vmem>>, vector<1x1536xf32>
    %5 = vector.broadcast %4 : vector<1x1536xf32> to vector<16x1536xf32>
    %6 = arith.addf %3, %5 : vector<16x1536xf32>
    %cst_5 = arith.constant 5.000000e-01 : f32
    %7 = vector.broadcast %cst_5 : f32 to vector<16x1536xf32>
    %8 = arith.mulf %7, %6 : vector<16x1536xf32>
    %9 = arith.mulf %6, %6 : vector<16x1536xf32>
    %10 = arith.mulf %9, %6 : vector<16x1536xf32>
    %cst_6 = arith.constant 4.471500e-02 : f32
    %11 = vector.broadcast %cst_6 : f32 to vector<16x1536xf32>
    %12 = arith.mulf %11, %10 : vector<16x1536xf32>
    %13 = arith.addf %6, %12 : vector<16x1536xf32>
    %cst_7 = arith.constant 0.797884583 : f32
    %14 = vector.broadcast %cst_7 : f32 to vector<16x1536xf32>
    %15 = arith.mulf %14, %13 : vector<16x1536xf32>
    %16 = math.tanh %15 : vector<16x1536xf32>
    %cst_8 = arith.constant 1.000000e+00 : f32
    %17 = vector.broadcast %cst_8 : f32 to vector<16x1536xf32>
    %18 = arith.addf %17, %16 : vector<16x1536xf32>
    %19 = arith.mulf %8, %18 : vector<16x1536xf32>
    %20 = arith.truncf %19 : vector<16x1536xf32> to vector<16x1536xbf16>
    %c0_9 = arith.constant 0 : index
    %c0_10 = arith.constant 0 : index
    %21 = vector.load %arg5[%c0_9, %c0_10] : memref<1536x768xbf16, #tpu.memory_space<vmem>>, vector<1536x768xbf16>
    %cst_11 = arith.constant dense<0.000000e+00> : vector<16x768xf32>
    %22 = tpu.matmul %20, %21, %cst_11 {dimension_numbers = #tpu.dot_dimension_numbers<[1], [0], [0], [1], [0, 0, 1, 1], [], []>} : vector<16x1536xbf16>, vector<1536x768xbf16>, vector<16x768xf32> -> vector<16x768xf32>
    %c0_12 = arith.constant 0 : index
    %c0_13 = arith.constant 0 : index
    %c0_14 = arith.constant 0 : index
    %23 = vector.load %arg6[%c0_12, %c0_13, %c0_14] : memref<1x16x768xf32, #tpu.memory_space<vmem>>, vector<1x16x768xf32>
    %24 = vector.shape_cast %23 : vector<1x16x768xf32> to vector<16x768xf32>
    %25 = vector.shape_cast %22 : vector<16x768xf32> to vector<1x16x768xf32>
    tpu.vector_store %arg6[%c0_12, %c0_13, %c0_14], %25 {strides = array<i32>} : memref<1x16x768xf32, #tpu.memory_space<vmem>>, vector<1x16x768xf32>,
    return
  }
  func.func @transform_0(%arg0: i32, %arg1: i32) -> (i32, i32) {
    %c0_i32 = arith.constant 0 : i32
    %c0_i32_0 = arith.constant 0 : i32
    return %arg1, %c0_i32 : i32, i32
  }
  func.func @transform_1(%arg0: i32, %arg1: i32) -> (i32, i32) {
    %c0_i32 = arith.constant 0 : i32
    %c0_i32_0 = arith.constant 0 : i32
    return %c0_i32, %arg0 : i32, i32
  }
  func.func @transform_2(%arg0: i32, %arg1: i32) -> (i32, i32) {
    %c0_i32 = arith.constant 0 : i32
    %c0_i32_0 = arith.constant 0 : i32
    return %c0_i32, %arg0 : i32, i32
  }
  func.func @transform_3(%arg0: i32, %arg1: i32) -> (i32, i32) {
    %c0_i32 = arith.constant 0 : i32
    %c0_i32_0 = arith.constant 0 : i32
    return %arg0, %c0_i32 : i32, i32
  }
  func.func @transform_4(%arg0: i32, %arg1: i32) -> (i32, i32, i32) {
    %c0_i32 = arith.constant 0 : i32
    %c0_i32_0 = arith.constant 0 : i32
    return %arg0, %arg1, %c0_i32 : i32, i32, i32
  }
}

</mosaic_0001>

<llo_original>
// kernel: tpu_custom_call.1
$region0: #{tpu_custom_call.1}
  #allocation0 [shape = 'u32[]', space=smem, size = 0x4, offset = 0x4, fixed_abs, tag = 'smem constant byte address 0x4 - core index']
  #allocation1 [shape = 'u32[144,128]{1,0:T(1,128)}', space=vmem, size = 0x12000, scoped, tag = 'internal scratch']
  %s0 = inlined_call_operand.hbm [shape: f32[16,768], index: 0, kind: input, shape index: {}]
  %s1 = inlined_call_operand.hbm [shape: bf16[768,3072], index: 1, kind: input, shape index: {}]
  %s2 = inlined_call_operand.hbm [shape: f32[1,3072], index: 2, kind: input, shape index: {}]
  %s3 = inlined_call_operand.hbm [shape: bf16[3072,768], index: 3, kind: input, shape index: {}]
  %s4 = inlined_call_operand.hbm [shape: f32[2,16,768], index: 4, kind: output, shape index: {}]
  %s5 = sld [smem:[#allocation0]]
  $region65: #{tpu_custom_call.1} parent=0
    _
  %s7 = ssub.s32 1, %s5
  %s8 = scalar_select 0, %s7, %s5
  $region1: #{tpu_custom_call.1} parent=0
    #allocation2 [shape = 'u8[49152]{0}', space=vmem, size = 0xc000, scoped, tag = 'input window, operand 0, single buffered']
    #allocation3 [shape = 's32[2]{0}', space=sflag, size = 0x8, scoped, tag = 'scoped memory for tpu_custom_call.1']
    #allocation4 [shape = 's32[2]{0}', space=sflag, size = 0x8, scoped, tag = 'scoped memory for tpu_custom_call.1']
    #allocation5 [shape = 'u8[4718592]{0}', space=vmem, size = 0x480000, scoped, tag = 'input window, operand 1']
    #allocation6 [shape = 's32[2]{0}', space=sflag, size = 0x8, scoped, tag = 'scoped memory for tpu_custom_call.1']
    #allocation7 [shape = 'u8[12288]{0}', space=vmem, size = 0x3000, scoped, tag = 'input window, operand 2']
    #allocation8 [shape = 'u8[4718592]{0}', space=vmem, size = 0x480000, scoped, tag = 'input window, operand 3']
    #allocation9 [shape = 's32[2]{0}', space=sflag, size = 0x8, scoped, tag = 'scoped memory for tpu_custom_call.1']
    #allocation10 [shape = 'u8[98304]{0}', space=vmem, size = 0x18000, scoped, tag = 'output window, operand 0']
    %9 = vsyncpa [#allocation3], 0
    %10 = vsyncpa [#allocation6], 0
    %s11 = scalar_lea.sflag [#allocation6], 1
    %12 = vsyncpa %s11, 0
    %13 = vsyncpa [#allocation9], 0
    %s14 = scalar_lea.sflag [#allocation9], 1
    %15 = vsyncpa %s14, 0
    %16 = vsyncpa [#allocation4], 0
    %s17 = scalar_lea.sflag [#allocation4], 1
    %18 = vsyncpa %s17, 0
    loop: start=0, step=1, limit=4
    $region2: #{tpu_custom_call.1} parent=1 // loop_pre_header
      _
    $region3: #{tpu_custom_call.1} parent=1 // loop_header
      %s20 = sphi 0, %s24
      %p21 = scmp.ge.s32.totalorder %s20, 4
      %s27 = sphi 0, %s39
      %s28 = sphi 0, %s35
      %s29 = sphi 0, %s27
      %s30 = sphi 0, %s28
      %s31 = sphi 0, %s29
      %s32 = sphi 0, %s30
      %s42 = sphi 0, %s44
      %s45 = sphi 0, %s42
      %s46 = sphi 0, %s45
      %s62 = sphi 0, %s46
      %s68 = sphi 0, %s70
      %s71 = sphi 0, %s68
      %s72 = sphi 0, %s71
      %s88 = sphi 0, %s72
      %s94 = sphi 0, %s96
      %s97 = sphi 0, %s94
      %s98 = sphi 0, %s97
      %s114 = sphi 0, %s98
      %s120 = sphi 0, %s122
      %s123 = sphi 0, %s120
      %s124 = sphi 0, %s123
      %s140 = sphi 0, %s124
      %s148 = sphi 0, %s150
      %s151 = sphi 0, %s148
      %s152 = sphi 0, %s151
      %s168 = sphi 0, %s152
    $region4: #{tpu_custom_call.1} parent=1 // loop_header_branch
      %23 = sbr.rel (%p21) target = $region8
    $region5: #{tpu_custom_call.1} parent=1 // loop_body
      %s25 = ssub.s32 %s20, 1
      %s26 = ssub.s32 %s20, 2
      %s33 = sadd.s32 1, %s28
      %p34 = scmp.ge.s32.totalorder %s33, 1
      %s35 = scalar_select %p34, 0, %s33
      %s36 = sadd.s32 1, %s27
      %s37 = scalar_select %p34, %s36, %s27
      %p38 = scmp.ge.s32.totalorder %s37, 2
      %s39 = scalar_select %p38, 0, %s37
      %s40 = ssub.s32 %s28, %s35
      %p41 = scmp.eq.s32.totalorder %s40, 0
      %s43 = sadd.s32 %s42, 1
      %s44 = scalar_select %p41, %s42, %s43
      %p47 = pneg %p41
      %p48 = scmp.eq.s32.totalorder %s20, 1
      %p49 = por %p47, %p48
      %p50 = scmp.ne.s32.totalorder %s42, %s45
      %p51 = scmp.eq.s32.totalorder %s20, 0
      %p52 = por %p50, %p51
      %p53 = scmp.ne.s32.totalorder %s42, %s45
      %p54 = scmp.eq.s32.totalorder %s25, 1
      %p55 = por %p53, %p54
      %p56 = scmp.ne.s32.totalorder %s45, %s46
      %p57 = scmp.eq.s32.totalorder %s25, 0
      %p58 = por %p56, %p57
      %p59 = scmp.ne.s32.totalorder %s45, %s46
      %p60 = scmp.eq.s32.totalorder %s26, 1
      %p61 = por %p59, %p60
      %p63 = scmp.ne.s32.totalorder %s46, %s62
      %p64 = scmp.eq.s32.totalorder %s26, 0
      %p65 = por %p63, %p64
      %s66 = ssub.s32 %s27, %s39
      %p67 = scmp.eq.s32.totalorder %s66, 0
      %s69 = sadd.s32 %s68, 1
      %s70 = scalar_select %p67, %s68, %s69
      %p73 = pneg %p67
      %p74 = scmp.eq.s32.totalorder %s20, 1
      %p75 = por %p73, %p74
      %p76 = scmp.ne.s32.totalorder %s68, %s71
      %p77 = scmp.eq.s32.totalorder %s20, 0
      %p78 = por %p76, %p77
      %p79 = scmp.ne.s32.totalorder %s68, %s71
      %p80 = scmp.eq.s32.totalorder %s25, 1
      %p81 = por %p79, %p80
      %p82 = scmp.ne.s32.totalorder %s71, %s72
      %p83 = scmp.eq.s32.totalorder %s25, 0
      %p84 = por %p82, %p83
      %p85 = scmp.ne.s32.totalorder %s71, %s72
      %p86 = scmp.eq.s32.totalorder %s26, 1
      %p87 = por %p85, %p86
      %p89 = scmp.ne.s32.totalorder %s72, %s88
      %p90 = scmp.eq.s32.totalorder %s26, 0
      %p91 = por %p89, %p90
      %s92 = ssub.s32 %s27, %s39
      %p93 = scmp.eq.s32.totalorder %s92, 0
      %s95 = sadd.s32 %s94, 1
      %s96 = scalar_select %p93, %s94, %s95
      %p99 = pneg %p93
      %p100 = scmp.eq.s32.totalorder %s20, 1
      %p101 = por %p99, %p100
      %p102 = scmp.ne.s32.totalorder %s94, %s97
      %p103 = scmp.eq.s32.totalorder %s20, 0
      %p104 = por %p102, %p103
      %p105 = scmp.ne.s32.totalorder %s94, %s97
      %p106 = scmp.eq.s32.totalorder %s25, 1
      %p107 = por %p105, %p106
      %p108 = scmp.ne.s32.totalorder %s97, %s98
      %p109 = scmp.eq.s32.totalorder %s25, 0
      %p110 = por %p108, %p109
      %p111 = scmp.ne.s32.totalorder %s97, %s98
      %p112 = scmp.eq.s32.totalorder %s26, 1
      %p113 = por %p111, %p112
      %p115 = scmp.ne.s32.totalorder %s98, %s114
      %p116 = scmp.eq.s32.totalorder %s26, 0
      %p117 = por %p115, %p116
      %s118 = ssub.s32 %s27, %s39
      %p119 = scmp.eq.s32.totalorder %s118, 0
      %s121 = sadd.s32 %s120, 1
      %s122 = scalar_select %p119, %s120, %s121
      %p125 = pneg %p119
      %p126 = scmp.eq.s32.totalorder %s20, 1
      %p127 = por %p125, %p126
      %p128 = scmp.ne.s32.totalorder %s120, %s123
      %p129 = scmp.eq.s32.totalorder %s20, 0
      %p130 = por %p128, %p129
      %p131 = scmp.ne.s32.totalorder %s120, %s123
      %p132 = scmp.eq.s32.totalorder %s25, 1
      %p133 = por %p131, %p132
      %p134 = scmp.ne.s32.totalorder %s123, %s124
      %p135 = scmp.eq.s32.totalorder %s25, 0
      %p136 = por %p134, %p135
      %p137 = scmp.ne.s32.totalorder %s123, %s124
      %p138 = scmp.eq.s32.totalorder %s26, 1
      %p139 = por %p137, %p138
      %p141 = scmp.ne.s32.totalorder %s124, %s140
      %p142 = scmp.eq.s32.totalorder %s26, 0
      %p143 = por %p141, %p142
      %s144 = ssub.s32 %s27, %s39
      %s145 = ssub.s32 %s28, %s35
      %s146 = sor.u32 %s144, %s145
      %p147 = scmp.eq.s32.totalorder %s146, 0
      %s149 = sadd.s32 %s148, 1
      %s150 = scalar_select %p147, %s148, %s149
      %p153 = pneg %p147
      %p154 = scmp.eq.s32.totalorder %s20, 1
      %p155 = por %p153, %p154
      %p156 = scmp.ne.s32.totalorder %s148, %s151
      %p157 = scmp.eq.s32.totalorder %s20, 0
      %p158 = por %p156, %p157
      %p159 = scmp.ne.s32.totalorder %s148, %s151
      %p160 = scmp.eq.s32.totalorder %s25, 1
      %p161 = por %p159, %p160
      %p162 = scmp.ne.s32.totalorder %s151, %s152
      %p163 = scmp.eq.s32.totalorder %s25, 0
      %p164 = por %p162, %p163
      %p165 = scmp.ne.s32.totalorder %s151, %s152
      %p166 = scmp.eq.s32.totalorder %s26, 1
      %p167 = por %p165, %p166
      %p169 = scmp.ne.s32.totalorder %s152, %s168
      %p170 = scmp.eq.s32.totalorder %s26, 0
      %p171 = por %p169, %p170
      %p172 = scmp.le.s32.totalorder 1, %s20
      %p173 = scmp.lt.s32.totalorder %s20, 3
      %p174 = pnand %p172, %p173
      %p175 = pneg %p174
      // Predicated region
      $region9: #{tpu_custom_call.1} parent=5 // pred_check
        _
      $region10: #{tpu_custom_call.1} parent=5 // pred_check_branch
        %177 = sbr.rel (%p174) target = $region12
      $region11: #{tpu_custom_call.1} parent=5 // pred_region
        %s178 = ssub.s32 %s20, 1
        // Predicated region
        $region13: #{tpu_custom_call.1} parent=11 // pred_check
          %p179 = pneg %p58
        $region14: #{tpu_custom_call.1} parent=11 // pred_check_branch
          %181 = sbr.rel (%p179) target = $region16
        $region15: #{tpu_custom_call.1} parent=11 // pred_region
          %s182 = smul.u32 2, %s30
          %s184 = ssub.s32 1536, 1536
          %185 = vsyncadd [#allocation3], %s184
          %s186 = smul.addr %s182, 6
          %s187 = smul.addr %s186, 128
          %s188 = scalar_lea.hbm %s0, %s187
          %s189 = sshll.u32 [#allocation2], 4
          %s190 = int_to_ptr.vmem [resolvable:$true] %s189
          %195 = dma.hbm_to_vmem [thread:$0]  %s188, 1536, %s190, [#allocation3], 768, 768, 48
        $region16: #{tpu_custom_call.1} parent=11 // pred_fallthru
          _
      $region12: #{tpu_custom_call.1} parent=5 // pred_fallthru
        _
      %p196 = scmp.lt.s32.totalorder %s20, 2
      // Predicated region
      $region17: #{tpu_custom_call.1} parent=5 // pred_check
        %p197 = pneg %p196
      $region18: #{tpu_custom_call.1} parent=5 // pred_check_branch
        %199 = sbr.rel (%p197) target = $region20
      $region19: #{tpu_custom_call.1} parent=5 // pred_region
        // Predicated region
        $region21: #{tpu_custom_call.1} parent=19 // pred_check
          %p200 = pneg %p78
        $region22: #{tpu_custom_call.1} parent=19 // pred_check_branch
          %202 = sbr.rel (%p200) target = $region24
        $region23: #{tpu_custom_call.1} parent=19 // pred_region
          %s203 = sand.u32 %s20, 1
          %s204 = scalar_lea.sflag [#allocation6], %s203
          %s205 = sand.u32 %s68, 1
          %s206 = smul.addr %s205, 4608
          %s207 = scalar_lea.vmem [#allocation5], %s206
          %s208 = smul.u32 12, %s27
          %s210 = ssub.s32 73728, 73728
          %211 = vsyncadd %s204, %s210
          %s212 = smul.addr %s208, 64
          %s213 = scalar_lea.hbm %s1, %s212
          %s214 = sshll.u32 %s207, 4
          %s215 = int_to_ptr.vmem [resolvable:$true] %s214
          %220 = dma.hbm_to_vmem [thread:$0]  %s213, 73728, %s215, %s204, 1536, 768, 48
        $region24: #{tpu_custom_call.1} parent=19 // pred_fallthru
          _
        // Predicated region
        $region25: #{tpu_custom_call.1} parent=19 // pred_check
          %p221 = pneg %p104
        $region26: #{tpu_custom_call.1} parent=19 // pred_check_branch
          %223 = sbr.rel (%p221) target = $region28
        $region27: #{tpu_custom_call.1} parent=19 // pred_region
          %s224 = sand.u32 %s20, 1
          %s225 = scalar_lea.sflag [#allocation6], %s224
          %s226 = sand.u32 %s94, 1
          %s227 = smul.addr %s226, 12
          %s228 = scalar_lea.vmem [#allocation7], %s227
          %s229 = smul.u32 12, %s27
          %s231 = ssub.s32 192, 192
          %232 = vsyncadd %s225, %s231
          %s233 = smul.addr %s229, 16
          %s234 = scalar_lea.hbm %s2, %s233
          %s236 = sshll.u32 %s228, 4
          %s237 = int_to_ptr.vmem [resolvable:$true] %s236
          %239 = dma.hbm_to_vmem [thread:$0]  %s234, 192, %s237, %s225
        $region28: #{tpu_custom_call.1} parent=19 // pred_fallthru
          _
        // Predicated region
        $region29: #{tpu_custom_call.1} parent=19 // pred_check
          %p240 = pneg %p130
        $region30: #{tpu_custom_call.1} parent=19 // pred_check_branch
          %242 = sbr.rel (%p240) target = $region32
        $region31: #{tpu_custom_call.1} parent=19 // pred_region
          %s243 = sand.u32 %s120, 1
          %s244 = scalar_lea.sflag [#allocation9], %s243
          %s245 = sand.u32 %s120, 1
          %s246 = smul.addr %s245, 4608
          %s247 = scalar_lea.vmem [#allocation8], %s246
          %s248 = smul.u32 192, %s27
          %s250 = ssub.s32 73728, 73728
          %251 = vsyncadd %s244, %s250
          %s252 = smul.addr %s248, 6
          %s253 = smul.addr %s252, 64
          %s254 = scalar_lea.hbm %s3, %s253
          %s255 = sshll.u32 %s247, 4
          %s256 = int_to_ptr.vmem [resolvable:$true] %s255
          %261 = dma.hbm_to_vmem [thread:$0]  %s254, 73728, %s256, %s244, 384, 384, 24
        $region32: #{tpu_custom_call.1} parent=19 // pred_fallthru
          _
      $region20: #{tpu_custom_call.1} parent=5 // pred_fallthru
        _
      %p262 = scmp.le.s32.totalorder 1, %s20
      %p263 = scmp.lt.s32.totalorder %s20, 3
      %p264 = pnand %p262, %p263
      %p265 = pneg %p264
      // Predicated region
      $region33: #{tpu_custom_call.1} parent=5 // pred_check
        _
      $region34: #{tpu_custom_call.1} parent=5 // pred_check_branch
        %267 = sbr.rel (%p264) target = $region36
      $region35: #{tpu_custom_call.1} parent=5 // pred_region
        %s268 = ssub.s32 %s20, 1
        // Predicated region
        $region37: #{tpu_custom_call.1} parent=35 // pred_check
          %p269 = pneg %p58
        $region38: #{tpu_custom_call.1} parent=35 // pred_check_branch
          %271 = sbr.rel (%p269) target = $region40
        $region39: #{tpu_custom_call.1} parent=35 // pred_region
          %272 = dma.done [#allocation3], 1536
        $region40: #{tpu_custom_call.1} parent=35 // pred_fallthru
          _
        %s273 = sand.u32 %s25, 1
        %s274 = scalar_lea.sflag [#allocation6], %s273
        %s275 = sand.u32 %s71, 1
        %s276 = smul.addr %s275, 4608
        %s277 = scalar_lea.vmem [#allocation5], %s276
        // Predicated region
        $region41: #{tpu_custom_call.1} parent=35 // pred_check
          %p278 = pneg %p84
        $region42: #{tpu_custom_call.1} parent=35 // pred_check_branch
          %280 = sbr.rel (%p278) target = $region44
        $region43: #{tpu_custom_call.1} parent=35 // pred_region
          %281 = dma.done %s274, 73728
        $region44: #{tpu_custom_call.1} parent=35 // pred_fallthru
          _
        %s282 = sand.u32 %s25, 1
        %s283 = scalar_lea.sflag [#allocation6], %s282
        %s284 = sand.u32 %s97, 1
        %s285 = smul.addr %s284, 12
        %s286 = scalar_lea.vmem [#allocation7], %s285
        // Predicated region
        $region45: #{tpu_custom_call.1} parent=35 // pred_check
          %p287 = pneg %p110
        $region46: #{tpu_custom_call.1} parent=35 // pred_check_branch
          %289 = sbr.rel (%p287) target = $region48
        $region47: #{tpu_custom_call.1} parent=35 // pred_region
          %290 = dma.done %s283, 192
        $region48: #{tpu_custom_call.1} parent=35 // pred_fallthru
          _
        %s291 = sand.u32 %s123, 1
        %s292 = scalar_lea.sflag [#allocation9], %s291
        %s293 = sand.u32 %s123, 1
        %s294 = smul.addr %s293, 4608
        %s295 = scalar_lea.vmem [#allocation8], %s294
        // Predicated region
        $region49: #{tpu_custom_call.1} parent=35 // pred_check
          %p296 = pneg %p136
        $region50: #{tpu_custom_call.1} parent=35 // pred_check_branch
          %298 = sbr.rel (%p296) target = $region52
        $region51: #{tpu_custom_call.1} parent=35 // pred_region
          %299 = dma.done %s292, 73728
        $region52: #{tpu_custom_call.1} parent=35 // pred_fallthru
          _
        %p300 = pneg %p58
        %p301 = pneg %p55
        %s302 = sand.u32 %s25, 1
        %s303 = scalar_lea.sflag [#allocation6], %s302
        %s304 = sand.u32 %s71, 1
        %s305 = smul.addr %s304, 4608
        %s306 = scalar_lea.vmem [#allocation5], %s305
        %p307 = pneg %p84
        %p308 = pneg %p81
        %s309 = sand.u32 %s25, 1
        %s310 = scalar_lea.sflag [#allocation6], %s309
        %s311 = sand.u32 %s97, 1
        %s312 = smul.addr %s311, 12
        %s313 = scalar_lea.vmem [#allocation7], %s312
        %p314 = pneg %p110
        %p315 = pneg %p107
        %s316 = sand.u32 %s123, 1
        %s317 = scalar_lea.sflag [#allocation9], %s316
        %s318 = sand.u32 %s123, 1
        %s319 = smul.addr %s318, 4608
        %s320 = scalar_lea.vmem [#allocation8], %s319
        %p321 = pneg %p136
        %p322 = pneg %p133
        %p323 = pneg %p164
        %p324 = pneg %p161
        %s325 = sand.u32 %s151, 1
        %s326 = scalar_lea.sflag [#allocation4], %s325
        %s327 = sand.u32 %s151, 1
        %s328 = smul.addr %s327, 96
        %s329 = scalar_lea.vmem [#allocation10], %s328
        %s330 = smul.u32 2, %s30
        %s331 = smul.u32 12, %s29
        %s332 = smul.u32 12, %s29
        %s333 = smul.u32 192, %s29
        %s334 = smul.u32 2, %s30
        %v335 = vld [vmem:[#allocation2] sm:$0xff]
        %v336 = vld [vmem:[#allocation2 + $0x8] sm:$0xff]
        %v337 = vld [vmem:[#allocation2 + $0x10] sm:$0xff]
        %v338 = vld [vmem:[#allocation2 + $0x18] sm:$0xff]
        %v339 = vld [vmem:[#allocation2 + $0x20] sm:$0xff]
        %v340 = vld [vmem:[#allocation2 + $0x28] sm:$0xff]
        %v341 = vld [vmem:[#allocation2 + $0x30] sm:$0xff]
        %v342 = vld [vmem:[#allocation2 + $0x38] sm:$0xff]
        %v343 = vld [vmem:[#allocation2 + $0x40] sm:$0xff]
        %v344 = vld [vmem:[#allocation2 + $0x48] sm:$0xff]
        %v345 = vld [vmem:[#allocation2 + $0x50] sm:$0xff]
        %v346 = vld [vmem:[#allocation2 + $0x58] sm:$0xff]
        %v347 = vpack.c.bf16 %v341, %v335
        %v348 = vpack.c.bf16 %v342, %v336
        %v349 = vpack.c.bf16 %v343, %v337
        %v350 = vpack.c.bf16 %v344, %v338
        %v351 = vpack.c.bf16 %v345, %v339
        %v352 = vpack.c.bf16 %v346, %v340
        %v353 = vld [vmem:[%s277] sm:$0xff]
        %v354 = vld [vmem:[%s277 + $0x8] sm:$0xff]
        %v355 = vld [vmem:[%s277 + $0x10] sm:$0xff]
        %v356 = vld [vmem:[%s277 + $0x18] sm:$0xff]
        %v357 = vld [vmem:[%s277 + $0x20] sm:$0xff]
        %v358 = vld [vmem:[%s277 + $0x28] sm:$0xff]
        %v359 = vld [vmem:[%s277 + $0x30] sm:$0xff]
        %v360 = vld [vmem:[%s277 + $0x38] sm:$0xff]
        %v361 = vld [vmem:[%s277 + $0x40] sm:$0xff]
        %v362 = vld [vmem:[%s277 + $0x48] sm:$0xff]
        %v363 = vld [vmem:[%s277 + $0x50] sm:$0xff]
        %v364 = vld [vmem:[%s277 + $0x58] sm:$0xff]
        %v365 = vld [vmem:[%s277 + $0x60] sm:$0xff]
        %v366 = vld [vmem:[%s277 + $0x68] sm:$0xff]
        %v367 = vld [vmem:[%s277 + $0x70] sm:$0xff]
        %v368 = vld [vmem:[%s277 + $0x78] sm:$0xff]
        %v369 = vld [vmem:[%s277 + $0x80] sm:$0xff]
        %v370 = vld [vmem:[%s277 + $0x88] sm:$0xff]
        %v371 = vld [vmem:[%s277 + $0x90] sm:$0xff]
        %v372 = vld [vmem:[%s277 + $0x98] sm:$0xff]
        %v373 = vld [vmem:[%s277 + $0xa0] sm:$0xff]
        %v374 = vld [vmem:[%s277 + $0xa8] sm:$0xff]
        %v375 = vld [vmem:[%s277 + $0xb0] sm:$0xff]
        %v376 = vld [vmem:[%s277 + $0xb8] sm:$0xff]
        %v377 = vld [vmem:[%s277 + $0xc0] sm:$0xff]
        %v378 = vld [vmem:[%s277 + $0xc8] sm:$0xff]
        %v379 = vld [vmem:[%s277 + $0xd0] sm:$0xff]
        %v380 = vld [vmem:[%s277 + $0xd8] sm:$0xff]
        %v381 = vld [vmem:[%s277 + $0xe0] sm:$0xff]
        %v382 = vld [vmem:[%s277 + $0xe8] sm:$0xff]
        %v383 = vld [vmem:[%s277 + $0xf0] sm:$0xff]
        %v384 = vld [vmem:[%s277 + $0xf8] sm:$0xff]
        %v385 = vld [vmem:[%s277 + $0x100] sm:$0xff]
        %v386 = vld [vmem:[%s277 + $0x108] sm:$0xff]
        %v387 = vld [vmem:[%s277 + $0x110] sm:$0xff]
        %v388 = vld [vmem:[%s277 + $0x118] sm:$0xff]
        %v389 = vld [vmem:[%s277 + $0x120] sm:$0xff]
        %v390 = vld [vmem:[%s277 + $0x128] sm:$0xff]
        %v391 = vld [vmem:[%s277 + $0x130] sm:$0xff]
        %v392 = vld [vmem:[%s277 + $0x138] sm:$0xff]
        %v393 = vld [vmem:[%s277 + $0x140] sm:$0xff]
        %v394 = vld [vmem:[%s277 + $0x148] sm:$0xff]
        %v395 = vld [vmem:[%s277 + $0x150] sm:$0xff]
        %v396 = vld [vmem:[%s277 + $0x158] sm:$0xff]
        %v397 = vld [vmem:[%s277 + $0x160] sm:$0xff]
        %v398 = vld [vmem:[%s277 + $0x168] sm:$0xff]
        %v399 = vld [vmem:[%s277 + $0x170] sm:$0xff]
        %v400 = vld [vmem:[%s277 + $0x178] sm:$0xff]
        %v401 = vld [vmem:[%s277 + $0x180] sm:$0xff]
        %v402 = vld [vmem:[%s277 + $0x188] sm:$0xff]
        %v403 = vld [vmem:[%s277 + $0x190] sm:$0xff]
        %v404 = vld [vmem:[%s277 + $0x198] sm:$0xff]
        %v405 = vld [vmem:[%s277 + $0x1a0] sm:$0xff]
        %v406 = vld [vmem:[%s277 + $0x1a8] sm:$0xff]
        %v407 = vld [vmem:[%s277 + $0x1b0] sm:$0xff]
        %v408 = vld [vmem:[%s277 + $0x1b8] sm:$0xff]
        %v409 = vld [vmem:[%s277 + $0x1c0] sm:$0xff]
        %v410 = vld [vmem:[%s277 + $0x1c8] sm:$0xff]
        %v411 = vld [vmem:[%s277 + $0x1d0] sm:$0xff]
        %v412 = vld [vmem:[%s277 + $0x1d8] sm:$0xff]
        %v413 = vld [vmem:[%s277 + $0x1e0] sm:$0xff]
        %v414 = vld [vmem:[%s277 + $0x1e8] sm:$0xff]
        %v415 = vld [vmem:[%s277 + $0x1f0] sm:$0xff]
        %v416 = vld [vmem:[%s277 + $0x1f8] sm:$0xff]
        %v417 = vld [vmem:[%s277 + $0x200] sm:$0xff]
        %v418 = vld [vmem:[%s277 + $0x208] sm:$0xff]
        %v419 = vld [vmem:[%s277 + $0x210] sm:$0xff]
        %v420 = vld [vmem:[%s277 + $0x218] sm:$0xff]
        %v421 = vld [vmem:[%s277 + $0x220] sm:$0xff]
        %v422 = vld [vmem:[%s277 + $0x228] sm:$0xff]
        %v423 = vld [vmem:[%s277 + $0x230] sm:$0xff]
        %v424 = vld [vmem:[%s277 + $0x238] sm:$0xff]
        %v425 = vld [vmem:[%s277 + $0x240] sm:$0xff]
        %v426 = vld [vmem:[%s277 + $0x248] sm:$0xff]
        %v427 = vld [vmem:[%s277 + $0x250] sm:$0xff]
        %v428 = vld [vmem:[%s277 + $0x258] sm:$0xff]
        %v429 = vld [vmem:[%s277 + $0x260] sm:$0xff]
        %v430 = vld [vmem:[%s277 + $0x268] sm:$0xff]
        %v431 = vld [vmem:[%s277 + $0x270] sm:$0xff]
        %v432 = vld [vmem:[%s277 + $0x278] sm:$0xff]
        %v433 = vld [vmem:[%s277 + $0x280] sm:$0xff]
        %v434 = vld [vmem:[%s277 + $0x288] sm:$0xff]
        %v435 = vld [vmem:[%s277 + $0x290] sm:$0xff]
        %v436 = vld [vmem:[%s277 + $0x298] sm:$0xff]
        %v437 = vld [vmem:[%s277 + $0x2a0] sm:$0xff]
        %v438 = vld [vmem:[%s277 + $0x2a8] sm:$0xff]
        %v439 = vld [vmem:[%s277 + $0x2b0] sm:$0xff]
        %v440 = vld [vmem:[%s277 + $0x2b8] sm:$0xff]
        %v441 = vld [vmem:[%s277 + $0x2c0] sm:$0xff]
        %v442 = vld [vmem:[%s277 + $0x2c8] sm:$0xff]
        %v443 = vld [vmem:[%s277 + $0x2d0] sm:$0xff]
        %v444 = vld [vmem:[%s277 + $0x2d8] sm:$0xff]
        %v445 = vld [vmem:[%s277 + $0x2e0] sm:$0xff]
        %v446 = vld [vmem:[%s277 + $0x2e8] sm:$0xff]
        %v447 = vld [vmem:[%s277 + $0x2f0] sm:$0xff]
        %v448 = vld [vmem:[%s277 + $0x2f8] sm:$0xff]
        %v449 = vld [vmem:[%s277 + $0x300] sm:$0xff]
        %v450 = vld [vmem:[%s277 + $0x308] sm:$0xff]
        %v451 = vld [vmem:[%s277 + $0x310] sm:$0xff]
        %v452 = vld [vmem:[%s277 + $0x318] sm:$0xff]
        %v453 = vld [vmem:[%s277 + $0x320] sm:$0xff]
        %v454 = vld [vmem:[%s277 + $0x328] sm:$0xff]
        %v455 = vld [vmem:[%s277 + $0x330] sm:$0xff]
        %v456 = vld [vmem:[%s277 + $0x338] sm:$0xff]
        %v457 = vld [vmem:[%s277 + $0x340] sm:$0xff]
        %v458 = vld [vmem:[%s277 + $0x348] sm:$0xff]
        %v459 = vld [vmem:[%s277 + $0x350] sm:$0xff]
        %v460 = vld [vmem:[%s277 + $0x358] sm:$0xff]
        %v461 = vld [vmem:[%s277 + $0x360] sm:$0xff]
        %v462 = vld [vmem:[%s277 + $0x368] sm:$0xff]
        %v463 = vld [vmem:[%s277 + $0x370] sm:$0xff]
        %v464 = vld [vmem:[%s277 + $0x378] sm:$0xff]
        %v465 = vld [vmem:[%s277 + $0x380] sm:$0xff]
        %v466 = vld [vmem:[%s277 + $0x388] sm:$0xff]
        %v467 = vld [vmem:[%s277 + $0x390] sm:$0xff]
        %v468 = vld [vmem:[%s277 + $0x398] sm:$0xff]
        %v469 = vld [vmem:[%s277 + $0x3a0] sm:$0xff]
        %v470 = vld [vmem:[%s277 + $0x3a8] sm:$0xff]
        %v471 = vld [vmem:[%s277 + $0x3b0] sm:$0xff]
        %v472 = vld [vmem:[%s277 + $0x3b8] sm:$0xff]
        %v473 = vld [vmem:[%s277 + $0x3c0] sm:$0xff]
        %v474 = vld [vmem:[%s277 + $0x3c8] sm:$0xff]
        %v475 = vld [vmem:[%s277 + $0x3d0] sm:$0xff]
        %v476 = vld [vmem:[%s277 + $0x3d8] sm:$0xff]
        %v477 = vld [vmem:[%s277 + $0x3e0] sm:$0xff]
        %v478 = vld [vmem:[%s277 + $0x3e8] sm:$0xff]
        %v479 = vld [vmem:[%s277 + $0x3f0] sm:$0xff]
        %v480 = vld [vmem:[%s277 + $0x3f8] sm:$0xff]
        %v481 = vld [vmem:[%s277 + $0x400] sm:$0xff]
        %v482 = vld [vmem:[%s277 + $0x408] sm:$0xff]
        %v483 = vld [vmem:[%s277 + $0x410] sm:$0xff]
        %v484 = vld [vmem:[%s277 + $0x418] sm:$0xff]
        %v485 = vld [vmem:[%s277 + $0x420] sm:$0xff]
        %v486 = vld [vmem:[%s277 + $0x428] sm:$0xff]
        %v487 = vld [vmem:[%s277 + $0x430] sm:$0xff]
        %v488 = vld [vmem:[%s277 + $0x438] sm:$0xff]
        %v489 = vld [vmem:[%s277 + $0x440] sm:$0xff]
        %v490 = vld [vmem:[%s277 + $0x448] sm:$0xff]
        %v491 = vld [vmem:[%s277 + $0x450] sm:$0xff]
        %v492 = vld [vmem:[%s277 + $0x458] sm:$0xff]
        %v493 = vld [vmem:[%s277 + $0x460] sm:$0xff]
        %v494 = vld [vmem:[%s277 + $0x468] sm:$0xff]
        %v495 = vld [vmem:[%s277 + $0x470] sm:$0xff]
        %v496 = vld [vmem:[%s277 + $0x478] sm:$0xff]
        %v497 = vld [vmem:[%s277 + $0x480] sm:$0xff]
        %v498 = vld [vmem:[%s277 + $0x488] sm:$0xff]
        %v499 = vld [vmem:[%s277 + $0x490] sm:$0xff]
        %v500 = vld [vmem:[%s277 + $0x498] sm:$0xff]
        %v501 = vld [vmem:[%s277 + $0x4a0] sm:$0xff]
        %v502 = vld [vmem:[%s277 + $0x4a8] sm:$0xff]
        %v503 = vld [vmem:[%s277 + $0x4b0] sm:$0xff]
        %v504 = vld [vmem:[%s277 + $0x4b8] sm:$0xff]
        %v505 = vld [vmem:[%s277 + $0x4c0] sm:$0xff]
        %v506 = vld [vmem:[%s277 + $0x4c8] sm:$0xff]
        %v507 = vld [vmem:[%s277 + $0x4d0] sm:$0xff]
        %v508 = vld [vmem:[%s277 + $0x4d8] sm:$0xff]
        %v509 = vld [vmem:[%s277 + $0x4e0] sm:$0xff]
        %v510 = vld [vmem:[%s277 + $0x4e8] sm:$0xff]
        %v511 = vld [vmem:[%s277 + $0x4f0] sm:$0xff]
        %v512 = vld [vmem:[%s277 + $0x4f8] sm:$0xff]
        %v513 = vld [vmem:[%s277 + $0x500] sm:$0xff]
        %v514 = vld [vmem:[%s277 + $0x508] sm:$0xff]
        %v515 = vld [vmem:[%s277 + $0x510] sm:$0xff]
        %v516 = vld [vmem:[%s277 + $0x518] sm:$0xff]
        %v517 = vld [vmem:[%s277 + $0x520] sm:$0xff]
        %v518 = vld [vmem:[%s277 + $0x528] sm:$0xff]
        %v519 = vld [vmem:[%s277 + $0x530] sm:$0xff]
        %v520 = vld [vmem:[%s277 + $0x538] sm:$0xff]
        %v521 = vld [vmem:[%s277 + $0x540] sm:$0xff]
        %v522 = vld [vmem:[%s277 + $0x548] sm:$0xff]
        %v523 = vld [vmem:[%s277 + $0x550] sm:$0xff]
        %v524 = vld [vmem:[%s277 + $0x558] sm:$0xff]
        %v525 = vld [vmem:[%s277 + $0x560] sm:$0xff]
        %v526 = vld [vmem:[%s277 + $0x568] sm:$0xff]
        %v527 = vld [vmem:[%s277 + $0x570] sm:$0xff]
        %v528 = vld [vmem:[%s277 + $0x578] sm:$0xff]
        %v529 = vld [vmem:[%s277 + $0x580] sm:$0xff]
        %v530 = vld [vmem:[%s277 + $0x588] sm:$0xff]
        %v531 = vld [vmem:[%s277 + $0x590] sm:$0xff]
        %v532 = vld [vmem:[%s277 + $0x598] sm:$0xff]
        %v533 = vld [vmem:[%s277 + $0x5a0] sm:$0xff]
        %v534 = vld [vmem:[%s277 + $0x5a8] sm:$0xff]
        %v535 = vld [vmem:[%s277 + $0x5b0] sm:$0xff]
        %v536 = vld [vmem:[%s277 + $0x5b8] sm:$0xff]
        %v537 = vld [vmem:[%s277 + $0x5c0] sm:$0xff]
        %v538 = vld [vmem:[%s277 + $0x5c8] sm:$0xff]
        %v539 = vld [vmem:[%s277 + $0x5d0] sm:$0xff]
        %v540 = vld [vmem:[%s277 + $0x5d8] sm:$0xff]
        %v541 = vld [vmem:[%s277 + $0x5e0] sm:$0xff]
        %v542 = vld [vmem:[%s277 + $0x5e8] sm:$0xff]
        %v543 = vld [vmem:[%s277 + $0x5f0] sm:$0xff]
        %v544 = vld [vmem:[%s277 + $0x5f8] sm:$0xff]
        %v545 = vld [vmem:[%s277 + $0x600] sm:$0xff]
        %v546 = vld [vmem:[%s277 + $0x608] sm:$0xff]
        %v547 = vld [vmem:[%s277 + $0x610] sm:$0xff]
        %v548 = vld [vmem:[%s277 + $0x618] sm:$0xff]
        %v549 = vld [vmem:[%s277 + $0x620] sm:$0xff]
        %v550 = vld [vmem:[%s277 + $0x628] sm:$0xff]
        %v551 = vld [vmem:[%s277 + $0x630] sm:$0xff]
        %v552 = vld [vmem:[%s277 + $0x638] sm:$0xff]
        %v553 = vld [vmem:[%s277 + $0x640] sm:$0xff]
        %v554 = vld [vmem:[%s277 + $0x648] sm:$0xff]
        %v555 = vld [vmem:[%s277 + $0x650] sm:$0xff]
        %v556 = vld [vmem:[%s277 + $0x658] sm:$0xff]
        %v557 = vld [vmem:[%s277 + $0x660] sm:$0xff]
        %v558 = vld [vmem:[%s277 + $0x668] sm:$0xff]
        %v559 = vld [vmem:[%s277 + $0x670] sm:$0xff]
        %v560 = vld [vmem:[%s277 + $0x678] sm:$0xff]
        %v561 = vld [vmem:[%s277 + $0x680] sm:$0xff]
        %v562 = vld [vmem:[%s277 + $0x688] sm:$0xff]
        %v563 = vld [vmem:[%s277 + $0x690] sm:$0xff]
        %v564 = vld [vmem:[%s277 + $0x698] sm:$0xff]
        %v565 = vld [vmem:[%s277 + $0x6a0] sm:$0xff]
        %v566 = vld [vmem:[%s277 + $0x6a8] sm:$0xff]
        %v567 = vld [vmem:[%s277 + $0x6b0] sm:$0xff]
        %v568 = vld [vmem:[%s277 + $0x6b8] sm:$0xff]
        %v569 = vld [vmem:[%s277 + $0x6c0] sm:$0xff]
        %v570 = vld [vmem:[%s277 + $0x6c8] sm:$0xff]
        %v571 = vld [vmem:[%s277 + $0x6d0] sm:$0xff]
        %v572 = vld [vmem:[%s277 + $0x6d8] sm:$0xff]
        %v573 = vld [vmem:[%s277 + $0x6e0] sm:$0xff]
        %v574 = vld [vmem:[%s277 + $0x6e8] sm:$0xff]
        %v575 = vld [vmem:[%s277 + $0x6f0] sm:$0xff]
        %v576 = vld [vmem:[%s277 + $0x6f8] sm:$0xff]
        %v577 = vld [vmem:[%s277 + $0x700] sm:$0xff]
        %v578 = vld [vmem:[%s277 + $0x708] sm:$0xff]
        %v579 = vld [vmem:[%s277 + $0x710] sm:$0xff]
        %v580 = vld [vmem:[%s277 + $0x718] sm:$0xff]
        %v581 = vld [vmem:[%s277 + $0x720] sm:$0xff]
        %v582 = vld [vmem:[%s277 + $0x728] sm:$0xff]
        %v583 = vld [vmem:[%s277 + $0x730] sm:$0xff]
        %v584 = vld [vmem:[%s277 + $0x738] sm:$0xff]
        %v585 = vld [vmem:[%s277 + $0x740] sm:$0xff]
        %v586 = vld [vmem:[%s277 + $0x748] sm:$0xff]
        %v587 = vld [vmem:[%s277 + $0x750] sm:$0xff]
        %v588 = vld [vmem:[%s277 + $0x758] sm:$0xff]
        %v589 = vld [vmem:[%s277 + $0x760] sm:$0xff]
        %v590 = vld [vmem:[%s277 + $0x768] sm:$0xff]
        %v591 = vld [vmem:[%s277 + $0x770] sm:$0xff]
        %v592 = vld [vmem:[%s277 + $0x778] sm:$0xff]
        %v593 = vld [vmem:[%s277 + $0x780] sm:$0xff]
        %v594 = vld [vmem:[%s277 + $0x788] sm:$0xff]
        %v595 = vld [vmem:[%s277 + $0x790] sm:$0xff]
        %v596 = vld [vmem:[%s277 + $0x798] sm:$0xff]
        %v597 = vld [vmem:[%s277 + $0x7a0] sm:$0xff]
        %v598 = vld [vmem:[%s277 + $0x7a8] sm:$0xff]
        %v599 = vld [vmem:[%s277 + $0x7b0] sm:$0xff]
        %v600 = vld [vmem:[%s277 + $0x7b8] sm:$0xff]
        %v601 = vld [vmem:[%s277 + $0x7c0] sm:$0xff]
        %v602 = vld [vmem:[%s277 + $0x7c8] sm:$0xff]
        %v603 = vld [vmem:[%s277 + $0x7d0] sm:$0xff]
        %v604 = vld [vmem:[%s277 + $0x7d8] sm:$0xff]
        %v605 = vld [vmem:[%s277 + $0x7e0] sm:$0xff]
        %v606 = vld [vmem:[%s277 + $0x7e8] sm:$0xff]
        %v607 = vld [vmem:[%s277 + $0x7f0] sm:$0xff]
        %v608 = vld [vmem:[%s277 + $0x7f8] sm:$0xff]
        %v609 = vld [vmem:[%s277 + $0x800] sm:$0xff]
        %v610 = vld [vmem:[%s277 + $0x808] sm:$0xff]
        %v611 = vld [vmem:[%s277 + $0x810] sm:$0xff]
        %v612 = vld [vmem:[%s277 + $0x818] sm:$0xff]
        %v613 = vld [vmem:[%s277 + $0x820] sm:$0xff]
        %v614 = vld [vmem:[%s277 + $0x828] sm:$0xff]
        %v615 = vld [vmem:[%s277 + $0x830] sm:$0xff]
        %v616 = vld [vmem:[%s277 + $0x838] sm:$0xff]
        %v617 = vld [vmem:[%s277 + $0x840] sm:$0xff]
        %v618 = vld [vmem:[%s277 + $0x848] sm:$0xff]
        %v619 = vld [vmem:[%s277 + $0x850] sm:$0xff]
        %v620 = vld [vmem:[%s277 + $0x858] sm:$0xff]
        %v621 = vld [vmem:[%s277 + $0x860] sm:$0xff]
        %v622 = vld [vmem:[%s277 + $0x868] sm:$0xff]
        %v623 = vld [vmem:[%s277 + $0x870] sm:$0xff]
        %v624 = vld [vmem:[%s277 + $0x878] sm:$0xff]
        %v625 = vld [vmem:[%s277 + $0x880] sm:$0xff]
        %v626 = vld [vmem:[%s277 + $0x888] sm:$0xff]
        %v627 = vld [vmem:[%s277 + $0x890] sm:$0xff]
        %v628 = vld [vmem:[%s277 + $0x898] sm:$0xff]
        %v629 = vld [vmem:[%s277 + $0x8a0] sm:$0xff]
        %v630 = vld [vmem:[%s277 + $0x8a8] sm:$0xff]
        %v631 = vld [vmem:[%s277 + $0x8b0] sm:$0xff]
        %v632 = vld [vmem:[%s277 + $0x8b8] sm:$0xff]
        %v633 = vld [vmem:[%s277 + $0x8c0] sm:$0xff]
        %v634 = vld [vmem:[%s277 + $0x8c8] sm:$0xff]
        %v635 = vld [vmem:[%s277 + $0x8d0] sm:$0xff]
        %v636 = vld [vmem:[%s277 + $0x8d8] sm:$0xff]
        %v637 = vld [vmem:[%s277 + $0x8e0] sm:$0xff]
        %v638 = vld [vmem:[%s277 + $0x8e8] sm:$0xff]
        %v639 = vld [vmem:[%s277 + $0x8f0] sm:$0xff]
        %v640 = vld [vmem:[%s277 + $0x8f8] sm:$0xff]
        %v641 = vld [vmem:[%s277 + $0x900] sm:$0xff]
        %v642 = vld [vmem:[%s277 + $0x908] sm:$0xff]
        %v643 = vld [vmem:[%s277 + $0x910] sm:$0xff]
        %v644 = vld [vmem:[%s277 + $0x918] sm:$0xff]
        %v645 = vld [vmem:[%s277 + $0x920] sm:$0xff]
        %v646 = vld [vmem:[%s277 + $0x928] sm:$0xff]
        %v647 = vld [vmem:[%s277 + $0x930] sm:$0xff]
        %v648 = vld [vmem:[%s277 + $0x938] sm:$0xff]
        %v649 = vld [vmem:[%s277 + $0x940] sm:$0xff]
        %v650 = vld [vmem:[%s277 + $0x948] sm:$0xff]
        %v651 = vld [vmem:[%s277 + $0x950] sm:$0xff]
        %v652 = vld [vmem:[%s277 + $0x958] sm:$0xff]
        %v653 = vld [vmem:[%s277 + $0x960] sm:$0xff]
        %v654 = vld [vmem:[%s277 + $0x968] sm:$0xff]
        %v655 = vld [vmem:[%s277 + $0x970] sm:$0xff]
        %v656 = vld [vmem:[%s277 + $0x978] sm:$0xff]
        %v657 = vld [vmem:[%s277 + $0x980] sm:$0xff]
        %v658 = vld [vmem:[%s277 + $0x988] sm:$0xff]
        %v659 = vld [vmem:[%s277 + $0x990] sm:$0xff]
        %v660 = vld [vmem:[%s277 + $0x998] sm:$0xff]
        %v661 = vld [vmem:[%s277 + $0x9a0] sm:$0xff]
        %v662 = vld [vmem:[%s277 + $0x9a8] sm:$0xff]
        %v663 = vld [vmem:[%s277 + $0x9b0] sm:$0xff]
        %v664 = vld [vmem:[%s277 + $0x9b8] sm:$0xff]
        %v665 = vld [vmem:[%s277 + $0x9c0] sm:$0xff]
        %v666 = vld [vmem:[%s277 + $0x9c8] sm:$0xff]
        %v667 = vld [vmem:[%s277 + $0x9d0] sm:$0xff]
        %v668 = vld [vmem:[%s277 + $0x9d8] sm:$0xff]
        %v669 = vld [vmem:[%s277 + $0x9e0] sm:$0xff]
        %v670 = vld [vmem:[%s277 + $0x9e8] sm:$0xff]
        %v671 = vld [vmem:[%s277 + $0x9f0] sm:$0xff]
        %v672 = vld [vmem:[%s277 + $0x9f8] sm:$0xff]
        %v673 = vld [vmem:[%s277 + $0xa00] sm:$0xff]
        %v674 = vld [vmem:[%s277 + $0xa08] sm:$0xff]
        %v675 = vld [vmem:[%s277 + $0xa10] sm:$0xff]
        %v676 = vld [vmem:[%s277 + $0xa18] sm:$0xff]
        %v677 = vld [vmem:[%s277 + $0xa20] sm:$0xff]
        %v678 = vld [vmem:[%s277 + $0xa28] sm:$0xff]
        %v679 = vld [vmem:[%s277 + $0xa30] sm:$0xff]
        %v680 = vld [vmem:[%s277 + $0xa38] sm:$0xff]
        %v681 = vld [vmem:[%s277 + $0xa40] sm:$0xff]
        %v682 = vld [vmem:[%s277 + $0xa48] sm:$0xff]
        %v683 = vld [vmem:[%s277 + $0xa50] sm:$0xff]
        %v684 = vld [vmem:[%s277 + $0xa58] sm:$0xff]
        %v685 = vld [vmem:[%s277 + $0xa60] sm:$0xff]
        %v686 = vld [vmem:[%s277 + $0xa68] sm:$0xff]
        %v687 = vld [vmem:[%s277 + $0xa70] sm:$0xff]
        %v688 = vld [vmem:[%s277 + $0xa78] sm:$0xff]
        %v689 = vld [vmem:[%s277 + $0xa80] sm:$0xff]
        %v690 = vld [vmem:[%s277 + $0xa88] sm:$0xff]
        %v691 = vld [vmem:[%s277 + $0xa90] sm:$0xff]
        %v692 = vld [vmem:[%s277 + $0xa98] sm:$0xff]
        %v693 = vld [vmem:[%s277 + $0xaa0] sm:$0xff]
        %v694 = vld [vmem:[%s277 + $0xaa8] sm:$0xff]
        %v695 = vld [vmem:[%s277 + $0xab0] sm:$0xff]
        %v696 = vld [vmem:[%s277 + $0xab8] sm:$0xff]
        %v697 = vld [vmem:[%s277 + $0xac0] sm:$0xff]
        %v698 = vld [vmem:[%s277 + $0xac8] sm:$0xff]
        %v699 = vld [vmem:[%s277 + $0xad0] sm:$0xff]
        %v700 = vld [vmem:[%s277 + $0xad8] sm:$0xff]
        %v701 = vld [vmem:[%s277 + $0xae0] sm:$0xff]
        %v702 = vld [vmem:[%s277 + $0xae8] sm:$0xff]
        %v703 = vld [vmem:[%s277 + $0xaf0] sm:$0xff]
        %v704 = vld [vmem:[%s277 + $0xaf8] sm:$0xff]
        %v705 = vld [vmem:[%s277 + $0xb00] sm:$0xff]
        %v706 = vld [vmem:[%s277 + $0xb08] sm:$0xff]
        %v707 = vld [vmem:[%s277 + $0xb10] sm:$0xff]
        %v708 = vld [vmem:[%s277 + $0xb18] sm:$0xff]
        %v709 = vld [vmem:[%s277 + $0xb20] sm:$0xff]
        %v710 = vld [vmem:[%s277 + $0xb28] sm:$0xff]
        %v711 = vld [vmem:[%s277 + $0xb30] sm:$0xff]
        %v712 = vld [vmem:[%s277 + $0xb38] sm:$0xff]
        %v713 = vld [vmem:[%s277 + $0xb40] sm:$0xff]
        %v714 = vld [vmem:[%s277 + $0xb48] sm:$0xff]
        %v715 = vld [vmem:[%s277 + $0xb50] sm:$0xff]
        %v716 = vld [vmem:[%s277 + $0xb58] sm:$0xff]
        %v717 = vld [vmem:[%s277 + $0xb60] sm:$0xff]
        %v718 = vld [vmem:[%s277 + $0xb68] sm:$0xff]
        %v719 = vld [vmem:[%s277 + $0xb70] sm:$0xff]
        %v720 = vld [vmem:[%s277 + $0xb78] sm:$0xff]
        %v721 = vld [vmem:[%s277 + $0xb80] sm:$0xff]
        %v722 = vld [vmem:[%s277 + $0xb88] sm:$0xff]
        %v723 = vld [vmem:[%s277 + $0xb90] sm:$0xff]
        %v724 = vld [vmem:[%s277 + $0xb98] sm:$0xff]
        %v725 = vld [vmem:[%s277 + $0xba0] sm:$0xff]
        %v726 = vld [vmem:[%s277 + $0xba8] sm:$0xff]
        %v727 = vld [vmem:[%s277 + $0xbb0] sm:$0xff]
        %v728 = vld [vmem:[%s277 + $0xbb8] sm:$0xff]
        %v729 = vld [vmem:[%s277 + $0xbc0] sm:$0xff]
        %v730 = vld [vmem:[%s277 + $0xbc8] sm:$0xff]
        %v731 = vld [vmem:[%s277 + $0xbd0] sm:$0xff]
        %v732 = vld [vmem:[%s277 + $0xbd8] sm:$0xff]
        %v733 = vld [vmem:[%s277 + $0xbe0] sm:$0xff]
        %v734 = vld [vmem:[%s277 + $0xbe8] sm:$0xff]
        %v735 = vld [vmem:[%s277 + $0xbf0] sm:$0xff]
        %v736 = vld [vmem:[%s277 + $0xbf8] sm:$0xff]
        %v737 = vld [vmem:[%s277 + $0xc00] sm:$0xff]
        %v738 = vld [vmem:[%s277 + $0xc08] sm:$0xff]
        %v739 = vld [vmem:[%s277 + $0xc10] sm:$0xff]
        %v740 = vld [vmem:[%s277 + $0xc18] sm:$0xff]
        %v741 = vld [vmem:[%s277 + $0xc20] sm:$0xff]
        %v742 = vld [vmem:[%s277 + $0xc28] sm:$0xff]
        %v743 = vld [vmem:[%s277 + $0xc30] sm:$0xff]
        %v744 = vld [vmem:[%s277 + $0xc38] sm:$0xff]
        %v745 = vld [vmem:[%s277 + $0xc40] sm:$0xff]
        %v746 = vld [vmem:[%s277 + $0xc48] sm:$0xff]
        %v747 = vld [vmem:[%s277 + $0xc50] sm:$0xff]
        %v748 = vld [vmem:[%s277 + $0xc58] sm:$0xff]
        %v749 = vld [vmem:[%s277 + $0xc60] sm:$0xff]
        %v750 = vld [vmem:[%s277 + $0xc68] sm:$0xff]
        %v751 = vld [vmem:[%s277 + $0xc70] sm:$0xff]
        %v752 = vld [vmem:[%s277 + $0xc78] sm:$0xff]
        %v753 = vld [vmem:[%s277 + $0xc80] sm:$0xff]
        %v754 = vld [vmem:[%s277 + $0xc88] sm:$0xff]
        %v755 = vld [vmem:[%s277 + $0xc90] sm:$0xff]
        %v756 = vld [vmem:[%s277 + $0xc98] sm:$0xff]
        %v757 = vld [vmem:[%s277 + $0xca0] sm:$0xff]
        %v758 = vld [vmem:[%s277 + $0xca8] sm:$0xff]
        %v759 = vld [vmem:[%s277 + $0xcb0] sm:$0xff]
        %v760 = vld [vmem:[%s277 + $0xcb8] sm:$0xff]
        %v761 = vld [vmem:[%s277 + $0xcc0] sm:$0xff]
        %v762 = vld [vmem:[%s277 + $0xcc8] sm:$0xff]
        %v763 = vld [vmem:[%s277 + $0xcd0] sm:$0xff]
        %v764 = vld [vmem:[%s277 + $0xcd8] sm:$0xff]
        %v765 = vld [vmem:[%s277 + $0xce0] sm:$0xff]
        %v766 = vld [vmem:[%s277 + $0xce8] sm:$0xff]
        %v767 = vld [vmem:[%s277 + $0xcf0] sm:$0xff]
        %v768 = vld [vmem:[%s277 + $0xcf8] sm:$0xff]
        %v769 = vld [vmem:[%s277 + $0xd00] sm:$0xff]
        %v770 = vld [vmem:[%s277 + $0xd08] sm:$0xff]
        %v771 = vld [vmem:[%s277 + $0xd10] sm:$0xff]
        %v772 = vld [vmem:[%s277 + $0xd18] sm:$0xff]
        %v773 = vld [vmem:[%s277 + $0xd20] sm:$0xff]
        %v774 = vld [vmem:[%s277 + $0xd28] sm:$0xff]
        %v775 = vld [vmem:[%s277 + $0xd30] sm:$0xff]
        %v776 = vld [vmem:[%s277 + $0xd38] sm:$0xff]
        %v777 = vld [vmem:[%s277 + $0xd40] sm:$0xff]
        %v778 = vld [vmem:[%s277 + $0xd48] sm:$0xff]
        %v779 = vld [vmem:[%s277 + $0xd50] sm:$0xff]
        %v780 = vld [vmem:[%s277 + $0xd58] sm:$0xff]
        %v781 = vld [vmem:[%s277 + $0xd60] sm:$0xff]
        %v782 = vld [vmem:[%s277 + $0xd68] sm:$0xff]
        %v783 = vld [vmem:[%s277 + $0xd70] sm:$0xff]
        %v784 = vld [vmem:[%s277 + $0xd78] sm:$0xff]
        %v785 = vld [vmem:[%s277 + $0xd80] sm:$0xff]
        %v786 = vld [vmem:[%s277 + $0xd88] sm:$0xff]
        %v787 = vld [vmem:[%s277 + $0xd90] sm:$0xff]
        %v788 = vld [vmem:[%s277 + $0xd98] sm:$0xff]
        %v789 = vld [vmem:[%s277 + $0xda0] sm:$0xff]
        %v790 = vld [vmem:[%s277 + $0xda8] sm:$0xff]
        %v791 = vld [vmem:[%s277 + $0xdb0] sm:$0xff]
        %v792 = vld [vmem:[%s277 + $0xdb8] sm:$0xff]
        %v793 = vld [vmem:[%s277 + $0xdc0] sm:$0xff]
        %v794 = vld [vmem:[%s277 + $0xdc8] sm:$0xff]
        %v795 = vld [vmem:[%s277 + $0xdd0] sm:$0xff]
        %v796 = vld [vmem:[%s277 + $0xdd8] sm:$0xff]
        %v797 = vld [vmem:[%s277 + $0xde0] sm:$0xff]
        %v798 = vld [vmem:[%s277 + $0xde8] sm:$0xff]
        %v799 = vld [vmem:[%s277 + $0xdf0] sm:$0xff]
        %v800 = vld [vmem:[%s277 + $0xdf8] sm:$0xff]
        %v801 = vld [vmem:[%s277 + $0xe00] sm:$0xff]
        %v802 = vld [vmem:[%s277 + $0xe08] sm:$0xff]
        %v803 = vld [vmem:[%s277 + $0xe10] sm:$0xff]
        %v804 = vld [vmem:[%s277 + $0xe18] sm:$0xff]
        %v805 = vld [vmem:[%s277 + $0xe20] sm:$0xff]
        %v806 = vld [vmem:[%s277 + $0xe28] sm:$0xff]
        %v807 = vld [vmem:[%s277 + $0xe30] sm:$0xff]
        %v808 = vld [vmem:[%s277 + $0xe38] sm:$0xff]
        %v809 = vld [vmem:[%s277 + $0xe40] sm:$0xff]
        %v810 = vld [vmem:[%s277 + $0xe48] sm:$0xff]
        %v811 = vld [vmem:[%s277 + $0xe50] sm:$0xff]
        %v812 = vld [vmem:[%s277 + $0xe58] sm:$0xff]
        %v813 = vld [vmem:[%s277 + $0xe60] sm:$0xff]
        %v814 = vld [vmem:[%s277 + $0xe68] sm:$0xff]
        %v815 = vld [vmem:[%s277 + $0xe70] sm:$0xff]
        %v816 = vld [vmem:[%s277 + $0xe78] sm:$0xff]
        %v817 = vld [vmem:[%s277 + $0xe80] sm:$0xff]
        %v818 = vld [vmem:[%s277 + $0xe88] sm:$0xff]
        %v819 = vld [vmem:[%s277 + $0xe90] sm:$0xff]
        %v820 = vld [vmem:[%s277 + $0xe98] sm:$0xff]
        %v821 = vld [vmem:[%s277 + $0xea0] sm:$0xff]
        %v822 = vld [vmem:[%s277 + $0xea8] sm:$0xff]
        %v823 = vld [vmem:[%s277 + $0xeb0] sm:$0xff]
        %v824 = vld [vmem:[%s277 + $0xeb8] sm:$0xff]
        %v825 = vld [vmem:[%s277 + $0xec0] sm:$0xff]
        %v826 = vld [vmem:[%s277 + $0xec8] sm:$0xff]
        %v827 = vld [vmem:[%s277 + $0xed0] sm:$0xff]
        %v828 = vld [vmem:[%s277 + $0xed8] sm:$0xff]
        %v829 = vld [vmem:[%s277 + $0xee0] sm:$0xff]
        %v830 = vld [vmem:[%s277 + $0xee8] sm:$0xff]
        %v831 = vld [vmem:[%s277 + $0xef0] sm:$0xff]
        %v832 = vld [vmem:[%s277 + $0xef8] sm:$0xff]
        %v833 = vld [vmem:[%s277 + $0xf00] sm:$0xff]
        %v834 = vld [vmem:[%s277 + $0xf08] sm:$0xff]
        %v835 = vld [vmem:[%s277 + $0xf10] sm:$0xff]
        %v836 = vld [vmem:[%s277 + $0xf18] sm:$0xff]
        %v837 = vld [vmem:[%s277 + $0xf20] sm:$0xff]
        %v838 = vld [vmem:[%s277 + $0xf28] sm:$0xff]
        %v839 = vld [vmem:[%s277 + $0xf30] sm:$0xff]
        %v840 = vld [vmem:[%s277 + $0xf38] sm:$0xff]
        %v841 = vld [vmem:[%s277 + $0xf40] sm:$0xff]
        %v842 = vld [vmem:[%s277 + $0xf48] sm:$0xff]
        %v843 = vld [vmem:[%s277 + $0xf50] sm:$0xff]
        %v844 = vld [vmem:[%s277 + $0xf58] sm:$0xff]
        %v845 = vld [vmem:[%s277 + $0xf60] sm:$0xff]
        %v846 = vld [vmem:[%s277 + $0xf68] sm:$0xff]
        %v847 = vld [vmem:[%s277 + $0xf70] sm:$0xff]
        %v848 = vld [vmem:[%s277 + $0xf78] sm:$0xff]
        %v849 = vld [vmem:[%s277 + $0xf80] sm:$0xff]
        %v850 = vld [vmem:[%s277 + $0xf88] sm:$0xff]
        %v851 = vld [vmem:[%s277 + $0xf90] sm:$0xff]
        %v852 = vld [vmem:[%s277 + $0xf98] sm:$0xff]
        %v853 = vld [vmem:[%s277 + $0xfa0] sm:$0xff]
        %v854 = vld [vmem:[%s277 + $0xfa8] sm:$0xff]
        %v855 = vld [vmem:[%s277 + $0xfb0] sm:$0xff]
        %v856 = vld [vmem:[%s277 + $0xfb8] sm:$0xff]
        %v857 = vld [vmem:[%s277 + $0xfc0] sm:$0xff]
        %v858 = vld [vmem:[%s277 + $0xfc8] sm:$0xff]
        %v859 = vld [vmem:[%s277 + $0xfd0] sm:$0xff]
        %v860 = vld [vmem:[%s277 + $0xfd8] sm:$0xff]
        %v861 = vld [vmem:[%s277 + $0xfe0] sm:$0xff]
        %v862 = vld [vmem:[%s277 + $0xfe8] sm:$0xff]
        %v863 = vld [vmem:[%s277 + $0xff0] sm:$0xff]
        %v864 = vld [vmem:[%s277 + $0xff8] sm:$0xff]
        %v865 = vld [vmem:[%s277 + $0x1000] sm:$0xff]
        %v866 = vld [vmem:[%s277 + $0x1008] sm:$0xff]
        %v867 = vld [vmem:[%s277 + $0x1010] sm:$0xff]
        %v868 = vld [vmem:[%s277 + $0x1018] sm:$0xff]
        %v869 = vld [vmem:[%s277 + $0x1020] sm:$0xff]
        %v870 = vld [vmem:[%s277 + $0x1028] sm:$0xff]
        %v871 = vld [vmem:[%s277 + $0x1030] sm:$0xff]
        %v872 = vld [vmem:[%s277 + $0x1038] sm:$0xff]
        %v873 = vld [vmem:[%s277 + $0x1040] sm:$0xff]
        %v874 = vld [vmem:[%s277 + $0x1048] sm:$0xff]
        %v875 = vld [vmem:[%s277 + $0x1050] sm:$0xff]
        %v876 = vld [vmem:[%s277 + $0x1058] sm:$0xff]
        %v877 = vld [vmem:[%s277 + $0x1060] sm:$0xff]
        %v878 = vld [vmem:[%s277 + $0x1068] sm:$0xff]
        %v879 = vld [vmem:[%s277 + $0x1070] sm:$0xff]
        %v880 = vld [vmem:[%s277 + $0x1078] sm:$0xff]
        %v881 = vld [vmem:[%s277 + $0x1080] sm:$0xff]
        %v882 = vld [vmem:[%s277 + $0x1088] sm:$0xff]
        %v883 = vld [vmem:[%s277 + $0x1090] sm:$0xff]
        %v884 = vld [vmem:[%s277 + $0x1098] sm:$0xff]
        %v885 = vld [vmem:[%s277 + $0x10a0] sm:$0xff]
        %v886 = vld [vmem:[%s277 + $0x10a8] sm:$0xff]
        %v887 = vld [vmem:[%s277 + $0x10b0] sm:$0xff]
        %v888 = vld [vmem:[%s277 + $0x10b8] sm:$0xff]
        %v889 = vld [vmem:[%s277 + $0x10c0] sm:$0xff]
        %v890 = vld [vmem:[%s277 + $0x10c8] sm:$0xff]
        %v891 = vld [vmem:[%s277 + $0x10d0] sm:$0xff]
        %v892 = vld [vmem:[%s277 + $0x10d8] sm:$0xff]
        %v893 = vld [vmem:[%s277 + $0x10e0] sm:$0xff]
        %v894 = vld [vmem:[%s277 + $0x10e8] sm:$0xff]
        %v895 = vld [vmem:[%s277 + $0x10f0] sm:$0xff]
        %v896 = vld [vmem:[%s277 + $0x10f8] sm:$0xff]
        %v897 = vld [vmem:[%s277 + $0x1100] sm:$0xff]
        %v898 = vld [vmem:[%s277 + $0x1108] sm:$0xff]
        %v899 = vld [vmem:[%s277 + $0x1110] sm:$0xff]
        %v900 = vld [vmem:[%s277 + $0x1118] sm:$0xff]
        %v901 = vld [vmem:[%s277 + $0x1120] sm:$0xff]
        %v902 = vld [vmem:[%s277 + $0x1128] sm:$0xff]
        %v903 = vld [vmem:[%s277 + $0x1130] sm:$0xff]
        %v904 = vld [vmem:[%s277 + $0x1138] sm:$0xff]
        %v905 = vld [vmem:[%s277 + $0x1140] sm:$0xff]
        %v906 = vld [vmem:[%s277 + $0x1148] sm:$0xff]
        %v907 = vld [vmem:[%s277 + $0x1150] sm:$0xff]
        %v908 = vld [vmem:[%s277 + $0x1158] sm:$0xff]
        %v909 = vld [vmem:[%s277 + $0x1160] sm:$0xff]
        %v910 = vld [vmem:[%s277 + $0x1168] sm:$0xff]
        %v911 = vld [vmem:[%s277 + $0x1170] sm:$0xff]
        %v912 = vld [vmem:[%s277 + $0x1178] sm:$0xff]
        %v913 = vld [vmem:[%s277 + $0x1180] sm:$0xff]
        %v914 = vld [vmem:[%s277 + $0x1188] sm:$0xff]
        %v915 = vld [vmem:[%s277 + $0x1190] sm:$0xff]
        %v916 = vld [vmem:[%s277 + $0x1198] sm:$0xff]
        %v917 = vld [vmem:[%s277 + $0x11a0] sm:$0xff]
        %v918 = vld [vmem:[%s277 + $0x11a8] sm:$0xff]
        %v919 = vld [vmem:[%s277 + $0x11b0] sm:$0xff]
        %v920 = vld [vmem:[%s277 + $0x11b8] sm:$0xff]
        %v921 = vld [vmem:[%s277 + $0x11c0] sm:$0xff]
        %v922 = vld [vmem:[%s277 + $0x11c8] sm:$0xff]
        %v923 = vld [vmem:[%s277 + $0x11d0] sm:$0xff]
        %v924 = vld [vmem:[%s277 + $0x11d8] sm:$0xff]
        %v925 = vld [vmem:[%s277 + $0x11e0] sm:$0xff]
        %v926 = vld [vmem:[%s277 + $0x11e8] sm:$0xff]
        %v927 = vld [vmem:[%s277 + $0x11f0] sm:$0xff]
        %v928 = vld [vmem:[%s277 + $0x11f8] sm:$0xff]
        %v929 = vld [vmem:[%s286] sm:$0xff]
        %v930 = vld [vmem:[%s286 + $0x8] sm:$0xf]
        %v933 = vlaneseq
        %v934 = vshrl.u32 %v933, 7
        %v935 = vsub.s32 0, %v934
        %v936 = vrot.slane %v929, %v935
        %v937 = vlaneseq
        %v938 = vshrl.u32 %v937, 7
        %v939 = vsub.s32 1, %v938
        %v940 = vrot.slane %v929, %v939
        %v941 = vlaneseq
        %v942 = vshrl.u32 %v941, 7
        %v943 = vsub.s32 2, %v942
        %v944 = vrot.slane %v929, %v943
        %v945 = vlaneseq
        %v946 = vshrl.u32 %v945, 7
        %v947 = vsub.s32 3, %v946
        %v948 = vrot.slane %v929, %v947
        %v949 = vlaneseq
        %v950 = vshrl.u32 %v949, 7
        %v951 = vsub.s32 4, %v950
        %v952 = vrot.slane %v929, %v951
        %v953 = vlaneseq
        %v954 = vshrl.u32 %v953, 7
        %v955 = vsub.s32 5, %v954
        %v956 = vrot.slane %v929, %v955
        %v957 = vlaneseq
        %v958 = vshrl.u32 %v957, 7
        %v959 = vsub.s32 6, %v958
        %v960 = vrot.slane %v929, %v959
        %v961 = vlaneseq
        %v962 = vshrl.u32 %v961, 7
        %v963 = vsub.s32 7, %v962
        %v964 = vrot.slane %v929, %v963
        %v965 = vlaneseq
        %v966 = vshrl.u32 %v965, 7
        %v967 = vsub.s32 0, %v966
        %v968 = vrot.slane %v930, %v967
        %v969 = vlaneseq
        %v970 = vshrl.u32 %v969, 7
        %v971 = vsub.s32 1, %v970
        %v972 = vrot.slane %v930, %v971
        %v973 = vlaneseq
        %v974 = vshrl.u32 %v973, 7
        %v975 = vsub.s32 2, %v974
        %v976 = vrot.slane %v930, %v975
        %v977 = vlaneseq
        %v978 = vshrl.u32 %v977, 7
        %v979 = vsub.s32 3, %v978
        %v980 = vrot.slane %v930, %v979
        %v1569 = vunpack.c.l.b16 %v353
        %v1570 = vunpack.c.h.b16 %v353
        %v1571 = vunpack.c.l.b16 %v354
        %v1572 = vunpack.c.h.b16 %v354
        %v1573 = vunpack.c.l.b16 %v355
        %v1574 = vunpack.c.h.b16 %v355
        %v1575 = vunpack.c.l.b16 %v356
        %v1576 = vunpack.c.h.b16 %v356
        %v1577 = vunpack.c.l.b16 %v357
        %v1578 = vunpack.c.h.b16 %v357
        %v1579 = vunpack.c.l.b16 %v358
        %v1580 = vunpack.c.h.b16 %v358
        %v1581 = vunpack.c.l.b16 %v359
        %v1582 = vunpack.c.h.b16 %v359
        %v1583 = vunpack.c.l.b16 %v360
        %v1584 = vunpack.c.h.b16 %v360
        %v1585 = vunpack.c.l.b16 %v361
        %v1586 = vunpack.c.h.b16 %v361
        %v1587 = vunpack.c.l.b16 %v362
        %v1588 = vunpack.c.h.b16 %v362
        %v1589 = vunpack.c.l.b16 %v363
        %v1590 = vunpack.c.h.b16 %v363
        %v1591 = vunpack.c.l.b16 %v364
        %v1592 = vunpack.c.h.b16 %v364
        %v1593 = vunpack.c.l.b16 %v365
        %v1594 = vunpack.c.h.b16 %v365
        %v1595 = vunpack.c.l.b16 %v366
        %v1596 = vunpack.c.h.b16 %v366
        %v1597 = vunpack.c.l.b16 %v367
        %v1598 = vunpack.c.h.b16 %v367
        %v1599 = vunpack.c.l.b16 %v368
        %v1600 = vunpack.c.h.b16 %v368
        %v1601 = vunpack.c.l.b16 %v369
        %v1602 = vunpack.c.h.b16 %v369
        %v1603 = vunpack.c.l.b16 %v370
        %v1604 = vunpack.c.h.b16 %v370
        %v1605 = vunpack.c.l.b16 %v371
        %v1606 = vunpack.c.h.b16 %v371
        %v1607 = vunpack.c.l.b16 %v372
        %v1608 = vunpack.c.h.b16 %v372
        %v1609 = vunpack.c.l.b16 %v373
        %v1610 = vunpack.c.h.b16 %v373
        %v1611 = vunpack.c.l.b16 %v374
        %v1612 = vunpack.c.h.b16 %v374
        %v1613 = vunpack.c.l.b16 %v375
        %v1614 = vunpack.c.h.b16 %v375
        %v1615 = vunpack.c.l.b16 %v376
        %v1616 = vunpack.c.h.b16 %v376
        %v1617 = vunpack.c.l.b16 %v377
        %v1618 = vunpack.c.h.b16 %v377
        %v1619 = vunpack.c.l.b16 %v378
        %v1620 = vunpack.c.h.b16 %v378
        %v1621 = vunpack.c.l.b16 %v379
        %v1622 = vunpack.c.h.b16 %v379
        %v1623 = vunpack.c.l.b16 %v380
        %v1624 = vunpack.c.h.b16 %v380
        %v1625 = vunpack.c.l.b16 %v381
        %v1626 = vunpack.c.h.b16 %v381
        %v1627 = vunpack.c.l.b16 %v382
        %v1628 = vunpack.c.h.b16 %v382
        %v1629 = vunpack.c.l.b16 %v383
        %v1630 = vunpack.c.h.b16 %v383
        %v1631 = vunpack.c.l.b16 %v384
        %v1632 = vunpack.c.h.b16 %v384
        %v1633 = vunpack.c.l.b16 %v385
        %v1634 = vunpack.c.h.b16 %v385
        %v1635 = vunpack.c.l.b16 %v386
        %v1636 = vunpack.c.h.b16 %v386
        %v1637 = vunpack.c.l.b16 %v387
        %v1638 = vunpack.c.h.b16 %v387
        %v1639 = vunpack.c.l.b16 %v388
        %v1640 = vunpack.c.h.b16 %v388
        %v1641 = vunpack.c.l.b16 %v389
        %v1642 = vunpack.c.h.b16 %v389
        %v1643 = vunpack.c.l.b16 %v390
        %v1644 = vunpack.c.h.b16 %v390
        %v1645 = vunpack.c.l.b16 %v391
        %v1646 = vunpack.c.h.b16 %v391
        %v1647 = vunpack.c.l.b16 %v392
        %v1648 = vunpack.c.h.b16 %v392
        %v1649 = vunpack.c.l.b16 %v393
        %v1650 = vunpack.c.h.b16 %v393
        %v1651 = vunpack.c.l.b16 %v394
        %v1652 = vunpack.c.h.b16 %v394
        %v1653 = vunpack.c.l.b16 %v395
        %v1654 = vunpack.c.h.b16 %v395
        %v1655 = vunpack.c.l.b16 %v396
        %v1656 = vunpack.c.h.b16 %v396
        %v1657 = vunpack.c.l.b16 %v397
        %v1658 = vunpack.c.h.b16 %v397
        %v1659 = vunpack.c.l.b16 %v398
        %v1660 = vunpack.c.h.b16 %v398
        %v1661 = vunpack.c.l.b16 %v399
        %v1662 = vunpack.c.h.b16 %v399
        %v1663 = vunpack.c.l.b16 %v400
        %v1664 = vunpack.c.h.b16 %v400
        %v1665 = vunpack.c.l.b16 %v401
        %v1666 = vunpack.c.h.b16 %v401
        %v1667 = vunpack.c.l.b16 %v402
        %v1668 = vunpack.c.h.b16 %v402
        %v1669 = vunpack.c.l.b16 %v403
        %v1670 = vunpack.c.h.b16 %v403
        %v1671 = vunpack.c.l.b16 %v404
        %v1672 = vunpack.c.h.b16 %v404
        %v1673 = vunpack.c.l.b16 %v405
        %v1674 = vunpack.c.h.b16 %v405
        %v1675 = vunpack.c.l.b16 %v406
        %v1676 = vunpack.c.h.b16 %v406
        %v1677 = vunpack.c.l.b16 %v407
        %v1678 = vunpack.c.h.b16 %v407
        %v1679 = vunpack.c.l.b16 %v408
        %v1680 = vunpack.c.h.b16 %v408
        %v1681 = vunpack.c.l.b16 %v409
        %v1682 = vunpack.c.h.b16 %v409
        %v1683 = vunpack.c.l.b16 %v410
        %v1684 = vunpack.c.h.b16 %v410
        %v1685 = vunpack.c.l.b16 %v411
        %v1686 = vunpack.c.h.b16 %v411
        %v1687 = vunpack.c.l.b16 %v412
        %v1688 = vunpack.c.h.b16 %v412
        %v1689 = vunpack.c.l.b16 %v413
        %v1690 = vunpack.c.h.b16 %v413
        %v1691 = vunpack.c.l.b16 %v414
        %v1692 = vunpack.c.h.b16 %v414
        %v1693 = vunpack.c.l.b16 %v415
        %v1694 = vunpack.c.h.b16 %v415
        %v1695 = vunpack.c.l.b16 %v416
        %v1696 = vunpack.c.h.b16 %v416
        %v1697 = vunpack.c.l.b16 %v417
        %v1698 = vunpack.c.h.b16 %v417
        %v1699 = vunpack.c.l.b16 %v418
        %v1700 = vunpack.c.h.b16 %v418
        %v1701 = vunpack.c.l.b16 %v419
        %v1702 = vunpack.c.h.b16 %v419
        %v1703 = vunpack.c.l.b16 %v420
        %v1704 = vunpack.c.h.b16 %v420
        %v1705 = vunpack.c.l.b16 %v421
        %v1706 = vunpack.c.h.b16 %v421
        %v1707 = vunpack.c.l.b16 %v422
        %v1708 = vunpack.c.h.b16 %v422
        %v1709 = vunpack.c.l.b16 %v423
        %v1710 = vunpack.c.h.b16 %v423
        %v1711 = vunpack.c.l.b16 %v424
        %v1712 = vunpack.c.h.b16 %v424
        %v1713 = vunpack.c.l.b16 %v425
        %v1714 = vunpack.c.h.b16 %v425
        %v1715 = vunpack.c.l.b16 %v426
        %v1716 = vunpack.c.h.b16 %v426
        %v1717 = vunpack.c.l.b16 %v427
        %v1718 = vunpack.c.h.b16 %v427
        %v1719 = vunpack.c.l.b16 %v428
        %v1720 = vunpack.c.h.b16 %v428
        %v1721 = vunpack.c.l.b16 %v429
        %v1722 = vunpack.c.h.b16 %v429
        %v1723 = vunpack.c.l.b16 %v430
        %v1724 = vunpack.c.h.b16 %v430
        %v1725 = vunpack.c.l.b16 %v431
        %v1726 = vunpack.c.h.b16 %v431
        %v1727 = vunpack.c.l.b16 %v432
        %v1728 = vunpack.c.h.b16 %v432
        %v1729 = vunpack.c.l.b16 %v433
        %v1730 = vunpack.c.h.b16 %v433
        %v1731 = vunpack.c.l.b16 %v434
        %v1732 = vunpack.c.h.b16 %v434
        %v1733 = vunpack.c.l.b16 %v435
        %v1734 = vunpack.c.h.b16 %v435
        %v1735 = vunpack.c.l.b16 %v436
        %v1736 = vunpack.c.h.b16 %v436
        %v1737 = vunpack.c.l.b16 %v437
        %v1738 = vunpack.c.h.b16 %v437
        %v1739 = vunpack.c.l.b16 %v438
        %v1740 = vunpack.c.h.b16 %v438
        %v1741 = vunpack.c.l.b16 %v439
        %v1742 = vunpack.c.h.b16 %v439
        %v1743 = vunpack.c.l.b16 %v440
        %v1744 = vunpack.c.h.b16 %v440
        %v1745 = vunpack.c.l.b16 %v441
        %v1746 = vunpack.c.h.b16 %v441
        %v1747 = vunpack.c.l.b16 %v442
        %v1748 = vunpack.c.h.b16 %v442
        %v1749 = vunpack.c.l.b16 %v443
        %v1750 = vunpack.c.h.b16 %v443
        %v1751 = vunpack.c.l.b16 %v444
        %v1752 = vunpack.c.h.b16 %v444
        %v1753 = vunpack.c.l.b16 %v445
        %v1754 = vunpack.c.h.b16 %v445
        %v1755 = vunpack.c.l.b16 %v446
        %v1756 = vunpack.c.h.b16 %v446
        %v1757 = vunpack.c.l.b16 %v447
        %v1758 = vunpack.c.h.b16 %v447
        %v1759 = vunpack.c.l.b16 %v448
        %v1760 = vunpack.c.h.b16 %v448
        %v1761 = vunpack.c.l.b16 %v449
        %v1762 = vunpack.c.h.b16 %v449
        %v1763 = vunpack.c.l.b16 %v450
        %v1764 = vunpack.c.h.b16 %v450
        %v1765 = vunpack.c.l.b16 %v451
        %v1766 = vunpack.c.h.b16 %v451
        %v1767 = vunpack.c.l.b16 %v452
        %v1768 = vunpack.c.h.b16 %v452
        %v1769 = vunpack.c.l.b16 %v453
        %v1770 = vunpack.c.h.b16 %v453
        %v1771 = vunpack.c.l.b16 %v454
        %v1772 = vunpack.c.h.b16 %v454
        %v1773 = vunpack.c.l.b16 %v455
        %v1774 = vunpack.c.h.b16 %v455
        %v1775 = vunpack.c.l.b16 %v456
        %v1776 = vunpack.c.h.b16 %v456
        %v1777 = vunpack.c.l.b16 %v457
        %v1778 = vunpack.c.h.b16 %v457
        %v1779 = vunpack.c.l.b16 %v458
        %v1780 = vunpack.c.h.b16 %v458
        %v1781 = vunpack.c.l.b16 %v459
        %v1782 = vunpack.c.h.b16 %v459
        %v1783 = vunpack.c.l.b16 %v460
        %v1784 = vunpack.c.h.b16 %v460
        %v1785 = vunpack.c.l.b16 %v461
        %v1786 = vunpack.c.h.b16 %v461
        %v1787 = vunpack.c.l.b16 %v462
        %v1788 = vunpack.c.h.b16 %v462
        %v1789 = vunpack.c.l.b16 %v463
        %v1790 = vunpack.c.h.b16 %v463
        %v1791 = vunpack.c.l.b16 %v464
        %v1792 = vunpack.c.h.b16 %v464
        %v1793 = vunpack.c.l.b16 %v465
        %v1794 = vunpack.c.h.b16 %v465
        %v1795 = vunpack.c.l.b16 %v466
        %v1796 = vunpack.c.h.b16 %v466
        %v1797 = vunpack.c.l.b16 %v467
        %v1798 = vunpack.c.h.b16 %v467
        %v1799 = vunpack.c.l.b16 %v468
        %v1800 = vunpack.c.h.b16 %v468
        %v1801 = vunpack.c.l.b16 %v469
        %v1802 = vunpack.c.h.b16 %v469
        %v1803 = vunpack.c.l.b16 %v470
        %v1804 = vunpack.c.h.b16 %v470
        %v1805 = vunpack.c.l.b16 %v471
        %v1806 = vunpack.c.h.b16 %v471
        %v1807 = vunpack.c.l.b16 %v472
        %v1808 = vunpack.c.h.b16 %v472
        %v1809 = vunpack.c.l.b16 %v473
        %v1810 = vunpack.c.h.b16 %v473
        %v1811 = vunpack.c.l.b16 %v474
        %v1812 = vunpack.c.h.b16 %v474
        %v1813 = vunpack.c.l.b16 %v475
        %v1814 = vunpack.c.h.b16 %v475
        %v1815 = vunpack.c.l.b16 %v476
        %v1816 = vunpack.c.h.b16 %v476
        %v1817 = vunpack.c.l.b16 %v477
        %v1818 = vunpack.c.h.b16 %v477
        %v1819 = vunpack.c.l.b16 %v478
        %v1820 = vunpack.c.h.b16 %v478
        %v1821 = vunpack.c.l.b16 %v479
        %v1822 = vunpack.c.h.b16 %v479
        %v1823 = vunpack.c.l.b16 %v480
        %v1824 = vunpack.c.h.b16 %v480
        %v1825 = vunpack.c.l.b16 %v481
        %v1826 = vunpack.c.h.b16 %v481
        %v1827 = vunpack.c.l.b16 %v482
        %v1828 = vunpack.c.h.b16 %v482
        %v1829 = vunpack.c.l.b16 %v483
        %v1830 = vunpack.c.h.b16 %v483
        %v1831 = vunpack.c.l.b16 %v484
        %v1832 = vunpack.c.h.b16 %v484
        %v1833 = vunpack.c.l.b16 %v485
        %v1834 = vunpack.c.h.b16 %v485
        %v1835 = vunpack.c.l.b16 %v486
        %v1836 = vunpack.c.h.b16 %v486
        %v1837 = vunpack.c.l.b16 %v487
        %v1838 = vunpack.c.h.b16 %v487
        %v1839 = vunpack.c.l.b16 %v488
        %v1840 = vunpack.c.h.b16 %v488
        %v1841 = vunpack.c.l.b16 %v489
        %v1842 = vunpack.c.h.b16 %v489
        %v1843 = vunpack.c.l.b16 %v490
        %v1844 = vunpack.c.h.b16 %v490
        %v1845 = vunpack.c.l.b16 %v491
        %v1846 = vunpack.c.h.b16 %v491
        %v1847 = vunpack.c.l.b16 %v492
        %v1848 = vunpack.c.h.b16 %v492
        %v1849 = vunpack.c.l.b16 %v493
        %v1850 = vunpack.c.h.b16 %v493
        %v1851 = vunpack.c.l.b16 %v494
        %v1852 = vunpack.c.h.b16 %v494
        %v1853 = vunpack.c.l.b16 %v495
        %v1854 = vunpack.c.h.b16 %v495
        %v1855 = vunpack.c.l.b16 %v496
        %v1856 = vunpack.c.h.b16 %v496
        %v1857 = vunpack.c.l.b16 %v497
        %v1858 = vunpack.c.h.b16 %v497
        %v1859 = vunpack.c.l.b16 %v498
        %v1860 = vunpack.c.h.b16 %v498
        %v1861 = vunpack.c.l.b16 %v499
        %v1862 = vunpack.c.h.b16 %v499
        %v1863 = vunpack.c.l.b16 %v500
        %v1864 = vunpack.c.h.b16 %v500
        %v1865 = vunpack.c.l.b16 %v501
        %v1866 = vunpack.c.h.b16 %v501
        %v1867 = vunpack.c.l.b16 %v502
        %v1868 = vunpack.c.h.b16 %v502
        %v1869 = vunpack.c.l.b16 %v503
        %v1870 = vunpack.c.h.b16 %v503
        %v1871 = vunpack.c.l.b16 %v504
        %v1872 = vunpack.c.h.b16 %v504
        %v1873 = vunpack.c.l.b16 %v505
        %v1874 = vunpack.c.h.b16 %v505
        %v1875 = vunpack.c.l.b16 %v506
        %v1876 = vunpack.c.h.b16 %v506
        %v1877 = vunpack.c.l.b16 %v507
        %v1878 = vunpack.c.h.b16 %v507
        %v1879 = vunpack.c.l.b16 %v508
        %v1880 = vunpack.c.h.b16 %v508
        %v1881 = vunpack.c.l.b16 %v509
        %v1882 = vunpack.c.h.b16 %v509
        %v1883 = vunpack.c.l.b16 %v510
        %v1884 = vunpack.c.h.b16 %v510
        %v1885 = vunpack.c.l.b16 %v511
        %v1886 = vunpack.c.h.b16 %v511
        %v1887 = vunpack.c.l.b16 %v512
        %v1888 = vunpack.c.h.b16 %v512
        %v1889 = vunpack.c.l.b16 %v513
        %v1890 = vunpack.c.h.b16 %v513
        %v1891 = vunpack.c.l.b16 %v514
        %v1892 = vunpack.c.h.b16 %v514
        %v1893 = vunpack.c.l.b16 %v515
        %v1894 = vunpack.c.h.b16 %v515
        %v1895 = vunpack.c.l.b16 %v516
        %v1896 = vunpack.c.h.b16 %v516
        %v1897 = vunpack.c.l.b16 %v517
        %v1898 = vunpack.c.h.b16 %v517
        %v1899 = vunpack.c.l.b16 %v518
        %v1900 = vunpack.c.h.b16 %v518
        %v1901 = vunpack.c.l.b16 %v519
        %v1902 = vunpack.c.h.b16 %v519
        %v1903 = vunpack.c.l.b16 %v520
        %v1904 = vunpack.c.h.b16 %v520
        %v1905 = vunpack.c.l.b16 %v521
        %v1906 = vunpack.c.h.b16 %v521
        %v1907 = vunpack.c.l.b16 %v522
        %v1908 = vunpack.c.h.b16 %v522
        %v1909 = vunpack.c.l.b16 %v523
        %v1910 = vunpack.c.h.b16 %v523
        %v1911 = vunpack.c.l.b16 %v524
        %v1912 = vunpack.c.h.b16 %v524
        %v1913 = vunpack.c.l.b16 %v525
        %v1914 = vunpack.c.h.b16 %v525
        %v1915 = vunpack.c.l.b16 %v526
        %v1916 = vunpack.c.h.b16 %v526
        %v1917 = vunpack.c.l.b16 %v527
        %v1918 = vunpack.c.h.b16 %v527
        %v1919 = vunpack.c.l.b16 %v528
        %v1920 = vunpack.c.h.b16 %v528
        %v1921 = vunpack.c.l.b16 %v529
        %v1922 = vunpack.c.h.b16 %v529
        %v1923 = vunpack.c.l.b16 %v530
        %v1924 = vunpack.c.h.b16 %v530
        %v1925 = vunpack.c.l.b16 %v531
        %v1926 = vunpack.c.h.b16 %v531
        %v1927 = vunpack.c.l.b16 %v532
        %v1928 = vunpack.c.h.b16 %v532
        %v1929 = vunpack.c.l.b16 %v533
        %v1930 = vunpack.c.h.b16 %v533
        %v1931 = vunpack.c.l.b16 %v534
        %v1932 = vunpack.c.h.b16 %v534
        %v1933 = vunpack.c.l.b16 %v535
        %v1934 = vunpack.c.h.b16 %v535
        %v1935 = vunpack.c.l.b16 %v536
        %v1936 = vunpack.c.h.b16 %v536
        %v1937 = vunpack.c.l.b16 %v537
        %v1938 = vunpack.c.h.b16 %v537
        %v1939 = vunpack.c.l.b16 %v538
        %v1940 = vunpack.c.h.b16 %v538
        %v1941 = vunpack.c.l.b16 %v539
        %v1942 = vunpack.c.h.b16 %v539
        %v1943 = vunpack.c.l.b16 %v540
        %v1944 = vunpack.c.h.b16 %v540
        %v1945 = vunpack.c.l.b16 %v541
        %v1946 = vunpack.c.h.b16 %v541
        %v1947 = vunpack.c.l.b16 %v542
        %v1948 = vunpack.c.h.b16 %v542
        %v1949 = vunpack.c.l.b16 %v543
        %v1950 = vunpack.c.h.b16 %v543
        %v1951 = vunpack.c.l.b16 %v544
        %v1952 = vunpack.c.h.b16 %v544
        %v1953 = vunpack.c.l.b16 %v545
        %v1954 = vunpack.c.h.b16 %v545
        %v1955 = vunpack.c.l.b16 %v546
        %v1956 = vunpack.c.h.b16 %v546
        %v1957 = vunpack.c.l.b16 %v547
        %v1958 = vunpack.c.h.b16 %v547
        %v1959 = vunpack.c.l.b16 %v548
        %v1960 = vunpack.c.h.b16 %v548
        %v1961 = vunpack.c.l.b16 %v549
        %v1962 = vunpack.c.h.b16 %v549
        %v1963 = vunpack.c.l.b16 %v550
        %v1964 = vunpack.c.h.b16 %v550
        %v1965 = vunpack.c.l.b16 %v551
        %v1966 = vunpack.c.h.b16 %v551
        %v1967 = vunpack.c.l.b16 %v552
        %v1968 = vunpack.c.h.b16 %v552
        %v1969 = vunpack.c.l.b16 %v553
        %v1970 = vunpack.c.h.b16 %v553
        %v1971 = vunpack.c.l.b16 %v554
        %v1972 = vunpack.c.h.b16 %v554
        %v1973 = vunpack.c.l.b16 %v555
        %v1974 = vunpack.c.h.b16 %v555
        %v1975 = vunpack.c.l.b16 %v556
        %v1976 = vunpack.c.h.b16 %v556
        %v1977 = vunpack.c.l.b16 %v557
        %v1978 = vunpack.c.h.b16 %v557
        %v1979 = vunpack.c.l.b16 %v558
        %v1980 = vunpack.c.h.b16 %v558
        %v1981 = vunpack.c.l.b16 %v559
        %v1982 = vunpack.c.h.b16 %v559
        %v1983 = vunpack.c.l.b16 %v560
        %v1984 = vunpack.c.h.b16 %v560
        %v1985 = vunpack.c.l.b16 %v561
        %v1986 = vunpack.c.h.b16 %v561
        %v1987 = vunpack.c.l.b16 %v562
        %v1988 = vunpack.c.h.b16 %v562
        %v1989 = vunpack.c.l.b16 %v563
        %v1990 = vunpack.c.h.b16 %v563
        %v1991 = vunpack.c.l.b16 %v564
        %v1992 = vunpack.c.h.b16 %v564
        %v1993 = vunpack.c.l.b16 %v565
        %v1994 = vunpack.c.h.b16 %v565
        %v1995 = vunpack.c.l.b16 %v566
        %v1996 = vunpack.c.h.b16 %v566
        %v1997 = vunpack.c.l.b16 %v567
        %v1998 = vunpack.c.h.b16 %v567
        %v1999 = vunpack.c.l.b16 %v568
        %v2000 = vunpack.c.h.b16 %v568
        %v2001 = vunpack.c.l.b16 %v569
        %v2002 = vunpack.c.h.b16 %v569
        %v2003 = vunpack.c.l.b16 %v570
        %v2004 = vunpack.c.h.b16 %v570
        %v2005 = vunpack.c.l.b16 %v571
        %v2006 = vunpack.c.h.b16 %v571
        %v2007 = vunpack.c.l.b16 %v572
        %v2008 = vunpack.c.h.b16 %v572
        %v2009 = vunpack.c.l.b16 %v573
        %v2010 = vunpack.c.h.b16 %v573
        %v2011 = vunpack.c.l.b16 %v574
        %v2012 = vunpack.c.h.b16 %v574
        %v2013 = vunpack.c.l.b16 %v575
        %v2014 = vunpack.c.h.b16 %v575
        %v2015 = vunpack.c.l.b16 %v576
        %v2016 = vunpack.c.h.b16 %v576
        %v2017 = vunpack.c.l.b16 %v577
        %v2018 = vunpack.c.h.b16 %v577
        %v2019 = vunpack.c.l.b16 %v578
        %v2020 = vunpack.c.h.b16 %v578
        %v2021 = vunpack.c.l.b16 %v579
        %v2022 = vunpack.c.h.b16 %v579
        %v2023 = vunpack.c.l.b16 %v580
        %v2024 = vunpack.c.h.b16 %v580
        %v2025 = vunpack.c.l.b16 %v581
        %v2026 = vunpack.c.h.b16 %v581
        %v2027 = vunpack.c.l.b16 %v582
        %v2028 = vunpack.c.h.b16 %v582
        %v2029 = vunpack.c.l.b16 %v583
        %v2030 = vunpack.c.h.b16 %v583
        %v2031 = vunpack.c.l.b16 %v584
        %v2032 = vunpack.c.h.b16 %v584
        %v2033 = vunpack.c.l.b16 %v585
        %v2034 = vunpack.c.h.b16 %v585
        %v2035 = vunpack.c.l.b16 %v586
        %v2036 = vunpack.c.h.b16 %v586
        %v2037 = vunpack.c.l.b16 %v587
        %v2038 = vunpack.c.h.b16 %v587
        %v2039 = vunpack.c.l.b16 %v588
        %v2040 = vunpack.c.h.b16 %v588
        %v2041 = vunpack.c.l.b16 %v589
        %v2042 = vunpack.c.h.b16 %v589
        %v2043 = vunpack.c.l.b16 %v590
        %v2044 = vunpack.c.h.b16 %v590
        %v2045 = vunpack.c.l.b16 %v591
        %v2046 = vunpack.c.h.b16 %v591
        %v2047 = vunpack.c.l.b16 %v592
        %v2048 = vunpack.c.h.b16 %v592
        %v2049 = vunpack.c.l.b16 %v593
        %v2050 = vunpack.c.h.b16 %v593
        %v2051 = vunpack.c.l.b16 %v594
        %v2052 = vunpack.c.h.b16 %v594
        %v2053 = vunpack.c.l.b16 %v595
        %v2054 = vunpack.c.h.b16 %v595
        %v2055 = vunpack.c.l.b16 %v596
        %v2056 = vunpack.c.h.b16 %v596
        %v2057 = vunpack.c.l.b16 %v597
        %v2058 = vunpack.c.h.b16 %v597
        %v2059 = vunpack.c.l.b16 %v598
        %v2060 = vunpack.c.h.b16 %v598
        %v2061 = vunpack.c.l.b16 %v599
        %v2062 = vunpack.c.h.b16 %v599
        %v2063 = vunpack.c.l.b16 %v600
        %v2064 = vunpack.c.h.b16 %v600
        %v2065 = vunpack.c.l.b16 %v601
        %v2066 = vunpack.c.h.b16 %v601
        %v2067 = vunpack.c.l.b16 %v602
        %v2068 = vunpack.c.h.b16 %v602
        %v2069 = vunpack.c.l.b16 %v603
        %v2070 = vunpack.c.h.b16 %v603
        %v2071 = vunpack.c.l.b16 %v604
        %v2072 = vunpack.c.h.b16 %v604
        %v2073 = vunpack.c.l.b16 %v605
        %v2074 = vunpack.c.h.b16 %v605
        %v2075 = vunpack.c.l.b16 %v606
        %v2076 = vunpack.c.h.b16 %v606
        %v2077 = vunpack.c.l.b16 %v607
        %v2078 = vunpack.c.h.b16 %v607
        %v2079 = vunpack.c.l.b16 %v608
        %v2080 = vunpack.c.h.b16 %v608
        %v2081 = vunpack.c.l.b16 %v609
        %v2082 = vunpack.c.h.b16 %v609
        %v2083 = vunpack.c.l.b16 %v610
        %v2084 = vunpack.c.h.b16 %v610
        %v2085 = vunpack.c.l.b16 %v611
        %v2086 = vunpack.c.h.b16 %v611
        %v2087 = vunpack.c.l.b16 %v612
        %v2088 = vunpack.c.h.b16 %v612
        %v2089 = vunpack.c.l.b16 %v613
        %v2090 = vunpack.c.h.b16 %v613
        %v2091 = vunpack.c.l.b16 %v614
        %v2092 = vunpack.c.h.b16 %v614
        %v2093 = vunpack.c.l.b16 %v615
        %v2094 = vunpack.c.h.b16 %v615
        %v2095 = vunpack.c.l.b16 %v616
        %v2096 = vunpack.c.h.b16 %v616
        %v2097 = vunpack.c.l.b16 %v617
        %v2098 = vunpack.c.h.b16 %v617
        %v2099 = vunpack.c.l.b16 %v618
        %v2100 = vunpack.c.h.b16 %v618
        %v2101 = vunpack.c.l.b16 %v619
        %v2102 = vunpack.c.h.b16 %v619
        %v2103 = vunpack.c.l.b16 %v620
        %v2104 = vunpack.c.h.b16 %v620
        %v2105 = vunpack.c.l.b16 %v621
        %v2106 = vunpack.c.h.b16 %v621
        %v2107 = vunpack.c.l.b16 %v622
        %v2108 = vunpack.c.h.b16 %v622
        %v2109 = vunpack.c.l.b16 %v623
        %v2110 = vunpack.c.h.b16 %v623
        %v2111 = vunpack.c.l.b16 %v624
        %v2112 = vunpack.c.h.b16 %v624
        %v2113 = vunpack.c.l.b16 %v625
        %v2114 = vunpack.c.h.b16 %v625
        %v2115 = vunpack.c.l.b16 %v626
        %v2116 = vunpack.c.h.b16 %v626
        %v2117 = vunpack.c.l.b16 %v627
        %v2118 = vunpack.c.h.b16 %v627
        %v2119 = vunpack.c.l.b16 %v628
        %v2120 = vunpack.c.h.b16 %v628
        %v2121 = vunpack.c.l.b16 %v629
        %v2122 = vunpack.c.h.b16 %v629
        %v2123 = vunpack.c.l.b16 %v630
        %v2124 = vunpack.c.h.b16 %v630
        %v2125 = vunpack.c.l.b16 %v631
        %v2126 = vunpack.c.h.b16 %v631
        %v2127 = vunpack.c.l.b16 %v632
        %v2128 = vunpack.c.h.b16 %v632
        %v2129 = vunpack.c.l.b16 %v633
        %v2130 = vunpack.c.h.b16 %v633
        %v2131 = vunpack.c.l.b16 %v634
        %v2132 = vunpack.c.h.b16 %v634
        %v2133 = vunpack.c.l.b16 %v635
        %v2134 = vunpack.c.h.b16 %v635
        %v2135 = vunpack.c.l.b16 %v636
        %v2136 = vunpack.c.h.b16 %v636
        %v2137 = vunpack.c.l.b16 %v637
        %v2138 = vunpack.c.h.b16 %v637
        %v2139 = vunpack.c.l.b16 %v638
        %v2140 = vunpack.c.h.b16 %v638
        %v2141 = vunpack.c.l.b16 %v639
        %v2142 = vunpack.c.h.b16 %v639
        %v2143 = vunpack.c.l.b16 %v640
        %v2144 = vunpack.c.h.b16 %v640
        %v2145 = vunpack.c.l.b16 %v641
        %v2146 = vunpack.c.h.b16 %v641
        %v2147 = vunpack.c.l.b16 %v642
        %v2148 = vunpack.c.h.b16 %v642
        %v2149 = vunpack.c.l.b16 %v643
        %v2150 = vunpack.c.h.b16 %v643
        %v2151 = vunpack.c.l.b16 %v644
        %v2152 = vunpack.c.h.b16 %v644
        %v2153 = vunpack.c.l.b16 %v645
        %v2154 = vunpack.c.h.b16 %v645
        %v2155 = vunpack.c.l.b16 %v646
        %v2156 = vunpack.c.h.b16 %v646
        %v2157 = vunpack.c.l.b16 %v647
        %v2158 = vunpack.c.h.b16 %v647
        %v2159 = vunpack.c.l.b16 %v648
        %v2160 = vunpack.c.h.b16 %v648
        %v2161 = vunpack.c.l.b16 %v649
        %v2162 = vunpack.c.h.b16 %v649
        %v2163 = vunpack.c.l.b16 %v650
        %v2164 = vunpack.c.h.b16 %v650
        %v2165 = vunpack.c.l.b16 %v651
        %v2166 = vunpack.c.h.b16 %v651
        %v2167 = vunpack.c.l.b16 %v652
        %v2168 = vunpack.c.h.b16 %v652
        %v2169 = vunpack.c.l.b16 %v653
        %v2170 = vunpack.c.h.b16 %v653
        %v2171 = vunpack.c.l.b16 %v654
        %v2172 = vunpack.c.h.b16 %v654
        %v2173 = vunpack.c.l.b16 %v655
        %v2174 = vunpack.c.h.b16 %v655
        %v2175 = vunpack.c.l.b16 %v656
        %v2176 = vunpack.c.h.b16 %v656
        %v2177 = vunpack.c.l.b16 %v657
        %v2178 = vunpack.c.h.b16 %v657
        %v2179 = vunpack.c.l.b16 %v658
        %v2180 = vunpack.c.h.b16 %v658
        %v2181 = vunpack.c.l.b16 %v659
        %v2182 = vunpack.c.h.b16 %v659
        %v2183 = vunpack.c.l.b16 %v660
        %v2184 = vunpack.c.h.b16 %v660
        %v2185 = vunpack.c.l.b16 %v661
        %v2186 = vunpack.c.h.b16 %v661
        %v2187 = vunpack.c.l.b16 %v662
        %v2188 = vunpack.c.h.b16 %v662
        %v2189 = vunpack.c.l.b16 %v663
        %v2190 = vunpack.c.h.b16 %v663
        %v2191 = vunpack.c.l.b16 %v664
        %v2192 = vunpack.c.h.b16 %v664
        %v2193 = vunpack.c.l.b16 %v665
        %v2194 = vunpack.c.h.b16 %v665
        %v2195 = vunpack.c.l.b16 %v666
        %v2196 = vunpack.c.h.b16 %v666
        %v2197 = vunpack.c.l.b16 %v667
        %v2198 = vunpack.c.h.b16 %v667
        %v2199 = vunpack.c.l.b16 %v668
        %v2200 = vunpack.c.h.b16 %v668
        %v2201 = vunpack.c.l.b16 %v669
        %v2202 = vunpack.c.h.b16 %v669
        %v2203 = vunpack.c.l.b16 %v670
        %v2204 = vunpack.c.h.b16 %v670
        %v2205 = vunpack.c.l.b16 %v671
        %v2206 = vunpack.c.h.b16 %v671
        %v2207 = vunpack.c.l.b16 %v672
        %v2208 = vunpack.c.h.b16 %v672
        %v2209 = vunpack.c.l.b16 %v673
        %v2210 = vunpack.c.h.b16 %v673
        %v2211 = vunpack.c.l.b16 %v674
        %v2212 = vunpack.c.h.b16 %v674
        %v2213 = vunpack.c.l.b16 %v675
        %v2214 = vunpack.c.h.b16 %v675
        %v2215 = vunpack.c.l.b16 %v676
        %v2216 = vunpack.c.h.b16 %v676
        %v2217 = vunpack.c.l.b16 %v677
        %v2218 = vunpack.c.h.b16 %v677
        %v2219 = vunpack.c.l.b16 %v678
        %v2220 = vunpack.c.h.b16 %v678
        %v2221 = vunpack.c.l.b16 %v679
        %v2222 = vunpack.c.h.b16 %v679
        %v2223 = vunpack.c.l.b16 %v680
        %v2224 = vunpack.c.h.b16 %v680
        %v2225 = vunpack.c.l.b16 %v681
        %v2226 = vunpack.c.h.b16 %v681
        %v2227 = vunpack.c.l.b16 %v682
        %v2228 = vunpack.c.h.b16 %v682
        %v2229 = vunpack.c.l.b16 %v683
        %v2230 = vunpack.c.h.b16 %v683
        %v2231 = vunpack.c.l.b16 %v684
        %v2232 = vunpack.c.h.b16 %v684
        %v2233 = vunpack.c.l.b16 %v685
        %v2234 = vunpack.c.h.b16 %v685
        %v2235 = vunpack.c.l.b16 %v686
        %v2236 = vunpack.c.h.b16 %v686
        %v2237 = vunpack.c.l.b16 %v687
        %v2238 = vunpack.c.h.b16 %v687
        %v2239 = vunpack.c.l.b16 %v688
        %v2240 = vunpack.c.h.b16 %v688
        %v2241 = vunpack.c.l.b16 %v689
        %v2242 = vunpack.c.h.b16 %v689
        %v2243 = vunpack.c.l.b16 %v690
        %v2244 = vunpack.c.h.b16 %v690
        %v2245 = vunpack.c.l.b16 %v691
        %v2246 = vunpack.c.h.b16 %v691
        %v2247 = vunpack.c.l.b16 %v692
        %v2248 = vunpack.c.h.b16 %v692
        %v2249 = vunpack.c.l.b16 %v693
        %v2250 = vunpack.c.h.b16 %v693
        %v2251 = vunpack.c.l.b16 %v694
        %v2252 = vunpack.c.h.b16 %v694
        %v2253 = vunpack.c.l.b16 %v695
        %v2254 = vunpack.c.h.b16 %v695
        %v2255 = vunpack.c.l.b16 %v696
        %v2256 = vunpack.c.h.b16 %v696
        %v2257 = vunpack.c.l.b16 %v697
        %v2258 = vunpack.c.h.b16 %v697
        %v2259 = vunpack.c.l.b16 %v698
        %v2260 = vunpack.c.h.b16 %v698
        %v2261 = vunpack.c.l.b16 %v699
        %v2262 = vunpack.c.h.b16 %v699
        %v2263 = vunpack.c.l.b16 %v700
        %v2264 = vunpack.c.h.b16 %v700
        %v2265 = vunpack.c.l.b16 %v701
        %v2266 = vunpack.c.h.b16 %v701
        %v2267 = vunpack.c.l.b16 %v702
        %v2268 = vunpack.c.h.b16 %v702
        %v2269 = vunpack.c.l.b16 %v703
        %v2270 = vunpack.c.h.b16 %v703
        %v2271 = vunpack.c.l.b16 %v704
        %v2272 = vunpack.c.h.b16 %v704
        %v2273 = vunpack.c.l.b16 %v705
        %v2274 = vunpack.c.h.b16 %v705
        %v2275 = vunpack.c.l.b16 %v706
        %v2276 = vunpack.c.h.b16 %v706
        %v2277 = vunpack.c.l.b16 %v707
        %v2278 = vunpack.c.h.b16 %v707
        %v2279 = vunpack.c.l.b16 %v708
        %v2280 = vunpack.c.h.b16 %v708
        %v2281 = vunpack.c.l.b16 %v709
        %v2282 = vunpack.c.h.b16 %v709
        %v2283 = vunpack.c.l.b16 %v710
        %v2284 = vunpack.c.h.b16 %v710
        %v2285 = vunpack.c.l.b16 %v711
        %v2286 = vunpack.c.h.b16 %v711
        %v2287 = vunpack.c.l.b16 %v712
        %v2288 = vunpack.c.h.b16 %v712
        %v2289 = vunpack.c.l.b16 %v713
        %v2290 = vunpack.c.h.b16 %v713
        %v2291 = vunpack.c.l.b16 %v714
        %v2292 = vunpack.c.h.b16 %v714
        %v2293 = vunpack.c.l.b16 %v715
        %v2294 = vunpack.c.h.b16 %v715
        %v2295 = vunpack.c.l.b16 %v716
        %v2296 = vunpack.c.h.b16 %v716
        %v2297 = vunpack.c.l.b16 %v717
        %v2298 = vunpack.c.h.b16 %v717
        %v2299 = vunpack.c.l.b16 %v718
        %v2300 = vunpack.c.h.b16 %v718
        %v2301 = vunpack.c.l.b16 %v719
        %v2302 = vunpack.c.h.b16 %v719
        %v2303 = vunpack.c.l.b16 %v720
        %v2304 = vunpack.c.h.b16 %v720
        %v2305 = vunpack.c.l.b16 %v721
        %v2306 = vunpack.c.h.b16 %v721
        %v2307 = vunpack.c.l.b16 %v722
        %v2308 = vunpack.c.h.b16 %v722
        %v2309 = vunpack.c.l.b16 %v723
        %v2310 = vunpack.c.h.b16 %v723
        %v2311 = vunpack.c.l.b16 %v724
        %v2312 = vunpack.c.h.b16 %v724
        %v2313 = vunpack.c.l.b16 %v725
        %v2314 = vunpack.c.h.b16 %v725
        %v2315 = vunpack.c.l.b16 %v726
        %v2316 = vunpack.c.h.b16 %v726
        %v2317 = vunpack.c.l.b16 %v727
        %v2318 = vunpack.c.h.b16 %v727
        %v2319 = vunpack.c.l.b16 %v728
        %v2320 = vunpack.c.h.b16 %v728
        %v2321 = vunpack.c.l.b16 %v729
        %v2322 = vunpack.c.h.b16 %v729
        %v2323 = vunpack.c.l.b16 %v730
        %v2324 = vunpack.c.h.b16 %v730
        %v2325 = vunpack.c.l.b16 %v731
        %v2326 = vunpack.c.h.b16 %v731
        %v2327 = vunpack.c.l.b16 %v732
        %v2328 = vunpack.c.h.b16 %v732
        %v2329 = vunpack.c.l.b16 %v733
        %v2330 = vunpack.c.h.b16 %v733
        %v2331 = vunpack.c.l.b16 %v734
        %v2332 = vunpack.c.h.b16 %v734
        %v2333 = vunpack.c.l.b16 %v735
        %v2334 = vunpack.c.h.b16 %v735
        %v2335 = vunpack.c.l.b16 %v736
        %v2336 = vunpack.c.h.b16 %v736
        %v2337 = vunpack.c.l.b16 %v737
        %v2338 = vunpack.c.h.b16 %v737
        %v2339 = vunpack.c.l.b16 %v738
        %v2340 = vunpack.c.h.b16 %v738
        %v2341 = vunpack.c.l.b16 %v739
        %v2342 = vunpack.c.h.b16 %v739
        %v2343 = vunpack.c.l.b16 %v740
        %v2344 = vunpack.c.h.b16 %v740
        %v2345 = vunpack.c.l.b16 %v741
        %v2346 = vunpack.c.h.b16 %v741
        %v2347 = vunpack.c.l.b16 %v742
        %v2348 = vunpack.c.h.b16 %v742
        %v2349 = vunpack.c.l.b16 %v743
        %v2350 = vunpack.c.h.b16 %v743
        %v2351 = vunpack.c.l.b16 %v744
        %v2352 = vunpack.c.h.b16 %v744
        %v2353 = vunpack.c.l.b16 %v745
        %v2354 = vunpack.c.h.b16 %v745
        %v2355 = vunpack.c.l.b16 %v746
        %v2356 = vunpack.c.h.b16 %v746
        %v2357 = vunpack.c.l.b16 %v747
        %v2358 = vunpack.c.h.b16 %v747
        %v2359 = vunpack.c.l.b16 %v748
        %v2360 = vunpack.c.h.b16 %v748
        %v2361 = vunpack.c.l.b16 %v749
        %v2362 = vunpack.c.h.b16 %v749
        %v2363 = vunpack.c.l.b16 %v750
        %v2364 = vunpack.c.h.b16 %v750
        %v2365 = vunpack.c.l.b16 %v751
        %v2366 = vunpack.c.h.b16 %v751
        %v2367 = vunpack.c.l.b16 %v752
        %v2368 = vunpack.c.h.b16 %v752
        %v2369 = vunpack.c.l.b16 %v753
        %v2370 = vunpack.c.h.b16 %v753
        %v2371 = vunpack.c.l.b16 %v754
        %v2372 = vunpack.c.h.b16 %v754
        %v2373 = vunpack.c.l.b16 %v755
        %v2374 = vunpack.c.h.b16 %v755
        %v2375 = vunpack.c.l.b16 %v756
        %v2376 = vunpack.c.h.b16 %v756
        %v2377 = vunpack.c.l.b16 %v757
        %v2378 = vunpack.c.h.b16 %v757
        %v2379 = vunpack.c.l.b16 %v758
        %v2380 = vunpack.c.h.b16 %v758
        %v2381 = vunpack.c.l.b16 %v759
        %v2382 = vunpack.c.h.b16 %v759
        %v2383 = vunpack.c.l.b16 %v760
        %v2384 = vunpack.c.h.b16 %v760
        %v2385 = vunpack.c.l.b16 %v761
        %v2386 = vunpack.c.h.b16 %v761
        %v2387 = vunpack.c.l.b16 %v762
        %v2388 = vunpack.c.h.b16 %v762
        %v2389 = vunpack.c.l.b16 %v763
        %v2390 = vunpack.c.h.b16 %v763
        %v2391 = vunpack.c.l.b16 %v764
        %v2392 = vunpack.c.h.b16 %v764
        %v2393 = vunpack.c.l.b16 %v765
        %v2394 = vunpack.c.h.b16 %v765
        %v2395 = vunpack.c.l.b16 %v766
        %v2396 = vunpack.c.h.b16 %v766
        %v2397 = vunpack.c.l.b16 %v767
        %v2398 = vunpack.c.h.b16 %v767
        %v2399 = vunpack.c.l.b16 %v768
        %v2400 = vunpack.c.h.b16 %v768
        %v2401 = vunpack.c.l.b16 %v769
        %v2402 = vunpack.c.h.b16 %v769
        %v2403 = vunpack.c.l.b16 %v770
        %v2404 = vunpack.c.h.b16 %v770
        %v2405 = vunpack.c.l.b16 %v771
        %v2406 = vunpack.c.h.b16 %v771
        %v2407 = vunpack.c.l.b16 %v772
        %v2408 = vunpack.c.h.b16 %v772
        %v2409 = vunpack.c.l.b16 %v773
        %v2410 = vunpack.c.h.b16 %v773
        %v2411 = vunpack.c.l.b16 %v774
        %v2412 = vunpack.c.h.b16 %v774
        %v2413 = vunpack.c.l.b16 %v775
        %v2414 = vunpack.c.h.b16 %v775
        %v2415 = vunpack.c.l.b16 %v776
        %v2416 = vunpack.c.h.b16 %v776
        %v2417 = vunpack.c.l.b16 %v777
        %v2418 = vunpack.c.h.b16 %v777
        %v2419 = vunpack.c.l.b16 %v778
        %v2420 = vunpack.c.h.b16 %v778
        %v2421 = vunpack.c.l.b16 %v779
        %v2422 = vunpack.c.h.b16 %v779
        %v2423 = vunpack.c.l.b16 %v780
        %v2424 = vunpack.c.h.b16 %v780
        %v2425 = vunpack.c.l.b16 %v781
        %v2426 = vunpack.c.h.b16 %v781
        %v2427 = vunpack.c.l.b16 %v782
        %v2428 = vunpack.c.h.b16 %v782
        %v2429 = vunpack.c.l.b16 %v783
        %v2430 = vunpack.c.h.b16 %v783
        %v2431 = vunpack.c.l.b16 %v784
        %v2432 = vunpack.c.h.b16 %v784
        %v2433 = vunpack.c.l.b16 %v785
        %v2434 = vunpack.c.h.b16 %v785
        %v2435 = vunpack.c.l.b16 %v786
        %v2436 = vunpack.c.h.b16 %v786
        %v2437 = vunpack.c.l.b16 %v787
        %v2438 = vunpack.c.h.b16 %v787
        %v2439 = vunpack.c.l.b16 %v788
        %v2440 = vunpack.c.h.b16 %v788
        %v2441 = vunpack.c.l.b16 %v789
        %v2442 = vunpack.c.h.b16 %v789
        %v2443 = vunpack.c.l.b16 %v790
        %v2444 = vunpack.c.h.b16 %v790
        %v2445 = vunpack.c.l.b16 %v791
        %v2446 = vunpack.c.h.b16 %v791
        %v2447 = vunpack.c.l.b16 %v792
        %v2448 = vunpack.c.h.b16 %v792
        %v2449 = vunpack.c.l.b16 %v793
        %v2450 = vunpack.c.h.b16 %v793
        %v2451 = vunpack.c.l.b16 %v794
        %v2452 = vunpack.c.h.b16 %v794
        %v2453 = vunpack.c.l.b16 %v795
        %v2454 = vunpack.c.h.b16 %v795
        %v2455 = vunpack.c.l.b16 %v796
        %v2456 = vunpack.c.h.b16 %v796
        %v2457 = vunpack.c.l.b16 %v797
        %v2458 = vunpack.c.h.b16 %v797
        %v2459 = vunpack.c.l.b16 %v798
        %v2460 = vunpack.c.h.b16 %v798
        %v2461 = vunpack.c.l.b16 %v799
        %v2462 = vunpack.c.h.b16 %v799
        %v2463 = vunpack.c.l.b16 %v800
        %v2464 = vunpack.c.h.b16 %v800
        %v2465 = vunpack.c.l.b16 %v801
        %v2466 = vunpack.c.h.b16 %v801
        %v2467 = vunpack.c.l.b16 %v802
        %v2468 = vunpack.c.h.b16 %v802
        %v2469 = vunpack.c.l.b16 %v803
        %v2470 = vunpack.c.h.b16 %v803
        %v2471 = vunpack.c.l.b16 %v804
        %v2472 = vunpack.c.h.b16 %v804
        %v2473 = vunpack.c.l.b16 %v805
        %v2474 = vunpack.c.h.b16 %v805
        %v2475 = vunpack.c.l.b16 %v806
        %v2476 = vunpack.c.h.b16 %v806
        %v2477 = vunpack.c.l.b16 %v807
        %v2478 = vunpack.c.h.b16 %v807
        %v2479 = vunpack.c.l.b16 %v808
        %v2480 = vunpack.c.h.b16 %v808
        %v2481 = vunpack.c.l.b16 %v809
        %v2482 = vunpack.c.h.b16 %v809
        %v2483 = vunpack.c.l.b16 %v810
        %v2484 = vunpack.c.h.b16 %v810
        %v2485 = vunpack.c.l.b16 %v811
        %v2486 = vunpack.c.h.b16 %v811
        %v2487 = vunpack.c.l.b16 %v812
        %v2488 = vunpack.c.h.b16 %v812
        %v2489 = vunpack.c.l.b16 %v813
        %v2490 = vunpack.c.h.b16 %v813
        %v2491 = vunpack.c.l.b16 %v814
        %v2492 = vunpack.c.h.b16 %v814
        %v2493 = vunpack.c.l.b16 %v815
        %v2494 = vunpack.c.h.b16 %v815
        %v2495 = vunpack.c.l.b16 %v816
        %v2496 = vunpack.c.h.b16 %v816
        %v2497 = vunpack.c.l.b16 %v817
        %v2498 = vunpack.c.h.b16 %v817
        %v2499 = vunpack.c.l.b16 %v818
        %v2500 = vunpack.c.h.b16 %v818
        %v2501 = vunpack.c.l.b16 %v819
        %v2502 = vunpack.c.h.b16 %v819
        %v2503 = vunpack.c.l.b16 %v820
        %v2504 = vunpack.c.h.b16 %v820
        %v2505 = vunpack.c.l.b16 %v821
        %v2506 = vunpack.c.h.b16 %v821
        %v2507 = vunpack.c.l.b16 %v822
        %v2508 = vunpack.c.h.b16 %v822
        %v2509 = vunpack.c.l.b16 %v823
        %v2510 = vunpack.c.h.b16 %v823
        %v2511 = vunpack.c.l.b16 %v824
        %v2512 = vunpack.c.h.b16 %v824
        %v2513 = vunpack.c.l.b16 %v825
        %v2514 = vunpack.c.h.b16 %v825
        %v2515 = vunpack.c.l.b16 %v826
        %v2516 = vunpack.c.h.b16 %v826
        %v2517 = vunpack.c.l.b16 %v827
        %v2518 = vunpack.c.h.b16 %v827
        %v2519 = vunpack.c.l.b16 %v828
        %v2520 = vunpack.c.h.b16 %v828
        %v2521 = vunpack.c.l.b16 %v829
        %v2522 = vunpack.c.h.b16 %v829
        %v2523 = vunpack.c.l.b16 %v830
        %v2524 = vunpack.c.h.b16 %v830
        %v2525 = vunpack.c.l.b16 %v831
        %v2526 = vunpack.c.h.b16 %v831
        %v2527 = vunpack.c.l.b16 %v832
        %v2528 = vunpack.c.h.b16 %v832
        %v2529 = vunpack.c.l.b16 %v833
        %v2530 = vunpack.c.h.b16 %v833
        %v2531 = vunpack.c.l.b16 %v834
        %v2532 = vunpack.c.h.b16 %v834
        %v2533 = vunpack.c.l.b16 %v835
        %v2534 = vunpack.c.h.b16 %v835
        %v2535 = vunpack.c.l.b16 %v836
        %v2536 = vunpack.c.h.b16 %v836
        %v2537 = vunpack.c.l.b16 %v837
        %v2538 = vunpack.c.h.b16 %v837
        %v2539 = vunpack.c.l.b16 %v838
        %v2540 = vunpack.c.h.b16 %v838
        %v2541 = vunpack.c.l.b16 %v839
        %v2542 = vunpack.c.h.b16 %v839
        %v2543 = vunpack.c.l.b16 %v840
        %v2544 = vunpack.c.h.b16 %v840
        %v2545 = vunpack.c.l.b16 %v841
        %v2546 = vunpack.c.h.b16 %v841
        %v2547 = vunpack.c.l.b16 %v842
        %v2548 = vunpack.c.h.b16 %v842
        %v2549 = vunpack.c.l.b16 %v843
        %v2550 = vunpack.c.h.b16 %v843
        %v2551 = vunpack.c.l.b16 %v844
        %v2552 = vunpack.c.h.b16 %v844
        %v2553 = vunpack.c.l.b16 %v845
        %v2554 = vunpack.c.h.b16 %v845
        %v2555 = vunpack.c.l.b16 %v846
        %v2556 = vunpack.c.h.b16 %v846
        %v2557 = vunpack.c.l.b16 %v847
        %v2558 = vunpack.c.h.b16 %v847
        %v2559 = vunpack.c.l.b16 %v848
        %v2560 = vunpack.c.h.b16 %v848
        %v2561 = vunpack.c.l.b16 %v849
        %v2562 = vunpack.c.h.b16 %v849
        %v2563 = vunpack.c.l.b16 %v850
        %v2564 = vunpack.c.h.b16 %v850
        %v2565 = vunpack.c.l.b16 %v851
        %v2566 = vunpack.c.h.b16 %v851
        %v2567 = vunpack.c.l.b16 %v852
        %v2568 = vunpack.c.h.b16 %v852
        %v2569 = vunpack.c.l.b16 %v853
        %v2570 = vunpack.c.h.b16 %v853
        %v2571 = vunpack.c.l.b16 %v854
        %v2572 = vunpack.c.h.b16 %v854
        %v2573 = vunpack.c.l.b16 %v855
        %v2574 = vunpack.c.h.b16 %v855
        %v2575 = vunpack.c.l.b16 %v856
        %v2576 = vunpack.c.h.b16 %v856
        %v2577 = vunpack.c.l.b16 %v857
        %v2578 = vunpack.c.h.b16 %v857
        %v2579 = vunpack.c.l.b16 %v858
        %v2580 = vunpack.c.h.b16 %v858
        %v2581 = vunpack.c.l.b16 %v859
        %v2582 = vunpack.c.h.b16 %v859
        %v2583 = vunpack.c.l.b16 %v860
        %v2584 = vunpack.c.h.b16 %v860
        %v2585 = vunpack.c.l.b16 %v861
        %v2586 = vunpack.c.h.b16 %v861
        %v2587 = vunpack.c.l.b16 %v862
        %v2588 = vunpack.c.h.b16 %v862
        %v2589 = vunpack.c.l.b16 %v863
        %v2590 = vunpack.c.h.b16 %v863
        %v2591 = vunpack.c.l.b16 %v864
        %v2592 = vunpack.c.h.b16 %v864
        %v2593 = vunpack.c.l.b16 %v865
        %v2594 = vunpack.c.h.b16 %v865
        %v2595 = vunpack.c.l.b16 %v866
        %v2596 = vunpack.c.h.b16 %v866
        %v2597 = vunpack.c.l.b16 %v867
        %v2598 = vunpack.c.h.b16 %v867
        %v2599 = vunpack.c.l.b16 %v868
        %v2600 = vunpack.c.h.b16 %v868
        %v2601 = vunpack.c.l.b16 %v869
        %v2602 = vunpack.c.h.b16 %v869
        %v2603 = vunpack.c.l.b16 %v870
        %v2604 = vunpack.c.h.b16 %v870
        %v2605 = vunpack.c.l.b16 %v871
        %v2606 = vunpack.c.h.b16 %v871
        %v2607 = vunpack.c.l.b16 %v872
        %v2608 = vunpack.c.h.b16 %v872
        %v2609 = vunpack.c.l.b16 %v873
        %v2610 = vunpack.c.h.b16 %v873
        %v2611 = vunpack.c.l.b16 %v874
        %v2612 = vunpack.c.h.b16 %v874
        %v2613 = vunpack.c.l.b16 %v875
        %v2614 = vunpack.c.h.b16 %v875
        %v2615 = vunpack.c.l.b16 %v876
        %v2616 = vunpack.c.h.b16 %v876
        %v2617 = vunpack.c.l.b16 %v877
        %v2618 = vunpack.c.h.b16 %v877
        %v2619 = vunpack.c.l.b16 %v878
        %v2620 = vunpack.c.h.b16 %v878
        %v2621 = vunpack.c.l.b16 %v879
        %v2622 = vunpack.c.h.b16 %v879
        %v2623 = vunpack.c.l.b16 %v880
        %v2624 = vunpack.c.h.b16 %v880
        %v2625 = vunpack.c.l.b16 %v881
        %v2626 = vunpack.c.h.b16 %v881
        %v2627 = vunpack.c.l.b16 %v882
        %v2628 = vunpack.c.h.b16 %v882
        %v2629 = vunpack.c.l.b16 %v883
        %v2630 = vunpack.c.h.b16 %v883
        %v2631 = vunpack.c.l.b16 %v884
        %v2632 = vunpack.c.h.b16 %v884
        %v2633 = vunpack.c.l.b16 %v885
        %v2634 = vunpack.c.h.b16 %v885
        %v2635 = vunpack.c.l.b16 %v886
        %v2636 = vunpack.c.h.b16 %v886
        %v2637 = vunpack.c.l.b16 %v887
        %v2638 = vunpack.c.h.b16 %v887
        %v2639 = vunpack.c.l.b16 %v888
        %v2640 = vunpack.c.h.b16 %v888
        %v2641 = vunpack.c.l.b16 %v889
        %v2642 = vunpack.c.h.b16 %v889
        %v2643 = vunpack.c.l.b16 %v890
        %v2644 = vunpack.c.h.b16 %v890
        %v2645 = vunpack.c.l.b16 %v891
        %v2646 = vunpack.c.h.b16 %v891
        %v2647 = vunpack.c.l.b16 %v892
        %v2648 = vunpack.c.h.b16 %v892
        %v2649 = vunpack.c.l.b16 %v893
        %v2650 = vunpack.c.h.b16 %v893
        %v2651 = vunpack.c.l.b16 %v894
        %v2652 = vunpack.c.h.b16 %v894
        %v2653 = vunpack.c.l.b16 %v895
        %v2654 = vunpack.c.h.b16 %v895
        %v2655 = vunpack.c.l.b16 %v896
        %v2656 = vunpack.c.h.b16 %v896
        %v2657 = vunpack.c.l.b16 %v897
        %v2658 = vunpack.c.h.b16 %v897
        %v2659 = vunpack.c.l.b16 %v898
        %v2660 = vunpack.c.h.b16 %v898
        %v2661 = vunpack.c.l.b16 %v899
        %v2662 = vunpack.c.h.b16 %v899
        %v2663 = vunpack.c.l.b16 %v900
        %v2664 = vunpack.c.h.b16 %v900
        %v2665 = vunpack.c.l.b16 %v901
        %v2666 = vunpack.c.h.b16 %v901
        %v2667 = vunpack.c.l.b16 %v902
        %v2668 = vunpack.c.h.b16 %v902
        %v2669 = vunpack.c.l.b16 %v903
        %v2670 = vunpack.c.h.b16 %v903
        %v2671 = vunpack.c.l.b16 %v904
        %v2672 = vunpack.c.h.b16 %v904
        %v2673 = vunpack.c.l.b16 %v905
        %v2674 = vunpack.c.h.b16 %v905
        %v2675 = vunpack.c.l.b16 %v906
        %v2676 = vunpack.c.h.b16 %v906
        %v2677 = vunpack.c.l.b16 %v907
        %v2678 = vunpack.c.h.b16 %v907
        %v2679 = vunpack.c.l.b16 %v908
        %v2680 = vunpack.c.h.b16 %v908
        %v2681 = vunpack.c.l.b16 %v909
        %v2682 = vunpack.c.h.b16 %v909
        %v2683 = vunpack.c.l.b16 %v910
        %v2684 = vunpack.c.h.b16 %v910
        %v2685 = vunpack.c.l.b16 %v911
        %v2686 = vunpack.c.h.b16 %v911
        %v2687 = vunpack.c.l.b16 %v912
        %v2688 = vunpack.c.h.b16 %v912
        %v2689 = vunpack.c.l.b16 %v913
        %v2690 = vunpack.c.h.b16 %v913
        %v2691 = vunpack.c.l.b16 %v914
        %v2692 = vunpack.c.h.b16 %v914
        %v2693 = vunpack.c.l.b16 %v915
        %v2694 = vunpack.c.h.b16 %v915
        %v2695 = vunpack.c.l.b16 %v916
        %v2696 = vunpack.c.h.b16 %v916
        %v2697 = vunpack.c.l.b16 %v917
        %v2698 = vunpack.c.h.b16 %v917
        %v2699 = vunpack.c.l.b16 %v918
        %v2700 = vunpack.c.h.b16 %v918
        %v2701 = vunpack.c.l.b16 %v919
        %v2702 = vunpack.c.h.b16 %v919
        %v2703 = vunpack.c.l.b16 %v920
        %v2704 = vunpack.c.h.b16 %v920
        %v2705 = vunpack.c.l.b16 %v921
        %v2706 = vunpack.c.h.b16 %v921
        %v2707 = vunpack.c.l.b16 %v922
        %v2708 = vunpack.c.h.b16 %v922
        %v2709 = vunpack.c.l.b16 %v923
        %v2710 = vunpack.c.h.b16 %v923
        %v2711 = vunpack.c.l.b16 %v924
        %v2712 = vunpack.c.h.b16 %v924
        %v2713 = vunpack.c.l.b16 %v925
        %v2714 = vunpack.c.h.b16 %v925
        %v2715 = vunpack.c.l.b16 %v926
        %v2716 = vunpack.c.h.b16 %v926
        %v2717 = vunpack.c.l.b16 %v927
        %v2718 = vunpack.c.h.b16 %v927
        %v2719 = vunpack.c.l.b16 %v928
        %v2720 = vunpack.c.h.b16 %v928
        %v2721 = vpack.c.b16 %v1581, %v1569
        %v2722 = vpack.c.b16 %v1582, %v1570
        %v2723 = vpack.c.b16 %v1583, %v1571
        %v2724 = vpack.c.b16 %v1584, %v1572
        %v2725 = vpack.c.b16 %v1585, %v1573
        %v2726 = vpack.c.b16 %v1586, %v1574
        %v2727 = vpack.c.b16 %v1587, %v1575
        %v2728 = vpack.c.b16 %v1588, %v1576
        %v2729 = vpack.c.b16 %v1589, %v1577
        %v2730 = vpack.c.b16 %v1590, %v1578
        %v2731 = vpack.c.b16 %v1591, %v1579
        %v2732 = vpack.c.b16 %v1592, %v1580
        %v2733 = vpack.c.b16 %v1605, %v1593
        %v2734 = vpack.c.b16 %v1606, %v1594
        %v2735 = vpack.c.b16 %v1607, %v1595
        %v2736 = vpack.c.b16 %v1608, %v1596
        %v2737 = vpack.c.b16 %v1609, %v1597
        %v2738 = vpack.c.b16 %v1610, %v1598
        %v2739 = vpack.c.b16 %v1611, %v1599
        %v2740 = vpack.c.b16 %v1612, %v1600
        %v2741 = vpack.c.b16 %v1613, %v1601
        %v2742 = vpack.c.b16 %v1614, %v1602
        %v2743 = vpack.c.b16 %v1615, %v1603
        %v2744 = vpack.c.b16 %v1616, %v1604
        %v2745 = vpack.c.b16 %v1629, %v1617
        %v2746 = vpack.c.b16 %v1630, %v1618
        %v2747 = vpack.c.b16 %v1631, %v1619
        %v2748 = vpack.c.b16 %v1632, %v1620
        %v2749 = vpack.c.b16 %v1633, %v1621
        %v2750 = vpack.c.b16 %v1634, %v1622
        %v2751 = vpack.c.b16 %v1635, %v1623
        %v2752 = vpack.c.b16 %v1636, %v1624
        %v2753 = vpack.c.b16 %v1637, %v1625
        %v2754 = vpack.c.b16 %v1638, %v1626
        %v2755 = vpack.c.b16 %v1639, %v1627
        %v2756 = vpack.c.b16 %v1640, %v1628
        %v2757 = vpack.c.b16 %v1653, %v1641
        %v2758 = vpack.c.b16 %v1654, %v1642
        %v2759 = vpack.c.b16 %v1655, %v1643
        %v2760 = vpack.c.b16 %v1656, %v1644
        %v2761 = vpack.c.b16 %v1657, %v1645
        %v2762 = vpack.c.b16 %v1658, %v1646
        %v2763 = vpack.c.b16 %v1659, %v1647
        %v2764 = vpack.c.b16 %v1660, %v1648
        %v2765 = vpack.c.b16 %v1661, %v1649
        %v2766 = vpack.c.b16 %v1662, %v1650
        %v2767 = vpack.c.b16 %v1663, %v1651
        %v2768 = vpack.c.b16 %v1664, %v1652
        %v2769 = vpack.c.b16 %v1677, %v1665
        %v2770 = vpack.c.b16 %v1678, %v1666
        %v2771 = vpack.c.b16 %v1679, %v1667
        %v2772 = vpack.c.b16 %v1680, %v1668
        %v2773 = vpack.c.b16 %v1681, %v1669
        %v2774 = vpack.c.b16 %v1682, %v1670
        %v2775 = vpack.c.b16 %v1683, %v1671
        %v2776 = vpack.c.b16 %v1684, %v1672
        %v2777 = vpack.c.b16 %v1685, %v1673
        %v2778 = vpack.c.b16 %v1686, %v1674
        %v2779 = vpack.c.b16 %v1687, %v1675
        %v2780 = vpack.c.b16 %v1688, %v1676
        %v2781 = vpack.c.b16 %v1701, %v1689
        %v2782 = vpack.c.b16 %v1702, %v1690
        %v2783 = vpack.c.b16 %v1703, %v1691
        %v2784 = vpack.c.b16 %v1704, %v1692
        %v2785 = vpack.c.b16 %v1705, %v1693
        %v2786 = vpack.c.b16 %v1706, %v1694
        %v2787 = vpack.c.b16 %v1707, %v1695
        %v2788 = vpack.c.b16 %v1708, %v1696
        %v2789 = vpack.c.b16 %v1709, %v1697
        %v2790 = vpack.c.b16 %v1710, %v1698
        %v2791 = vpack.c.b16 %v1711, %v1699
        %v2792 = vpack.c.b16 %v1712, %v1700
        %v2793 = vpack.c.b16 %v1725, %v1713
        %v2794 = vpack.c.b16 %v1726, %v1714
        %v2795 = vpack.c.b16 %v1727, %v1715
        %v2796 = vpack.c.b16 %v1728, %v1716
        %v2797 = vpack.c.b16 %v1729, %v1717
        %v2798 = vpack.c.b16 %v1730, %v1718
        %v2799 = vpack.c.b16 %v1731, %v1719
        %v2800 = vpack.c.b16 %v1732, %v1720
        %v2801 = vpack.c.b16 %v1733, %v1721
        %v2802 = vpack.c.b16 %v1734, %v1722
        %v2803 = vpack.c.b16 %v1735, %v1723
        %v2804 = vpack.c.b16 %v1736, %v1724
        %v2805 = vpack.c.b16 %v1749, %v1737
        %v2806 = vpack.c.b16 %v1750, %v1738
        %v2807 = vpack.c.b16 %v1751, %v1739
        %v2808 = vpack.c.b16 %v1752, %v1740
        %v2809 = vpack.c.b16 %v1753, %v1741
        %v2810 = vpack.c.b16 %v1754, %v1742
        %v2811 = vpack.c.b16 %v1755, %v1743
        %v2812 = vpack.c.b16 %v1756, %v1744
        %v2813 = vpack.c.b16 %v1757, %v1745
        %v2814 = vpack.c.b16 %v1758, %v1746
        %v2815 = vpack.c.b16 %v1759, %v1747
        %v2816 = vpack.c.b16 %v1760, %v1748
        %v2817 = vpack.c.b16 %v1773, %v1761
        %v2818 = vpack.c.b16 %v1774, %v1762
        %v2819 = vpack.c.b16 %v1775, %v1763
        %v2820 = vpack.c.b16 %v1776, %v1764
        %v2821 = vpack.c.b16 %v1777, %v1765
        %v2822 = vpack.c.b16 %v1778, %v1766
        %v2823 = vpack.c.b16 %v1779, %v1767
        %v2824 = vpack.c.b16 %v1780, %v1768
        %v2825 = vpack.c.b16 %v1781, %v1769
        %v2826 = vpack.c.b16 %v1782, %v1770
        %v2827 = vpack.c.b16 %v1783, %v1771
        %v2828 = vpack.c.b16 %v1784, %v1772
        %v2829 = vpack.c.b16 %v1797, %v1785
        %v2830 = vpack.c.b16 %v1798, %v1786
        %v2831 = vpack.c.b16 %v1799, %v1787
        %v2832 = vpack.c.b16 %v1800, %v1788
        %v2833 = vpack.c.b16 %v1801, %v1789
        %v2834 = vpack.c.b16 %v1802, %v1790
        %v2835 = vpack.c.b16 %v1803, %v1791
        %v2836 = vpack.c.b16 %v1804, %v1792
        %v2837 = vpack.c.b16 %v1805, %v1793
        %v2838 = vpack.c.b16 %v1806, %v1794
        %v2839 = vpack.c.b16 %v1807, %v1795
        %v2840 = vpack.c.b16 %v1808, %v1796
        %v2841 = vpack.c.b16 %v1821, %v1809
        %v2842 = vpack.c.b16 %v1822, %v1810
        %v2843 = vpack.c.b16 %v1823, %v1811
        %v2844 = vpack.c.b16 %v1824, %v1812
        %v2845 = vpack.c.b16 %v1825, %v1813
        %v2846 = vpack.c.b16 %v1826, %v1814
        %v2847 = vpack.c.b16 %v1827, %v1815
        %v2848 = vpack.c.b16 %v1828, %v1816
        %v2849 = vpack.c.b16 %v1829, %v1817
        %v2850 = vpack.c.b16 %v1830, %v1818
        %v2851 = vpack.c.b16 %v1831, %v1819
        %v2852 = vpack.c.b16 %v1832, %v1820
        %v2853 = vpack.c.b16 %v1845, %v1833
        %v2854 = vpack.c.b16 %v1846, %v1834
        %v2855 = vpack.c.b16 %v1847, %v1835
        %v2856 = vpack.c.b16 %v1848, %v1836
        %v2857 = vpack.c.b16 %v1849, %v1837
        %v2858 = vpack.c.b16 %v1850, %v1838
        %v2859 = vpack.c.b16 %v1851, %v1839
        %v2860 = vpack.c.b16 %v1852, %v1840
        %v2861 = vpack.c.b16 %v1853, %v1841
        %v2862 = vpack.c.b16 %v1854, %v1842
        %v2863 = vpack.c.b16 %v1855, %v1843
        %v2864 = vpack.c.b16 %v1856, %v1844
        %v2865 = vpack.c.b16 %v1869, %v1857
        %v2866 = vpack.c.b16 %v1870, %v1858
        %v2867 = vpack.c.b16 %v1871, %v1859
        %v2868 = vpack.c.b16 %v1872, %v1860
        %v2869 = vpack.c.b16 %v1873, %v1861
        %v2870 = vpack.c.b16 %v1874, %v1862
        %v2871 = vpack.c.b16 %v1875, %v1863
        %v2872 = vpack.c.b16 %v1876, %v1864
        %v2873 = vpack.c.b16 %v1877, %v1865
        %v2874 = vpack.c.b16 %v1878, %v1866
        %v2875 = vpack.c.b16 %v1879, %v1867
        %v2876 = vpack.c.b16 %v1880, %v1868
        %v2877 = vpack.c.b16 %v1893, %v1881
        %v2878 = vpack.c.b16 %v1894, %v1882
        %v2879 = vpack.c.b16 %v1895, %v1883
        %v2880 = vpack.c.b16 %v1896, %v1884
        %v2881 = vpack.c.b16 %v1897, %v1885
        %v2882 = vpack.c.b16 %v1898, %v1886
        %v2883 = vpack.c.b16 %v1899, %v1887
        %v2884 = vpack.c.b16 %v1900, %v1888
        %v2885 = vpack.c.b16 %v1901, %v1889
        %v2886 = vpack.c.b16 %v1902, %v1890
        %v2887 = vpack.c.b16 %v1903, %v1891
        %v2888 = vpack.c.b16 %v1904, %v1892
        %v2889 = vpack.c.b16 %v1917, %v1905
        %v2890 = vpack.c.b16 %v1918, %v1906
        %v2891 = vpack.c.b16 %v1919, %v1907
        %v2892 = vpack.c.b16 %v1920, %v1908
        %v2893 = vpack.c.b16 %v1921, %v1909
        %v2894 = vpack.c.b16 %v1922, %v1910
        %v2895 = vpack.c.b16 %v1923, %v1911
        %v2896 = vpack.c.b16 %v1924, %v1912
        %v2897 = vpack.c.b16 %v1925, %v1913
        %v2898 = vpack.c.b16 %v1926, %v1914
        %v2899 = vpack.c.b16 %v1927, %v1915
        %v2900 = vpack.c.b16 %v1928, %v1916
        %v2901 = vpack.c.b16 %v1941, %v1929
        %v2902 = vpack.c.b16 %v1942, %v1930
        %v2903 = vpack.c.b16 %v1943, %v1931
        %v2904 = vpack.c.b16 %v1944, %v1932
        %v2905 = vpack.c.b16 %v1945, %v1933
        %v2906 = vpack.c.b16 %v1946, %v1934
        %v2907 = vpack.c.b16 %v1947, %v1935
        %v2908 = vpack.c.b16 %v1948, %v1936
        %v2909 = vpack.c.b16 %v1949, %v1937
        %v2910 = vpack.c.b16 %v1950, %v1938
        %v2911 = vpack.c.b16 %v1951, %v1939
        %v2912 = vpack.c.b16 %v1952, %v1940
        %v2913 = vpack.c.b16 %v1965, %v1953
        %v2914 = vpack.c.b16 %v1966, %v1954
        %v2915 = vpack.c.b16 %v1967, %v1955
        %v2916 = vpack.c.b16 %v1968, %v1956
        %v2917 = vpack.c.b16 %v1969, %v1957
        %v2918 = vpack.c.b16 %v1970, %v1958
        %v2919 = vpack.c.b16 %v1971, %v1959
        %v2920 = vpack.c.b16 %v1972, %v1960
        %v2921 = vpack.c.b16 %v1973, %v1961
        %v2922 = vpack.c.b16 %v1974, %v1962
        %v2923 = vpack.c.b16 %v1975, %v1963
        %v2924 = vpack.c.b16 %v1976, %v1964
        %v2925 = vpack.c.b16 %v1989, %v1977
        %v2926 = vpack.c.b16 %v1990, %v1978
        %v2927 = vpack.c.b16 %v1991, %v1979
        %v2928 = vpack.c.b16 %v1992, %v1980
        %v2929 = vpack.c.b16 %v1993, %v1981
        %v2930 = vpack.c.b16 %v1994, %v1982
        %v2931 = vpack.c.b16 %v1995, %v1983
        %v2932 = vpack.c.b16 %v1996, %v1984
        %v2933 = vpack.c.b16 %v1997, %v1985
        %v2934 = vpack.c.b16 %v1998, %v1986
        %v2935 = vpack.c.b16 %v1999, %v1987
        %v2936 = vpack.c.b16 %v2000, %v1988
        %v2937 = vpack.c.b16 %v2013, %v2001
        %v2938 = vpack.c.b16 %v2014, %v2002
        %v2939 = vpack.c.b16 %v2015, %v2003
        %v2940 = vpack.c.b16 %v2016, %v2004
        %v2941 = vpack.c.b16 %v2017, %v2005
        %v2942 = vpack.c.b16 %v2018, %v2006
        %v2943 = vpack.c.b16 %v2019, %v2007
        %v2944 = vpack.c.b16 %v2020, %v2008
        %v2945 = vpack.c.b16 %v2021, %v2009
        %v2946 = vpack.c.b16 %v2022, %v2010
        %v2947 = vpack.c.b16 %v2023, %v2011
        %v2948 = vpack.c.b16 %v2024, %v2012
        %v2949 = vpack.c.b16 %v2037, %v2025
        %v2950 = vpack.c.b16 %v2038, %v2026
        %v2951 = vpack.c.b16 %v2039, %v2027
        %v2952 = vpack.c.b16 %v2040, %v2028
        %v2953 = vpack.c.b16 %v2041, %v2029
        %v2954 = vpack.c.b16 %v2042, %v2030
        %v2955 = vpack.c.b16 %v2043, %v2031
        %v2956 = vpack.c.b16 %v2044, %v2032
        %v2957 = vpack.c.b16 %v2045, %v2033
        %v2958 = vpack.c.b16 %v2046, %v2034
        %v2959 = vpack.c.b16 %v2047, %v2035
        %v2960 = vpack.c.b16 %v2048, %v2036
        %v2961 = vpack.c.b16 %v2061, %v2049
        %v2962 = vpack.c.b16 %v2062, %v2050
        %v2963 = vpack.c.b16 %v2063, %v2051
        %v2964 = vpack.c.b16 %v2064, %v2052
        %v2965 = vpack.c.b16 %v2065, %v2053
        %v2966 = vpack.c.b16 %v2066, %v2054
        %v2967 = vpack.c.b16 %v2067, %v2055
        %v2968 = vpack.c.b16 %v2068, %v2056
        %v2969 = vpack.c.b16 %v2069, %v2057
        %v2970 = vpack.c.b16 %v2070, %v2058
        %v2971 = vpack.c.b16 %v2071, %v2059
        %v2972 = vpack.c.b16 %v2072, %v2060
        %v2973 = vpack.c.b16 %v2085, %v2073
        %v2974 = vpack.c.b16 %v2086, %v2074
        %v2975 = vpack.c.b16 %v2087, %v2075
        %v2976 = vpack.c.b16 %v2088, %v2076
        %v2977 = vpack.c.b16 %v2089, %v2077
        %v2978 = vpack.c.b16 %v2090, %v2078
        %v2979 = vpack.c.b16 %v2091, %v2079
        %v2980 = vpack.c.b16 %v2092, %v2080
        %v2981 = vpack.c.b16 %v2093, %v2081
        %v2982 = vpack.c.b16 %v2094, %v2082
        %v2983 = vpack.c.b16 %v2095, %v2083
        %v2984 = vpack.c.b16 %v2096, %v2084
        %v2985 = vpack.c.b16 %v2109, %v2097
        %v2986 = vpack.c.b16 %v2110, %v2098
        %v2987 = vpack.c.b16 %v2111, %v2099
        %v2988 = vpack.c.b16 %v2112, %v2100
        %v2989 = vpack.c.b16 %v2113, %v2101
        %v2990 = vpack.c.b16 %v2114, %v2102
        %v2991 = vpack.c.b16 %v2115, %v2103
        %v2992 = vpack.c.b16 %v2116, %v2104
        %v2993 = vpack.c.b16 %v2117, %v2105
        %v2994 = vpack.c.b16 %v2118, %v2106
        %v2995 = vpack.c.b16 %v2119, %v2107
        %v2996 = vpack.c.b16 %v2120, %v2108
        %v2997 = vpack.c.b16 %v2133, %v2121
        %v2998 = vpack.c.b16 %v2134, %v2122
        %v2999 = vpack.c.b16 %v2135, %v2123
        %v3000 = vpack.c.b16 %v2136, %v2124
        %v3001 = vpack.c.b16 %v2137, %v2125
        %v3002 = vpack.c.b16 %v2138, %v2126
        %v3003 = vpack.c.b16 %v2139, %v2127
        %v3004 = vpack.c.b16 %v2140, %v2128
        %v3005 = vpack.c.b16 %v2141, %v2129
        %v3006 = vpack.c.b16 %v2142, %v2130
        %v3007 = vpack.c.b16 %v2143, %v2131
        %v3008 = vpack.c.b16 %v2144, %v2132
        %v3009 = vpack.c.b16 %v2157, %v2145
        %v3010 = vpack.c.b16 %v2158, %v2146
        %v3011 = vpack.c.b16 %v2159, %v2147
        %v3012 = vpack.c.b16 %v2160, %v2148
        %v3013 = vpack.c.b16 %v2161, %v2149
        %v3014 = vpack.c.b16 %v2162, %v2150
        %v3015 = vpack.c.b16 %v2163, %v2151
        %v3016 = vpack.c.b16 %v2164, %v2152
        %v3017 = vpack.c.b16 %v2165, %v2153
        %v3018 = vpack.c.b16 %v2166, %v2154
        %v3019 = vpack.c.b16 %v2167, %v2155
        %v3020 = vpack.c.b16 %v2168, %v2156
        %v3021 = vpack.c.b16 %v2181, %v2169
        %v3022 = vpack.c.b16 %v2182, %v2170
        %v3023 = vpack.c.b16 %v2183, %v2171
        %v3024 = vpack.c.b16 %v2184, %v2172
        %v3025 = vpack.c.b16 %v2185, %v2173
        %v3026 = vpack.c.b16 %v2186, %v2174
        %v3027 = vpack.c.b16 %v2187, %v2175
        %v3028 = vpack.c.b16 %v2188, %v2176
        %v3029 = vpack.c.b16 %v2189, %v2177
        %v3030 = vpack.c.b16 %v2190, %v2178
        %v3031 = vpack.c.b16 %v2191, %v2179
        %v3032 = vpack.c.b16 %v2192, %v2180
        %v3033 = vpack.c.b16 %v2205, %v2193
        %v3034 = vpack.c.b16 %v2206, %v2194
        %v3035 = vpack.c.b16 %v2207, %v2195
        %v3036 = vpack.c.b16 %v2208, %v2196
        %v3037 = vpack.c.b16 %v2209, %v2197
        %v3038 = vpack.c.b16 %v2210, %v2198
        %v3039 = vpack.c.b16 %v2211, %v2199
        %v3040 = vpack.c.b16 %v2212, %v2200
        %v3041 = vpack.c.b16 %v2213, %v2201
        %v3042 = vpack.c.b16 %v2214, %v2202
        %v3043 = vpack.c.b16 %v2215, %v2203
        %v3044 = vpack.c.b16 %v2216, %v2204
        %v3045 = vpack.c.b16 %v2229, %v2217
        %v3046 = vpack.c.b16 %v2230, %v2218
        %v3047 = vpack.c.b16 %v2231, %v2219
        %v3048 = vpack.c.b16 %v2232, %v2220
        %v3049 = vpack.c.b16 %v2233, %v2221
        %v3050 = vpack.c.b16 %v2234, %v2222
        %v3051 = vpack.c.b16 %v2235, %v2223
        %v3052 = vpack.c.b16 %v2236, %v2224
        %v3053 = vpack.c.b16 %v2237, %v2225
        %v3054 = vpack.c.b16 %v2238, %v2226
        %v3055 = vpack.c.b16 %v2239, %v2227
        %v3056 = vpack.c.b16 %v2240, %v2228
        %v3057 = vpack.c.b16 %v2253, %v2241
        %v3058 = vpack.c.b16 %v2254, %v2242
        %v3059 = vpack.c.b16 %v2255, %v2243
        %v3060 = vpack.c.b16 %v2256, %v2244
        %v3061 = vpack.c.b16 %v2257, %v2245
        %v3062 = vpack.c.b16 %v2258, %v2246
        %v3063 = vpack.c.b16 %v2259, %v2247
        %v3064 = vpack.c.b16 %v2260, %v2248
        %v3065 = vpack.c.b16 %v2261, %v2249
        %v3066 = vpack.c.b16 %v2262, %v2250
        %v3067 = vpack.c.b16 %v2263, %v2251
        %v3068 = vpack.c.b16 %v2264, %v2252
        %v3069 = vpack.c.b16 %v2277, %v2265
        %v3070 = vpack.c.b16 %v2278, %v2266
        %v3071 = vpack.c.b16 %v2279, %v2267
        %v3072 = vpack.c.b16 %v2280, %v2268
        %v3073 = vpack.c.b16 %v2281, %v2269
        %v3074 = vpack.c.b16 %v2282, %v2270
        %v3075 = vpack.c.b16 %v2283, %v2271
        %v3076 = vpack.c.b16 %v2284, %v2272
        %v3077 = vpack.c.b16 %v2285, %v2273
        %v3078 = vpack.c.b16 %v2286, %v2274
        %v3079 = vpack.c.b16 %v2287, %v2275
        %v3080 = vpack.c.b16 %v2288, %v2276
        %v3081 = vpack.c.b16 %v2301, %v2289
        %v3082 = vpack.c.b16 %v2302, %v2290
        %v3083 = vpack.c.b16 %v2303, %v2291
        %v3084 = vpack.c.b16 %v2304, %v2292
        %v3085 = vpack.c.b16 %v2305, %v2293
        %v3086 = vpack.c.b16 %v2306, %v2294
        %v3087 = vpack.c.b16 %v2307, %v2295
        %v3088 = vpack.c.b16 %v2308, %v2296
        %v3089 = vpack.c.b16 %v2309, %v2297
        %v3090 = vpack.c.b16 %v2310, %v2298
        %v3091 = vpack.c.b16 %v2311, %v2299
        %v3092 = vpack.c.b16 %v2312, %v2300
        %v3093 = vpack.c.b16 %v2325, %v2313
        %v3094 = vpack.c.b16 %v2326, %v2314
        %v3095 = vpack.c.b16 %v2327, %v2315
        %v3096 = vpack.c.b16 %v2328, %v2316
        %v3097 = vpack.c.b16 %v2329, %v2317
        %v3098 = vpack.c.b16 %v2330, %v2318
        %v3099 = vpack.c.b16 %v2331, %v2319
        %v3100 = vpack.c.b16 %v2332, %v2320
        %v3101 = vpack.c.b16 %v2333, %v2321
        %v3102 = vpack.c.b16 %v2334, %v2322
        %v3103 = vpack.c.b16 %v2335, %v2323
        %v3104 = vpack.c.b16 %v2336, %v2324
        %v3105 = vpack.c.b16 %v2349, %v2337
        %v3106 = vpack.c.b16 %v2350, %v2338
        %v3107 = vpack.c.b16 %v2351, %v2339
        %v3108 = vpack.c.b16 %v2352, %v2340
        %v3109 = vpack.c.b16 %v2353, %v2341
        %v3110 = vpack.c.b16 %v2354, %v2342
        %v3111 = vpack.c.b16 %v2355, %v2343
        %v3112 = vpack.c.b16 %v2356, %v2344
        %v3113 = vpack.c.b16 %v2357, %v2345
        %v3114 = vpack.c.b16 %v2358, %v2346
        %v3115 = vpack.c.b16 %v2359, %v2347
        %v3116 = vpack.c.b16 %v2360, %v2348
        %v3117 = vpack.c.b16 %v2373, %v2361
        %v3118 = vpack.c.b16 %v2374, %v2362
        %v3119 = vpack.c.b16 %v2375, %v2363
        %v3120 = vpack.c.b16 %v2376, %v2364
        %v3121 = vpack.c.b16 %v2377, %v2365
        %v3122 = vpack.c.b16 %v2378, %v2366
        %v3123 = vpack.c.b16 %v2379, %v2367
        %v3124 = vpack.c.b16 %v2380, %v2368
        %v3125 = vpack.c.b16 %v2381, %v2369
        %v3126 = vpack.c.b16 %v2382, %v2370
        %v3127 = vpack.c.b16 %v2383, %v2371
        %v3128 = vpack.c.b16 %v2384, %v2372
        %v3129 = vpack.c.b16 %v2397, %v2385
        %v3130 = vpack.c.b16 %v2398, %v2386
        %v3131 = vpack.c.b16 %v2399, %v2387
        %v3132 = vpack.c.b16 %v2400, %v2388
        %v3133 = vpack.c.b16 %v2401, %v2389
        %v3134 = vpack.c.b16 %v2402, %v2390
        %v3135 = vpack.c.b16 %v2403, %v2391
        %v3136 = vpack.c.b16 %v2404, %v2392
        %v3137 = vpack.c.b16 %v2405, %v2393
        %v3138 = vpack.c.b16 %v2406, %v2394
        %v3139 = vpack.c.b16 %v2407, %v2395
        %v3140 = vpack.c.b16 %v2408, %v2396
        %v3141 = vpack.c.b16 %v2421, %v2409
        %v3142 = vpack.c.b16 %v2422, %v2410
        %v3143 = vpack.c.b16 %v2423, %v2411
        %v3144 = vpack.c.b16 %v2424, %v2412
        %v3145 = vpack.c.b16 %v2425, %v2413
        %v3146 = vpack.c.b16 %v2426, %v2414
        %v3147 = vpack.c.b16 %v2427, %v2415
        %v3148 = vpack.c.b16 %v2428, %v2416
        %v3149 = vpack.c.b16 %v2429, %v2417
        %v3150 = vpack.c.b16 %v2430, %v2418
        %v3151 = vpack.c.b16 %v2431, %v2419
        %v3152 = vpack.c.b16 %v2432, %v2420
        %v3153 = vpack.c.b16 %v2445, %v2433
        %v3154 = vpack.c.b16 %v2446, %v2434
        %v3155 = vpack.c.b16 %v2447, %v2435
        %v3156 = vpack.c.b16 %v2448, %v2436
        %v3157 = vpack.c.b16 %v2449, %v2437
        %v3158 = vpack.c.b16 %v2450, %v2438
        %v3159 = vpack.c.b16 %v2451, %v2439
        %v3160 = vpack.c.b16 %v2452, %v2440
        %v3161 = vpack.c.b16 %v2453, %v2441
        %v3162 = vpack.c.b16 %v2454, %v2442
        %v3163 = vpack.c.b16 %v2455, %v2443
        %v3164 = vpack.c.b16 %v2456, %v2444
        %v3165 = vpack.c.b16 %v2469, %v2457
        %v3166 = vpack.c.b16 %v2470, %v2458
        %v3167 = vpack.c.b16 %v2471, %v2459
        %v3168 = vpack.c.b16 %v2472, %v2460
        %v3169 = vpack.c.b16 %v2473, %v2461
        %v3170 = vpack.c.b16 %v2474, %v2462
        %v3171 = vpack.c.b16 %v2475, %v2463
        %v3172 = vpack.c.b16 %v2476, %v2464
        %v3173 = vpack.c.b16 %v2477, %v2465
        %v3174 = vpack.c.b16 %v2478, %v2466
        %v3175 = vpack.c.b16 %v2479, %v2467
        %v3176 = vpack.c.b16 %v2480, %v2468
        %v3177 = vpack.c.b16 %v2493, %v2481
        %v3178 = vpack.c.b16 %v2494, %v2482
        %v3179 = vpack.c.b16 %v2495, %v2483
        %v3180 = vpack.c.b16 %v2496, %v2484
        %v3181 = vpack.c.b16 %v2497, %v2485
        %v3182 = vpack.c.b16 %v2498, %v2486
        %v3183 = vpack.c.b16 %v2499, %v2487
        %v3184 = vpack.c.b16 %v2500, %v2488
        %v3185 = vpack.c.b16 %v2501, %v2489
        %v3186 = vpack.c.b16 %v2502, %v2490
        %v3187 = vpack.c.b16 %v2503, %v2491
        %v3188 = vpack.c.b16 %v2504, %v2492
        %v3189 = vpack.c.b16 %v2517, %v2505
        %v3190 = vpack.c.b16 %v2518, %v2506
        %v3191 = vpack.c.b16 %v2519, %v2507
        %v3192 = vpack.c.b16 %v2520, %v2508
        %v3193 = vpack.c.b16 %v2521, %v2509
        %v3194 = vpack.c.b16 %v2522, %v2510
        %v3195 = vpack.c.b16 %v2523, %v2511
        %v3196 = vpack.c.b16 %v2524, %v2512
        %v3197 = vpack.c.b16 %v2525, %v2513
        %v3198 = vpack.c.b16 %v2526, %v2514
        %v3199 = vpack.c.b16 %v2527, %v2515
        %v3200 = vpack.c.b16 %v2528, %v2516
        %v3201 = vpack.c.b16 %v2541, %v2529
        %v3202 = vpack.c.b16 %v2542, %v2530
        %v3203 = vpack.c.b16 %v2543, %v2531
        %v3204 = vpack.c.b16 %v2544, %v2532
        %v3205 = vpack.c.b16 %v2545, %v2533
        %v3206 = vpack.c.b16 %v2546, %v2534
        %v3207 = vpack.c.b16 %v2547, %v2535
        %v3208 = vpack.c.b16 %v2548, %v2536
        %v3209 = vpack.c.b16 %v2549, %v2537
        %v3210 = vpack.c.b16 %v2550, %v2538
        %v3211 = vpack.c.b16 %v2551, %v2539
        %v3212 = vpack.c.b16 %v2552, %v2540
        %v3213 = vpack.c.b16 %v2565, %v2553
        %v3214 = vpack.c.b16 %v2566, %v2554
        %v3215 = vpack.c.b16 %v2567, %v2555
        %v3216 = vpack.c.b16 %v2568, %v2556
        %v3217 = vpack.c.b16 %v2569, %v2557
        %v3218 = vpack.c.b16 %v2570, %v2558
        %v3219 = vpack.c.b16 %v2571, %v2559
        %v3220 = vpack.c.b16 %v2572, %v2560
        %v3221 = vpack.c.b16 %v2573, %v2561
        %v3222 = vpack.c.b16 %v2574, %v2562
        %v3223 = vpack.c.b16 %v2575, %v2563
        %v3224 = vpack.c.b16 %v2576, %v2564
        %v3225 = vpack.c.b16 %v2589, %v2577
        %v3226 = vpack.c.b16 %v2590, %v2578
        %v3227 = vpack.c.b16 %v2591, %v2579
        %v3228 = vpack.c.b16 %v2592, %v2580
        %v3229 = vpack.c.b16 %v2593, %v2581
        %v3230 = vpack.c.b16 %v2594, %v2582
        %v3231 = vpack.c.b16 %v2595, %v2583
        %v3232 = vpack.c.b16 %v2596, %v2584
        %v3233 = vpack.c.b16 %v2597, %v2585
        %v3234 = vpack.c.b16 %v2598, %v2586
        %v3235 = vpack.c.b16 %v2599, %v2587
        %v3236 = vpack.c.b16 %v2600, %v2588
        %v3237 = vpack.c.b16 %v2613, %v2601
        %v3238 = vpack.c.b16 %v2614, %v2602
        %v3239 = vpack.c.b16 %v2615, %v2603
        %v3240 = vpack.c.b16 %v2616, %v2604
        %v3241 = vpack.c.b16 %v2617, %v2605
        %v3242 = vpack.c.b16 %v2618, %v2606
        %v3243 = vpack.c.b16 %v2619, %v2607
        %v3244 = vpack.c.b16 %v2620, %v2608
        %v3245 = vpack.c.b16 %v2621, %v2609
        %v3246 = vpack.c.b16 %v2622, %v2610
        %v3247 = vpack.c.b16 %v2623, %v2611
        %v3248 = vpack.c.b16 %v2624, %v2612
        %v3249 = vpack.c.b16 %v2637, %v2625
        %v3250 = vpack.c.b16 %v2638, %v2626
        %v3251 = vpack.c.b16 %v2639, %v2627
        %v3252 = vpack.c.b16 %v2640, %v2628
        %v3253 = vpack.c.b16 %v2641, %v2629
        %v3254 = vpack.c.b16 %v2642, %v2630
        %v3255 = vpack.c.b16 %v2643, %v2631
        %v3256 = vpack.c.b16 %v2644, %v2632
        %v3257 = vpack.c.b16 %v2645, %v2633
        %v3258 = vpack.c.b16 %v2646, %v2634
        %v3259 = vpack.c.b16 %v2647, %v2635
        %v3260 = vpack.c.b16 %v2648, %v2636
        %v3261 = vpack.c.b16 %v2661, %v2649
        %v3262 = vpack.c.b16 %v2662, %v2650
        %v3263 = vpack.c.b16 %v2663, %v2651
        %v3264 = vpack.c.b16 %v2664, %v2652
        %v3265 = vpack.c.b16 %v2665, %v2653
        %v3266 = vpack.c.b16 %v2666, %v2654
        %v3267 = vpack.c.b16 %v2667, %v2655
        %v3268 = vpack.c.b16 %v2668, %v2656
        %v3269 = vpack.c.b16 %v2669, %v2657
        %v3270 = vpack.c.b16 %v2670, %v2658
        %v3271 = vpack.c.b16 %v2671, %v2659
        %v3272 = vpack.c.b16 %v2672, %v2660
        %v3273 = vpack.c.b16 %v2685, %v2673
        %v3274 = vpack.c.b16 %v2686, %v2674
        %v3275 = vpack.c.b16 %v2687, %v2675
        %v3276 = vpack.c.b16 %v2688, %v2676
        %v3277 = vpack.c.b16 %v2689, %v2677
        %v3278 = vpack.c.b16 %v2690, %v2678
        %v3279 = vpack.c.b16 %v2691, %v2679
        %v3280 = vpack.c.b16 %v2692, %v2680
        %v3281 = vpack.c.b16 %v2693, %v2681
        %v3282 = vpack.c.b16 %v2694, %v2682
        %v3283 = vpack.c.b16 %v2695, %v2683
        %v3284 = vpack.c.b16 %v2696, %v2684
        %v3285 = vpack.c.b16 %v2709, %v2697
        %v3286 = vpack.c.b16 %v2710, %v2698
        %v3287 = vpack.c.b16 %v2711, %v2699
        %v3288 = vpack.c.b16 %v2712, %v2700
        %v3289 = vpack.c.b16 %v2713, %v2701
        %v3290 = vpack.c.b16 %v2714, %v2702
        %v3291 = vpack.c.b16 %v2715, %v2703
        %v3292 = vpack.c.b16 %v2716, %v2704
        %v3293 = vpack.c.b16 %v2717, %v2705
        %v3294 = vpack.c.b16 %v2718, %v2706
        %v3295 = vpack.c.b16 %v2719, %v2707
        %v3296 = vpack.c.b16 %v2720, %v2708
        %3873 = vmatprep.subr.bf16.mxu0 %v2806
        %3874 = vmatpush1.bf16.msra.mxu0 %v2805
        %3875 = vmatprep.subr.bf16.mxu0 %v2794
        %3876 = vmatpush1.bf16.msra.mxu0 %v2793
        %3877 = vmatprep.subr.bf16.mxu0 %v2782
        %3878 = vmatpush1.bf16.msra.mxu0 %v2781
        %3879 = vmatprep.subr.bf16.mxu0 %v2770
        %3880 = vmatpush1.bf16.msra.mxu0 %v2769
        %3881 = vmatprep.subr.bf16.mxu0 %v2758
        %3882 = vmatpush1.bf16.msra.mxu0 %v2757
        %3883 = vmatprep.subr.bf16.mxu0 %v2746
        %3884 = vmatpush1.bf16.msra.mxu0 %v2745
        %3885 = vmatprep.subr.bf16.mxu0 %v2734
        %3886 = vmatpush1.bf16.msra.mxu0 %v2733
        %3887 = vmatprep.subr.bf16.mxu0 %v2722
        %3888 = vmatpush1.bf16.msra.mxu0 %v2721
        %3889 = vmatprep.subr.bf16.mxu0 %v2902
        %3890 = vmatpush2.bf16.msra.mxu0 %v2901
        %3891 = vmatprep.subr.bf16.mxu0 %v2890
        %3892 = vmatpush2.bf16.msra.mxu0 %v2889
        %3893 = vmatprep.subr.bf16.mxu0 %v2878
        %3894 = vmatpush2.bf16.msra.mxu0 %v2877
        %3895 = vmatprep.subr.bf16.mxu0 %v2866
        %3896 = vmatpush2.bf16.msra.mxu0 %v2865
        %3897 = vmatprep.subr.bf16.mxu0 %v2854
        %3898 = vmatpush2.bf16.msra.mxu0 %v2853
        %3899 = vmatprep.subr.bf16.mxu0 %v2842
        %3900 = vmatpush2.bf16.msra.mxu0 %v2841
        %3901 = vmatprep.subr.bf16.mxu0 %v2830
        %3902 = vmatpush2.bf16.msra.mxu0 %v2829
        %3903 = vmatprep.subr.bf16.mxu0 %v2818
        %3904 = vmatpush2.bf16.msra.mxu0 %v2817
        %3905 = vmatprep.mubr.bf16.mxu0 %v348
        %3906 = vmatmul.mubr.bf16.gmra.mxu0 %v347
        %v3907 = vpop.f32.mrf.mxu0
        %v3908 = vadd.f32 %v936, %v3907
        %v3909 = vpop.f32.mrf.mxu0
        %v3910 = vadd.f32 %v940, %v3909
        %v3911 = vpop.f32.mrf.mxu0
        %v3912 = vadd.f32 %v936, %v3911
        %v3913 = vpop.f32.mrf.mxu0
        %v3914 = vadd.f32 %v940, %v3913
        %3915 = vdwg.mxu0
        %3916 = vmatprep.subr.bf16.mxu0 %v2998
        %3917 = vmatpush1.bf16.msra.mxu0 %v2997
        %3918 = vmatprep.subr.bf16.mxu0 %v2986
        %3919 = vmatpush1.bf16.msra.mxu0 %v2985
        %3920 = vmatprep.subr.bf16.mxu0 %v2974
        %3921 = vmatpush1.bf16.msra.mxu0 %v2973
        %3922 = vmatprep.subr.bf16.mxu0 %v2962
        %3923 = vmatpush1.bf16.msra.mxu0 %v2961
        %3924 = vmatprep.subr.bf16.mxu0 %v2950
        %3925 = vmatpush1.bf16.msra.mxu0 %v2949
        %3926 = vmatprep.subr.bf16.mxu0 %v2938
        %3927 = vmatpush1.bf16.msra.mxu0 %v2937
        %3928 = vmatprep.subr.bf16.mxu0 %v2926
        %3929 = vmatpush1.bf16.msra.mxu0 %v2925
        %3930 = vmatprep.subr.bf16.mxu0 %v2914
        %3931 = vmatpush1.bf16.msra.mxu0 %v2913
        %3932 = vmatprep.subr.bf16.mxu0 %v3094
        %3933 = vmatpush2.bf16.msra.mxu0 %v3093
        %3934 = vmatprep.subr.bf16.mxu0 %v3082
        %3935 = vmatpush2.bf16.msra.mxu0 %v3081
        %3936 = vmatprep.subr.bf16.mxu0 %v3070
        %3937 = vmatpush2.bf16.msra.mxu0 %v3069
        %3938 = vmatprep.subr.bf16.mxu0 %v3058
        %3939 = vmatpush2.bf16.msra.mxu0 %v3057
        %3940 = vmatprep.subr.bf16.mxu0 %v3046
        %3941 = vmatpush2.bf16.msra.mxu0 %v3045
        %3942 = vmatprep.subr.bf16.mxu0 %v3034
        %3943 = vmatpush2.bf16.msra.mxu0 %v3033
        %3944 = vmatprep.subr.bf16.mxu0 %v3022
        %3945 = vmatpush2.bf16.msra.mxu0 %v3021
        %3946 = vmatprep.subr.bf16.mxu0 %v3010
        %3947 = vmatpush2.bf16.msra.mxu0 %v3009
        %3948 = vmatprep.mubr.bf16.mxu0 %v350
        %3949 = vmatmul.mubr.bf16.gmra.mxu0 %v349
        %v3950 = vpop.f32.mrf.mxu0
        %v3951 = vadd.f32 %v3908, %v3950
        %v3952 = vpop.f32.mrf.mxu0
        %v3953 = vadd.f32 %v3910, %v3952
        %v3954 = vpop.f32.mrf.mxu0
        %v3955 = vadd.f32 %v3912, %v3954
        %v3956 = vpop.f32.mrf.mxu0
        %v3957 = vadd.f32 %v3914, %v3956
        %3958 = vdwg.mxu0
        %3959 = vmatprep.subr.bf16.mxu0 %v3190
        %3960 = vmatpush1.bf16.msra.mxu0 %v3189
        %3961 = vmatprep.subr.bf16.mxu0 %v3178
        %3962 = vmatpush1.bf16.msra.mxu0 %v3177
        %3963 = vmatprep.subr.bf16.mxu0 %v3166
        %3964 = vmatpush1.bf16.msra.mxu0 %v3165
        %3965 = vmatprep.subr.bf16.mxu0 %v3154
        %3966 = vmatpush1.bf16.msra.mxu0 %v3153
        %3967 = vmatprep.subr.bf16.mxu0 %v3142
        %3968 = vmatpush1.bf16.msra.mxu0 %v3141
        %3969 = vmatprep.subr.bf16.mxu0 %v3130
        %3970 = vmatpush1.bf16.msra.mxu0 %v3129
        %3971 = vmatprep.subr.bf16.mxu0 %v3118
        %3972 = vmatpush1.bf16.msra.mxu0 %v3117
        %3973 = vmatprep.subr.bf16.mxu0 %v3106
        %3974 = vmatpush1.bf16.msra.mxu0 %v3105
        %3975 = vmatprep.subr.bf16.mxu0 %v3286
        %3976 = vmatpush2.bf16.msra.mxu0 %v3285
        %3977 = vmatprep.subr.bf16.mxu0 %v3274
        %3978 = vmatpush2.bf16.msra.mxu0 %v3273
        %3979 = vmatprep.subr.bf16.mxu0 %v3262
        %3980 = vmatpush2.bf16.msra.mxu0 %v3261
        %3981 = vmatprep.subr.bf16.mxu0 %v3250
        %3982 = vmatpush2.bf16.msra.mxu0 %v3249
        %3983 = vmatprep.subr.bf16.mxu0 %v3238
        %3984 = vmatpush2.bf16.msra.mxu0 %v3237
        %3985 = vmatprep.subr.bf16.mxu0 %v3226
        %3986 = vmatpush2.bf16.msra.mxu0 %v3225
        %3987 = vmatprep.subr.bf16.mxu0 %v3214
        %3988 = vmatpush2.bf16.msra.mxu0 %v3213
        %3989 = vmatprep.subr.bf16.mxu0 %v3202
        %3990 = vmatpush2.bf16.msra.mxu0 %v3201
        %3991 = vmatprep.mubr.bf16.mxu0 %v352
        %3992 = vmatmul.mubr.bf16.gmra.mxu0 %v351
        %v3993 = vpop.f32.mrf.mxu0
        %v3994 = vadd.f32 %v3951, %v3993
        %v3995 = vpop.f32.mrf.mxu0
        %v3996 = vadd.f32 %v3953, %v3995
        %v3997 = vpop.f32.mrf.mxu0
        %v3998 = vadd.f32 %v3955, %v3997
        %v3999 = vpop.f32.mrf.mxu0
        %v4000 = vadd.f32 %v3957, %v3999
        %4001 = vdwg.mxu0
        %4002 = vmatprep.subr.bf16.mxu0 %v2808
        %4003 = vmatpush1.bf16.msra.mxu0 %v2807
        %4004 = vmatprep.subr.bf16.mxu0 %v2796
        %4005 = vmatpush1.bf16.msra.mxu0 %v2795
        %4006 = vmatprep.subr.bf16.mxu0 %v2784
        %4007 = vmatpush1.bf16.msra.mxu0 %v2783
        %4008 = vmatprep.subr.bf16.mxu0 %v2772
        %4009 = vmatpush1.bf16.msra.mxu0 %v2771
        %4010 = vmatprep.subr.bf16.mxu0 %v2760
        %4011 = vmatpush1.bf16.msra.mxu0 %v2759
        %4012 = vmatprep.subr.bf16.mxu0 %v2748
        %4013 = vmatpush1.bf16.msra.mxu0 %v2747
        %4014 = vmatprep.subr.bf16.mxu0 %v2736
        %4015 = vmatpush1.bf16.msra.mxu0 %v2735
        %4016 = vmatprep.subr.bf16.mxu0 %v2724
        %4017 = vmatpush1.bf16.msra.mxu0 %v2723
        %4018 = vmatprep.subr.bf16.mxu0 %v2904
        %4019 = vmatpush2.bf16.msra.mxu0 %v2903
        %4020 = vmatprep.subr.bf16.mxu0 %v2892
        %4021 = vmatpush2.bf16.msra.mxu0 %v2891
        %4022 = vmatprep.subr.bf16.mxu0 %v2880
        %4023 = vmatpush2.bf16.msra.mxu0 %v2879
        %4024 = vmatprep.subr.bf16.mxu0 %v2868
        %4025 = vmatpush2.bf16.msra.mxu0 %v2867
        %4026 = vmatprep.subr.bf16.mxu0 %v2856
        %4027 = vmatpush2.bf16.msra.mxu0 %v2855
        %4028 = vmatprep.subr.bf16.mxu0 %v2844
        %4029 = vmatpush2.bf16.msra.mxu0 %v2843
        %4030 = vmatprep.subr.bf16.mxu0 %v2832
        %4031 = vmatpush2.bf16.msra.mxu0 %v2831
        %4032 = vmatprep.subr.bf16.mxu0 %v2820
        %4033 = vmatpush2.bf16.msra.mxu0 %v2819
        %4034 = vmatprep.mubr.bf16.mxu0 %v348
        %4035 = vmatmul.mubr.bf16.gmra.mxu0 %v347
        %v4036 = vpop.f32.mrf.mxu0
        %v4037 = vadd.f32 %v944, %v4036
        %v4038 = vpop.f32.mrf.mxu0
        %v4039 = vadd.f32 %v948, %v4038
        %v4040 = vpop.f32.mrf.mxu0
        %v4041 = vadd.f32 %v944, %v4040
        %v4042 = vpop.f32.mrf.mxu0
        %v4043 = vadd.f32 %v948, %v4042
        %4044 = vdwg.mxu0
        %4045 = vmatprep.subr.bf16.mxu0 %v3000
        %4046 = vmatpush1.bf16.msra.mxu0 %v2999
        %4047 = vmatprep.subr.bf16.mxu0 %v2988
        %4048 = vmatpush1.bf16.msra.mxu0 %v2987
        %4049 = vmatprep.subr.bf16.mxu0 %v2976
        %4050 = vmatpush1.bf16.msra.mxu0 %v2975
        %4051 = vmatprep.subr.bf16.mxu0 %v2964
        %4052 = vmatpush1.bf16.msra.mxu0 %v2963
        %4053 = vmatprep.subr.bf16.mxu0 %v2952
        %4054 = vmatpush1.bf16.msra.mxu0 %v2951
        %4055 = vmatprep.subr.bf16.mxu0 %v2940
        %4056 = vmatpush1.bf16.msra.mxu0 %v2939
        %4057 = vmatprep.subr.bf16.mxu0 %v2928
        %4058 = vmatpush1.bf16.msra.mxu0 %v2927
        %4059 = vmatprep.subr.bf16.mxu0 %v2916
        %4060 = vmatpush1.bf16.msra.mxu0 %v2915
        %4061 = vmatprep.subr.bf16.mxu0 %v3096
        %4062 = vmatpush2.bf16.msra.mxu0 %v3095
        %4063 = vmatprep.subr.bf16.mxu0 %v3084
        %4064 = vmatpush2.bf16.msra.mxu0 %v3083
        %4065 = vmatprep.subr.bf16.mxu0 %v3072
        %4066 = vmatpush2.bf16.msra.mxu0 %v3071
        %4067 = vmatprep.subr.bf16.mxu0 %v3060
        %4068 = vmatpush2.bf16.msra.mxu0 %v3059
        %4069 = vmatprep.subr.bf16.mxu0 %v3048
        %4070 = vmatpush2.bf16.msra.mxu0 %v3047
        %4071 = vmatprep.subr.bf16.mxu0 %v3036
        %4072 = vmatpush2.bf16.msra.mxu0 %v3035
        %4073 = vmatprep.subr.bf16.mxu0 %v3024
        %4074 = vmatpush2.bf16.msra.mxu0 %v3023
        %4075 = vmatprep.subr.bf16.mxu0 %v3012
        %4076 = vmatpush2.bf16.msra.mxu0 %v3011
        %4077 = vmatprep.mubr.bf16.mxu0 %v350
        %4078 = vmatmul.mubr.bf16.gmra.mxu0 %v349
        %v4079 = vpop.f32.mrf.mxu0
        %v4080 = vadd.f32 %v4037, %v4079
        %v4081 = vpop.f32.mrf.mxu0
        %v4082 = vadd.f32 %v4039, %v4081
        %v4083 = vpop.f32.mrf.mxu0
        %v4084 = vadd.f32 %v4041, %v4083
        %v4085 = vpop.f32.mrf.mxu0
        %v4086 = vadd.f32 %v4043, %v4085
        %4087 = vdwg.mxu0
        %4088 = vmatprep.subr.bf16.mxu0 %v3192
        %4089 = vmatpush1.bf16.msra.mxu0 %v3191
        %4090 = vmatprep.subr.bf16.mxu0 %v3180
        %4091 = vmatpush1.bf16.msra.mxu0 %v3179
        %4092 = vmatprep.subr.bf16.mxu0 %v3168
        %4093 = vmatpush1.bf16.msra.mxu0 %v3167
        %4094 = vmatprep.subr.bf16.mxu0 %v3156
        %4095 = vmatpush1.bf16.msra.mxu0 %v3155
        %4096 = vmatprep.subr.bf16.mxu0 %v3144
        %4097 = vmatpush1.bf16.msra.mxu0 %v3143
        %4098 = vmatprep.subr.bf16.mxu0 %v3132
        %4099 = vmatpush1.bf16.msra.mxu0 %v3131
        %4100 = vmatprep.subr.bf16.mxu0 %v3120
        %4101 = vmatpush1.bf16.msra.mxu0 %v3119
        %4102 = vmatprep.subr.bf16.mxu0 %v3108
        %4103 = vmatpush1.bf16.msra.mxu0 %v3107
        %4104 = vmatprep.subr.bf16.mxu0 %v3288
        %4105 = vmatpush2.bf16.msra.mxu0 %v3287
        %4106 = vmatprep.subr.bf16.mxu0 %v3276
        %4107 = vmatpush2.bf16.msra.mxu0 %v3275
        %4108 = vmatprep.subr.bf16.mxu0 %v3264
        %4109 = vmatpush2.bf16.msra.mxu0 %v3263
        %4110 = vmatprep.subr.bf16.mxu0 %v3252
        %4111 = vmatpush2.bf16.msra.mxu0 %v3251
        %4112 = vmatprep.subr.bf16.mxu0 %v3240
        %4113 = vmatpush2.bf16.msra.mxu0 %v3239
        %4114 = vmatprep.subr.bf16.mxu0 %v3228
        %4115 = vmatpush2.bf16.msra.mxu0 %v3227
        %4116 = vmatprep.subr.bf16.mxu0 %v3216
        %4117 = vmatpush2.bf16.msra.mxu0 %v3215
        %4118 = vmatprep.subr.bf16.mxu0 %v3204
        %4119 = vmatpush2.bf16.msra.mxu0 %v3203
        %4120 = vmatprep.mubr.bf16.mxu0 %v352
        %4121 = vmatmul.mubr.bf16.gmra.mxu0 %v351
        %v4122 = vpop.f32.mrf.mxu0
        %v4123 = vadd.f32 %v4080, %v4122
        %v4124 = vpop.f32.mrf.mxu0
        %v4125 = vadd.f32 %v4082, %v4124
        %v4126 = vpop.f32.mrf.mxu0
        %v4127 = vadd.f32 %v4084, %v4126
        %v4128 = vpop.f32.mrf.mxu0
        %v4129 = vadd.f32 %v4086, %v4128
        %4130 = vdwg.mxu0
        %4131 = vmatprep.subr.bf16.mxu0 %v2810
        %4132 = vmatpush1.bf16.msra.mxu0 %v2809
        %4133 = vmatprep.subr.bf16.mxu0 %v2798
        %4134 = vmatpush1.bf16.msra.mxu0 %v2797
        %4135 = vmatprep.subr.bf16.mxu0 %v2786
        %4136 = vmatpush1.bf16.msra.mxu0 %v2785
        %4137 = vmatprep.subr.bf16.mxu0 %v2774
        %4138 = vmatpush1.bf16.msra.mxu0 %v2773
        %4139 = vmatprep.subr.bf16.mxu0 %v2762
        %4140 = vmatpush1.bf16.msra.mxu0 %v2761
        %4141 = vmatprep.subr.bf16.mxu0 %v2750
        %4142 = vmatpush1.bf16.msra.mxu0 %v2749
        %4143 = vmatprep.subr.bf16.mxu0 %v2738
        %4144 = vmatpush1.bf16.msra.mxu0 %v2737
        %4145 = vmatprep.subr.bf16.mxu0 %v2726
        %4146 = vmatpush1.bf16.msra.mxu0 %v2725
        %4147 = vmatprep.subr.bf16.mxu0 %v2906
        %4148 = vmatpush2.bf16.msra.mxu0 %v2905
        %4149 = vmatprep.subr.bf16.mxu0 %v2894
        %4150 = vmatpush2.bf16.msra.mxu0 %v2893
        %4151 = vmatprep.subr.bf16.mxu0 %v2882
        %4152 = vmatpush2.bf16.msra.mxu0 %v2881
        %4153 = vmatprep.subr.bf16.mxu0 %v2870
        %4154 = vmatpush2.bf16.msra.mxu0 %v2869
        %4155 = vmatprep.subr.bf16.mxu0 %v2858
        %4156 = vmatpush2.bf16.msra.mxu0 %v2857
        %4157 = vmatprep.subr.bf16.mxu0 %v2846
        %4158 = vmatpush2.bf16.msra.mxu0 %v2845
        %4159 = vmatprep.subr.bf16.mxu0 %v2834
        %4160 = vmatpush2.bf16.msra.mxu0 %v2833
        %4161 = vmatprep.subr.bf16.mxu0 %v2822
        %4162 = vmatpush2.bf16.msra.mxu0 %v2821
        %4163 = vmatprep.mubr.bf16.mxu0 %v348
        %4164 = vmatmul.mubr.bf16.gmra.mxu0 %v347
        %v4165 = vpop.f32.mrf.mxu0
        %v4166 = vadd.f32 %v952, %v4165
        %v4167 = vpop.f32.mrf.mxu0
        %v4168 = vadd.f32 %v956, %v4167
        %v4169 = vpop.f32.mrf.mxu0
        %v4170 = vadd.f32 %v952, %v4169
        %v4171 = vpop.f32.mrf.mxu0
        %v4172 = vadd.f32 %v956, %v4171
        %4173 = vdwg.mxu0
        %4174 = vmatprep.subr.bf16.mxu0 %v3002
        %4175 = vmatpush1.bf16.msra.mxu0 %v3001
        %4176 = vmatprep.subr.bf16.mxu0 %v2990
        %4177 = vmatpush1.bf16.msra.mxu0 %v2989
        %4178 = vmatprep.subr.bf16.mxu0 %v2978
        %4179 = vmatpush1.bf16.msra.mxu0 %v2977
        %4180 = vmatprep.subr.bf16.mxu0 %v2966
        %4181 = vmatpush1.bf16.msra.mxu0 %v2965
        %4182 = vmatprep.subr.bf16.mxu0 %v2954
        %4183 = vmatpush1.bf16.msra.mxu0 %v2953
        %4184 = vmatprep.subr.bf16.mxu0 %v2942
        %4185 = vmatpush1.bf16.msra.mxu0 %v2941
        %4186 = vmatprep.subr.bf16.mxu0 %v2930
        %4187 = vmatpush1.bf16.msra.mxu0 %v2929
        %4188 = vmatprep.subr.bf16.mxu0 %v2918
        %4189 = vmatpush1.bf16.msra.mxu0 %v2917
        %4190 = vmatprep.subr.bf16.mxu0 %v3098
        %4191 = vmatpush2.bf16.msra.mxu0 %v3097
        %4192 = vmatprep.subr.bf16.mxu0 %v3086
        %4193 = vmatpush2.bf16.msra.mxu0 %v3085
        %4194 = vmatprep.subr.bf16.mxu0 %v3074
        %4195 = vmatpush2.bf16.msra.mxu0 %v3073
        %4196 = vmatprep.subr.bf16.mxu0 %v3062
        %4197 = vmatpush2.bf16.msra.mxu0 %v3061
        %4198 = vmatprep.subr.bf16.mxu0 %v3050
        %4199 = vmatpush2.bf16.msra.mxu0 %v3049
        %4200 = vmatprep.subr.bf16.mxu0 %v3038
        %4201 = vmatpush2.bf16.msra.mxu0 %v3037
        %4202 = vmatprep.subr.bf16.mxu0 %v3026
        %4203 = vmatpush2.bf16.msra.mxu0 %v3025
        %4204 = vmatprep.subr.bf16.mxu0 %v3014
        %4205 = vmatpush2.bf16.msra.mxu0 %v3013
        %4206 = vmatprep.mubr.bf16.mxu0 %v350
        %4207 = vmatmul.mubr.bf16.gmra.mxu0 %v349
        %v4208 = vpop.f32.mrf.mxu0
        %v4209 = vadd.f32 %v4166, %v4208
        %v4210 = vpop.f32.mrf.mxu0
        %v4211 = vadd.f32 %v4168, %v4210
        %v4212 = vpop.f32.mrf.mxu0
        %v4213 = vadd.f32 %v4170, %v4212
        %v4214 = vpop.f32.mrf.mxu0
        %v4215 = vadd.f32 %v4172, %v4214
        %4216 = vdwg.mxu0
        %4217 = vmatprep.subr.bf16.mxu0 %v3194
        %4218 = vmatpush1.bf16.msra.mxu0 %v3193
        %4219 = vmatprep.subr.bf16.mxu0 %v3182
        %4220 = vmatpush1.bf16.msra.mxu0 %v3181
        %4221 = vmatprep.subr.bf16.mxu0 %v3170
        %4222 = vmatpush1.bf16.msra.mxu0 %v3169
        %4223 = vmatprep.subr.bf16.mxu0 %v3158
        %4224 = vmatpush1.bf16.msra.mxu0 %v3157
        %4225 = vmatprep.subr.bf16.mxu0 %v3146
        %4226 = vmatpush1.bf16.msra.mxu0 %v3145
        %4227 = vmatprep.subr.bf16.mxu0 %v3134
        %4228 = vmatpush1.bf16.msra.mxu0 %v3133
        %4229 = vmatprep.subr.bf16.mxu0 %v3122
        %4230 = vmatpush1.bf16.msra.mxu0 %v3121
        %4231 = vmatprep.subr.bf16.mxu0 %v3110
        %4232 = vmatpush1.bf16.msra.mxu0 %v3109
        %4233 = vmatprep.subr.bf16.mxu0 %v3290
        %4234 = vmatpush2.bf16.msra.mxu0 %v3289
        %4235 = vmatprep.subr.bf16.mxu0 %v3278
        %4236 = vmatpush2.bf16.msra.mxu0 %v3277
        %4237 = vmatprep.subr.bf16.mxu0 %v3266
        %4238 = vmatpush2.bf16.msra.mxu0 %v3265
        %4239 = vmatprep.subr.bf16.mxu0 %v3254
        %4240 = vmatpush2.bf16.msra.mxu0 %v3253
        %4241 = vmatprep.subr.bf16.mxu0 %v3242
        %4242 = vmatpush2.bf16.msra.mxu0 %v3241
        %4243 = vmatprep.subr.bf16.mxu0 %v3230
        %4244 = vmatpush2.bf16.msra.mxu0 %v3229
        %4245 = vmatprep.subr.bf16.mxu0 %v3218
        %4246 = vmatpush2.bf16.msra.mxu0 %v3217
        %4247 = vmatprep.subr.bf16.mxu0 %v3206
        %4248 = vmatpush2.bf16.msra.mxu0 %v3205
        %4249 = vmatprep.mubr.bf16.mxu0 %v352
        %4250 = vmatmul.mubr.bf16.gmra.mxu0 %v351
        %v4251 = vpop.f32.mrf.mxu0
        %v4252 = vadd.f32 %v4209, %v4251
        %v4253 = vpop.f32.mrf.mxu0
        %v4254 = vadd.f32 %v4211, %v4253
        %v4255 = vpop.f32.mrf.mxu0
        %v4256 = vadd.f32 %v4213, %v4255
        %v4257 = vpop.f32.mrf.mxu0
        %v4258 = vadd.f32 %v4215, %v4257
        %4259 = vdwg.mxu0
        %4260 = vmatprep.subr.bf16.mxu0 %v2812
        %4261 = vmatpush1.bf16.msra.mxu0 %v2811
        %4262 = vmatprep.subr.bf16.mxu0 %v2800
        %4263 = vmatpush1.bf16.msra.mxu0 %v2799
        %4264 = vmatprep.subr.bf16.mxu0 %v2788
        %4265 = vmatpush1.bf16.msra.mxu0 %v2787
        %4266 = vmatprep.subr.bf16.mxu0 %v2776
        %4267 = vmatpush1.bf16.msra.mxu0 %v2775
        %4268 = vmatprep.subr.bf16.mxu0 %v2764
        %4269 = vmatpush1.bf16.msra.mxu0 %v2763
        %4270 = vmatprep.subr.bf16.mxu0 %v2752
        %4271 = vmatpush1.bf16.msra.mxu0 %v2751
        %4272 = vmatprep.subr.bf16.mxu0 %v2740
        %4273 = vmatpush1.bf16.msra.mxu0 %v2739
        %4274 = vmatprep.subr.bf16.mxu0 %v2728
        %4275 = vmatpush1.bf16.msra.mxu0 %v2727
        %4276 = vmatprep.subr.bf16.mxu0 %v2908
        %4277 = vmatpush2.bf16.msra.mxu0 %v2907
        %4278 = vmatprep.subr.bf16.mxu0 %v2896
        %4279 = vmatpush2.bf16.msra.mxu0 %v2895
        %4280 = vmatprep.subr.bf16.mxu0 %v2884
        %4281 = vmatpush2.bf16.msra.mxu0 %v2883
        %4282 = vmatprep.subr.bf16.mxu0 %v2872
        %4283 = vmatpush2.bf16.msra.mxu0 %v2871
        %4284 = vmatprep.subr.bf16.mxu0 %v2860
        %4285 = vmatpush2.bf16.msra.mxu0 %v2859
        %4286 = vmatprep.subr.bf16.mxu0 %v2848
        %4287 = vmatpush2.bf16.msra.mxu0 %v2847
        %4288 = vmatprep.subr.bf16.mxu0 %v2836
        %4289 = vmatpush2.bf16.msra.mxu0 %v2835
        %4290 = vmatprep.subr.bf16.mxu0 %v2824
        %4291 = vmatpush2.bf16.msra.mxu0 %v2823
        %4292 = vmatprep.mubr.bf16.mxu0 %v348
        %4293 = vmatmul.mubr.bf16.gmra.mxu0 %v347
        %v4294 = vpop.f32.mrf.mxu0
        %v4295 = vadd.f32 %v960, %v4294
        %v4296 = vpop.f32.mrf.mxu0
        %v4297 = vadd.f32 %v964, %v4296
        %v4298 = vpop.f32.mrf.mxu0
        %v4299 = vadd.f32 %v960, %v4298
        %v4300 = vpop.f32.mrf.mxu0
        %v4301 = vadd.f32 %v964, %v4300
        %4302 = vdwg.mxu0
        %4303 = vmatprep.subr.bf16.mxu0 %v3004
        %4304 = vmatpush1.bf16.msra.mxu0 %v3003
        %4305 = vmatprep.subr.bf16.mxu0 %v2992
        %4306 = vmatpush1.bf16.msra.mxu0 %v2991
        %4307 = vmatprep.subr.bf16.mxu0 %v2980
        %4308 = vmatpush1.bf16.msra.mxu0 %v2979
        %4309 = vmatprep.subr.bf16.mxu0 %v2968
        %4310 = vmatpush1.bf16.msra.mxu0 %v2967
        %4311 = vmatprep.subr.bf16.mxu0 %v2956
        %4312 = vmatpush1.bf16.msra.mxu0 %v2955
        %4313 = vmatprep.subr.bf16.mxu0 %v2944
        %4314 = vmatpush1.bf16.msra.mxu0 %v2943
        %4315 = vmatprep.subr.bf16.mxu0 %v2932
        %4316 = vmatpush1.bf16.msra.mxu0 %v2931
        %4317 = vmatprep.subr.bf16.mxu0 %v2920
        %4318 = vmatpush1.bf16.msra.mxu0 %v2919
        %4319 = vmatprep.subr.bf16.mxu0 %v3100
        %4320 = vmatpush2.bf16.msra.mxu0 %v3099
        %4321 = vmatprep.subr.bf16.mxu0 %v3088
        %4322 = vmatpush2.bf16.msra.mxu0 %v3087
        %4323 = vmatprep.subr.bf16.mxu0 %v3076
        %4324 = vmatpush2.bf16.msra.mxu0 %v3075
        %4325 = vmatprep.subr.bf16.mxu0 %v3064
        %4326 = vmatpush2.bf16.msra.mxu0 %v3063
        %4327 = vmatprep.subr.bf16.mxu0 %v3052
        %4328 = vmatpush2.bf16.msra.mxu0 %v3051
        %4329 = vmatprep.subr.bf16.mxu0 %v3040
        %4330 = vmatpush2.bf16.msra.mxu0 %v3039
        %4331 = vmatprep.subr.bf16.mxu0 %v3028
        %4332 = vmatpush2.bf16.msra.mxu0 %v3027
        %4333 = vmatprep.subr.bf16.mxu0 %v3016
        %4334 = vmatpush2.bf16.msra.mxu0 %v3015
        %4335 = vmatprep.mubr.bf16.mxu0 %v350
        %4336 = vmatmul.mubr.bf16.gmra.mxu0 %v349
        %v4337 = vpop.f32.mrf.mxu0
        %v4338 = vadd.f32 %v4295, %v4337
        %v4339 = vpop.f32.mrf.mxu0
        %v4340 = vadd.f32 %v4297, %v4339
        %v4341 = vpop.f32.mrf.mxu0
        %v4342 = vadd.f32 %v4299, %v4341
        %v4343 = vpop.f32.mrf.mxu0
        %v4344 = vadd.f32 %v4301, %v4343
        %4345 = vdwg.mxu0
        %4346 = vmatprep.subr.bf16.mxu0 %v3196
        %4347 = vmatpush1.bf16.msra.mxu0 %v3195
        %4348 = vmatprep.subr.bf16.mxu0 %v3184
        %4349 = vmatpush1.bf16.msra.mxu0 %v3183
        %4350 = vmatprep.subr.bf16.mxu0 %v3172
        %4351 = vmatpush1.bf16.msra.mxu0 %v3171
        %4352 = vmatprep.subr.bf16.mxu0 %v3160
        %4353 = vmatpush1.bf16.msra.mxu0 %v3159
        %4354 = vmatprep.subr.bf16.mxu0 %v3148
        %4355 = vmatpush1.bf16.msra.mxu0 %v3147
        %4356 = vmatprep.subr.bf16.mxu0 %v3136
        %4357 = vmatpush1.bf16.msra.mxu0 %v3135
        %4358 = vmatprep.subr.bf16.mxu0 %v3124
        %4359 = vmatpush1.bf16.msra.mxu0 %v3123
        %4360 = vmatprep.subr.bf16.mxu0 %v3112
        %4361 = vmatpush1.bf16.msra.mxu0 %v3111
        %4362 = vmatprep.subr.bf16.mxu0 %v3292
        %4363 = vmatpush2.bf16.msra.mxu0 %v3291
        %4364 = vmatprep.subr.bf16.mxu0 %v3280
        %4365 = vmatpush2.bf16.msra.mxu0 %v3279
        %4366 = vmatprep.subr.bf16.mxu0 %v3268
        %4367 = vmatpush2.bf16.msra.mxu0 %v3267
        %4368 = vmatprep.subr.bf16.mxu0 %v3256
        %4369 = vmatpush2.bf16.msra.mxu0 %v3255
        %4370 = vmatprep.subr.bf16.mxu0 %v3244
        %4371 = vmatpush2.bf16.msra.mxu0 %v3243
        %4372 = vmatprep.subr.bf16.mxu0 %v3232
        %4373 = vmatpush2.bf16.msra.mxu0 %v3231
        %4374 = vmatprep.subr.bf16.mxu0 %v3220
        %4375 = vmatpush2.bf16.msra.mxu0 %v3219
        %4376 = vmatprep.subr.bf16.mxu0 %v3208
        %4377 = vmatpush2.bf16.msra.mxu0 %v3207
        %4378 = vmatprep.mubr.bf16.mxu0 %v352
        %4379 = vmatmul.mubr.bf16.gmra.mxu0 %v351
        %v4380 = vpop.f32.mrf.mxu0
        %v4381 = vadd.f32 %v4338, %v4380
        %v4382 = vpop.f32.mrf.mxu0
        %v4383 = vadd.f32 %v4340, %v4382
        %v4384 = vpop.f32.mrf.mxu0
        %v4385 = vadd.f32 %v4342, %v4384
        %v4386 = vpop.f32.mrf.mxu0
        %v4387 = vadd.f32 %v4344, %v4386
        %4388 = vdwg.mxu0
        %4389 = vmatprep.subr.bf16.mxu0 %v2814
        %4390 = vmatpush1.bf16.msra.mxu0 %v2813
        %4391 = vmatprep.subr.bf16.mxu0 %v2802
        %4392 = vmatpush1.bf16.msra.mxu0 %v2801
        %4393 = vmatprep.subr.bf16.mxu0 %v2790
        %4394 = vmatpush1.bf16.msra.mxu0 %v2789
        %4395 = vmatprep.subr.bf16.mxu0 %v2778
        %4396 = vmatpush1.bf16.msra.mxu0 %v2777
        %4397 = vmatprep.subr.bf16.mxu0 %v2766
        %4398 = vmatpush1.bf16.msra.mxu0 %v2765
        %4399 = vmatprep.subr.bf16.mxu0 %v2754
        %4400 = vmatpush1.bf16.msra.mxu0 %v2753
        %4401 = vmatprep.subr.bf16.mxu0 %v2742
        %4402 = vmatpush1.bf16.msra.mxu0 %v2741
        %4403 = vmatprep.subr.bf16.mxu0 %v2730
        %4404 = vmatpush1.bf16.msra.mxu0 %v2729
        %4405 = vmatprep.subr.bf16.mxu0 %v2910
        %4406 = vmatpush2.bf16.msra.mxu0 %v2909
        %4407 = vmatprep.subr.bf16.mxu0 %v2898
        %4408 = vmatpush2.bf16.msra.mxu0 %v2897
        %4409 = vmatprep.subr.bf16.mxu0 %v2886
        %4410 = vmatpush2.bf16.msra.mxu0 %v2885
        %4411 = vmatprep.subr.bf16.mxu0 %v2874
        %4412 = vmatpush2.bf16.msra.mxu0 %v2873
        %4413 = vmatprep.subr.bf16.mxu0 %v2862
        %4414 = vmatpush2.bf16.msra.mxu0 %v2861
        %4415 = vmatprep.subr.bf16.mxu0 %v2850
        %4416 = vmatpush2.bf16.msra.mxu0 %v2849
        %4417 = vmatprep.subr.bf16.mxu0 %v2838
        %4418 = vmatpush2.bf16.msra.mxu0 %v2837
        %4419 = vmatprep.subr.bf16.mxu0 %v2826
        %4420 = vmatpush2.bf16.msra.mxu0 %v2825
        %4421 = vmatprep.mubr.bf16.mxu0 %v348
        %4422 = vmatmul.mubr.bf16.gmra.mxu0 %v347
        %v4423 = vpop.f32.mrf.mxu0
        %v4424 = vadd.f32 %v968, %v4423
        %v4425 = vpop.f32.mrf.mxu0
        %v4426 = vadd.f32 %v972, %v4425
        %v4427 = vpop.f32.mrf.mxu0
        %v4428 = vadd.f32 %v968, %v4427
        %v4429 = vpop.f32.mrf.mxu0
        %v4430 = vadd.f32 %v972, %v4429
        %4431 = vdwg.mxu0
        %4432 = vmatprep.subr.bf16.mxu0 %v3006
        %4433 = vmatpush1.bf16.msra.mxu0 %v3005
        %4434 = vmatprep.subr.bf16.mxu0 %v2994
        %4435 = vmatpush1.bf16.msra.mxu0 %v2993
        %4436 = vmatprep.subr.bf16.mxu0 %v2982
        %4437 = vmatpush1.bf16.msra.mxu0 %v2981
        %4438 = vmatprep.subr.bf16.mxu0 %v2970
        %4439 = vmatpush1.bf16.msra.mxu0 %v2969
        %4440 = vmatprep.subr.bf16.mxu0 %v2958
        %4441 = vmatpush1.bf16.msra.mxu0 %v2957
        %4442 = vmatprep.subr.bf16.mxu0 %v2946
        %4443 = vmatpush1.bf16.msra.mxu0 %v2945
        %4444 = vmatprep.subr.bf16.mxu0 %v2934
        %4445 = vmatpush1.bf16.msra.mxu0 %v2933
        %4446 = vmatprep.subr.bf16.mxu0 %v2922
        %4447 = vmatpush1.bf16.msra.mxu0 %v2921
        %4448 = vmatprep.subr.bf16.mxu0 %v3102
        %4449 = vmatpush2.bf16.msra.mxu0 %v3101
        %4450 = vmatprep.subr.bf16.mxu0 %v3090
        %4451 = vmatpush2.bf16.msra.mxu0 %v3089
        %4452 = vmatprep.subr.bf16.mxu0 %v3078
        %4453 = vmatpush2.bf16.msra.mxu0 %v3077
        %4454 = vmatprep.subr.bf16.mxu0 %v3066
        %4455 = vmatpush2.bf16.msra.mxu0 %v3065
        %4456 = vmatprep.subr.bf16.mxu0 %v3054
        %4457 = vmatpush2.bf16.msra.mxu0 %v3053
        %4458 = vmatprep.subr.bf16.mxu0 %v3042
        %4459 = vmatpush2.bf16.msra.mxu0 %v3041
        %4460 = vmatprep.subr.bf16.mxu0 %v3030
        %4461 = vmatpush2.bf16.msra.mxu0 %v3029
        %4462 = vmatprep.subr.bf16.mxu0 %v3018
        %4463 = vmatpush2.bf16.msra.mxu0 %v3017
        %4464 = vmatprep.mubr.bf16.mxu0 %v350
        %4465 = vmatmul.mubr.bf16.gmra.mxu0 %v349
        %v4466 = vpop.f32.mrf.mxu0
        %v4467 = vadd.f32 %v4424, %v4466
        %v4468 = vpop.f32.mrf.mxu0
        %v4469 = vadd.f32 %v4426, %v4468
        %v4470 = vpop.f32.mrf.mxu0
        %v4471 = vadd.f32 %v4428, %v4470
        %v4472 = vpop.f32.mrf.mxu0
        %v4473 = vadd.f32 %v4430, %v4472
        %4474 = vdwg.mxu0
        %4475 = vmatprep.subr.bf16.mxu0 %v3198
        %4476 = vmatpush1.bf16.msra.mxu0 %v3197
        %4477 = vmatprep.subr.bf16.mxu0 %v3186
        %4478 = vmatpush1.bf16.msra.mxu0 %v3185
        %4479 = vmatprep.subr.bf16.mxu0 %v3174
        %4480 = vmatpush1.bf16.msra.mxu0 %v3173
        %4481 = vmatprep.subr.bf16.mxu0 %v3162
        %4482 = vmatpush1.bf16.msra.mxu0 %v3161
        %4483 = vmatprep.subr.bf16.mxu0 %v3150
        %4484 = vmatpush1.bf16.msra.mxu0 %v3149
        %4485 = vmatprep.subr.bf16.mxu0 %v3138
        %4486 = vmatpush1.bf16.msra.mxu0 %v3137
        %4487 = vmatprep.subr.bf16.mxu0 %v3126
        %4488 = vmatpush1.bf16.msra.mxu0 %v3125
        %4489 = vmatprep.subr.bf16.mxu0 %v3114
        %4490 = vmatpush1.bf16.msra.mxu0 %v3113
        %4491 = vmatprep.subr.bf16.mxu0 %v3294
        %4492 = vmatpush2.bf16.msra.mxu0 %v3293
        %4493 = vmatprep.subr.bf16.mxu0 %v3282
        %4494 = vmatpush2.bf16.msra.mxu0 %v3281
        %4495 = vmatprep.subr.bf16.mxu0 %v3270
        %4496 = vmatpush2.bf16.msra.mxu0 %v3269
        %4497 = vmatprep.subr.bf16.mxu0 %v3258
        %4498 = vmatpush2.bf16.msra.mxu0 %v3257
        %4499 = vmatprep.subr.bf16.mxu0 %v3246
        %4500 = vmatpush2.bf16.msra.mxu0 %v3245
        %4501 = vmatprep.subr.bf16.mxu0 %v3234
        %4502 = vmatpush2.bf16.msra.mxu0 %v3233
        %4503 = vmatprep.subr.bf16.mxu0 %v3222
        %4504 = vmatpush2.bf16.msra.mxu0 %v3221
        %4505 = vmatprep.subr.bf16.mxu0 %v3210
        %4506 = vmatpush2.bf16.msra.mxu0 %v3209
        %4507 = vmatprep.mubr.bf16.mxu0 %v352
        %4508 = vmatmul.mubr.bf16.gmra.mxu0 %v351
        %v4509 = vpop.f32.mrf.mxu0
        %v4510 = vadd.f32 %v4467, %v4509
        %v4511 = vpop.f32.mrf.mxu0
        %v4512 = vadd.f32 %v4469, %v4511
        %v4513 = vpop.f32.mrf.mxu0
        %v4514 = vadd.f32 %v4471, %v4513
        %v4515 = vpop.f32.mrf.mxu0
        %v4516 = vadd.f32 %v4473, %v4515
        %4517 = vdwg.mxu0
        %4518 = vmatprep.subr.bf16.mxu0 %v2816
        %4519 = vmatpush1.bf16.msra.mxu0 %v2815
        %4520 = vmatprep.subr.bf16.mxu0 %v2804
        %4521 = vmatpush1.bf16.msra.mxu0 %v2803
        %4522 = vmatprep.subr.bf16.mxu0 %v2792
        %4523 = vmatpush1.bf16.msra.mxu0 %v2791
        %4524 = vmatprep.subr.bf16.mxu0 %v2780
        %4525 = vmatpush1.bf16.msra.mxu0 %v2779
        %4526 = vmatprep.subr.bf16.mxu0 %v2768
        %4527 = vmatpush1.bf16.msra.mxu0 %v2767
        %4528 = vmatprep.subr.bf16.mxu0 %v2756
        %4529 = vmatpush1.bf16.msra.mxu0 %v2755
        %4530 = vmatprep.subr.bf16.mxu0 %v2744
        %4531 = vmatpush1.bf16.msra.mxu0 %v2743
        %4532 = vmatprep.subr.bf16.mxu0 %v2732
        %4533 = vmatpush1.bf16.msra.mxu0 %v2731
        %4534 = vmatprep.subr.bf16.mxu0 %v2912
        %4535 = vmatpush2.bf16.msra.mxu0 %v2911
        %4536 = vmatprep.subr.bf16.mxu0 %v2900
        %4537 = vmatpush2.bf16.msra.mxu0 %v2899
        %4538 = vmatprep.subr.bf16.mxu0 %v2888
        %4539 = vmatpush2.bf16.msra.mxu0 %v2887
        %4540 = vmatprep.subr.bf16.mxu0 %v2876
        %4541 = vmatpush2.bf16.msra.mxu0 %v2875
        %4542 = vmatprep.subr.bf16.mxu0 %v2864
        %4543 = vmatpush2.bf16.msra.mxu0 %v2863
        %4544 = vmatprep.subr.bf16.mxu0 %v2852
        %4545 = vmatpush2.bf16.msra.mxu0 %v2851
        %4546 = vmatprep.subr.bf16.mxu0 %v2840
        %4547 = vmatpush2.bf16.msra.mxu0 %v2839
        %4548 = vmatprep.subr.bf16.mxu0 %v2828
        %4549 = vmatpush2.bf16.msra.mxu0 %v2827
        %4550 = vmatprep.mubr.bf16.mxu0 %v348
        %4551 = vmatmul.mubr.bf16.gmra.mxu0 %v347
        %v4552 = vpop.f32.mrf.mxu0
        %v4553 = vadd.f32 %v976, %v4552
        %v4554 = vpop.f32.mrf.mxu0
        %v4555 = vadd.f32 %v980, %v4554
        %v4556 = vpop.f32.mrf.mxu0
        %v4557 = vadd.f32 %v976, %v4556
        %v4558 = vpop.f32.mrf.mxu0
        %v4559 = vadd.f32 %v980, %v4558
        %4560 = vdwg.mxu0
        %4561 = vmatprep.subr.bf16.mxu0 %v3008
        %4562 = vmatpush1.bf16.msra.mxu0 %v3007
        %4563 = vmatprep.subr.bf16.mxu0 %v2996
        %4564 = vmatpush1.bf16.msra.mxu0 %v2995
        %4565 = vmatprep.subr.bf16.mxu0 %v2984
        %4566 = vmatpush1.bf16.msra.mxu0 %v2983
        %4567 = vmatprep.subr.bf16.mxu0 %v2972
        %4568 = vmatpush1.bf16.msra.mxu0 %v2971
        %4569 = vmatprep.subr.bf16.mxu0 %v2960
        %4570 = vmatpush1.bf16.msra.mxu0 %v2959
        %4571 = vmatprep.subr.bf16.mxu0 %v2948
        %4572 = vmatpush1.bf16.msra.mxu0 %v2947
        %4573 = vmatprep.subr.bf16.mxu0 %v2936
        %4574 = vmatpush1.bf16.msra.mxu0 %v2935
        %4575 = vmatprep.subr.bf16.mxu0 %v2924
        %4576 = vmatpush1.bf16.msra.mxu0 %v2923
        %4577 = vmatprep.subr.bf16.mxu0 %v3104
        %4578 = vmatpush2.bf16.msra.mxu0 %v3103
        %4579 = vmatprep.subr.bf16.mxu0 %v3092
        %4580 = vmatpush2.bf16.msra.mxu0 %v3091
        %4581 = vmatprep.subr.bf16.mxu0 %v3080
        %4582 = vmatpush2.bf16.msra.mxu0 %v3079
        %4583 = vmatprep.subr.bf16.mxu0 %v3068
        %4584 = vmatpush2.bf16.msra.mxu0 %v3067
        %4585 = vmatprep.subr.bf16.mxu0 %v3056
        %4586 = vmatpush2.bf16.msra.mxu0 %v3055
        %4587 = vmatprep.subr.bf16.mxu0 %v3044
        %4588 = vmatpush2.bf16.msra.mxu0 %v3043
        %4589 = vmatprep.subr.bf16.mxu0 %v3032
        %4590 = vmatpush2.bf16.msra.mxu0 %v3031
        %4591 = vmatprep.subr.bf16.mxu0 %v3020
        %4592 = vmatpush2.bf16.msra.mxu0 %v3019
        %4593 = vmatprep.mubr.bf16.mxu0 %v350
        %4594 = vmatmul.mubr.bf16.gmra.mxu0 %v349
        %v4595 = vpop.f32.mrf.mxu0
        %v4596 = vadd.f32 %v4553, %v4595
        %v4597 = vpop.f32.mrf.mxu0
        %v4598 = vadd.f32 %v4555, %v4597
        %v4599 = vpop.f32.mrf.mxu0
        %v4600 = vadd.f32 %v4557, %v4599
        %v4601 = vpop.f32.mrf.mxu0
        %v4602 = vadd.f32 %v4559, %v4601
        %4603 = vdwg.mxu0
        %4604 = vmatprep.subr.bf16.mxu0 %v3200
        %4605 = vmatpush1.bf16.msra.mxu0 %v3199
        %4606 = vmatprep.subr.bf16.mxu0 %v3188
        %4607 = vmatpush1.bf16.msra.mxu0 %v3187
        %4608 = vmatprep.subr.bf16.mxu0 %v3176
        %4609 = vmatpush1.bf16.msra.mxu0 %v3175
        %4610 = vmatprep.subr.bf16.mxu0 %v3164
        %4611 = vmatpush1.bf16.msra.mxu0 %v3163
        %4612 = vmatprep.subr.bf16.mxu0 %v3152
        %4613 = vmatpush1.bf16.msra.mxu0 %v3151
        %4614 = vmatprep.subr.bf16.mxu0 %v3140
        %4615 = vmatpush1.bf16.msra.mxu0 %v3139
        %4616 = vmatprep.subr.bf16.mxu0 %v3128
        %4617 = vmatpush1.bf16.msra.mxu0 %v3127
        %4618 = vmatprep.subr.bf16.mxu0 %v3116
        %4619 = vmatpush1.bf16.msra.mxu0 %v3115
        %4620 = vmatprep.subr.bf16.mxu0 %v3296
        %4621 = vmatpush2.bf16.msra.mxu0 %v3295
        %4622 = vmatprep.subr.bf16.mxu0 %v3284
        %4623 = vmatpush2.bf16.msra.mxu0 %v3283
        %4624 = vmatprep.subr.bf16.mxu0 %v3272
        %4625 = vmatpush2.bf16.msra.mxu0 %v3271
        %4626 = vmatprep.subr.bf16.mxu0 %v3260
        %4627 = vmatpush2.bf16.msra.mxu0 %v3259
        %4628 = vmatprep.subr.bf16.mxu0 %v3248
        %4629 = vmatpush2.bf16.msra.mxu0 %v3247
        %4630 = vmatprep.subr.bf16.mxu0 %v3236
        %4631 = vmatpush2.bf16.msra.mxu0 %v3235
        %4632 = vmatprep.subr.bf16.mxu0 %v3224
        %4633 = vmatpush2.bf16.msra.mxu0 %v3223
        %4634 = vmatprep.subr.bf16.mxu0 %v3212
        %4635 = vmatpush2.bf16.msra.mxu0 %v3211
        %4636 = vmatprep.mubr.bf16.mxu0 %v352
        %4637 = vmatmul.mubr.bf16.gmra.mxu0 %v351
        %v4638 = vpop.f32.mrf.mxu0
        %v4639 = vadd.f32 %v4596, %v4638
        %v4640 = vpop.f32.mrf.mxu0
        %v4641 = vadd.f32 %v4598, %v4640
        %v4642 = vpop.f32.mrf.mxu0
        %v4643 = vadd.f32 %v4600, %v4642
        %v4644 = vpop.f32.mrf.mxu0
        %v4645 = vadd.f32 %v4602, %v4644
        %4646 = vdwg.mxu0
        %v4647 = vmul.f32 %v3994, 0.5
        %v4648 = vmul.f32 %v3996, 0.5
        %v4649 = vmul.f32 %v4123, 0.5
        %v4650 = vmul.f32 %v4125, 0.5
        %v4651 = vmul.f32 %v4252, 0.5
        %v4652 = vmul.f32 %v4254, 0.5
        %v4653 = vmul.f32 %v4381, 0.5
        %v4654 = vmul.f32 %v4383, 0.5
        %v4655 = vmul.f32 %v4510, 0.5
        %v4656 = vmul.f32 %v4512, 0.5
        %v4657 = vmul.f32 %v4639, 0.5
        %v4658 = vmul.f32 %v4641, 0.5
        %v4659 = vmul.f32 %v3998, 0.5
        %v4660 = vmul.f32 %v4000, 0.5
        %v4661 = vmul.f32 %v4127, 0.5
        %v4662 = vmul.f32 %v4129, 0.5
        %v4663 = vmul.f32 %v4256, 0.5
        %v4664 = vmul.f32 %v4258, 0.5
        %v4665 = vmul.f32 %v4385, 0.5
        %v4666 = vmul.f32 %v4387, 0.5
        %v4667 = vmul.f32 %v4514, 0.5
        %v4668 = vmul.f32 %v4516, 0.5
        %v4669 = vmul.f32 %v4643, 0.5
        %v4670 = vmul.f32 %v4645, 0.5
        %v4671 = vmul.f32 %v3994, %v3994
        %v4672 = vmul.f32 %v3996, %v3996
        %v4673 = vmul.f32 %v4123, %v4123
        %v4674 = vmul.f32 %v4125, %v4125
        %v4675 = vmul.f32 %v4252, %v4252
        %v4676 = vmul.f32 %v4254, %v4254
        %v4677 = vmul.f32 %v4381, %v4381
        %v4678 = vmul.f32 %v4383, %v4383
        %v4679 = vmul.f32 %v4510, %v4510
        %v4680 = vmul.f32 %v4512, %v4512
        %v4681 = vmul.f32 %v4639, %v4639
        %v4682 = vmul.f32 %v4641, %v4641
        %v4683 = vmul.f32 %v3998, %v3998
        %v4684 = vmul.f32 %v4000, %v4000
        %v4685 = vmul.f32 %v4127, %v4127
        %v4686 = vmul.f32 %v4129, %v4129
        %v4687 = vmul.f32 %v4256, %v4256
        %v4688 = vmul.f32 %v4258, %v4258
        %v4689 = vmul.f32 %v4385, %v4385
        %v4690 = vmul.f32 %v4387, %v4387
        %v4691 = vmul.f32 %v4514, %v4514
        %v4692 = vmul.f32 %v4516, %v4516
        %v4693 = vmul.f32 %v4643, %v4643
        %v4694 = vmul.f32 %v4645, %v4645
        %v4695 = vmul.f32 %v4671, %v3994
        %v4696 = vmul.f32 %v4672, %v3996
        %v4697 = vmul.f32 %v4673, %v4123
        %v4698 = vmul.f32 %v4674, %v4125
        %v4699 = vmul.f32 %v4675, %v4252
        %v4700 = vmul.f32 %v4676, %v4254
        %v4701 = vmul.f32 %v4677, %v4381
        %v4702 = vmul.f32 %v4678, %v4383
        %v4703 = vmul.f32 %v4679, %v4510
        %v4704 = vmul.f32 %v4680, %v4512
        %v4705 = vmul.f32 %v4681, %v4639
        %v4706 = vmul.f32 %v4682, %v4641
        %v4707 = vmul.f32 %v4683, %v3998
        %v4708 = vmul.f32 %v4684, %v4000
        %v4709 = vmul.f32 %v4685, %v4127
        %v4710 = vmul.f32 %v4686, %v4129
        %v4711 = vmul.f32 %v4687, %v4256
        %v4712 = vmul.f32 %v4688, %v4258
        %v4713 = vmul.f32 %v4689, %v4385
        %v4714 = vmul.f32 %v4690, %v4387
        %v4715 = vmul.f32 %v4691, %v4514
        %v4716 = vmul.f32 %v4692, %v4516
        %v4717 = vmul.f32 %v4693, %v4643
        %v4718 = vmul.f32 %v4694, %v4645
        %v4719 = vmul.f32 %v4695, 0.044715
        %v4720 = vmul.f32 %v4696, 0.044715
        %v4721 = vmul.f32 %v4697, 0.044715
        %v4722 = vmul.f32 %v4698, 0.044715
        %v4723 = vmul.f32 %v4699, 0.044715
        %v4724 = vmul.f32 %v4700, 0.044715
        %v4725 = vmul.f32 %v4701, 0.044715
        %v4726 = vmul.f32 %v4702, 0.044715
        %v4727 = vmul.f32 %v4703, 0.044715
        %v4728 = vmul.f32 %v4704, 0.044715
        %v4729 = vmul.f32 %v4705, 0.044715
        %v4730 = vmul.f32 %v4706, 0.044715
        %v4731 = vmul.f32 %v4707, 0.044715
        %v4732 = vmul.f32 %v4708, 0.044715
        %v4733 = vmul.f32 %v4709, 0.044715
        %v4734 = vmul.f32 %v4710, 0.044715
        %v4735 = vmul.f32 %v4711, 0.044715
        %v4736 = vmul.f32 %v4712, 0.044715
        %v4737 = vmul.f32 %v4713, 0.044715
        %v4738 = vmul.f32 %v4714, 0.044715
        %v4739 = vmul.f32 %v4715, 0.044715
        %v4740 = vmul.f32 %v4716, 0.044715
        %v4741 = vmul.f32 %v4717, 0.044715
        %v4742 = vmul.f32 %v4718, 0.044715
        %v4743 = vadd.f32 %v3994, %v4719
        %v4744 = vadd.f32 %v3996, %v4720
        %v4745 = vadd.f32 %v4123, %v4721
        %v4746 = vadd.f32 %v4125, %v4722
        %v4747 = vadd.f32 %v4252, %v4723
        %v4748 = vadd.f32 %v4254, %v4724
        %v4749 = vadd.f32 %v4381, %v4725
        %v4750 = vadd.f32 %v4383, %v4726
        %v4751 = vadd.f32 %v4510, %v4727
        %v4752 = vadd.f32 %v4512, %v4728
        %v4753 = vadd.f32 %v4639, %v4729
        %v4754 = vadd.f32 %v4641, %v4730
        %v4755 = vadd.f32 %v3998, %v4731
        %v4756 = vadd.f32 %v4000, %v4732
        %v4757 = vadd.f32 %v4127, %v4733
        %v4758 = vadd.f32 %v4129, %v4734
        %v4759 = vadd.f32 %v4256, %v4735
        %v4760 = vadd.f32 %v4258, %v4736
        %v4761 = vadd.f32 %v4385, %v4737
        %v4762 = vadd.f32 %v4387, %v4738
        %v4763 = vadd.f32 %v4514, %v4739
        %v4764 = vadd.f32 %v4516, %v4740
        %v4765 = vadd.f32 %v4643, %v4741
        %v4766 = vadd.f32 %v4645, %v4742
        %v4767 = vmul.f32 %v4743, 0.7978846
        %v4768 = vmul.f32 %v4744, 0.7978846
        %v4769 = vmul.f32 %v4745, 0.7978846
        %v4770 = vmul.f32 %v4746, 0.7978846
        %v4771 = vmul.f32 %v4747, 0.7978846
        %v4772 = vmul.f32 %v4748, 0.7978846
        %v4773 = vmul.f32 %v4749, 0.7978846
        %v4774 = vmul.f32 %v4750, 0.7978846
        %v4775 = vmul.f32 %v4751, 0.7978846
        %v4776 = vmul.f32 %v4752, 0.7978846
        %v4777 = vmul.f32 %v4753, 0.7978846
        %v4778 = vmul.f32 %v4754, 0.7978846
        %v4779 = vmul.f32 %v4755, 0.7978846
        %v4780 = vmul.f32 %v4756, 0.7978846
        %v4781 = vmul.f32 %v4757, 0.7978846
        %v4782 = vmul.f32 %v4758, 0.7978846
        %v4783 = vmul.f32 %v4759, 0.7978846
        %v4784 = vmul.f32 %v4760, 0.7978846
        %v4785 = vmul.f32 %v4761, 0.7978846
        %v4786 = vmul.f32 %v4762, 0.7978846
        %v4787 = vmul.f32 %v4763, 0.7978846
        %v4788 = vmul.f32 %v4764, 0.7978846
        %v4789 = vmul.f32 %v4765, 0.7978846
        %v4790 = vmul.f32 %v4766, 0.7978846
        %v4791 = vtanh.pop %v4767
        %v4792 = vtanh.pop %v4768
        %v4793 = vtanh.pop %v4769
        %v4794 = vtanh.pop %v4770
        %v4795 = vtanh.pop %v4771
        %v4796 = vtanh.pop %v4772
        %v4797 = vtanh.pop %v4773
        %v4798 = vtanh.pop %v4774
        %v4799 = vtanh.pop %v4775
        %v4800 = vtanh.pop %v4776
        %v4801 = vtanh.pop %v4777
        %v4802 = vtanh.pop %v4778
        %v4803 = vtanh.pop %v4779
        %v4804 = vtanh.pop %v4780
        %v4805 = vtanh.pop %v4781
        %v4806 = vtanh.pop %v4782
        %v4807 = vtanh.pop %v4783
        %v4808 = vtanh.pop %v4784
        %v4809 = vtanh.pop %v4785
        %v4810 = vtanh.pop %v4786
        %v4811 = vtanh.pop %v4787
        %v4812 = vtanh.pop %v4788
        %v4813 = vtanh.pop %v4789
        %v4814 = vtanh.pop %v4790
        %v4815 = vadd.f32 %v4791, 1.0
        %v4816 = vadd.f32 %v4792, 1.0
        %v4817 = vadd.f32 %v4793, 1.0
        %v4818 = vadd.f32 %v4794, 1.0
        %v4819 = vadd.f32 %v4795, 1.0
        %v4820 = vadd.f32 %v4796, 1.0
        %v4821 = vadd.f32 %v4797, 1.0
        %v4822 = vadd.f32 %v4798, 1.0
        %v4823 = vadd.f32 %v4799, 1.0
        %v4824 = vadd.f32 %v4800, 1.0
        %v4825 = vadd.f32 %v4801, 1.0
        %v4826 = vadd.f32 %v4802, 1.0
        %v4827 = vadd.f32 %v4803, 1.0
        %v4828 = vadd.f32 %v4804, 1.0
        %v4829 = vadd.f32 %v4805, 1.0
        %v4830 = vadd.f32 %v4806, 1.0
        %v4831 = vadd.f32 %v4807, 1.0
        %v4832 = vadd.f32 %v4808, 1.0
        %v4833 = vadd.f32 %v4809, 1.0
        %v4834 = vadd.f32 %v4810, 1.0
        %v4835 = vadd.f32 %v4811, 1.0
        %v4836 = vadd.f32 %v4812, 1.0
        %v4837 = vadd.f32 %v4813, 1.0
        %v4838 = vadd.f32 %v4814, 1.0
        %v4839 = vmul.f32 %v4647, %v4815
        %v4840 = vmul.f32 %v4648, %v4816
        %v4841 = vmul.f32 %v4649, %v4817
        %v4842 = vmul.f32 %v4650, %v4818
        %v4843 = vmul.f32 %v4651, %v4819
        %v4844 = vmul.f32 %v4652, %v4820
        %v4845 = vmul.f32 %v4653, %v4821
        %v4846 = vmul.f32 %v4654, %v4822
        %v4847 = vmul.f32 %v4655, %v4823
        %v4848 = vmul.f32 %v4656, %v4824
        %v4849 = vmul.f32 %v4657, %v4825
        %v4850 = vmul.f32 %v4658, %v4826
        %v4851 = vmul.f32 %v4659, %v4827
        %v4852 = vmul.f32 %v4660, %v4828
        %v4853 = vmul.f32 %v4661, %v4829
        %v4854 = vmul.f32 %v4662, %v4830
        %v4855 = vmul.f32 %v4663, %v4831
        %v4856 = vmul.f32 %v4664, %v4832
        %v4857 = vmul.f32 %v4665, %v4833
        %v4858 = vmul.f32 %v4666, %v4834
        %v4859 = vmul.f32 %v4667, %v4835
        %v4860 = vmul.f32 %v4668, %v4836
        %v4861 = vmul.f32 %v4669, %v4837
        %v4862 = vmul.f32 %v4670, %v4838
        %v4863 = vpack.c.bf16 %v4851, %v4839
        %v4864 = vpack.c.bf16 %v4852, %v4840
        %v4865 = vpack.c.bf16 %v4853, %v4841
        %v4866 = vpack.c.bf16 %v4854, %v4842
        %v4867 = vpack.c.bf16 %v4855, %v4843
        %v4868 = vpack.c.bf16 %v4856, %v4844
        %v4869 = vpack.c.bf16 %v4857, %v4845
        %v4870 = vpack.c.bf16 %v4858, %v4846
        %v4871 = vpack.c.bf16 %v4859, %v4847
        %v4872 = vpack.c.bf16 %v4860, %v4848
        %v4873 = vpack.c.bf16 %v4861, %v4849
        %v4874 = vpack.c.bf16 %v4862, %v4850
        %v4875 = vld [vmem:[%s295] sm:$0xff]
        %v4876 = vld [vmem:[%s295 + $0x8] sm:$0xff]
        %v4877 = vld [vmem:[%s295 + $0x10] sm:$0xff]
        %v4878 = vld [vmem:[%s295 + $0x18] sm:$0xff]
        %v4879 = vld [vmem:[%s295 + $0x20] sm:$0xff]
        %v4880 = vld [vmem:[%s295 + $0x28] sm:$0xff]
        %v4881 = vld [vmem:[%s295 + $0x30] sm:$0xff]
        %v4882 = vld [vmem:[%s295 + $0x38] sm:$0xff]
        %v4883 = vld [vmem:[%s295 + $0x40] sm:$0xff]
        %v4884 = vld [vmem:[%s295 + $0x48] sm:$0xff]
        %v4885 = vld [vmem:[%s295 + $0x50] sm:$0xff]
        %v4886 = vld [vmem:[%s295 + $0x58] sm:$0xff]
        %v4887 = vld [vmem:[%s295 + $0x60] sm:$0xff]
        %v4888 = vld [vmem:[%s295 + $0x68] sm:$0xff]
        %v4889 = vld [vmem:[%s295 + $0x70] sm:$0xff]
        %v4890 = vld [vmem:[%s295 + $0x78] sm:$0xff]
        %v4891 = vld [vmem:[%s295 + $0x80] sm:$0xff]
        %v4892 = vld [vmem:[%s295 + $0x88] sm:$0xff]
        %v4893 = vld [vmem:[%s295 + $0x90] sm:$0xff]
        %v4894 = vld [vmem:[%s295 + $0x98] sm:$0xff]
        %v4895 = vld [vmem:[%s295 + $0xa0] sm:$0xff]
        %v4896 = vld [vmem:[%s295 + $0xa8] sm:$0xff]
        %v4897 = vld [vmem:[%s295 + $0xb0] sm:$0xff]
        %v4898 = vld [vmem:[%s295 + $0xb8] sm:$0xff]
        %v4899 = vld [vmem:[%s295 + $0xc0] sm:$0xff]
        %v4900 = vld [vmem:[%s295 + $0xc8] sm:$0xff]
        %v4901 = vld [vmem:[%s295 + $0xd0] sm:$0xff]
        %v4902 = vld [vmem:[%s295 + $0xd8] sm:$0xff]
        %v4903 = vld [vmem:[%s295 + $0xe0] sm:$0xff]
        %v4904 = vld [vmem:[%s295 + $0xe8] sm:$0xff]
        %v4905 = vld [vmem:[%s295 + $0xf0] sm:$0xff]
        %v4906 = vld [vmem:[%s295 + $0xf8] sm:$0xff]
        %v4907 = vld [vmem:[%s295 + $0x100] sm:$0xff]
        %v4908 = vld [vmem:[%s295 + $0x108] sm:$0xff]
        %v4909 = vld [vmem:[%s295 + $0x110] sm:$0xff]
        %v4910 = vld [vmem:[%s295 + $0x118] sm:$0xff]
        %v4911 = vld [vmem:[%s295 + $0x120] sm:$0xff]
        %v4912 = vld [vmem:[%s295 + $0x128] sm:$0xff]
        %v4913 = vld [vmem:[%s295 + $0x130] sm:$0xff]
        %v4914 = vld [vmem:[%s295 + $0x138] sm:$0xff]
        %v4915 = vld [vmem:[%s295 + $0x140] sm:$0xff]
        %v4916 = vld [vmem:[%s295 + $0x148] sm:$0xff]
        %v4917 = vld [vmem:[%s295 + $0x150] sm:$0xff]
        %v4918 = vld [vmem:[%s295 + $0x158] sm:$0xff]
        %v4919 = vld [vmem:[%s295 + $0x160] sm:$0xff]
        %v4920 = vld [vmem:[%s295 + $0x168] sm:$0xff]
        %v4921 = vld [vmem:[%s295 + $0x170] sm:$0xff]
        %v4922 = vld [vmem:[%s295 + $0x178] sm:$0xff]
        %v4923 = vld [vmem:[%s295 + $0x180] sm:$0xff]
        %v4924 = vld [vmem:[%s295 + $0x188] sm:$0xff]
        %v4925 = vld [vmem:[%s295 + $0x190] sm:$0xff]
        %v4926 = vld [vmem:[%s295 + $0x198] sm:$0xff]
        %v4927 = vld [vmem:[%s295 + $0x1a0] sm:$0xff]
        %v4928 = vld [vmem:[%s295 + $0x1a8] sm:$0xff]
        %v4929 = vld [vmem:[%s295 + $0x1b0] sm:$0xff]
        %v4930 = vld [vmem:[%s295 + $0x1b8] sm:$0xff]
        %v4931 = vld [vmem:[%s295 + $0x1c0] sm:$0xff]
        %v4932 = vld [vmem:[%s295 + $0x1c8] sm:$0xff]
        %v4933 = vld [vmem:[%s295 + $0x1d0] sm:$0xff]
        %v4934 = vld [vmem:[%s295 + $0x1d8] sm:$0xff]
        %v4935 = vld [vmem:[%s295 + $0x1e0] sm:$0xff]
        %v4936 = vld [vmem:[%s295 + $0x1e8] sm:$0xff]
        %v4937 = vld [vmem:[%s295 + $0x1f0] sm:$0xff]
        %v4938 = vld [vmem:[%s295 + $0x1f8] sm:$0xff]
        %v4939 = vld [vmem:[%s295 + $0x200] sm:$0xff]
        %v4940 = vld [vmem:[%s295 + $0x208] sm:$0xff]
        %v4941 = vld [vmem:[%s295 + $0x210] sm:$0xff]
        %v4942 = vld [vmem:[%s295 + $0x218] sm:$0xff]
        %v4943 = vld [vmem:[%s295 + $0x220] sm:$0xff]
        %v4944 = vld [vmem:[%s295 + $0x228] sm:$0xff]
        %v4945 = vld [vmem:[%s295 + $0x230] sm:$0xff]
        %v4946 = vld [vmem:[%s295 + $0x238] sm:$0xff]
        %v4947 = vld [vmem:[%s295 + $0x240] sm:$0xff]
        %v4948 = vld [vmem:[%s295 + $0x248] sm:$0xff]
        %v4949 = vld [vmem:[%s295 + $0x250] sm:$0xff]
        %v4950 = vld [vmem:[%s295 + $0x258] sm:$0xff]
        %v4951 = vld [vmem:[%s295 + $0x260] sm:$0xff]
        %v4952 = vld [vmem:[%s295 + $0x268] sm:$0xff]
        %v4953 = vld [vmem:[%s295 + $0x270] sm:$0xff]
        %v4954 = vld [vmem:[%s295 + $0x278] sm:$0xff]
        %v4955 = vld [vmem:[%s295 + $0x280] sm:$0xff]
        %v4956 = vld [vmem:[%s295 + $0x288] sm:$0xff]
        %v4957 = vld [vmem:[%s295 + $0x290] sm:$0xff]
        %v4958 = vld [vmem:[%s295 + $0x298] sm:$0xff]
        %v4959 = vld [vmem:[%s295 + $0x2a0] sm:$0xff]
        %v4960 = vld [vmem:[%s295 + $0x2a8] sm:$0xff]
        %v4961 = vld [vmem:[%s295 + $0x2b0] sm:$0xff]
        %v4962 = vld [vmem:[%s295 + $0x2b8] sm:$0xff]
        %v4963 = vld [vmem:[%s295 + $0x2c0] sm:$0xff]
        %v4964 = vld [vmem:[%s295 + $0x2c8] sm:$0xff]
        %v4965 = vld [vmem:[%s295 + $0x2d0] sm:$0xff]
        %v4966 = vld [vmem:[%s295 + $0x2d8] sm:$0xff]
        %v4967 = vld [vmem:[%s295 + $0x2e0] sm:$0xff]
        %v4968 = vld [vmem:[%s295 + $0x2e8] sm:$0xff]
        %v4969 = vld [vmem:[%s295 + $0x2f0] sm:$0xff]
        %v4970 = vld [vmem:[%s295 + $0x2f8] sm:$0xff]
        %v4971 = vld [vmem:[%s295 + $0x300] sm:$0xff]
        %v4972 = vld [vmem:[%s295 + $0x308] sm:$0xff]
        %v4973 = vld [vmem:[%s295 + $0x310] sm:$0xff]
        %v4974 = vld [vmem:[%s295 + $0x318] sm:$0xff]
        %v4975 = vld [vmem:[%s295 + $0x320] sm:$0xff]
        %v4976 = vld [vmem:[%s295 + $0x328] sm:$0xff]
        %v4977 = vld [vmem:[%s295 + $0x330] sm:$0xff]
        %v4978 = vld [vmem:[%s295 + $0x338] sm:$0xff]
        %v4979 = vld [vmem:[%s295 + $0x340] sm:$0xff]
        %v4980 = vld [vmem:[%s295 + $0x348] sm:$0xff]
        %v4981 = vld [vmem:[%s295 + $0x350] sm:$0xff]
        %v4982 = vld [vmem:[%s295 + $0x358] sm:$0xff]
        %v4983 = vld [vmem:[%s295 + $0x360] sm:$0xff]
        %v4984 = vld [vmem:[%s295 + $0x368] sm:$0xff]
        %v4985 = vld [vmem:[%s295 + $0x370] sm:$0xff]
        %v4986 = vld [vmem:[%s295 + $0x378] sm:$0xff]
        %v4987 = vld [vmem:[%s295 + $0x380] sm:$0xff]
        %v4988 = vld [vmem:[%s295 + $0x388] sm:$0xff]
        %v4989 = vld [vmem:[%s295 + $0x390] sm:$0xff]
        %v4990 = vld [vmem:[%s295 + $0x398] sm:$0xff]
        %v4991 = vld [vmem:[%s295 + $0x3a0] sm:$0xff]
        %v4992 = vld [vmem:[%s295 + $0x3a8] sm:$0xff]
        %v4993 = vld [vmem:[%s295 + $0x3b0] sm:$0xff]
        %v4994 = vld [vmem:[%s295 + $0x3b8] sm:$0xff]
        %v4995 = vld [vmem:[%s295 + $0x3c0] sm:$0xff]
        %v4996 = vld [vmem:[%s295 + $0x3c8] sm:$0xff]
        %v4997 = vld [vmem:[%s295 + $0x3d0] sm:$0xff]
        %v4998 = vld [vmem:[%s295 + $0x3d8] sm:$0xff]
        %v4999 = vld [vmem:[%s295 + $0x3e0] sm:$0xff]
        %v5000 = vld [vmem:[%s295 + $0x3e8] sm:$0xff]
        %v5001 = vld [vmem:[%s295 + $0x3f0] sm:$0xff]
        %v5002 = vld [vmem:[%s295 + $0x3f8] sm:$0xff]
        %v5003 = vld [vmem:[%s295 + $0x400] sm:$0xff]
        %v5004 = vld [vmem:[%s295 + $0x408] sm:$0xff]
        %v5005 = vld [vmem:[%s295 + $0x410] sm:$0xff]
        %v5006 = vld [vmem:[%s295 + $0x418] sm:$0xff]
        %v5007 = vld [vmem:[%s295 + $0x420] sm:$0xff]
        %v5008 = vld [vmem:[%s295 + $0x428] sm:$0xff]
        %v5009 = vld [vmem:[%s295 + $0x430] sm:$0xff]
        %v5010 = vld [vmem:[%s295 + $0x438] sm:$0xff]
        %v5011 = vld [vmem:[%s295 + $0x440] sm:$0xff]
        %v5012 = vld [vmem:[%s295 + $0x448] sm:$0xff]
        %v5013 = vld [vmem:[%s295 + $0x450] sm:$0xff]
        %v5014 = vld [vmem:[%s295 + $0x458] sm:$0xff]
        %v5015 = vld [vmem:[%s295 + $0x460] sm:$0xff]
        %v5016 = vld [vmem:[%s295 + $0x468] sm:$0xff]
        %v5017 = vld [vmem:[%s295 + $0x470] sm:$0xff]
        %v5018 = vld [vmem:[%s295 + $0x478] sm:$0xff]
        %v5019 = vld [vmem:[%s295 + $0x480] sm:$0xff]
        %v5020 = vld [vmem:[%s295 + $0x488] sm:$0xff]
        %v5021 = vld [vmem:[%s295 + $0x490] sm:$0xff]
        %v5022 = vld [vmem:[%s295 + $0x498] sm:$0xff]
        %v5023 = vld [vmem:[%s295 + $0x4a0] sm:$0xff]
        %v5024 = vld [vmem:[%s295 + $0x4a8] sm:$0xff]
        %v5025 = vld [vmem:[%s295 + $0x4b0] sm:$0xff]
        %v5026 = vld [vmem:[%s295 + $0x4b8] sm:$0xff]
        %v5027 = vld [vmem:[%s295 + $0x4c0] sm:$0xff]
        %v5028 = vld [vmem:[%s295 + $0x4c8] sm:$0xff]
        %v5029 = vld [vmem:[%s295 + $0x4d0] sm:$0xff]
        %v5030 = vld [vmem:[%s295 + $0x4d8] sm:$0xff]
        %v5031 = vld [vmem:[%s295 + $0x4e0] sm:$0xff]
        %v5032 = vld [vmem:[%s295 + $0x4e8] sm:$0xff]
        %v5033 = vld [vmem:[%s295 + $0x4f0] sm:$0xff]
        %v5034 = vld [vmem:[%s295 + $0x4f8] sm:$0xff]
        %v5035 = vld [vmem:[%s295 + $0x500] sm:$0xff]
        %v5036 = vld [vmem:[%s295 + $0x508] sm:$0xff]
        %v5037 = vld [vmem:[%s295 + $0x510] sm:$0xff]
        %v5038 = vld [vmem:[%s295 + $0x518] sm:$0xff]
        %v5039 = vld [vmem:[%s295 + $0x520] sm:$0xff]
        %v5040 = vld [vmem:[%s295 + $0x528] sm:$0xff]
        %v5041 = vld [vmem:[%s295 + $0x530] sm:$0xff]
        %v5042 = vld [vmem:[%s295 + $0x538] sm:$0xff]
        %v5043 = vld [vmem:[%s295 + $0x540] sm:$0xff]
        %v5044 = vld [vmem:[%s295 + $0x548] sm:$0xff]
        %v5045 = vld [vmem:[%s295 + $0x550] sm:$0xff]
        %v5046 = vld [vmem:[%s295 + $0x558] sm:$0xff]
        %v5047 = vld [vmem:[%s295 + $0x560] sm:$0xff]
        %v5048 = vld [vmem:[%s295 + $0x568] sm:$0xff]
        %v5049 = vld [vmem:[%s295 + $0x570] sm:$0xff]
        %v5050 = vld [vmem:[%s295 + $0x578] sm:$0xff]
        %v5051 = vld [vmem:[%s295 + $0x580] sm:$0xff]
        %v5052 = vld [vmem:[%s295 + $0x588] sm:$0xff]
        %v5053 = vld [vmem:[%s295 + $0x590] sm:$0xff]
        %v5054 = vld [vmem:[%s295 + $0x598] sm:$0xff]
        %v5055 = vld [vmem:[%s295 + $0x5a0] sm:$0xff]
        %v5056 = vld [vmem:[%s295 + $0x5a8] sm:$0xff]
        %v5057 = vld [vmem:[%s295 + $0x5b0] sm:$0xff]
        %v5058 = vld [vmem:[%s295 + $0x5b8] sm:$0xff]
        %v5059 = vld [vmem:[%s295 + $0x5c0] sm:$0xff]
        %v5060 = vld [vmem:[%s295 + $0x5c8] sm:$0xff]
        %v5061 = vld [vmem:[%s295 + $0x5d0] sm:$0xff]
        %v5062 = vld [vmem:[%s295 + $0x5d8] sm:$0xff]
        %v5063 = vld [vmem:[%s295 + $0x5e0] sm:$0xff]
        %v5064 = vld [vmem:[%s295 + $0x5e8] sm:$0xff]
        %v5065 = vld [vmem:[%s295 + $0x5f0] sm:$0xff]
        %v5066 = vld [vmem:[%s295 + $0x5f8] sm:$0xff]
        %v5067 = vld [vmem:[%s295 + $0x600] sm:$0xff]
        %v5068 = vld [vmem:[%s295 + $0x608] sm:$0xff]
        %v5069 = vld [vmem:[%s295 + $0x610] sm:$0xff]
        %v5070 = vld [vmem:[%s295 + $0x618] sm:$0xff]
        %v5071 = vld [vmem:[%s295 + $0x620] sm:$0xff]
        %v5072 = vld [vmem:[%s295 + $0x628] sm:$0xff]
        %v5073 = vld [vmem:[%s295 + $0x630] sm:$0xff]
        %v5074 = vld [vmem:[%s295 + $0x638] sm:$0xff]
        %v5075 = vld [vmem:[%s295 + $0x640] sm:$0xff]
        %v5076 = vld [vmem:[%s295 + $0x648] sm:$0xff]
        %v5077 = vld [vmem:[%s295 + $0x650] sm:$0xff]
        %v5078 = vld [vmem:[%s295 + $0x658] sm:$0xff]
        %v5079 = vld [vmem:[%s295 + $0x660] sm:$0xff]
        %v5080 = vld [vmem:[%s295 + $0x668] sm:$0xff]
        %v5081 = vld [vmem:[%s295 + $0x670] sm:$0xff]
        %v5082 = vld [vmem:[%s295 + $0x678] sm:$0xff]
        %v5083 = vld [vmem:[%s295 + $0x680] sm:$0xff]
        %v5084 = vld [vmem:[%s295 + $0x688] sm:$0xff]
        %v5085 = vld [vmem:[%s295 + $0x690] sm:$0xff]
        %v5086 = vld [vmem:[%s295 + $0x698] sm:$0xff]
        %v5087 = vld [vmem:[%s295 + $0x6a0] sm:$0xff]
        %v5088 = vld [vmem:[%s295 + $0x6a8] sm:$0xff]
        %v5089 = vld [vmem:[%s295 + $0x6b0] sm:$0xff]
        %v5090 = vld [vmem:[%s295 + $0x6b8] sm:$0xff]
        %v5091 = vld [vmem:[%s295 + $0x6c0] sm:$0xff]
        %v5092 = vld [vmem:[%s295 + $0x6c8] sm:$0xff]
        %v5093 = vld [vmem:[%s295 + $0x6d0] sm:$0xff]
        %v5094 = vld [vmem:[%s295 + $0x6d8] sm:$0xff]
        %v5095 = vld [vmem:[%s295 + $0x6e0] sm:$0xff]
        %v5096 = vld [vmem:[%s295 + $0x6e8] sm:$0xff]
        %v5097 = vld [vmem:[%s295 + $0x6f0] sm:$0xff]
        %v5098 = vld [vmem:[%s295 + $0x6f8] sm:$0xff]
        %v5099 = vld [vmem:[%s295 + $0x700] sm:$0xff]
        %v5100 = vld [vmem:[%s295 + $0x708] sm:$0xff]
        %v5101 = vld [vmem:[%s295 + $0x710] sm:$0xff]
        %v5102 = vld [vmem:[%s295 + $0x718] sm:$0xff]
        %v5103 = vld [vmem:[%s295 + $0x720] sm:$0xff]
        %v5104 = vld [vmem:[%s295 + $0x728] sm:$0xff]
        %v5105 = vld [vmem:[%s295 + $0x730] sm:$0xff]
        %v5106 = vld [vmem:[%s295 + $0x738] sm:$0xff]
        %v5107 = vld [vmem:[%s295 + $0x740] sm:$0xff]
        %v5108 = vld [vmem:[%s295 + $0x748] sm:$0xff]
        %v5109 = vld [vmem:[%s295 + $0x750] sm:$0xff]
        %v5110 = vld [vmem:[%s295 + $0x758] sm:$0xff]
        %v5111 = vld [vmem:[%s295 + $0x760] sm:$0xff]
        %v5112 = vld [vmem:[%s295 + $0x768] sm:$0xff]
        %v5113 = vld [vmem:[%s295 + $0x770] sm:$0xff]
        %v5114 = vld [vmem:[%s295 + $0x778] sm:$0xff]
        %v5115 = vld [vmem:[%s295 + $0x780] sm:$0xff]
        %v5116 = vld [vmem:[%s295 + $0x788] sm:$0xff]
        %v5117 = vld [vmem:[%s295 + $0x790] sm:$0xff]
        %v5118 = vld [vmem:[%s295 + $0x798] sm:$0xff]
        %v5119 = vld [vmem:[%s295 + $0x7a0] sm:$0xff]
        %v5120 = vld [vmem:[%s295 + $0x7a8] sm:$0xff]
        %v5121 = vld [vmem:[%s295 + $0x7b0] sm:$0xff]
        %v5122 = vld [vmem:[%s295 + $0x7b8] sm:$0xff]
        %v5123 = vld [vmem:[%s295 + $0x7c0] sm:$0xff]
        %v5124 = vld [vmem:[%s295 + $0x7c8] sm:$0xff]
        %v5125 = vld [vmem:[%s295 + $0x7d0] sm:$0xff]
        %v5126 = vld [vmem:[%s295 + $0x7d8] sm:$0xff]
        %v5127 = vld [vmem:[%s295 + $0x7e0] sm:$0xff]
        %v5128 = vld [vmem:[%s295 + $0x7e8] sm:$0xff]
        %v5129 = vld [vmem:[%s295 + $0x7f0] sm:$0xff]
        %v5130 = vld [vmem:[%s295 + $0x7f8] sm:$0xff]
        %v5131 = vld [vmem:[%s295 + $0x800] sm:$0xff]
        %v5132 = vld [vmem:[%s295 + $0x808] sm:$0xff]
        %v5133 = vld [vmem:[%s295 + $0x810] sm:$0xff]
        %v5134 = vld [vmem:[%s295 + $0x818] sm:$0xff]
        %v5135 = vld [vmem:[%s295 + $0x820] sm:$0xff]
        %v5136 = vld [vmem:[%s295 + $0x828] sm:$0xff]
        %v5137 = vld [vmem:[%s295 + $0x830] sm:$0xff]
        %v5138 = vld [vmem:[%s295 + $0x838] sm:$0xff]
        %v5139 = vld [vmem:[%s295 + $0x840] sm:$0xff]
        %v5140 = vld [vmem:[%s295 + $0x848] sm:$0xff]
        %v5141 = vld [vmem:[%s295 + $0x850] sm:$0xff]
        %v5142 = vld [vmem:[%s295 + $0x858] sm:$0xff]
        %v5143 = vld [vmem:[%s295 + $0x860] sm:$0xff]
        %v5144 = vld [vmem:[%s295 + $0x868] sm:$0xff]
        %v5145 = vld [vmem:[%s295 + $0x870] sm:$0xff]
        %v5146 = vld [vmem:[%s295 + $0x878] sm:$0xff]
        %v5147 = vld [vmem:[%s295 + $0x880] sm:$0xff]
        %v5148 = vld [vmem:[%s295 + $0x888] sm:$0xff]
        %v5149 = vld [vmem:[%s295 + $0x890] sm:$0xff]
        %v5150 = vld [vmem:[%s295 + $0x898] sm:$0xff]
        %v5151 = vld [vmem:[%s295 + $0x8a0] sm:$0xff]
        %v5152 = vld [vmem:[%s295 + $0x8a8] sm:$0xff]
        %v5153 = vld [vmem:[%s295 + $0x8b0] sm:$0xff]
        %v5154 = vld [vmem:[%s295 + $0x8b8] sm:$0xff]
        %v5155 = vld [vmem:[%s295 + $0x8c0] sm:$0xff]
        %v5156 = vld [vmem:[%s295 + $0x8c8] sm:$0xff]
        %v5157 = vld [vmem:[%s295 + $0x8d0] sm:$0xff]
        %v5158 = vld [vmem:[%s295 + $0x8d8] sm:$0xff]
        %v5159 = vld [vmem:[%s295 + $0x8e0] sm:$0xff]
        %v5160 = vld [vmem:[%s295 + $0x8e8] sm:$0xff]
        %v5161 = vld [vmem:[%s295 + $0x8f0] sm:$0xff]
        %v5162 = vld [vmem:[%s295 + $0x8f8] sm:$0xff]
        %v5163 = vld [vmem:[%s295 + $0x900] sm:$0xff]
        %v5164 = vld [vmem:[%s295 + $0x908] sm:$0xff]
        %v5165 = vld [vmem:[%s295 + $0x910] sm:$0xff]
        %v5166 = vld [vmem:[%s295 + $0x918] sm:$0xff]
        %v5167 = vld [vmem:[%s295 + $0x920] sm:$0xff]
        %v5168 = vld [vmem:[%s295 + $0x928] sm:$0xff]
        %v5169 = vld [vmem:[%s295 + $0x930] sm:$0xff]
        %v5170 = vld [vmem:[%s295 + $0x938] sm:$0xff]
        %v5171 = vld [vmem:[%s295 + $0x940] sm:$0xff]
        %v5172 = vld [vmem:[%s295 + $0x948] sm:$0xff]
        %v5173 = vld [vmem:[%s295 + $0x950] sm:$0xff]
        %v5174 = vld [vmem:[%s295 + $0x958] sm:$0xff]
        %v5175 = vld [vmem:[%s295 + $0x960] sm:$0xff]
        %v5176 = vld [vmem:[%s295 + $0x968] sm:$0xff]
        %v5177 = vld [vmem:[%s295 + $0x970] sm:$0xff]
        %v5178 = vld [vmem:[%s295 + $0x978] sm:$0xff]
        %v5179 = vld [vmem:[%s295 + $0x980] sm:$0xff]
        %v5180 = vld [vmem:[%s295 + $0x988] sm:$0xff]
        %v5181 = vld [vmem:[%s295 + $0x990] sm:$0xff]
        %v5182 = vld [vmem:[%s295 + $0x998] sm:$0xff]
        %v5183 = vld [vmem:[%s295 + $0x9a0] sm:$0xff]
        %v5184 = vld [vmem:[%s295 + $0x9a8] sm:$0xff]
        %v5185 = vld [vmem:[%s295 + $0x9b0] sm:$0xff]
        %v5186 = vld [vmem:[%s295 + $0x9b8] sm:$0xff]
        %v5187 = vld [vmem:[%s295 + $0x9c0] sm:$0xff]
        %v5188 = vld [vmem:[%s295 + $0x9c8] sm:$0xff]
        %v5189 = vld [vmem:[%s295 + $0x9d0] sm:$0xff]
        %v5190 = vld [vmem:[%s295 + $0x9d8] sm:$0xff]
        %v5191 = vld [vmem:[%s295 + $0x9e0] sm:$0xff]
        %v5192 = vld [vmem:[%s295 + $0x9e8] sm:$0xff]
        %v5193 = vld [vmem:[%s295 + $0x9f0] sm:$0xff]
        %v5194 = vld [vmem:[%s295 + $0x9f8] sm:$0xff]
        %v5195 = vld [vmem:[%s295 + $0xa00] sm:$0xff]
        %v5196 = vld [vmem:[%s295 + $0xa08] sm:$0xff]
        %v5197 = vld [vmem:[%s295 + $0xa10] sm:$0xff]
        %v5198 = vld [vmem:[%s295 + $0xa18] sm:$0xff]
        %v5199 = vld [vmem:[%s295 + $0xa20] sm:$0xff]
        %v5200 = vld [vmem:[%s295 + $0xa28] sm:$0xff]
        %v5201 = vld [vmem:[%s295 + $0xa30] sm:$0xff]
        %v5202 = vld [vmem:[%s295 + $0xa38] sm:$0xff]
        %v5203 = vld [vmem:[%s295 + $0xa40] sm:$0xff]
        %v5204 = vld [vmem:[%s295 + $0xa48] sm:$0xff]
        %v5205 = vld [vmem:[%s295 + $0xa50] sm:$0xff]
        %v5206 = vld [vmem:[%s295 + $0xa58] sm:$0xff]
        %v5207 = vld [vmem:[%s295 + $0xa60] sm:$0xff]
        %v5208 = vld [vmem:[%s295 + $0xa68] sm:$0xff]
        %v5209 = vld [vmem:[%s295 + $0xa70] sm:$0xff]
        %v5210 = vld [vmem:[%s295 + $0xa78] sm:$0xff]
        %v5211 = vld [vmem:[%s295 + $0xa80] sm:$0xff]
        %v5212 = vld [vmem:[%s295 + $0xa88] sm:$0xff]
        %v5213 = vld [vmem:[%s295 + $0xa90] sm:$0xff]
        %v5214 = vld [vmem:[%s295 + $0xa98] sm:$0xff]
        %v5215 = vld [vmem:[%s295 + $0xaa0] sm:$0xff]
        %v5216 = vld [vmem:[%s295 + $0xaa8] sm:$0xff]
        %v5217 = vld [vmem:[%s295 + $0xab0] sm:$0xff]
        %v5218 = vld [vmem:[%s295 + $0xab8] sm:$0xff]
        %v5219 = vld [vmem:[%s295 + $0xac0] sm:$0xff]
        %v5220 = vld [vmem:[%s295 + $0xac8] sm:$0xff]
        %v5221 = vld [vmem:[%s295 + $0xad0] sm:$0xff]
        %v5222 = vld [vmem:[%s295 + $0xad8] sm:$0xff]
        %v5223 = vld [vmem:[%s295 + $0xae0] sm:$0xff]
        %v5224 = vld [vmem:[%s295 + $0xae8] sm:$0xff]
        %v5225 = vld [vmem:[%s295 + $0xaf0] sm:$0xff]
        %v5226 = vld [vmem:[%s295 + $0xaf8] sm:$0xff]
        %v5227 = vld [vmem:[%s295 + $0xb00] sm:$0xff]
        %v5228 = vld [vmem:[%s295 + $0xb08] sm:$0xff]
        %v5229 = vld [vmem:[%s295 + $0xb10] sm:$0xff]
        %v5230 = vld [vmem:[%s295 + $0xb18] sm:$0xff]
        %v5231 = vld [vmem:[%s295 + $0xb20] sm:$0xff]
        %v5232 = vld [vmem:[%s295 + $0xb28] sm:$0xff]
        %v5233 = vld [vmem:[%s295 + $0xb30] sm:$0xff]
        %v5234 = vld [vmem:[%s295 + $0xb38] sm:$0xff]
        %v5235 = vld [vmem:[%s295 + $0xb40] sm:$0xff]
        %v5236 = vld [vmem:[%s295 + $0xb48] sm:$0xff]
        %v5237 = vld [vmem:[%s295 + $0xb50] sm:$0xff]
        %v5238 = vld [vmem:[%s295 + $0xb58] sm:$0xff]
        %v5239 = vld [vmem:[%s295 + $0xb60] sm:$0xff]
        %v5240 = vld [vmem:[%s295 + $0xb68] sm:$0xff]
        %v5241 = vld [vmem:[%s295 + $0xb70] sm:$0xff]
        %v5242 = vld [vmem:[%s295 + $0xb78] sm:$0xff]
        %v5243 = vld [vmem:[%s295 + $0xb80] sm:$0xff]
        %v5244 = vld [vmem:[%s295 + $0xb88] sm:$0xff]
        %v5245 = vld [vmem:[%s295 + $0xb90] sm:$0xff]
        %v5246 = vld [vmem:[%s295 + $0xb98] sm:$0xff]
        %v5247 = vld [vmem:[%s295 + $0xba0] sm:$0xff]
        %v5248 = vld [vmem:[%s295 + $0xba8] sm:$0xff]
        %v5249 = vld [vmem:[%s295 + $0xbb0] sm:$0xff]
        %v5250 = vld [vmem:[%s295 + $0xbb8] sm:$0xff]
        %v5251 = vld [vmem:[%s295 + $0xbc0] sm:$0xff]
        %v5252 = vld [vmem:[%s295 + $0xbc8] sm:$0xff]
        %v5253 = vld [vmem:[%s295 + $0xbd0] sm:$0xff]
        %v5254 = vld [vmem:[%s295 + $0xbd8] sm:$0xff]
        %v5255 = vld [vmem:[%s295 + $0xbe0] sm:$0xff]
        %v5256 = vld [vmem:[%s295 + $0xbe8] sm:$0xff]
        %v5257 = vld [vmem:[%s295 + $0xbf0] sm:$0xff]
        %v5258 = vld [vmem:[%s295 + $0xbf8] sm:$0xff]
        %v5259 = vld [vmem:[%s295 + $0xc00] sm:$0xff]
        %v5260 = vld [vmem:[%s295 + $0xc08] sm:$0xff]
        %v5261 = vld [vmem:[%s295 + $0xc10] sm:$0xff]
        %v5262 = vld [vmem:[%s295 + $0xc18] sm:$0xff]
        %v5263 = vld [vmem:[%s295 + $0xc20] sm:$0xff]
        %v5264 = vld [vmem:[%s295 + $0xc28] sm:$0xff]
        %v5265 = vld [vmem:[%s295 + $0xc30] sm:$0xff]
        %v5266 = vld [vmem:[%s295 + $0xc38] sm:$0xff]
        %v5267 = vld [vmem:[%s295 + $0xc40] sm:$0xff]
        %v5268 = vld [vmem:[%s295 + $0xc48] sm:$0xff]
        %v5269 = vld [vmem:[%s295 + $0xc50] sm:$0xff]
        %v5270 = vld [vmem:[%s295 + $0xc58] sm:$0xff]
        %v5271 = vld [vmem:[%s295 + $0xc60] sm:$0xff]
        %v5272 = vld [vmem:[%s295 + $0xc68] sm:$0xff]
        %v5273 = vld [vmem:[%s295 + $0xc70] sm:$0xff]
        %v5274 = vld [vmem:[%s295 + $0xc78] sm:$0xff]
        %v5275 = vld [vmem:[%s295 + $0xc80] sm:$0xff]
        %v5276 = vld [vmem:[%s295 + $0xc88] sm:$0xff]
        %v5277 = vld [vmem:[%s295 + $0xc90] sm:$0xff]
        %v5278 = vld [vmem:[%s295 + $0xc98] sm:$0xff]
        %v5279 = vld [vmem:[%s295 + $0xca0] sm:$0xff]
        %v5280 = vld [vmem:[%s295 + $0xca8] sm:$0xff]
        %v5281 = vld [vmem:[%s295 + $0xcb0] sm:$0xff]
        %v5282 = vld [vmem:[%s295 + $0xcb8] sm:$0xff]
        %v5283 = vld [vmem:[%s295 + $0xcc0] sm:$0xff]
        %v5284 = vld [vmem:[%s295 + $0xcc8] sm:$0xff]
        %v5285 = vld [vmem:[%s295 + $0xcd0] sm:$0xff]
        %v5286 = vld [vmem:[%s295 + $0xcd8] sm:$0xff]
        %v5287 = vld [vmem:[%s295 + $0xce0] sm:$0xff]
        %v5288 = vld [vmem:[%s295 + $0xce8] sm:$0xff]
        %v5289 = vld [vmem:[%s295 + $0xcf0] sm:$0xff]
        %v5290 = vld [vmem:[%s295 + $0xcf8] sm:$0xff]
        %v5291 = vld [vmem:[%s295 + $0xd00] sm:$0xff]
        %v5292 = vld [vmem:[%s295 + $0xd08] sm:$0xff]
        %v5293 = vld [vmem:[%s295 + $0xd10] sm:$0xff]
        %v5294 = vld [vmem:[%s295 + $0xd18] sm:$0xff]
        %v5295 = vld [vmem:[%s295 + $0xd20] sm:$0xff]
        %v5296 = vld [vmem:[%s295 + $0xd28] sm:$0xff]
        %v5297 = vld [vmem:[%s295 + $0xd30] sm:$0xff]
        %v5298 = vld [vmem:[%s295 + $0xd38] sm:$0xff]
        %v5299 = vld [vmem:[%s295 + $0xd40] sm:$0xff]
        %v5300 = vld [vmem:[%s295 + $0xd48] sm:$0xff]
        %v5301 = vld [vmem:[%s295 + $0xd50] sm:$0xff]
        %v5302 = vld [vmem:[%s295 + $0xd58] sm:$0xff]
        %v5303 = vld [vmem:[%s295 + $0xd60] sm:$0xff]
        %v5304 = vld [vmem:[%s295 + $0xd68] sm:$0xff]
        %v5305 = vld [vmem:[%s295 + $0xd70] sm:$0xff]
        %v5306 = vld [vmem:[%s295 + $0xd78] sm:$0xff]
        %v5307 = vld [vmem:[%s295 + $0xd80] sm:$0xff]
        %v5308 = vld [vmem:[%s295 + $0xd88] sm:$0xff]
        %v5309 = vld [vmem:[%s295 + $0xd90] sm:$0xff]
        %v5310 = vld [vmem:[%s295 + $0xd98] sm:$0xff]
        %v5311 = vld [vmem:[%s295 + $0xda0] sm:$0xff]
        %v5312 = vld [vmem:[%s295 + $0xda8] sm:$0xff]
        %v5313 = vld [vmem:[%s295 + $0xdb0] sm:$0xff]
        %v5314 = vld [vmem:[%s295 + $0xdb8] sm:$0xff]
        %v5315 = vld [vmem:[%s295 + $0xdc0] sm:$0xff]
        %v5316 = vld [vmem:[%s295 + $0xdc8] sm:$0xff]
        %v5317 = vld [vmem:[%s295 + $0xdd0] sm:$0xff]
        %v5318 = vld [vmem:[%s295 + $0xdd8] sm:$0xff]
        %v5319 = vld [vmem:[%s295 + $0xde0] sm:$0xff]
        %v5320 = vld [vmem:[%s295 + $0xde8] sm:$0xff]
        %v5321 = vld [vmem:[%s295 + $0xdf0] sm:$0xff]
        %v5322 = vld [vmem:[%s295 + $0xdf8] sm:$0xff]
        %v5323 = vld [vmem:[%s295 + $0xe00] sm:$0xff]
        %v5324 = vld [vmem:[%s295 + $0xe08] sm:$0xff]
        %v5325 = vld [vmem:[%s295 + $0xe10] sm:$0xff]
        %v5326 = vld [vmem:[%s295 + $0xe18] sm:$0xff]
        %v5327 = vld [vmem:[%s295 + $0xe20] sm:$0xff]
        %v5328 = vld [vmem:[%s295 + $0xe28] sm:$0xff]
        %v5329 = vld [vmem:[%s295 + $0xe30] sm:$0xff]
        %v5330 = vld [vmem:[%s295 + $0xe38] sm:$0xff]
        %v5331 = vld [vmem:[%s295 + $0xe40] sm:$0xff]
        %v5332 = vld [vmem:[%s295 + $0xe48] sm:$0xff]
        %v5333 = vld [vmem:[%s295 + $0xe50] sm:$0xff]
        %v5334 = vld [vmem:[%s295 + $0xe58] sm:$0xff]
        %v5335 = vld [vmem:[%s295 + $0xe60] sm:$0xff]
        %v5336 = vld [vmem:[%s295 + $0xe68] sm:$0xff]
        %v5337 = vld [vmem:[%s295 + $0xe70] sm:$0xff]
        %v5338 = vld [vmem:[%s295 + $0xe78] sm:$0xff]
        %v5339 = vld [vmem:[%s295 + $0xe80] sm:$0xff]
        %v5340 = vld [vmem:[%s295 + $0xe88] sm:$0xff]
        %v5341 = vld [vmem:[%s295 + $0xe90] sm:$0xff]
        %v5342 = vld [vmem:[%s295 + $0xe98] sm:$0xff]
        %v5343 = vld [vmem:[%s295 + $0xea0] sm:$0xff]
        %v5344 = vld [vmem:[%s295 + $0xea8] sm:$0xff]
        %v5345 = vld [vmem:[%s295 + $0xeb0] sm:$0xff]
        %v5346 = vld [vmem:[%s295 + $0xeb8] sm:$0xff]
        %v5347 = vld [vmem:[%s295 + $0xec0] sm:$0xff]
        %v5348 = vld [vmem:[%s295 + $0xec8] sm:$0xff]
        %v5349 = vld [vmem:[%s295 + $0xed0] sm:$0xff]
        %v5350 = vld [vmem:[%s295 + $0xed8] sm:$0xff]
        %v5351 = vld [vmem:[%s295 + $0xee0] sm:$0xff]
        %v5352 = vld [vmem:[%s295 + $0xee8] sm:$0xff]
        %v5353 = vld [vmem:[%s295 + $0xef0] sm:$0xff]
        %v5354 = vld [vmem:[%s295 + $0xef8] sm:$0xff]
        %v5355 = vld [vmem:[%s295 + $0xf00] sm:$0xff]
        %v5356 = vld [vmem:[%s295 + $0xf08] sm:$0xff]
        %v5357 = vld [vmem:[%s295 + $0xf10] sm:$0xff]
        %v5358 = vld [vmem:[%s295 + $0xf18] sm:$0xff]
        %v5359 = vld [vmem:[%s295 + $0xf20] sm:$0xff]
        %v5360 = vld [vmem:[%s295 + $0xf28] sm:$0xff]
        %v5361 = vld [vmem:[%s295 + $0xf30] sm:$0xff]
        %v5362 = vld [vmem:[%s295 + $0xf38] sm:$0xff]
        %v5363 = vld [vmem:[%s295 + $0xf40] sm:$0xff]
        %v5364 = vld [vmem:[%s295 + $0xf48] sm:$0xff]
        %v5365 = vld [vmem:[%s295 + $0xf50] sm:$0xff]
        %v5366 = vld [vmem:[%s295 + $0xf58] sm:$0xff]
        %v5367 = vld [vmem:[%s295 + $0xf60] sm:$0xff]
        %v5368 = vld [vmem:[%s295 + $0xf68] sm:$0xff]
        %v5369 = vld [vmem:[%s295 + $0xf70] sm:$0xff]
        %v5370 = vld [vmem:[%s295 + $0xf78] sm:$0xff]
        %v5371 = vld [vmem:[%s295 + $0xf80] sm:$0xff]
        %v5372 = vld [vmem:[%s295 + $0xf88] sm:$0xff]
        %v5373 = vld [vmem:[%s295 + $0xf90] sm:$0xff]
        %v5374 = vld [vmem:[%s295 + $0xf98] sm:$0xff]
        %v5375 = vld [vmem:[%s295 + $0xfa0] sm:$0xff]
        %v5376 = vld [vmem:[%s295 + $0xfa8] sm:$0xff]
        %v5377 = vld [vmem:[%s295 + $0xfb0] sm:$0xff]
        %v5378 = vld [vmem:[%s295 + $0xfb8] sm:$0xff]
        %v5379 = vld [vmem:[%s295 + $0xfc0] sm:$0xff]
        %v5380 = vld [vmem:[%s295 + $0xfc8] sm:$0xff]
        %v5381 = vld [vmem:[%s295 + $0xfd0] sm:$0xff]
        %v5382 = vld [vmem:[%s295 + $0xfd8] sm:$0xff]
        %v5383 = vld [vmem:[%s295 + $0xfe0] sm:$0xff]
        %v5384 = vld [vmem:[%s295 + $0xfe8] sm:$0xff]
        %v5385 = vld [vmem:[%s295 + $0xff0] sm:$0xff]
        %v5386 = vld [vmem:[%s295 + $0xff8] sm:$0xff]
        %v5387 = vld [vmem:[%s295 + $0x1000] sm:$0xff]
        %v5388 = vld [vmem:[%s295 + $0x1008] sm:$0xff]
        %v5389 = vld [vmem:[%s295 + $0x1010] sm:$0xff]
        %v5390 = vld [vmem:[%s295 + $0x1018] sm:$0xff]
        %v5391 = vld [vmem:[%s295 + $0x1020] sm:$0xff]
        %v5392 = vld [vmem:[%s295 + $0x1028] sm:$0xff]
        %v5393 = vld [vmem:[%s295 + $0x1030] sm:$0xff]
        %v5394 = vld [vmem:[%s295 + $0x1038] sm:$0xff]
        %v5395 = vld [vmem:[%s295 + $0x1040] sm:$0xff]
        %v5396 = vld [vmem:[%s295 + $0x1048] sm:$0xff]
        %v5397 = vld [vmem:[%s295 + $0x1050] sm:$0xff]
        %v5398 = vld [vmem:[%s295 + $0x1058] sm:$0xff]
        %v5399 = vld [vmem:[%s295 + $0x1060] sm:$0xff]
        %v5400 = vld [vmem:[%s295 + $0x1068] sm:$0xff]
        %v5401 = vld [vmem:[%s295 + $0x1070] sm:$0xff]
        %v5402 = vld [vmem:[%s295 + $0x1078] sm:$0xff]
        %v5403 = vld [vmem:[%s295 + $0x1080] sm:$0xff]
        %v5404 = vld [vmem:[%s295 + $0x1088] sm:$0xff]
        %v5405 = vld [vmem:[%s295 + $0x1090] sm:$0xff]
        %v5406 = vld [vmem:[%s295 + $0x1098] sm:$0xff]
        %v5407 = vld [vmem:[%s295 + $0x10a0] sm:$0xff]
        %v5408 = vld [vmem:[%s295 + $0x10a8] sm:$0xff]
        %v5409 = vld [vmem:[%s295 + $0x10b0] sm:$0xff]
        %v5410 = vld [vmem:[%s295 + $0x10b8] sm:$0xff]
        %v5411 = vld [vmem:[%s295 + $0x10c0] sm:$0xff]
        %v5412 = vld [vmem:[%s295 + $0x10c8] sm:$0xff]
        %v5413 = vld [vmem:[%s295 + $0x10d0] sm:$0xff]
        %v5414 = vld [vmem:[%s295 + $0x10d8] sm:$0xff]
        %v5415 = vld [vmem:[%s295 + $0x10e0] sm:$0xff]
        %v5416 = vld [vmem:[%s295 + $0x10e8] sm:$0xff]
        %v5417 = vld [vmem:[%s295 + $0x10f0] sm:$0xff]
        %v5418 = vld [vmem:[%s295 + $0x10f8] sm:$0xff]
        %v5419 = vld [vmem:[%s295 + $0x1100] sm:$0xff]
        %v5420 = vld [vmem:[%s295 + $0x1108] sm:$0xff]
        %v5421 = vld [vmem:[%s295 + $0x1110] sm:$0xff]
        %v5422 = vld [vmem:[%s295 + $0x1118] sm:$0xff]
        %v5423 = vld [vmem:[%s295 + $0x1120] sm:$0xff]
        %v5424 = vld [vmem:[%s295 + $0x1128] sm:$0xff]
        %v5425 = vld [vmem:[%s295 + $0x1130] sm:$0xff]
        %v5426 = vld [vmem:[%s295 + $0x1138] sm:$0xff]
        %v5427 = vld [vmem:[%s295 + $0x1140] sm:$0xff]
        %v5428 = vld [vmem:[%s295 + $0x1148] sm:$0xff]
        %v5429 = vld [vmem:[%s295 + $0x1150] sm:$0xff]
        %v5430 = vld [vmem:[%s295 + $0x1158] sm:$0xff]
        %v5431 = vld [vmem:[%s295 + $0x1160] sm:$0xff]
        %v5432 = vld [vmem:[%s295 + $0x1168] sm:$0xff]
        %v5433 = vld [vmem:[%s295 + $0x1170] sm:$0xff]
        %v5434 = vld [vmem:[%s295 + $0x1178] sm:$0xff]
        %v5435 = vld [vmem:[%s295 + $0x1180] sm:$0xff]
        %v5436 = vld [vmem:[%s295 + $0x1188] sm:$0xff]
        %v5437 = vld [vmem:[%s295 + $0x1190] sm:$0xff]
        %v5438 = vld [vmem:[%s295 + $0x1198] sm:$0xff]
        %v5439 = vld [vmem:[%s295 + $0x11a0] sm:$0xff]
        %v5440 = vld [vmem:[%s295 + $0x11a8] sm:$0xff]
        %v5441 = vld [vmem:[%s295 + $0x11b0] sm:$0xff]
        %v5442 = vld [vmem:[%s295 + $0x11b8] sm:$0xff]
        %v5443 = vld [vmem:[%s295 + $0x11c0] sm:$0xff]
        %v5444 = vld [vmem:[%s295 + $0x11c8] sm:$0xff]
        %v5445 = vld [vmem:[%s295 + $0x11d0] sm:$0xff]
        %v5446 = vld [vmem:[%s295 + $0x11d8] sm:$0xff]
        %v5447 = vld [vmem:[%s295 + $0x11e0] sm:$0xff]
        %v5448 = vld [vmem:[%s295 + $0x11e8] sm:$0xff]
        %v5449 = vld [vmem:[%s295 + $0x11f0] sm:$0xff]
        %v5450 = vld [vmem:[%s295 + $0x11f8] sm:$0xff]
        %v6027 = vunpack.c.l.b16 %v4875
        %v6028 = vunpack.c.h.b16 %v4875
        %v6029 = vunpack.c.l.b16 %v4876
        %v6030 = vunpack.c.h.b16 %v4876
        %v6031 = vunpack.c.l.b16 %v4877
        %v6032 = vunpack.c.h.b16 %v4877
        %v6033 = vunpack.c.l.b16 %v4878
        %v6034 = vunpack.c.h.b16 %v4878
        %v6035 = vunpack.c.l.b16 %v4879
        %v6036 = vunpack.c.h.b16 %v4879
        %v6037 = vunpack.c.l.b16 %v4880
        %v6038 = vunpack.c.h.b16 %v4880
        %v6039 = vunpack.c.l.b16 %v4881
        %v6040 = vunpack.c.h.b16 %v4881
        %v6041 = vunpack.c.l.b16 %v4882
        %v6042 = vunpack.c.h.b16 %v4882
        %v6043 = vunpack.c.l.b16 %v4883
        %v6044 = vunpack.c.h.b16 %v4883
        %v6045 = vunpack.c.l.b16 %v4884
        %v6046 = vunpack.c.h.b16 %v4884
        %v6047 = vunpack.c.l.b16 %v4885
        %v6048 = vunpack.c.h.b16 %v4885
        %v6049 = vunpack.c.l.b16 %v4886
        %v6050 = vunpack.c.h.b16 %v4886
        %v6051 = vunpack.c.l.b16 %v4887
        %v6052 = vunpack.c.h.b16 %v4887
        %v6053 = vunpack.c.l.b16 %v4888
        %v6054 = vunpack.c.h.b16 %v4888
        %v6055 = vunpack.c.l.b16 %v4889
        %v6056 = vunpack.c.h.b16 %v4889
        %v6057 = vunpack.c.l.b16 %v4890
        %v6058 = vunpack.c.h.b16 %v4890
        %v6059 = vunpack.c.l.b16 %v4891
        %v6060 = vunpack.c.h.b16 %v4891
        %v6061 = vunpack.c.l.b16 %v4892
        %v6062 = vunpack.c.h.b16 %v4892
        %v6063 = vunpack.c.l.b16 %v4893
        %v6064 = vunpack.c.h.b16 %v4893
        %v6065 = vunpack.c.l.b16 %v4894
        %v6066 = vunpack.c.h.b16 %v4894
        %v6067 = vunpack.c.l.b16 %v4895
        %v6068 = vunpack.c.h.b16 %v4895
        %v6069 = vunpack.c.l.b16 %v4896
        %v6070 = vunpack.c.h.b16 %v4896
        %v6071 = vunpack.c.l.b16 %v4897
        %v6072 = vunpack.c.h.b16 %v4897
        %v6073 = vunpack.c.l.b16 %v4898
        %v6074 = vunpack.c.h.b16 %v4898
        %v6075 = vunpack.c.l.b16 %v4899
        %v6076 = vunpack.c.h.b16 %v4899
        %v6077 = vunpack.c.l.b16 %v4900
        %v6078 = vunpack.c.h.b16 %v4900
        %v6079 = vunpack.c.l.b16 %v4901
        %v6080 = vunpack.c.h.b16 %v4901
        %v6081 = vunpack.c.l.b16 %v4902
        %v6082 = vunpack.c.h.b16 %v4902
        %v6083 = vunpack.c.l.b16 %v4903
        %v6084 = vunpack.c.h.b16 %v4903
        %v6085 = vunpack.c.l.b16 %v4904
        %v6086 = vunpack.c.h.b16 %v4904
        %v6087 = vunpack.c.l.b16 %v4905
        %v6088 = vunpack.c.h.b16 %v4905
        %v6089 = vunpack.c.l.b16 %v4906
        %v6090 = vunpack.c.h.b16 %v4906
        %v6091 = vunpack.c.l.b16 %v4907
        %v6092 = vunpack.c.h.b16 %v4907
        %v6093 = vunpack.c.l.b16 %v4908
        %v6094 = vunpack.c.h.b16 %v4908
        %v6095 = vunpack.c.l.b16 %v4909
        %v6096 = vunpack.c.h.b16 %v4909
        %v6097 = vunpack.c.l.b16 %v4910
        %v6098 = vunpack.c.h.b16 %v4910
        %v6099 = vunpack.c.l.b16 %v4911
        %v6100 = vunpack.c.h.b16 %v4911
        %v6101 = vunpack.c.l.b16 %v4912
        %v6102 = vunpack.c.h.b16 %v4912
        %v6103 = vunpack.c.l.b16 %v4913
        %v6104 = vunpack.c.h.b16 %v4913
        %v6105 = vunpack.c.l.b16 %v4914
        %v6106 = vunpack.c.h.b16 %v4914
        %v6107 = vunpack.c.l.b16 %v4915
        %v6108 = vunpack.c.h.b16 %v4915
        %v6109 = vunpack.c.l.b16 %v4916
        %v6110 = vunpack.c.h.b16 %v4916
        %v6111 = vunpack.c.l.b16 %v4917
        %v6112 = vunpack.c.h.b16 %v4917
        %v6113 = vunpack.c.l.b16 %v4918
        %v6114 = vunpack.c.h.b16 %v4918
        %v6115 = vunpack.c.l.b16 %v4919
        %v6116 = vunpack.c.h.b16 %v4919
        %v6117 = vunpack.c.l.b16 %v4920
        %v6118 = vunpack.c.h.b16 %v4920
        %v6119 = vunpack.c.l.b16 %v4921
        %v6120 = vunpack.c.h.b16 %v4921
        %v6121 = vunpack.c.l.b16 %v4922
        %v6122 = vunpack.c.h.b16 %v4922
        %v6123 = vunpack.c.l.b16 %v4923
        %v6124 = vunpack.c.h.b16 %v4923
        %v6125 = vunpack.c.l.b16 %v4924
        %v6126 = vunpack.c.h.b16 %v4924
        %v6127 = vunpack.c.l.b16 %v4925
        %v6128 = vunpack.c.h.b16 %v4925
        %v6129 = vunpack.c.l.b16 %v4926
        %v6130 = vunpack.c.h.b16 %v4926
        %v6131 = vunpack.c.l.b16 %v4927
        %v6132 = vunpack.c.h.b16 %v4927
        %v6133 = vunpack.c.l.b16 %v4928
        %v6134 = vunpack.c.h.b16 %v4928
        %v6135 = vunpack.c.l.b16 %v4929
        %v6136 = vunpack.c.h.b16 %v4929
        %v6137 = vunpack.c.l.b16 %v4930
        %v6138 = vunpack.c.h.b16 %v4930
        %v6139 = vunpack.c.l.b16 %v4931
        %v6140 = vunpack.c.h.b16 %v4931
        %v6141 = vunpack.c.l.b16 %v4932
        %v6142 = vunpack.c.h.b16 %v4932
        %v6143 = vunpack.c.l.b16 %v4933
        %v6144 = vunpack.c.h.b16 %v4933
        %v6145 = vunpack.c.l.b16 %v4934
        %v6146 = vunpack.c.h.b16 %v4934
        %v6147 = vunpack.c.l.b16 %v4935
        %v6148 = vunpack.c.h.b16 %v4935
        %v6149 = vunpack.c.l.b16 %v4936
        %v6150 = vunpack.c.h.b16 %v4936
        %v6151 = vunpack.c.l.b16 %v4937
        %v6152 = vunpack.c.h.b16 %v4937
        %v6153 = vunpack.c.l.b16 %v4938
        %v6154 = vunpack.c.h.b16 %v4938
        %v6155 = vunpack.c.l.b16 %v4939
        %v6156 = vunpack.c.h.b16 %v4939
        %v6157 = vunpack.c.l.b16 %v4940
        %v6158 = vunpack.c.h.b16 %v4940
        %v6159 = vunpack.c.l.b16 %v4941
        %v6160 = vunpack.c.h.b16 %v4941
        %v6161 = vunpack.c.l.b16 %v4942
        %v6162 = vunpack.c.h.b16 %v4942
        %v6163 = vunpack.c.l.b16 %v4943
        %v6164 = vunpack.c.h.b16 %v4943
        %v6165 = vunpack.c.l.b16 %v4944
        %v6166 = vunpack.c.h.b16 %v4944
        %v6167 = vunpack.c.l.b16 %v4945
        %v6168 = vunpack.c.h.b16 %v4945
        %v6169 = vunpack.c.l.b16 %v4946
        %v6170 = vunpack.c.h.b16 %v4946
        %v6171 = vunpack.c.l.b16 %v4947
        %v6172 = vunpack.c.h.b16 %v4947
        %v6173 = vunpack.c.l.b16 %v4948
        %v6174 = vunpack.c.h.b16 %v4948
        %v6175 = vunpack.c.l.b16 %v4949
        %v6176 = vunpack.c.h.b16 %v4949
        %v6177 = vunpack.c.l.b16 %v4950
        %v6178 = vunpack.c.h.b16 %v4950
        %v6179 = vunpack.c.l.b16 %v4951
        %v6180 = vunpack.c.h.b16 %v4951
        %v6181 = vunpack.c.l.b16 %v4952
        %v6182 = vunpack.c.h.b16 %v4952
        %v6183 = vunpack.c.l.b16 %v4953
        %v6184 = vunpack.c.h.b16 %v4953
        %v6185 = vunpack.c.l.b16 %v4954
        %v6186 = vunpack.c.h.b16 %v4954
        %v6187 = vunpack.c.l.b16 %v4955
        %v6188 = vunpack.c.h.b16 %v4955
        %v6189 = vunpack.c.l.b16 %v4956
        %v6190 = vunpack.c.h.b16 %v4956
        %v6191 = vunpack.c.l.b16 %v4957
        %v6192 = vunpack.c.h.b16 %v4957
        %v6193 = vunpack.c.l.b16 %v4958
        %v6194 = vunpack.c.h.b16 %v4958
        %v6195 = vunpack.c.l.b16 %v4959
        %v6196 = vunpack.c.h.b16 %v4959
        %v6197 = vunpack.c.l.b16 %v4960
        %v6198 = vunpack.c.h.b16 %v4960
        %v6199 = vunpack.c.l.b16 %v4961
        %v6200 = vunpack.c.h.b16 %v4961
        %v6201 = vunpack.c.l.b16 %v4962
        %v6202 = vunpack.c.h.b16 %v4962
        %v6203 = vunpack.c.l.b16 %v4963
        %v6204 = vunpack.c.h.b16 %v4963
        %v6205 = vunpack.c.l.b16 %v4964
        %v6206 = vunpack.c.h.b16 %v4964
        %v6207 = vunpack.c.l.b16 %v4965
        %v6208 = vunpack.c.h.b16 %v4965
        %v6209 = vunpack.c.l.b16 %v4966
        %v6210 = vunpack.c.h.b16 %v4966
        %v6211 = vunpack.c.l.b16 %v4967
        %v6212 = vunpack.c.h.b16 %v4967
        %v6213 = vunpack.c.l.b16 %v4968
        %v6214 = vunpack.c.h.b16 %v4968
        %v6215 = vunpack.c.l.b16 %v4969
        %v6216 = vunpack.c.h.b16 %v4969
        %v6217 = vunpack.c.l.b16 %v4970
        %v6218 = vunpack.c.h.b16 %v4970
        %v6219 = vunpack.c.l.b16 %v4971
        %v6220 = vunpack.c.h.b16 %v4971
        %v6221 = vunpack.c.l.b16 %v4972
        %v6222 = vunpack.c.h.b16 %v4972
        %v6223 = vunpack.c.l.b16 %v4973
        %v6224 = vunpack.c.h.b16 %v4973
        %v6225 = vunpack.c.l.b16 %v4974
        %v6226 = vunpack.c.h.b16 %v4974
        %v6227 = vunpack.c.l.b16 %v4975
        %v6228 = vunpack.c.h.b16 %v4975
        %v6229 = vunpack.c.l.b16 %v4976
        %v6230 = vunpack.c.h.b16 %v4976
        %v6231 = vunpack.c.l.b16 %v4977
        %v6232 = vunpack.c.h.b16 %v4977
        %v6233 = vunpack.c.l.b16 %v4978
        %v6234 = vunpack.c.h.b16 %v4978
        %v6235 = vunpack.c.l.b16 %v4979
        %v6236 = vunpack.c.h.b16 %v4979
        %v6237 = vunpack.c.l.b16 %v4980
        %v6238 = vunpack.c.h.b16 %v4980
        %v6239 = vunpack.c.l.b16 %v4981
        %v6240 = vunpack.c.h.b16 %v4981
        %v6241 = vunpack.c.l.b16 %v4982
        %v6242 = vunpack.c.h.b16 %v4982
        %v6243 = vunpack.c.l.b16 %v4983
        %v6244 = vunpack.c.h.b16 %v4983
        %v6245 = vunpack.c.l.b16 %v4984
        %v6246 = vunpack.c.h.b16 %v4984
        %v6247 = vunpack.c.l.b16 %v4985
        %v6248 = vunpack.c.h.b16 %v4985
        %v6249 = vunpack.c.l.b16 %v4986
        %v6250 = vunpack.c.h.b16 %v4986
        %v6251 = vunpack.c.l.b16 %v4987
        %v6252 = vunpack.c.h.b16 %v4987
        %v6253 = vunpack.c.l.b16 %v4988
        %v6254 = vunpack.c.h.b16 %v4988
        %v6255 = vunpack.c.l.b16 %v4989
        %v6256 = vunpack.c.h.b16 %v4989
        %v6257 = vunpack.c.l.b16 %v4990
        %v6258 = vunpack.c.h.b16 %v4990
        %v6259 = vunpack.c.l.b16 %v4991
        %v6260 = vunpack.c.h.b16 %v4991
        %v6261 = vunpack.c.l.b16 %v4992
        %v6262 = vunpack.c.h.b16 %v4992
        %v6263 = vunpack.c.l.b16 %v4993
        %v6264 = vunpack.c.h.b16 %v4993
        %v6265 = vunpack.c.l.b16 %v4994
        %v6266 = vunpack.c.h.b16 %v4994
        %v6267 = vunpack.c.l.b16 %v4995
        %v6268 = vunpack.c.h.b16 %v4995
        %v6269 = vunpack.c.l.b16 %v4996
        %v6270 = vunpack.c.h.b16 %v4996
        %v6271 = vunpack.c.l.b16 %v4997
        %v6272 = vunpack.c.h.b16 %v4997
        %v6273 = vunpack.c.l.b16 %v4998
        %v6274 = vunpack.c.h.b16 %v4998
        %v6275 = vunpack.c.l.b16 %v4999
        %v6276 = vunpack.c.h.b16 %v4999
        %v6277 = vunpack.c.l.b16 %v5000
        %v6278 = vunpack.c.h.b16 %v5000
        %v6279 = vunpack.c.l.b16 %v5001
        %v6280 = vunpack.c.h.b16 %v5001
        %v6281 = vunpack.c.l.b16 %v5002
        %v6282 = vunpack.c.h.b16 %v5002
        %v6283 = vunpack.c.l.b16 %v5003
        %v6284 = vunpack.c.h.b16 %v5003
        %v6285 = vunpack.c.l.b16 %v5004
        %v6286 = vunpack.c.h.b16 %v5004
        %v6287 = vunpack.c.l.b16 %v5005
        %v6288 = vunpack.c.h.b16 %v5005
        %v6289 = vunpack.c.l.b16 %v5006
        %v6290 = vunpack.c.h.b16 %v5006
        %v6291 = vunpack.c.l.b16 %v5007
        %v6292 = vunpack.c.h.b16 %v5007
        %v6293 = vunpack.c.l.b16 %v5008
        %v6294 = vunpack.c.h.b16 %v5008
        %v6295 = vunpack.c.l.b16 %v5009
        %v6296 = vunpack.c.h.b16 %v5009
        %v6297 = vunpack.c.l.b16 %v5010
        %v6298 = vunpack.c.h.b16 %v5010
        %v6299 = vunpack.c.l.b16 %v5011
        %v6300 = vunpack.c.h.b16 %v5011
        %v6301 = vunpack.c.l.b16 %v5012
        %v6302 = vunpack.c.h.b16 %v5012
        %v6303 = vunpack.c.l.b16 %v5013
        %v6304 = vunpack.c.h.b16 %v5013
        %v6305 = vunpack.c.l.b16 %v5014
        %v6306 = vunpack.c.h.b16 %v5014
        %v6307 = vunpack.c.l.b16 %v5015
        %v6308 = vunpack.c.h.b16 %v5015
        %v6309 = vunpack.c.l.b16 %v5016
        %v6310 = vunpack.c.h.b16 %v5016
        %v6311 = vunpack.c.l.b16 %v5017
        %v6312 = vunpack.c.h.b16 %v5017
        %v6313 = vunpack.c.l.b16 %v5018
        %v6314 = vunpack.c.h.b16 %v5018
        %v6315 = vunpack.c.l.b16 %v5019
        %v6316 = vunpack.c.h.b16 %v5019
        %v6317 = vunpack.c.l.b16 %v5020
        %v6318 = vunpack.c.h.b16 %v5020
        %v6319 = vunpack.c.l.b16 %v5021
        %v6320 = vunpack.c.h.b16 %v5021
        %v6321 = vunpack.c.l.b16 %v5022
        %v6322 = vunpack.c.h.b16 %v5022
        %v6323 = vunpack.c.l.b16 %v5023
        %v6324 = vunpack.c.h.b16 %v5023
        %v6325 = vunpack.c.l.b16 %v5024
        %v6326 = vunpack.c.h.b16 %v5024
        %v6327 = vunpack.c.l.b16 %v5025
        %v6328 = vunpack.c.h.b16 %v5025
        %v6329 = vunpack.c.l.b16 %v5026
        %v6330 = vunpack.c.h.b16 %v5026
        %v6331 = vunpack.c.l.b16 %v5027
        %v6332 = vunpack.c.h.b16 %v5027
        %v6333 = vunpack.c.l.b16 %v5028
        %v6334 = vunpack.c.h.b16 %v5028
        %v6335 = vunpack.c.l.b16 %v5029
        %v6336 = vunpack.c.h.b16 %v5029
        %v6337 = vunpack.c.l.b16 %v5030
        %v6338 = vunpack.c.h.b16 %v5030
        %v6339 = vunpack.c.l.b16 %v5031
        %v6340 = vunpack.c.h.b16 %v5031
        %v6341 = vunpack.c.l.b16 %v5032
        %v6342 = vunpack.c.h.b16 %v5032
        %v6343 = vunpack.c.l.b16 %v5033
        %v6344 = vunpack.c.h.b16 %v5033
        %v6345 = vunpack.c.l.b16 %v5034
        %v6346 = vunpack.c.h.b16 %v5034
        %v6347 = vunpack.c.l.b16 %v5035
        %v6348 = vunpack.c.h.b16 %v5035
        %v6349 = vunpack.c.l.b16 %v5036
        %v6350 = vunpack.c.h.b16 %v5036
        %v6351 = vunpack.c.l.b16 %v5037
        %v6352 = vunpack.c.h.b16 %v5037
        %v6353 = vunpack.c.l.b16 %v5038
        %v6354 = vunpack.c.h.b16 %v5038
        %v6355 = vunpack.c.l.b16 %v5039
        %v6356 = vunpack.c.h.b16 %v5039
        %v6357 = vunpack.c.l.b16 %v5040
        %v6358 = vunpack.c.h.b16 %v5040
        %v6359 = vunpack.c.l.b16 %v5041
        %v6360 = vunpack.c.h.b16 %v5041
        %v6361 = vunpack.c.l.b16 %v5042
        %v6362 = vunpack.c.h.b16 %v5042
        %v6363 = vunpack.c.l.b16 %v5043
        %v6364 = vunpack.c.h.b16 %v5043
        %v6365 = vunpack.c.l.b16 %v5044
        %v6366 = vunpack.c.h.b16 %v5044
        %v6367 = vunpack.c.l.b16 %v5045
        %v6368 = vunpack.c.h.b16 %v5045
        %v6369 = vunpack.c.l.b16 %v5046
        %v6370 = vunpack.c.h.b16 %v5046
        %v6371 = vunpack.c.l.b16 %v5047
        %v6372 = vunpack.c.h.b16 %v5047
        %v6373 = vunpack.c.l.b16 %v5048
        %v6374 = vunpack.c.h.b16 %v5048
        %v6375 = vunpack.c.l.b16 %v5049
        %v6376 = vunpack.c.h.b16 %v5049
        %v6377 = vunpack.c.l.b16 %v5050
        %v6378 = vunpack.c.h.b16 %v5050
        %v6379 = vunpack.c.l.b16 %v5051
        %v6380 = vunpack.c.h.b16 %v5051
        %v6381 = vunpack.c.l.b16 %v5052
        %v6382 = vunpack.c.h.b16 %v5052
        %v6383 = vunpack.c.l.b16 %v5053
        %v6384 = vunpack.c.h.b16 %v5053
        %v6385 = vunpack.c.l.b16 %v5054
        %v6386 = vunpack.c.h.b16 %v5054
        %v6387 = vunpack.c.l.b16 %v5055
        %v6388 = vunpack.c.h.b16 %v5055
        %v6389 = vunpack.c.l.b16 %v5056
        %v6390 = vunpack.c.h.b16 %v5056
        %v6391 = vunpack.c.l.b16 %v5057
        %v6392 = vunpack.c.h.b16 %v5057
        %v6393 = vunpack.c.l.b16 %v5058
        %v6394 = vunpack.c.h.b16 %v5058
        %v6395 = vunpack.c.l.b16 %v5059
        %v6396 = vunpack.c.h.b16 %v5059
        %v6397 = vunpack.c.l.b16 %v5060
        %v6398 = vunpack.c.h.b16 %v5060
        %v6399 = vunpack.c.l.b16 %v5061
        %v6400 = vunpack.c.h.b16 %v5061
        %v6401 = vunpack.c.l.b16 %v5062
        %v6402 = vunpack.c.h.b16 %v5062
        %v6403 = vunpack.c.l.b16 %v5063
        %v6404 = vunpack.c.h.b16 %v5063
        %v6405 = vunpack.c.l.b16 %v5064
        %v6406 = vunpack.c.h.b16 %v5064
        %v6407 = vunpack.c.l.b16 %v5065
        %v6408 = vunpack.c.h.b16 %v5065
        %v6409 = vunpack.c.l.b16 %v5066
        %v6410 = vunpack.c.h.b16 %v5066
        %v6411 = vunpack.c.l.b16 %v5067
        %v6412 = vunpack.c.h.b16 %v5067
        %v6413 = vunpack.c.l.b16 %v5068
        %v6414 = vunpack.c.h.b16 %v5068
        %v6415 = vunpack.c.l.b16 %v5069
        %v6416 = vunpack.c.h.b16 %v5069
        %v6417 = vunpack.c.l.b16 %v5070
        %v6418 = vunpack.c.h.b16 %v5070
        %v6419 = vunpack.c.l.b16 %v5071
        %v6420 = vunpack.c.h.b16 %v5071
        %v6421 = vunpack.c.l.b16 %v5072
        %v6422 = vunpack.c.h.b16 %v5072
        %v6423 = vunpack.c.l.b16 %v5073
        %v6424 = vunpack.c.h.b16 %v5073
        %v6425 = vunpack.c.l.b16 %v5074
        %v6426 = vunpack.c.h.b16 %v5074
        %v6427 = vunpack.c.l.b16 %v5075
        %v6428 = vunpack.c.h.b16 %v5075
        %v6429 = vunpack.c.l.b16 %v5076
        %v6430 = vunpack.c.h.b16 %v5076
        %v6431 = vunpack.c.l.b16 %v5077
        %v6432 = vunpack.c.h.b16 %v5077
        %v6433 = vunpack.c.l.b16 %v5078
        %v6434 = vunpack.c.h.b16 %v5078
        %v6435 = vunpack.c.l.b16 %v5079
        %v6436 = vunpack.c.h.b16 %v5079
        %v6437 = vunpack.c.l.b16 %v5080
        %v6438 = vunpack.c.h.b16 %v5080
        %v6439 = vunpack.c.l.b16 %v5081
        %v6440 = vunpack.c.h.b16 %v5081
        %v6441 = vunpack.c.l.b16 %v5082
        %v6442 = vunpack.c.h.b16 %v5082
        %v6443 = vunpack.c.l.b16 %v5083
        %v6444 = vunpack.c.h.b16 %v5083
        %v6445 = vunpack.c.l.b16 %v5084
        %v6446 = vunpack.c.h.b16 %v5084
        %v6447 = vunpack.c.l.b16 %v5085
        %v6448 = vunpack.c.h.b16 %v5085
        %v6449 = vunpack.c.l.b16 %v5086
        %v6450 = vunpack.c.h.b16 %v5086
        %v6451 = vunpack.c.l.b16 %v5087
        %v6452 = vunpack.c.h.b16 %v5087
        %v6453 = vunpack.c.l.b16 %v5088
        %v6454 = vunpack.c.h.b16 %v5088
        %v6455 = vunpack.c.l.b16 %v5089
        %v6456 = vunpack.c.h.b16 %v5089
        %v6457 = vunpack.c.l.b16 %v5090
        %v6458 = vunpack.c.h.b16 %v5090
        %v6459 = vunpack.c.l.b16 %v5091
        %v6460 = vunpack.c.h.b16 %v5091
        %v6461 = vunpack.c.l.b16 %v5092
        %v6462 = vunpack.c.h.b16 %v5092
        %v6463 = vunpack.c.l.b16 %v5093
        %v6464 = vunpack.c.h.b16 %v5093
        %v6465 = vunpack.c.l.b16 %v5094
        %v6466 = vunpack.c.h.b16 %v5094
        %v6467 = vunpack.c.l.b16 %v5095
        %v6468 = vunpack.c.h.b16 %v5095
        %v6469 = vunpack.c.l.b16 %v5096
        %v6470 = vunpack.c.h.b16 %v5096
        %v6471 = vunpack.c.l.b16 %v5097
        %v6472 = vunpack.c.h.b16 %v5097
        %v6473 = vunpack.c.l.b16 %v5098
        %v6474 = vunpack.c.h.b16 %v5098
        %v6475 = vunpack.c.l.b16 %v5099
        %v6476 = vunpack.c.h.b16 %v5099
        %v6477 = vunpack.c.l.b16 %v5100
        %v6478 = vunpack.c.h.b16 %v5100
        %v6479 = vunpack.c.l.b16 %v5101
        %v6480 = vunpack.c.h.b16 %v5101
        %v6481 = vunpack.c.l.b16 %v5102
        %v6482 = vunpack.c.h.b16 %v5102
        %v6483 = vunpack.c.l.b16 %v5103
        %v6484 = vunpack.c.h.b16 %v5103
        %v6485 = vunpack.c.l.b16 %v5104
        %v6486 = vunpack.c.h.b16 %v5104
        %v6487 = vunpack.c.l.b16 %v5105
        %v6488 = vunpack.c.h.b16 %v5105
        %v6489 = vunpack.c.l.b16 %v5106
        %v6490 = vunpack.c.h.b16 %v5106
        %v6491 = vunpack.c.l.b16 %v5107
        %v6492 = vunpack.c.h.b16 %v5107
        %v6493 = vunpack.c.l.b16 %v5108
        %v6494 = vunpack.c.h.b16 %v5108
        %v6495 = vunpack.c.l.b16 %v5109
        %v6496 = vunpack.c.h.b16 %v5109
        %v6497 = vunpack.c.l.b16 %v5110
        %v6498 = vunpack.c.h.b16 %v5110
        %v6499 = vunpack.c.l.b16 %v5111
        %v6500 = vunpack.c.h.b16 %v5111
        %v6501 = vunpack.c.l.b16 %v5112
        %v6502 = vunpack.c.h.b16 %v5112
        %v6503 = vunpack.c.l.b16 %v5113
        %v6504 = vunpack.c.h.b16 %v5113
        %v6505 = vunpack.c.l.b16 %v5114
        %v6506 = vunpack.c.h.b16 %v5114
        %v6507 = vunpack.c.l.b16 %v5115
        %v6508 = vunpack.c.h.b16 %v5115
        %v6509 = vunpack.c.l.b16 %v5116
        %v6510 = vunpack.c.h.b16 %v5116
        %v6511 = vunpack.c.l.b16 %v5117
        %v6512 = vunpack.c.h.b16 %v5117
        %v6513 = vunpack.c.l.b16 %v5118
        %v6514 = vunpack.c.h.b16 %v5118
        %v6515 = vunpack.c.l.b16 %v5119
        %v6516 = vunpack.c.h.b16 %v5119
        %v6517 = vunpack.c.l.b16 %v5120
        %v6518 = vunpack.c.h.b16 %v5120
        %v6519 = vunpack.c.l.b16 %v5121
        %v6520 = vunpack.c.h.b16 %v5121
        %v6521 = vunpack.c.l.b16 %v5122
        %v6522 = vunpack.c.h.b16 %v5122
        %v6523 = vunpack.c.l.b16 %v5123
        %v6524 = vunpack.c.h.b16 %v5123
        %v6525 = vunpack.c.l.b16 %v5124
        %v6526 = vunpack.c.h.b16 %v5124
        %v6527 = vunpack.c.l.b16 %v5125
        %v6528 = vunpack.c.h.b16 %v5125
        %v6529 = vunpack.c.l.b16 %v5126
        %v6530 = vunpack.c.h.b16 %v5126
        %v6531 = vunpack.c.l.b16 %v5127
        %v6532 = vunpack.c.h.b16 %v5127
        %v6533 = vunpack.c.l.b16 %v5128
        %v6534 = vunpack.c.h.b16 %v5128
        %v6535 = vunpack.c.l.b16 %v5129
        %v6536 = vunpack.c.h.b16 %v5129
        %v6537 = vunpack.c.l.b16 %v5130
        %v6538 = vunpack.c.h.b16 %v5130
        %v6539 = vunpack.c.l.b16 %v5131
        %v6540 = vunpack.c.h.b16 %v5131
        %v6541 = vunpack.c.l.b16 %v5132
        %v6542 = vunpack.c.h.b16 %v5132
        %v6543 = vunpack.c.l.b16 %v5133
        %v6544 = vunpack.c.h.b16 %v5133
        %v6545 = vunpack.c.l.b16 %v5134
        %v6546 = vunpack.c.h.b16 %v5134
        %v6547 = vunpack.c.l.b16 %v5135
        %v6548 = vunpack.c.h.b16 %v5135
        %v6549 = vunpack.c.l.b16 %v5136
        %v6550 = vunpack.c.h.b16 %v5136
        %v6551 = vunpack.c.l.b16 %v5137
        %v6552 = vunpack.c.h.b16 %v5137
        %v6553 = vunpack.c.l.b16 %v5138
        %v6554 = vunpack.c.h.b16 %v5138
        %v6555 = vunpack.c.l.b16 %v5139
        %v6556 = vunpack.c.h.b16 %v5139
        %v6557 = vunpack.c.l.b16 %v5140
        %v6558 = vunpack.c.h.b16 %v5140
        %v6559 = vunpack.c.l.b16 %v5141
        %v6560 = vunpack.c.h.b16 %v5141
        %v6561 = vunpack.c.l.b16 %v5142
        %v6562 = vunpack.c.h.b16 %v5142
        %v6563 = vunpack.c.l.b16 %v5143
        %v6564 = vunpack.c.h.b16 %v5143
        %v6565 = vunpack.c.l.b16 %v5144
        %v6566 = vunpack.c.h.b16 %v5144
        %v6567 = vunpack.c.l.b16 %v5145
        %v6568 = vunpack.c.h.b16 %v5145
        %v6569 = vunpack.c.l.b16 %v5146
        %v6570 = vunpack.c.h.b16 %v5146
        %v6571 = vunpack.c.l.b16 %v5147
        %v6572 = vunpack.c.h.b16 %v5147
        %v6573 = vunpack.c.l.b16 %v5148
        %v6574 = vunpack.c.h.b16 %v5148
        %v6575 = vunpack.c.l.b16 %v5149
        %v6576 = vunpack.c.h.b16 %v5149
        %v6577 = vunpack.c.l.b16 %v5150
        %v6578 = vunpack.c.h.b16 %v5150
        %v6579 = vunpack.c.l.b16 %v5151
        %v6580 = vunpack.c.h.b16 %v5151
        %v6581 = vunpack.c.l.b16 %v5152
        %v6582 = vunpack.c.h.b16 %v5152
        %v6583 = vunpack.c.l.b16 %v5153
        %v6584 = vunpack.c.h.b16 %v5153
        %v6585 = vunpack.c.l.b16 %v5154
        %v6586 = vunpack.c.h.b16 %v5154
        %v6587 = vunpack.c.l.b16 %v5155
        %v6588 = vunpack.c.h.b16 %v5155
        %v6589 = vunpack.c.l.b16 %v5156
        %v6590 = vunpack.c.h.b16 %v5156
        %v6591 = vunpack.c.l.b16 %v5157
        %v6592 = vunpack.c.h.b16 %v5157
        %v6593 = vunpack.c.l.b16 %v5158
        %v6594 = vunpack.c.h.b16 %v5158
        %v6595 = vunpack.c.l.b16 %v5159
        %v6596 = vunpack.c.h.b16 %v5159
        %v6597 = vunpack.c.l.b16 %v5160
        %v6598 = vunpack.c.h.b16 %v5160
        %v6599 = vunpack.c.l.b16 %v5161
        %v6600 = vunpack.c.h.b16 %v5161
        %v6601 = vunpack.c.l.b16 %v5162
        %v6602 = vunpack.c.h.b16 %v5162
        %v6603 = vunpack.c.l.b16 %v5163
        %v6604 = vunpack.c.h.b16 %v5163
        %v6605 = vunpack.c.l.b16 %v5164
        %v6606 = vunpack.c.h.b16 %v5164
        %v6607 = vunpack.c.l.b16 %v5165
        %v6608 = vunpack.c.h.b16 %v5165
        %v6609 = vunpack.c.l.b16 %v5166
        %v6610 = vunpack.c.h.b16 %v5166
        %v6611 = vunpack.c.l.b16 %v5167
        %v6612 = vunpack.c.h.b16 %v5167
        %v6613 = vunpack.c.l.b16 %v5168
        %v6614 = vunpack.c.h.b16 %v5168
        %v6615 = vunpack.c.l.b16 %v5169
        %v6616 = vunpack.c.h.b16 %v5169
        %v6617 = vunpack.c.l.b16 %v5170
        %v6618 = vunpack.c.h.b16 %v5170
        %v6619 = vunpack.c.l.b16 %v5171
        %v6620 = vunpack.c.h.b16 %v5171
        %v6621 = vunpack.c.l.b16 %v5172
        %v6622 = vunpack.c.h.b16 %v5172
        %v6623 = vunpack.c.l.b16 %v5173
        %v6624 = vunpack.c.h.b16 %v5173
        %v6625 = vunpack.c.l.b16 %v5174
        %v6626 = vunpack.c.h.b16 %v5174
        %v6627 = vunpack.c.l.b16 %v5175
        %v6628 = vunpack.c.h.b16 %v5175
        %v6629 = vunpack.c.l.b16 %v5176
        %v6630 = vunpack.c.h.b16 %v5176
        %v6631 = vunpack.c.l.b16 %v5177
        %v6632 = vunpack.c.h.b16 %v5177
        %v6633 = vunpack.c.l.b16 %v5178
        %v6634 = vunpack.c.h.b16 %v5178
        %v6635 = vunpack.c.l.b16 %v5179
        %v6636 = vunpack.c.h.b16 %v5179
        %v6637 = vunpack.c.l.b16 %v5180
        %v6638 = vunpack.c.h.b16 %v5180
        %v6639 = vunpack.c.l.b16 %v5181
        %v6640 = vunpack.c.h.b16 %v5181
        %v6641 = vunpack.c.l.b16 %v5182
        %v6642 = vunpack.c.h.b16 %v5182
        %v6643 = vunpack.c.l.b16 %v5183
        %v6644 = vunpack.c.h.b16 %v5183
        %v6645 = vunpack.c.l.b16 %v5184
        %v6646 = vunpack.c.h.b16 %v5184
        %v6647 = vunpack.c.l.b16 %v5185
        %v6648 = vunpack.c.h.b16 %v5185
        %v6649 = vunpack.c.l.b16 %v5186
        %v6650 = vunpack.c.h.b16 %v5186
        %v6651 = vunpack.c.l.b16 %v5187
        %v6652 = vunpack.c.h.b16 %v5187
        %v6653 = vunpack.c.l.b16 %v5188
        %v6654 = vunpack.c.h.b16 %v5188
        %v6655 = vunpack.c.l.b16 %v5189
        %v6656 = vunpack.c.h.b16 %v5189
        %v6657 = vunpack.c.l.b16 %v5190
        %v6658 = vunpack.c.h.b16 %v5190
        %v6659 = vunpack.c.l.b16 %v5191
        %v6660 = vunpack.c.h.b16 %v5191
        %v6661 = vunpack.c.l.b16 %v5192
        %v6662 = vunpack.c.h.b16 %v5192
        %v6663 = vunpack.c.l.b16 %v5193
        %v6664 = vunpack.c.h.b16 %v5193
        %v6665 = vunpack.c.l.b16 %v5194
        %v6666 = vunpack.c.h.b16 %v5194
        %v6667 = vunpack.c.l.b16 %v5195
        %v6668 = vunpack.c.h.b16 %v5195
        %v6669 = vunpack.c.l.b16 %v5196
        %v6670 = vunpack.c.h.b16 %v5196
        %v6671 = vunpack.c.l.b16 %v5197
        %v6672 = vunpack.c.h.b16 %v5197
        %v6673 = vunpack.c.l.b16 %v5198
        %v6674 = vunpack.c.h.b16 %v5198
        %v6675 = vunpack.c.l.b16 %v5199
        %v6676 = vunpack.c.h.b16 %v5199
        %v6677 = vunpack.c.l.b16 %v5200
        %v6678 = vunpack.c.h.b16 %v5200
        %v6679 = vunpack.c.l.b16 %v5201
        %v6680 = vunpack.c.h.b16 %v5201
        %v6681 = vunpack.c.l.b16 %v5202
        %v6682 = vunpack.c.h.b16 %v5202
        %v6683 = vunpack.c.l.b16 %v5203
        %v6684 = vunpack.c.h.b16 %v5203
        %v6685 = vunpack.c.l.b16 %v5204
        %v6686 = vunpack.c.h.b16 %v5204
        %v6687 = vunpack.c.l.b16 %v5205
        %v6688 = vunpack.c.h.b16 %v5205
        %v6689 = vunpack.c.l.b16 %v5206
        %v6690 = vunpack.c.h.b16 %v5206
        %v6691 = vunpack.c.l.b16 %v5207
        %v6692 = vunpack.c.h.b16 %v5207
        %v6693 = vunpack.c.l.b16 %v5208
        %v6694 = vunpack.c.h.b16 %v5208
        %v6695 = vunpack.c.l.b16 %v5209
        %v6696 = vunpack.c.h.b16 %v5209
        %v6697 = vunpack.c.l.b16 %v5210
        %v6698 = vunpack.c.h.b16 %v5210
        %v6699 = vunpack.c.l.b16 %v5211
        %v6700 = vunpack.c.h.b16 %v5211
        %v6701 = vunpack.c.l.b16 %v5212
        %v6702 = vunpack.c.h.b16 %v5212
        %v6703 = vunpack.c.l.b16 %v5213
        %v6704 = vunpack.c.h.b16 %v5213
        %v6705 = vunpack.c.l.b16 %v5214
        %v6706 = vunpack.c.h.b16 %v5214
        %v6707 = vunpack.c.l.b16 %v5215
        %v6708 = vunpack.c.h.b16 %v5215
        %v6709 = vunpack.c.l.b16 %v5216
        %v6710 = vunpack.c.h.b16 %v5216
        %v6711 = vunpack.c.l.b16 %v5217
        %v6712 = vunpack.c.h.b16 %v5217
        %v6713 = vunpack.c.l.b16 %v5218
        %v6714 = vunpack.c.h.b16 %v5218
        %v6715 = vunpack.c.l.b16 %v5219
        %v6716 = vunpack.c.h.b16 %v5219
        %v6717 = vunpack.c.l.b16 %v5220
        %v6718 = vunpack.c.h.b16 %v5220
        %v6719 = vunpack.c.l.b16 %v5221
        %v6720 = vunpack.c.h.b16 %v5221
        %v6721 = vunpack.c.l.b16 %v5222
        %v6722 = vunpack.c.h.b16 %v5222
        %v6723 = vunpack.c.l.b16 %v5223
        %v6724 = vunpack.c.h.b16 %v5223
        %v6725 = vunpack.c.l.b16 %v5224
        %v6726 = vunpack.c.h.b16 %v5224
        %v6727 = vunpack.c.l.b16 %v5225
        %v6728 = vunpack.c.h.b16 %v5225
        %v6729 = vunpack.c.l.b16 %v5226
        %v6730 = vunpack.c.h.b16 %v5226
        %v6731 = vunpack.c.l.b16 %v5227
        %v6732 = vunpack.c.h.b16 %v5227
        %v6733 = vunpack.c.l.b16 %v5228
        %v6734 = vunpack.c.h.b16 %v5228
        %v6735 = vunpack.c.l.b16 %v5229
        %v6736 = vunpack.c.h.b16 %v5229
        %v6737 = vunpack.c.l.b16 %v5230
        %v6738 = vunpack.c.h.b16 %v5230
        %v6739 = vunpack.c.l.b16 %v5231
        %v6740 = vunpack.c.h.b16 %v5231
        %v6741 = vunpack.c.l.b16 %v5232
        %v6742 = vunpack.c.h.b16 %v5232
        %v6743 = vunpack.c.l.b16 %v5233
        %v6744 = vunpack.c.h.b16 %v5233
        %v6745 = vunpack.c.l.b16 %v5234
        %v6746 = vunpack.c.h.b16 %v5234
        %v6747 = vunpack.c.l.b16 %v5235
        %v6748 = vunpack.c.h.b16 %v5235
        %v6749 = vunpack.c.l.b16 %v5236
        %v6750 = vunpack.c.h.b16 %v5236
        %v6751 = vunpack.c.l.b16 %v5237
        %v6752 = vunpack.c.h.b16 %v5237
        %v6753 = vunpack.c.l.b16 %v5238
        %v6754 = vunpack.c.h.b16 %v5238
        %v6755 = vunpack.c.l.b16 %v5239
        %v6756 = vunpack.c.h.b16 %v5239
        %v6757 = vunpack.c.l.b16 %v5240
        %v6758 = vunpack.c.h.b16 %v5240
        %v6759 = vunpack.c.l.b16 %v5241
        %v6760 = vunpack.c.h.b16 %v5241
        %v6761 = vunpack.c.l.b16 %v5242
        %v6762 = vunpack.c.h.b16 %v5242
        %v6763 = vunpack.c.l.b16 %v5243
        %v6764 = vunpack.c.h.b16 %v5243
        %v6765 = vunpack.c.l.b16 %v5244
        %v6766 = vunpack.c.h.b16 %v5244
        %v6767 = vunpack.c.l.b16 %v5245
        %v6768 = vunpack.c.h.b16 %v5245
        %v6769 = vunpack.c.l.b16 %v5246
        %v6770 = vunpack.c.h.b16 %v5246
        %v6771 = vunpack.c.l.b16 %v5247
        %v6772 = vunpack.c.h.b16 %v5247
        %v6773 = vunpack.c.l.b16 %v5248
        %v6774 = vunpack.c.h.b16 %v5248
        %v6775 = vunpack.c.l.b16 %v5249
        %v6776 = vunpack.c.h.b16 %v5249
        %v6777 = vunpack.c.l.b16 %v5250
        %v6778 = vunpack.c.h.b16 %v5250
        %v6779 = vunpack.c.l.b16 %v5251
        %v6780 = vunpack.c.h.b16 %v5251
        %v6781 = vunpack.c.l.b16 %v5252
        %v6782 = vunpack.c.h.b16 %v5252
        %v6783 = vunpack.c.l.b16 %v5253
        %v6784 = vunpack.c.h.b16 %v5253
        %v6785 = vunpack.c.l.b16 %v5254
        %v6786 = vunpack.c.h.b16 %v5254
        %v6787 = vunpack.c.l.b16 %v5255
        %v6788 = vunpack.c.h.b16 %v5255
        %v6789 = vunpack.c.l.b16 %v5256
        %v6790 = vunpack.c.h.b16 %v5256
        %v6791 = vunpack.c.l.b16 %v5257
        %v6792 = vunpack.c.h.b16 %v5257
        %v6793 = vunpack.c.l.b16 %v5258
        %v6794 = vunpack.c.h.b16 %v5258
        %v6795 = vunpack.c.l.b16 %v5259
        %v6796 = vunpack.c.h.b16 %v5259
        %v6797 = vunpack.c.l.b16 %v5260
        %v6798 = vunpack.c.h.b16 %v5260
        %v6799 = vunpack.c.l.b16 %v5261
        %v6800 = vunpack.c.h.b16 %v5261
        %v6801 = vunpack.c.l.b16 %v5262
        %v6802 = vunpack.c.h.b16 %v5262
        %v6803 = vunpack.c.l.b16 %v5263
        %v6804 = vunpack.c.h.b16 %v5263
        %v6805 = vunpack.c.l.b16 %v5264
        %v6806 = vunpack.c.h.b16 %v5264
        %v6807 = vunpack.c.l.b16 %v5265
        %v6808 = vunpack.c.h.b16 %v5265
        %v6809 = vunpack.c.l.b16 %v5266
        %v6810 = vunpack.c.h.b16 %v5266
        %v6811 = vunpack.c.l.b16 %v5267
        %v6812 = vunpack.c.h.b16 %v5267
        %v6813 = vunpack.c.l.b16 %v5268
        %v6814 = vunpack.c.h.b16 %v5268
        %v6815 = vunpack.c.l.b16 %v5269
        %v6816 = vunpack.c.h.b16 %v5269
        %v6817 = vunpack.c.l.b16 %v5270
        %v6818 = vunpack.c.h.b16 %v5270
        %v6819 = vunpack.c.l.b16 %v5271
        %v6820 = vunpack.c.h.b16 %v5271
        %v6821 = vunpack.c.l.b16 %v5272
        %v6822 = vunpack.c.h.b16 %v5272
        %v6823 = vunpack.c.l.b16 %v5273
        %v6824 = vunpack.c.h.b16 %v5273
        %v6825 = vunpack.c.l.b16 %v5274
        %v6826 = vunpack.c.h.b16 %v5274
        %v6827 = vunpack.c.l.b16 %v5275
        %v6828 = vunpack.c.h.b16 %v5275
        %v6829 = vunpack.c.l.b16 %v5276
        %v6830 = vunpack.c.h.b16 %v5276
        %v6831 = vunpack.c.l.b16 %v5277
        %v6832 = vunpack.c.h.b16 %v5277
        %v6833 = vunpack.c.l.b16 %v5278
        %v6834 = vunpack.c.h.b16 %v5278
        %v6835 = vunpack.c.l.b16 %v5279
        %v6836 = vunpack.c.h.b16 %v5279
        %v6837 = vunpack.c.l.b16 %v5280
        %v6838 = vunpack.c.h.b16 %v5280
        %v6839 = vunpack.c.l.b16 %v5281
        %v6840 = vunpack.c.h.b16 %v5281
        %v6841 = vunpack.c.l.b16 %v5282
        %v6842 = vunpack.c.h.b16 %v5282
        %v6843 = vunpack.c.l.b16 %v5283
        %v6844 = vunpack.c.h.b16 %v5283
        %v6845 = vunpack.c.l.b16 %v5284
        %v6846 = vunpack.c.h.b16 %v5284
        %v6847 = vunpack.c.l.b16 %v5285
        %v6848 = vunpack.c.h.b16 %v5285
        %v6849 = vunpack.c.l.b16 %v5286
        %v6850 = vunpack.c.h.b16 %v5286
        %v6851 = vunpack.c.l.b16 %v5287
        %v6852 = vunpack.c.h.b16 %v5287
        %v6853 = vunpack.c.l.b16 %v5288
        %v6854 = vunpack.c.h.b16 %v5288
        %v6855 = vunpack.c.l.b16 %v5289
        %v6856 = vunpack.c.h.b16 %v5289
        %v6857 = vunpack.c.l.b16 %v5290
        %v6858 = vunpack.c.h.b16 %v5290
        %v6859 = vunpack.c.l.b16 %v5291
        %v6860 = vunpack.c.h.b16 %v5291
        %v6861 = vunpack.c.l.b16 %v5292
        %v6862 = vunpack.c.h.b16 %v5292
        %v6863 = vunpack.c.l.b16 %v5293
        %v6864 = vunpack.c.h.b16 %v5293
        %v6865 = vunpack.c.l.b16 %v5294
        %v6866 = vunpack.c.h.b16 %v5294
        %v6867 = vunpack.c.l.b16 %v5295
        %v6868 = vunpack.c.h.b16 %v5295
        %v6869 = vunpack.c.l.b16 %v5296
        %v6870 = vunpack.c.h.b16 %v5296
        %v6871 = vunpack.c.l.b16 %v5297
        %v6872 = vunpack.c.h.b16 %v5297
        %v6873 = vunpack.c.l.b16 %v5298
        %v6874 = vunpack.c.h.b16 %v5298
        %v6875 = vunpack.c.l.b16 %v5299
        %v6876 = vunpack.c.h.b16 %v5299
        %v6877 = vunpack.c.l.b16 %v5300
        %v6878 = vunpack.c.h.b16 %v5300
        %v6879 = vunpack.c.l.b16 %v5301
        %v6880 = vunpack.c.h.b16 %v5301
        %v6881 = vunpack.c.l.b16 %v5302
        %v6882 = vunpack.c.h.b16 %v5302
        %v6883 = vunpack.c.l.b16 %v5303
        %v6884 = vunpack.c.h.b16 %v5303
        %v6885 = vunpack.c.l.b16 %v5304
        %v6886 = vunpack.c.h.b16 %v5304
        %v6887 = vunpack.c.l.b16 %v5305
        %v6888 = vunpack.c.h.b16 %v5305
        %v6889 = vunpack.c.l.b16 %v5306
        %v6890 = vunpack.c.h.b16 %v5306
        %v6891 = vunpack.c.l.b16 %v5307
        %v6892 = vunpack.c.h.b16 %v5307
        %v6893 = vunpack.c.l.b16 %v5308
        %v6894 = vunpack.c.h.b16 %v5308
        %v6895 = vunpack.c.l.b16 %v5309
        %v6896 = vunpack.c.h.b16 %v5309
        %v6897 = vunpack.c.l.b16 %v5310
        %v6898 = vunpack.c.h.b16 %v5310
        %v6899 = vunpack.c.l.b16 %v5311
        %v6900 = vunpack.c.h.b16 %v5311
        %v6901 = vunpack.c.l.b16 %v5312
        %v6902 = vunpack.c.h.b16 %v5312
        %v6903 = vunpack.c.l.b16 %v5313
        %v6904 = vunpack.c.h.b16 %v5313
        %v6905 = vunpack.c.l.b16 %v5314
        %v6906 = vunpack.c.h.b16 %v5314
        %v6907 = vunpack.c.l.b16 %v5315
        %v6908 = vunpack.c.h.b16 %v5315
        %v6909 = vunpack.c.l.b16 %v5316
        %v6910 = vunpack.c.h.b16 %v5316
        %v6911 = vunpack.c.l.b16 %v5317
        %v6912 = vunpack.c.h.b16 %v5317
        %v6913 = vunpack.c.l.b16 %v5318
        %v6914 = vunpack.c.h.b16 %v5318
        %v6915 = vunpack.c.l.b16 %v5319
        %v6916 = vunpack.c.h.b16 %v5319
        %v6917 = vunpack.c.l.b16 %v5320
        %v6918 = vunpack.c.h.b16 %v5320
        %v6919 = vunpack.c.l.b16 %v5321
        %v6920 = vunpack.c.h.b16 %v5321
        %v6921 = vunpack.c.l.b16 %v5322
        %v6922 = vunpack.c.h.b16 %v5322
        %v6923 = vunpack.c.l.b16 %v5323
        %v6924 = vunpack.c.h.b16 %v5323
        %v6925 = vunpack.c.l.b16 %v5324
        %v6926 = vunpack.c.h.b16 %v5324
        %v6927 = vunpack.c.l.b16 %v5325
        %v6928 = vunpack.c.h.b16 %v5325
        %v6929 = vunpack.c.l.b16 %v5326
        %v6930 = vunpack.c.h.b16 %v5326
        %v6931 = vunpack.c.l.b16 %v5327
        %v6932 = vunpack.c.h.b16 %v5327
        %v6933 = vunpack.c.l.b16 %v5328
        %v6934 = vunpack.c.h.b16 %v5328
        %v6935 = vunpack.c.l.b16 %v5329
        %v6936 = vunpack.c.h.b16 %v5329
        %v6937 = vunpack.c.l.b16 %v5330
        %v6938 = vunpack.c.h.b16 %v5330
        %v6939 = vunpack.c.l.b16 %v5331
        %v6940 = vunpack.c.h.b16 %v5331
        %v6941 = vunpack.c.l.b16 %v5332
        %v6942 = vunpack.c.h.b16 %v5332
        %v6943 = vunpack.c.l.b16 %v5333
        %v6944 = vunpack.c.h.b16 %v5333
        %v6945 = vunpack.c.l.b16 %v5334
        %v6946 = vunpack.c.h.b16 %v5334
        %v6947 = vunpack.c.l.b16 %v5335
        %v6948 = vunpack.c.h.b16 %v5335
        %v6949 = vunpack.c.l.b16 %v5336
        %v6950 = vunpack.c.h.b16 %v5336
        %v6951 = vunpack.c.l.b16 %v5337
        %v6952 = vunpack.c.h.b16 %v5337
        %v6953 = vunpack.c.l.b16 %v5338
        %v6954 = vunpack.c.h.b16 %v5338
        %v6955 = vunpack.c.l.b16 %v5339
        %v6956 = vunpack.c.h.b16 %v5339
        %v6957 = vunpack.c.l.b16 %v5340
        %v6958 = vunpack.c.h.b16 %v5340
        %v6959 = vunpack.c.l.b16 %v5341
        %v6960 = vunpack.c.h.b16 %v5341
        %v6961 = vunpack.c.l.b16 %v5342
        %v6962 = vunpack.c.h.b16 %v5342
        %v6963 = vunpack.c.l.b16 %v5343
        %v6964 = vunpack.c.h.b16 %v5343
        %v6965 = vunpack.c.l.b16 %v5344
        %v6966 = vunpack.c.h.b16 %v5344
        %v6967 = vunpack.c.l.b16 %v5345
        %v6968 = vunpack.c.h.b16 %v5345
        %v6969 = vunpack.c.l.b16 %v5346
        %v6970 = vunpack.c.h.b16 %v5346
        %v6971 = vunpack.c.l.b16 %v5347
        %v6972 = vunpack.c.h.b16 %v5347
        %v6973 = vunpack.c.l.b16 %v5348
        %v6974 = vunpack.c.h.b16 %v5348
        %v6975 = vunpack.c.l.b16 %v5349
        %v6976 = vunpack.c.h.b16 %v5349
        %v6977 = vunpack.c.l.b16 %v5350
        %v6978 = vunpack.c.h.b16 %v5350
        %v6979 = vunpack.c.l.b16 %v5351
        %v6980 = vunpack.c.h.b16 %v5351
        %v6981 = vunpack.c.l.b16 %v5352
        %v6982 = vunpack.c.h.b16 %v5352
        %v6983 = vunpack.c.l.b16 %v5353
        %v6984 = vunpack.c.h.b16 %v5353
        %v6985 = vunpack.c.l.b16 %v5354
        %v6986 = vunpack.c.h.b16 %v5354
        %v6987 = vunpack.c.l.b16 %v5355
        %v6988 = vunpack.c.h.b16 %v5355
        %v6989 = vunpack.c.l.b16 %v5356
        %v6990 = vunpack.c.h.b16 %v5356
        %v6991 = vunpack.c.l.b16 %v5357
        %v6992 = vunpack.c.h.b16 %v5357
        %v6993 = vunpack.c.l.b16 %v5358
        %v6994 = vunpack.c.h.b16 %v5358
        %v6995 = vunpack.c.l.b16 %v5359
        %v6996 = vunpack.c.h.b16 %v5359
        %v6997 = vunpack.c.l.b16 %v5360
        %v6998 = vunpack.c.h.b16 %v5360
        %v6999 = vunpack.c.l.b16 %v5361
        %v7000 = vunpack.c.h.b16 %v5361
        %v7001 = vunpack.c.l.b16 %v5362
        %v7002 = vunpack.c.h.b16 %v5362
        %v7003 = vunpack.c.l.b16 %v5363
        %v7004 = vunpack.c.h.b16 %v5363
        %v7005 = vunpack.c.l.b16 %v5364
        %v7006 = vunpack.c.h.b16 %v5364
        %v7007 = vunpack.c.l.b16 %v5365
        %v7008 = vunpack.c.h.b16 %v5365
        %v7009 = vunpack.c.l.b16 %v5366
        %v7010 = vunpack.c.h.b16 %v5366
        %v7011 = vunpack.c.l.b16 %v5367
        %v7012 = vunpack.c.h.b16 %v5367
        %v7013 = vunpack.c.l.b16 %v5368
        %v7014 = vunpack.c.h.b16 %v5368
        %v7015 = vunpack.c.l.b16 %v5369
        %v7016 = vunpack.c.h.b16 %v5369
        %v7017 = vunpack.c.l.b16 %v5370
        %v7018 = vunpack.c.h.b16 %v5370
        %v7019 = vunpack.c.l.b16 %v5371
        %v7020 = vunpack.c.h.b16 %v5371
        %v7021 = vunpack.c.l.b16 %v5372
        %v7022 = vunpack.c.h.b16 %v5372
        %v7023 = vunpack.c.l.b16 %v5373
        %v7024 = vunpack.c.h.b16 %v5373
        %v7025 = vunpack.c.l.b16 %v5374
        %v7026 = vunpack.c.h.b16 %v5374
        %v7027 = vunpack.c.l.b16 %v5375
        %v7028 = vunpack.c.h.b16 %v5375
        %v7029 = vunpack.c.l.b16 %v5376
        %v7030 = vunpack.c.h.b16 %v5376
        %v7031 = vunpack.c.l.b16 %v5377
        %v7032 = vunpack.c.h.b16 %v5377
        %v7033 = vunpack.c.l.b16 %v5378
        %v7034 = vunpack.c.h.b16 %v5378
        %v7035 = vunpack.c.l.b16 %v5379
        %v7036 = vunpack.c.h.b16 %v5379
        %v7037 = vunpack.c.l.b16 %v5380
        %v7038 = vunpack.c.h.b16 %v5380
        %v7039 = vunpack.c.l.b16 %v5381
        %v7040 = vunpack.c.h.b16 %v5381
        %v7041 = vunpack.c.l.b16 %v5382
        %v7042 = vunpack.c.h.b16 %v5382
        %v7043 = vunpack.c.l.b16 %v5383
        %v7044 = vunpack.c.h.b16 %v5383
        %v7045 = vunpack.c.l.b16 %v5384
        %v7046 = vunpack.c.h.b16 %v5384
        %v7047 = vunpack.c.l.b16 %v5385
        %v7048 = vunpack.c.h.b16 %v5385
        %v7049 = vunpack.c.l.b16 %v5386
        %v7050 = vunpack.c.h.b16 %v5386
        %v7051 = vunpack.c.l.b16 %v5387
        %v7052 = vunpack.c.h.b16 %v5387
        %v7053 = vunpack.c.l.b16 %v5388
        %v7054 = vunpack.c.h.b16 %v5388
        %v7055 = vunpack.c.l.b16 %v5389
        %v7056 = vunpack.c.h.b16 %v5389
        %v7057 = vunpack.c.l.b16 %v5390
        %v7058 = vunpack.c.h.b16 %v5390
        %v7059 = vunpack.c.l.b16 %v5391
        %v7060 = vunpack.c.h.b16 %v5391
        %v7061 = vunpack.c.l.b16 %v5392
        %v7062 = vunpack.c.h.b16 %v5392
        %v7063 = vunpack.c.l.b16 %v5393
        %v7064 = vunpack.c.h.b16 %v5393
        %v7065 = vunpack.c.l.b16 %v5394
        %v7066 = vunpack.c.h.b16 %v5394
        %v7067 = vunpack.c.l.b16 %v5395
        %v7068 = vunpack.c.h.b16 %v5395
        %v7069 = vunpack.c.l.b16 %v5396
        %v7070 = vunpack.c.h.b16 %v5396
        %v7071 = vunpack.c.l.b16 %v5397
        %v7072 = vunpack.c.h.b16 %v5397
        %v7073 = vunpack.c.l.b16 %v5398
        %v7074 = vunpack.c.h.b16 %v5398
        %v7075 = vunpack.c.l.b16 %v5399
        %v7076 = vunpack.c.h.b16 %v5399
        %v7077 = vunpack.c.l.b16 %v5400
        %v7078 = vunpack.c.h.b16 %v5400
        %v7079 = vunpack.c.l.b16 %v5401
        %v7080 = vunpack.c.h.b16 %v5401
        %v7081 = vunpack.c.l.b16 %v5402
        %v7082 = vunpack.c.h.b16 %v5402
        %v7083 = vunpack.c.l.b16 %v5403
        %v7084 = vunpack.c.h.b16 %v5403
        %v7085 = vunpack.c.l.b16 %v5404
        %v7086 = vunpack.c.h.b16 %v5404
        %v7087 = vunpack.c.l.b16 %v5405
        %v7088 = vunpack.c.h.b16 %v5405
        %v7089 = vunpack.c.l.b16 %v5406
        %v7090 = vunpack.c.h.b16 %v5406
        %v7091 = vunpack.c.l.b16 %v5407
        %v7092 = vunpack.c.h.b16 %v5407
        %v7093 = vunpack.c.l.b16 %v5408
        %v7094 = vunpack.c.h.b16 %v5408
        %v7095 = vunpack.c.l.b16 %v5409
        %v7096 = vunpack.c.h.b16 %v5409
        %v7097 = vunpack.c.l.b16 %v5410
        %v7098 = vunpack.c.h.b16 %v5410
        %v7099 = vunpack.c.l.b16 %v5411
        %v7100 = vunpack.c.h.b16 %v5411
        %v7101 = vunpack.c.l.b16 %v5412
        %v7102 = vunpack.c.h.b16 %v5412
        %v7103 = vunpack.c.l.b16 %v5413
        %v7104 = vunpack.c.h.b16 %v5413
        %v7105 = vunpack.c.l.b16 %v5414
        %v7106 = vunpack.c.h.b16 %v5414
        %v7107 = vunpack.c.l.b16 %v5415
        %v7108 = vunpack.c.h.b16 %v5415
        %v7109 = vunpack.c.l.b16 %v5416
        %v7110 = vunpack.c.h.b16 %v5416
        %v7111 = vunpack.c.l.b16 %v5417
        %v7112 = vunpack.c.h.b16 %v5417
        %v7113 = vunpack.c.l.b16 %v5418
        %v7114 = vunpack.c.h.b16 %v5418
        %v7115 = vunpack.c.l.b16 %v5419
        %v7116 = vunpack.c.h.b16 %v5419
        %v7117 = vunpack.c.l.b16 %v5420
        %v7118 = vunpack.c.h.b16 %v5420
        %v7119 = vunpack.c.l.b16 %v5421
        %v7120 = vunpack.c.h.b16 %v5421
        %v7121 = vunpack.c.l.b16 %v5422
        %v7122 = vunpack.c.h.b16 %v5422
        %v7123 = vunpack.c.l.b16 %v5423
        %v7124 = vunpack.c.h.b16 %v5423
        %v7125 = vunpack.c.l.b16 %v5424
        %v7126 = vunpack.c.h.b16 %v5424
        %v7127 = vunpack.c.l.b16 %v5425
        %v7128 = vunpack.c.h.b16 %v5425
        %v7129 = vunpack.c.l.b16 %v5426
        %v7130 = vunpack.c.h.b16 %v5426
        %v7131 = vunpack.c.l.b16 %v5427
        %v7132 = vunpack.c.h.b16 %v5427
        %v7133 = vunpack.c.l.b16 %v5428
        %v7134 = vunpack.c.h.b16 %v5428
        %v7135 = vunpack.c.l.b16 %v5429
        %v7136 = vunpack.c.h.b16 %v5429
        %v7137 = vunpack.c.l.b16 %v5430
        %v7138 = vunpack.c.h.b16 %v5430
        %v7139 = vunpack.c.l.b16 %v5431
        %v7140 = vunpack.c.h.b16 %v5431
        %v7141 = vunpack.c.l.b16 %v5432
        %v7142 = vunpack.c.h.b16 %v5432
        %v7143 = vunpack.c.l.b16 %v5433
        %v7144 = vunpack.c.h.b16 %v5433
        %v7145 = vunpack.c.l.b16 %v5434
        %v7146 = vunpack.c.h.b16 %v5434
        %v7147 = vunpack.c.l.b16 %v5435
        %v7148 = vunpack.c.h.b16 %v5435
        %v7149 = vunpack.c.l.b16 %v5436
        %v7150 = vunpack.c.h.b16 %v5436
        %v7151 = vunpack.c.l.b16 %v5437
        %v7152 = vunpack.c.h.b16 %v5437
        %v7153 = vunpack.c.l.b16 %v5438
        %v7154 = vunpack.c.h.b16 %v5438
        %v7155 = vunpack.c.l.b16 %v5439
        %v7156 = vunpack.c.h.b16 %v5439
        %v7157 = vunpack.c.l.b16 %v5440
        %v7158 = vunpack.c.h.b16 %v5440
        %v7159 = vunpack.c.l.b16 %v5441
        %v7160 = vunpack.c.h.b16 %v5441
        %v7161 = vunpack.c.l.b16 %v5442
        %v7162 = vunpack.c.h.b16 %v5442
        %v7163 = vunpack.c.l.b16 %v5443
        %v7164 = vunpack.c.h.b16 %v5443
        %v7165 = vunpack.c.l.b16 %v5444
        %v7166 = vunpack.c.h.b16 %v5444
        %v7167 = vunpack.c.l.b16 %v5445
        %v7168 = vunpack.c.h.b16 %v5445
        %v7169 = vunpack.c.l.b16 %v5446
        %v7170 = vunpack.c.h.b16 %v5446
        %v7171 = vunpack.c.l.b16 %v5447
        %v7172 = vunpack.c.h.b16 %v5447
        %v7173 = vunpack.c.l.b16 %v5448
        %v7174 = vunpack.c.h.b16 %v5448
        %v7175 = vunpack.c.l.b16 %v5449
        %v7176 = vunpack.c.h.b16 %v5449
        %v7177 = vunpack.c.l.b16 %v5450
        %v7178 = vunpack.c.h.b16 %v5450
        %v7179 = vpack.c.b16 %v6033, %v6027
        %v7180 = vpack.c.b16 %v6034, %v6028
        %v7181 = vpack.c.b16 %v6035, %v6029
        %v7182 = vpack.c.b16 %v6036, %v6030
        %v7183 = vpack.c.b16 %v6037, %v6031
        %v7184 = vpack.c.b16 %v6038, %v6032
        %v7185 = vpack.c.b16 %v6045, %v6039
        %v7186 = vpack.c.b16 %v6046, %v6040
        %v7187 = vpack.c.b16 %v6047, %v6041
        %v7188 = vpack.c.b16 %v6048, %v6042
        %v7189 = vpack.c.b16 %v6049, %v6043
        %v7190 = vpack.c.b16 %v6050, %v6044
        %v7191 = vpack.c.b16 %v6057, %v6051
        %v7192 = vpack.c.b16 %v6058, %v6052
        %v7193 = vpack.c.b16 %v6059, %v6053
        %v7194 = vpack.c.b16 %v6060, %v6054
        %v7195 = vpack.c.b16 %v6061, %v6055
        %v7196 = vpack.c.b16 %v6062, %v6056
        %v7197 = vpack.c.b16 %v6069, %v6063
        %v7198 = vpack.c.b16 %v6070, %v6064
        %v7199 = vpack.c.b16 %v6071, %v6065
        %v7200 = vpack.c.b16 %v6072, %v6066
        %v7201 = vpack.c.b16 %v6073, %v6067
        %v7202 = vpack.c.b16 %v6074, %v6068
        %v7203 = vpack.c.b16 %v6081, %v6075
        %v7204 = vpack.c.b16 %v6082, %v6076
        %v7205 = vpack.c.b16 %v6083, %v6077
        %v7206 = vpack.c.b16 %v6084, %v6078
        %v7207 = vpack.c.b16 %v6085, %v6079
        %v7208 = vpack.c.b16 %v6086, %v6080
        %v7209 = vpack.c.b16 %v6093, %v6087
        %v7210 = vpack.c.b16 %v6094, %v6088
        %v7211 = vpack.c.b16 %v6095, %v6089
        %v7212 = vpack.c.b16 %v6096, %v6090
        %v7213 = vpack.c.b16 %v6097, %v6091
        %v7214 = vpack.c.b16 %v6098, %v6092
        %v7215 = vpack.c.b16 %v6105, %v6099
        %v7216 = vpack.c.b16 %v6106, %v6100
        %v7217 = vpack.c.b16 %v6107, %v6101
        %v7218 = vpack.c.b16 %v6108, %v6102
        %v7219 = vpack.c.b16 %v6109, %v6103
        %v7220 = vpack.c.b16 %v6110, %v6104
        %v7221 = vpack.c.b16 %v6117, %v6111
        %v7222 = vpack.c.b16 %v6118, %v6112
        %v7223 = vpack.c.b16 %v6119, %v6113
        %v7224 = vpack.c.b16 %v6120, %v6114
        %v7225 = vpack.c.b16 %v6121, %v6115
        %v7226 = vpack.c.b16 %v6122, %v6116
        %v7227 = vpack.c.b16 %v6129, %v6123
        %v7228 = vpack.c.b16 %v6130, %v6124
        %v7229 = vpack.c.b16 %v6131, %v6125
        %v7230 = vpack.c.b16 %v6132, %v6126
        %v7231 = vpack.c.b16 %v6133, %v6127
        %v7232 = vpack.c.b16 %v6134, %v6128
        %v7233 = vpack.c.b16 %v6141, %v6135
        %v7234 = vpack.c.b16 %v6142, %v6136
        %v7235 = vpack.c.b16 %v6143, %v6137
        %v7236 = vpack.c.b16 %v6144, %v6138
        %v7237 = vpack.c.b16 %v6145, %v6139
        %v7238 = vpack.c.b16 %v6146, %v6140
        %v7239 = vpack.c.b16 %v6153, %v6147
        %v7240 = vpack.c.b16 %v6154, %v6148
        %v7241 = vpack.c.b16 %v6155, %v6149
        %v7242 = vpack.c.b16 %v6156, %v6150
        %v7243 = vpack.c.b16 %v6157, %v6151
        %v7244 = vpack.c.b16 %v6158, %v6152
        %v7245 = vpack.c.b16 %v6165, %v6159
        %v7246 = vpack.c.b16 %v6166, %v6160
        %v7247 = vpack.c.b16 %v6167, %v6161
        %v7248 = vpack.c.b16 %v6168, %v6162
        %v7249 = vpack.c.b16 %v6169, %v6163
        %v7250 = vpack.c.b16 %v6170, %v6164
        %v7251 = vpack.c.b16 %v6177, %v6171
        %v7252 = vpack.c.b16 %v6178, %v6172
        %v7253 = vpack.c.b16 %v6179, %v6173
        %v7254 = vpack.c.b16 %v6180, %v6174
        %v7255 = vpack.c.b16 %v6181, %v6175
        %v7256 = vpack.c.b16 %v6182, %v6176
        %v7257 = vpack.c.b16 %v6189, %v6183
        %v7258 = vpack.c.b16 %v6190, %v6184
        %v7259 = vpack.c.b16 %v6191, %v6185
        %v7260 = vpack.c.b16 %v6192, %v6186
        %v7261 = vpack.c.b16 %v6193, %v6187
        %v7262 = vpack.c.b16 %v6194, %v6188
        %v7263 = vpack.c.b16 %v6201, %v6195
        %v7264 = vpack.c.b16 %v6202, %v6196
        %v7265 = vpack.c.b16 %v6203, %v6197
        %v7266 = vpack.c.b16 %v6204, %v6198
        %v7267 = vpack.c.b16 %v6205, %v6199
        %v7268 = vpack.c.b16 %v6206, %v6200
        %v7269 = vpack.c.b16 %v6213, %v6207
        %v7270 = vpack.c.b16 %v6214, %v6208
        %v7271 = vpack.c.b16 %v6215, %v6209
        %v7272 = vpack.c.b16 %v6216, %v6210
        %v7273 = vpack.c.b16 %v6217, %v6211
        %v7274 = vpack.c.b16 %v6218, %v6212
        %v7275 = vpack.c.b16 %v6225, %v6219
        %v7276 = vpack.c.b16 %v6226, %v6220
        %v7277 = vpack.c.b16 %v6227, %v6221
        %v7278 = vpack.c.b16 %v6228, %v6222
        %v7279 = vpack.c.b16 %v6229, %v6223
        %v7280 = vpack.c.b16 %v6230, %v6224
        %v7281 = vpack.c.b16 %v6237, %v6231
        %v7282 = vpack.c.b16 %v6238, %v6232
        %v7283 = vpack.c.b16 %v6239, %v6233
        %v7284 = vpack.c.b16 %v6240, %v6234
        %v7285 = vpack.c.b16 %v6241, %v6235
        %v7286 = vpack.c.b16 %v6242, %v6236
        %v7287 = vpack.c.b16 %v6249, %v6243
        %v7288 = vpack.c.b16 %v6250, %v6244
        %v7289 = vpack.c.b16 %v6251, %v6245
        %v7290 = vpack.c.b16 %v6252, %v6246
        %v7291 = vpack.c.b16 %v6253, %v6247
        %v7292 = vpack.c.b16 %v6254, %v6248
        %v7293 = vpack.c.b16 %v6261, %v6255
        %v7294 = vpack.c.b16 %v6262, %v6256
        %v7295 = vpack.c.b16 %v6263, %v6257
        %v7296 = vpack.c.b16 %v6264, %v6258
        %v7297 = vpack.c.b16 %v6265, %v6259
        %v7298 = vpack.c.b16 %v6266, %v6260
        %v7299 = vpack.c.b16 %v6273, %v6267
        %v7300 = vpack.c.b16 %v6274, %v6268
        %v7301 = vpack.c.b16 %v6275, %v6269
        %v7302 = vpack.c.b16 %v6276, %v6270
        %v7303 = vpack.c.b16 %v6277, %v6271
        %v7304 = vpack.c.b16 %v6278, %v6272
        %v7305 = vpack.c.b16 %v6285, %v6279
        %v7306 = vpack.c.b16 %v6286, %v6280
        %v7307 = vpack.c.b16 %v6287, %v6281
        %v7308 = vpack.c.b16 %v6288, %v6282
        %v7309 = vpack.c.b16 %v6289, %v6283
        %v7310 = vpack.c.b16 %v6290, %v6284
        %v7311 = vpack.c.b16 %v6297, %v6291
        %v7312 = vpack.c.b16 %v6298, %v6292
        %v7313 = vpack.c.b16 %v6299, %v6293
        %v7314 = vpack.c.b16 %v6300, %v6294
        %v7315 = vpack.c.b16 %v6301, %v6295
        %v7316 = vpack.c.b16 %v6302, %v6296
        %v7317 = vpack.c.b16 %v6309, %v6303
        %v7318 = vpack.c.b16 %v6310, %v6304
        %v7319 = vpack.c.b16 %v6311, %v6305
        %v7320 = vpack.c.b16 %v6312, %v6306
        %v7321 = vpack.c.b16 %v6313, %v6307
        %v7322 = vpack.c.b16 %v6314, %v6308
        %v7323 = vpack.c.b16 %v6321, %v6315
        %v7324 = vpack.c.b16 %v6322, %v6316
        %v7325 = vpack.c.b16 %v6323, %v6317
        %v7326 = vpack.c.b16 %v6324, %v6318
        %v7327 = vpack.c.b16 %v6325, %v6319
        %v7328 = vpack.c.b16 %v6326, %v6320
        %v7329 = vpack.c.b16 %v6333, %v6327
        %v7330 = vpack.c.b16 %v6334, %v6328
        %v7331 = vpack.c.b16 %v6335, %v6329
        %v7332 = vpack.c.b16 %v6336, %v6330
        %v7333 = vpack.c.b16 %v6337, %v6331
        %v7334 = vpack.c.b16 %v6338, %v6332
        %v7335 = vpack.c.b16 %v6345, %v6339
        %v7336 = vpack.c.b16 %v6346, %v6340
        %v7337 = vpack.c.b16 %v6347, %v6341
        %v7338 = vpack.c.b16 %v6348, %v6342
        %v7339 = vpack.c.b16 %v6349, %v6343
        %v7340 = vpack.c.b16 %v6350, %v6344
        %v7341 = vpack.c.b16 %v6357, %v6351
        %v7342 = vpack.c.b16 %v6358, %v6352
        %v7343 = vpack.c.b16 %v6359, %v6353
        %v7344 = vpack.c.b16 %v6360, %v6354
        %v7345 = vpack.c.b16 %v6361, %v6355
        %v7346 = vpack.c.b16 %v6362, %v6356
        %v7347 = vpack.c.b16 %v6369, %v6363
        %v7348 = vpack.c.b16 %v6370, %v6364
        %v7349 = vpack.c.b16 %v6371, %v6365
        %v7350 = vpack.c.b16 %v6372, %v6366
        %v7351 = vpack.c.b16 %v6373, %v6367
        %v7352 = vpack.c.b16 %v6374, %v6368
        %v7353 = vpack.c.b16 %v6381, %v6375
        %v7354 = vpack.c.b16 %v6382, %v6376
        %v7355 = vpack.c.b16 %v6383, %v6377
        %v7356 = vpack.c.b16 %v6384, %v6378
        %v7357 = vpack.c.b16 %v6385, %v6379
        %v7358 = vpack.c.b16 %v6386, %v6380
        %v7359 = vpack.c.b16 %v6393, %v6387
        %v7360 = vpack.c.b16 %v6394, %v6388
        %v7361 = vpack.c.b16 %v6395, %v6389
        %v7362 = vpack.c.b16 %v6396, %v6390
        %v7363 = vpack.c.b16 %v6397, %v6391
        %v7364 = vpack.c.b16 %v6398, %v6392
        %v7365 = vpack.c.b16 %v6405, %v6399
        %v7366 = vpack.c.b16 %v6406, %v6400
        %v7367 = vpack.c.b16 %v6407, %v6401
        %v7368 = vpack.c.b16 %v6408, %v6402
        %v7369 = vpack.c.b16 %v6409, %v6403
        %v7370 = vpack.c.b16 %v6410, %v6404
        %v7371 = vpack.c.b16 %v6417, %v6411
        %v7372 = vpack.c.b16 %v6418, %v6412
        %v7373 = vpack.c.b16 %v6419, %v6413
        %v7374 = vpack.c.b16 %v6420, %v6414
        %v7375 = vpack.c.b16 %v6421, %v6415
        %v7376 = vpack.c.b16 %v6422, %v6416
        %v7377 = vpack.c.b16 %v6429, %v6423
        %v7378 = vpack.c.b16 %v6430, %v6424
        %v7379 = vpack.c.b16 %v6431, %v6425
        %v7380 = vpack.c.b16 %v6432, %v6426
        %v7381 = vpack.c.b16 %v6433, %v6427
        %v7382 = vpack.c.b16 %v6434, %v6428
        %v7383 = vpack.c.b16 %v6441, %v6435
        %v7384 = vpack.c.b16 %v6442, %v6436
        %v7385 = vpack.c.b16 %v6443, %v6437
        %v7386 = vpack.c.b16 %v6444, %v6438
        %v7387 = vpack.c.b16 %v6445, %v6439
        %v7388 = vpack.c.b16 %v6446, %v6440
        %v7389 = vpack.c.b16 %v6453, %v6447
        %v7390 = vpack.c.b16 %v6454, %v6448
        %v7391 = vpack.c.b16 %v6455, %v6449
        %v7392 = vpack.c.b16 %v6456, %v6450
        %v7393 = vpack.c.b16 %v6457, %v6451
        %v7394 = vpack.c.b16 %v6458, %v6452
        %v7395 = vpack.c.b16 %v6465, %v6459
        %v7396 = vpack.c.b16 %v6466, %v6460
        %v7397 = vpack.c.b16 %v6467, %v6461
        %v7398 = vpack.c.b16 %v6468, %v6462
        %v7399 = vpack.c.b16 %v6469, %v6463
        %v7400 = vpack.c.b16 %v6470, %v6464
        %v7401 = vpack.c.b16 %v6477, %v6471
        %v7402 = vpack.c.b16 %v6478, %v6472
        %v7403 = vpack.c.b16 %v6479, %v6473
        %v7404 = vpack.c.b16 %v6480, %v6474
        %v7405 = vpack.c.b16 %v6481, %v6475
        %v7406 = vpack.c.b16 %v6482, %v6476
        %v7407 = vpack.c.b16 %v6489, %v6483
        %v7408 = vpack.c.b16 %v6490, %v6484
        %v7409 = vpack.c.b16 %v6491, %v6485
        %v7410 = vpack.c.b16 %v6492, %v6486
        %v7411 = vpack.c.b16 %v6493, %v6487
        %v7412 = vpack.c.b16 %v6494, %v6488
        %v7413 = vpack.c.b16 %v6501, %v6495
        %v7414 = vpack.c.b16 %v6502, %v6496
        %v7415 = vpack.c.b16 %v6503, %v6497
        %v7416 = vpack.c.b16 %v6504, %v6498
        %v7417 = vpack.c.b16 %v6505, %v6499
        %v7418 = vpack.c.b16 %v6506, %v6500
        %v7419 = vpack.c.b16 %v6513, %v6507
        %v7420 = vpack.c.b16 %v6514, %v6508
        %v7421 = vpack.c.b16 %v6515, %v6509
        %v7422 = vpack.c.b16 %v6516, %v6510
        %v7423 = vpack.c.b16 %v6517, %v6511
        %v7424 = vpack.c.b16 %v6518, %v6512
        %v7425 = vpack.c.b16 %v6525, %v6519
        %v7426 = vpack.c.b16 %v6526, %v6520
        %v7427 = vpack.c.b16 %v6527, %v6521
        %v7428 = vpack.c.b16 %v6528, %v6522
        %v7429 = vpack.c.b16 %v6529, %v6523
        %v7430 = vpack.c.b16 %v6530, %v6524
        %v7431 = vpack.c.b16 %v6537, %v6531
        %v7432 = vpack.c.b16 %v6538, %v6532
        %v7433 = vpack.c.b16 %v6539, %v6533
        %v7434 = vpack.c.b16 %v6540, %v6534
        %v7435 = vpack.c.b16 %v6541, %v6535
        %v7436 = vpack.c.b16 %v6542, %v6536
        %v7437 = vpack.c.b16 %v6549, %v6543
        %v7438 = vpack.c.b16 %v6550, %v6544
        %v7439 = vpack.c.b16 %v6551, %v6545
        %v7440 = vpack.c.b16 %v6552, %v6546
        %v7441 = vpack.c.b16 %v6553, %v6547
        %v7442 = vpack.c.b16 %v6554, %v6548
        %v7443 = vpack.c.b16 %v6561, %v6555
        %v7444 = vpack.c.b16 %v6562, %v6556
        %v7445 = vpack.c.b16 %v6563, %v6557
        %v7446 = vpack.c.b16 %v6564, %v6558
        %v7447 = vpack.c.b16 %v6565, %v6559
        %v7448 = vpack.c.b16 %v6566, %v6560
        %v7449 = vpack.c.b16 %v6573, %v6567
        %v7450 = vpack.c.b16 %v6574, %v6568
        %v7451 = vpack.c.b16 %v6575, %v6569
        %v7452 = vpack.c.b16 %v6576, %v6570
        %v7453 = vpack.c.b16 %v6577, %v6571
        %v7454 = vpack.c.b16 %v6578, %v6572
        %v7455 = vpack.c.b16 %v6585, %v6579
        %v7456 = vpack.c.b16 %v6586, %v6580
        %v7457 = vpack.c.b16 %v6587, %v6581
        %v7458 = vpack.c.b16 %v6588, %v6582
        %v7459 = vpack.c.b16 %v6589, %v6583
        %v7460 = vpack.c.b16 %v6590, %v6584
        %v7461 = vpack.c.b16 %v6597, %v6591
        %v7462 = vpack.c.b16 %v6598, %v6592
        %v7463 = vpack.c.b16 %v6599, %v6593
        %v7464 = vpack.c.b16 %v6600, %v6594
        %v7465 = vpack.c.b16 %v6601, %v6595
        %v7466 = vpack.c.b16 %v6602, %v6596
        %v7467 = vpack.c.b16 %v6609, %v6603
        %v7468 = vpack.c.b16 %v6610, %v6604
        %v7469 = vpack.c.b16 %v6611, %v6605
        %v7470 = vpack.c.b16 %v6612, %v6606
        %v7471 = vpack.c.b16 %v6613, %v6607
        %v7472 = vpack.c.b16 %v6614, %v6608
        %v7473 = vpack.c.b16 %v6621, %v6615
        %v7474 = vpack.c.b16 %v6622, %v6616
        %v7475 = vpack.c.b16 %v6623, %v6617
        %v7476 = vpack.c.b16 %v6624, %v6618
        %v7477 = vpack.c.b16 %v6625, %v6619
        %v7478 = vpack.c.b16 %v6626, %v6620
        %v7479 = vpack.c.b16 %v6633, %v6627
        %v7480 = vpack.c.b16 %v6634, %v6628
        %v7481 = vpack.c.b16 %v6635, %v6629
        %v7482 = vpack.c.b16 %v6636, %v6630
        %v7483 = vpack.c.b16 %v6637, %v6631
        %v7484 = vpack.c.b16 %v6638, %v6632
        %v7485 = vpack.c.b16 %v6645, %v6639
        %v7486 = vpack.c.b16 %v6646, %v6640
        %v7487 = vpack.c.b16 %v6647, %v6641
        %v7488 = vpack.c.b16 %v6648, %v6642
        %v7489 = vpack.c.b16 %v6649, %v6643
        %v7490 = vpack.c.b16 %v6650, %v6644
        %v7491 = vpack.c.b16 %v6657, %v6651
        %v7492 = vpack.c.b16 %v6658, %v6652
        %v7493 = vpack.c.b16 %v6659, %v6653
        %v7494 = vpack.c.b16 %v6660, %v6654
        %v7495 = vpack.c.b16 %v6661, %v6655
        %v7496 = vpack.c.b16 %v6662, %v6656
        %v7497 = vpack.c.b16 %v6669, %v6663
        %v7498 = vpack.c.b16 %v6670, %v6664
        %v7499 = vpack.c.b16 %v6671, %v6665
        %v7500 = vpack.c.b16 %v6672, %v6666
        %v7501 = vpack.c.b16 %v6673, %v6667
        %v7502 = vpack.c.b16 %v6674, %v6668
        %v7503 = vpack.c.b16 %v6681, %v6675
        %v7504 = vpack.c.b16 %v6682, %v6676
        %v7505 = vpack.c.b16 %v6683, %v6677
        %v7506 = vpack.c.b16 %v6684, %v6678
        %v7507 = vpack.c.b16 %v6685, %v6679
        %v7508 = vpack.c.b16 %v6686, %v6680
        %v7509 = vpack.c.b16 %v6693, %v6687
        %v7510 = vpack.c.b16 %v6694, %v6688
        %v7511 = vpack.c.b16 %v6695, %v6689
        %v7512 = vpack.c.b16 %v6696, %v6690
        %v7513 = vpack.c.b16 %v6697, %v6691
        %v7514 = vpack.c.b16 %v6698, %v6692
        %v7515 = vpack.c.b16 %v6705, %v6699
        %v7516 = vpack.c.b16 %v6706, %v6700
        %v7517 = vpack.c.b16 %v6707, %v6701
        %v7518 = vpack.c.b16 %v6708, %v6702
        %v7519 = vpack.c.b16 %v6709, %v6703
        %v7520 = vpack.c.b16 %v6710, %v6704
        %v7521 = vpack.c.b16 %v6717, %v6711
        %v7522 = vpack.c.b16 %v6718, %v6712
        %v7523 = vpack.c.b16 %v6719, %v6713
        %v7524 = vpack.c.b16 %v6720, %v6714
        %v7525 = vpack.c.b16 %v6721, %v6715
        %v7526 = vpack.c.b16 %v6722, %v6716
        %v7527 = vpack.c.b16 %v6729, %v6723
        %v7528 = vpack.c.b16 %v6730, %v6724
        %v7529 = vpack.c.b16 %v6731, %v6725
        %v7530 = vpack.c.b16 %v6732, %v6726
        %v7531 = vpack.c.b16 %v6733, %v6727
        %v7532 = vpack.c.b16 %v6734, %v6728
        %v7533 = vpack.c.b16 %v6741, %v6735
        %v7534 = vpack.c.b16 %v6742, %v6736
        %v7535 = vpack.c.b16 %v6743, %v6737
        %v7536 = vpack.c.b16 %v6744, %v6738
        %v7537 = vpack.c.b16 %v6745, %v6739
        %v7538 = vpack.c.b16 %v6746, %v6740
        %v7539 = vpack.c.b16 %v6753, %v6747
        %v7540 = vpack.c.b16 %v6754, %v6748
        %v7541 = vpack.c.b16 %v6755, %v6749
        %v7542 = vpack.c.b16 %v6756, %v6750
        %v7543 = vpack.c.b16 %v6757, %v6751
        %v7544 = vpack.c.b16 %v6758, %v6752
        %v7545 = vpack.c.b16 %v6765, %v6759
        %v7546 = vpack.c.b16 %v6766, %v6760
        %v7547 = vpack.c.b16 %v6767, %v6761
        %v7548 = vpack.c.b16 %v6768, %v6762
        %v7549 = vpack.c.b16 %v6769, %v6763
        %v7550 = vpack.c.b16 %v6770, %v6764
        %v7551 = vpack.c.b16 %v6777, %v6771
        %v7552 = vpack.c.b16 %v6778, %v6772
        %v7553 = vpack.c.b16 %v6779, %v6773
        %v7554 = vpack.c.b16 %v6780, %v6774
        %v7555 = vpack.c.b16 %v6781, %v6775
        %v7556 = vpack.c.b16 %v6782, %v6776
        %v7557 = vpack.c.b16 %v6789, %v6783
        %v7558 = vpack.c.b16 %v6790, %v6784
        %v7559 = vpack.c.b16 %v6791, %v6785
        %v7560 = vpack.c.b16 %v6792, %v6786
        %v7561 = vpack.c.b16 %v6793, %v6787
        %v7562 = vpack.c.b16 %v6794, %v6788
        %v7563 = vpack.c.b16 %v6801, %v6795
        %v7564 = vpack.c.b16 %v6802, %v6796
        %v7565 = vpack.c.b16 %v6803, %v6797
        %v7566 = vpack.c.b16 %v6804, %v6798
        %v7567 = vpack.c.b16 %v6805, %v6799
        %v7568 = vpack.c.b16 %v6806, %v6800
        %v7569 = vpack.c.b16 %v6813, %v6807
        %v7570 = vpack.c.b16 %v6814, %v6808
        %v7571 = vpack.c.b16 %v6815, %v6809
        %v7572 = vpack.c.b16 %v6816, %v6810
        %v7573 = vpack.c.b16 %v6817, %v6811
        %v7574 = vpack.c.b16 %v6818, %v6812
        %v7575 = vpack.c.b16 %v6825, %v6819
        %v7576 = vpack.c.b16 %v6826, %v6820
        %v7577 = vpack.c.b16 %v6827, %v6821
        %v7578 = vpack.c.b16 %v6828, %v6822
        %v7579 = vpack.c.b16 %v6829, %v6823
        %v7580 = vpack.c.b16 %v6830, %v6824
        %v7581 = vpack.c.b16 %v6837, %v6831
        %v7582 = vpack.c.b16 %v6838, %v6832
        %v7583 = vpack.c.b16 %v6839, %v6833
        %v7584 = vpack.c.b16 %v6840, %v6834
        %v7585 = vpack.c.b16 %v6841, %v6835
        %v7586 = vpack.c.b16 %v6842, %v6836
        %v7587 = vpack.c.b16 %v6849, %v6843
        %v7588 = vpack.c.b16 %v6850, %v6844
        %v7589 = vpack.c.b16 %v6851, %v6845
        %v7590 = vpack.c.b16 %v6852, %v6846
        %v7591 = vpack.c.b16 %v6853, %v6847
        %v7592 = vpack.c.b16 %v6854, %v6848
        %v7593 = vpack.c.b16 %v6861, %v6855
        %v7594 = vpack.c.b16 %v6862, %v6856
        %v7595 = vpack.c.b16 %v6863, %v6857
        %v7596 = vpack.c.b16 %v6864, %v6858
        %v7597 = vpack.c.b16 %v6865, %v6859
        %v7598 = vpack.c.b16 %v6866, %v6860
        %v7599 = vpack.c.b16 %v6873, %v6867
        %v7600 = vpack.c.b16 %v6874, %v6868
        %v7601 = vpack.c.b16 %v6875, %v6869
        %v7602 = vpack.c.b16 %v6876, %v6870
        %v7603 = vpack.c.b16 %v6877, %v6871
        %v7604 = vpack.c.b16 %v6878, %v6872
        %v7605 = vpack.c.b16 %v6885, %v6879
        %v7606 = vpack.c.b16 %v6886, %v6880
        %v7607 = vpack.c.b16 %v6887, %v6881
        %v7608 = vpack.c.b16 %v6888, %v6882
        %v7609 = vpack.c.b16 %v6889, %v6883
        %v7610 = vpack.c.b16 %v6890, %v6884
        %v7611 = vpack.c.b16 %v6897, %v6891
        %v7612 = vpack.c.b16 %v6898, %v6892
        %v7613 = vpack.c.b16 %v6899, %v6893
        %v7614 = vpack.c.b16 %v6900, %v6894
        %v7615 = vpack.c.b16 %v6901, %v6895
        %v7616 = vpack.c.b16 %v6902, %v6896
        %v7617 = vpack.c.b16 %v6909, %v6903
        %v7618 = vpack.c.b16 %v6910, %v6904
        %v7619 = vpack.c.b16 %v6911, %v6905
        %v7620 = vpack.c.b16 %v6912, %v6906
        %v7621 = vpack.c.b16 %v6913, %v6907
        %v7622 = vpack.c.b16 %v6914, %v6908
        %v7623 = vpack.c.b16 %v6921, %v6915
        %v7624 = vpack.c.b16 %v6922, %v6916
        %v7625 = vpack.c.b16 %v6923, %v6917
        %v7626 = vpack.c.b16 %v6924, %v6918
        %v7627 = vpack.c.b16 %v6925, %v6919
        %v7628 = vpack.c.b16 %v6926, %v6920
        %v7629 = vpack.c.b16 %v6933, %v6927
        %v7630 = vpack.c.b16 %v6934, %v6928
        %v7631 = vpack.c.b16 %v6935, %v6929
        %v7632 = vpack.c.b16 %v6936, %v6930
        %v7633 = vpack.c.b16 %v6937, %v6931
        %v7634 = vpack.c.b16 %v6938, %v6932
        %v7635 = vpack.c.b16 %v6945, %v6939
        %v7636 = vpack.c.b16 %v6946, %v6940
        %v7637 = vpack.c.b16 %v6947, %v6941
        %v7638 = vpack.c.b16 %v6948, %v6942
        %v7639 = vpack.c.b16 %v6949, %v6943
        %v7640 = vpack.c.b16 %v6950, %v6944
        %v7641 = vpack.c.b16 %v6957, %v6951
        %v7642 = vpack.c.b16 %v6958, %v6952
        %v7643 = vpack.c.b16 %v6959, %v6953
        %v7644 = vpack.c.b16 %v6960, %v6954
        %v7645 = vpack.c.b16 %v6961, %v6955
        %v7646 = vpack.c.b16 %v6962, %v6956
        %v7647 = vpack.c.b16 %v6969, %v6963
        %v7648 = vpack.c.b16 %v6970, %v6964
        %v7649 = vpack.c.b16 %v6971, %v6965
        %v7650 = vpack.c.b16 %v6972, %v6966
        %v7651 = vpack.c.b16 %v6973, %v6967
        %v7652 = vpack.c.b16 %v6974, %v6968
        %v7653 = vpack.c.b16 %v6981, %v6975
        %v7654 = vpack.c.b16 %v6982, %v6976
        %v7655 = vpack.c.b16 %v6983, %v6977
        %v7656 = vpack.c.b16 %v6984, %v6978
        %v7657 = vpack.c.b16 %v6985, %v6979
        %v7658 = vpack.c.b16 %v6986, %v6980
        %v7659 = vpack.c.b16 %v6993, %v6987
        %v7660 = vpack.c.b16 %v6994, %v6988
        %v7661 = vpack.c.b16 %v6995, %v6989
        %v7662 = vpack.c.b16 %v6996, %v6990
        %v7663 = vpack.c.b16 %v6997, %v6991
        %v7664 = vpack.c.b16 %v6998, %v6992
        %v7665 = vpack.c.b16 %v7005, %v6999
        %v7666 = vpack.c.b16 %v7006, %v7000
        %v7667 = vpack.c.b16 %v7007, %v7001
        %v7668 = vpack.c.b16 %v7008, %v7002
        %v7669 = vpack.c.b16 %v7009, %v7003
        %v7670 = vpack.c.b16 %v7010, %v7004
        %v7671 = vpack.c.b16 %v7017, %v7011
        %v7672 = vpack.c.b16 %v7018, %v7012
        %v7673 = vpack.c.b16 %v7019, %v7013
        %v7674 = vpack.c.b16 %v7020, %v7014
        %v7675 = vpack.c.b16 %v7021, %v7015
        %v7676 = vpack.c.b16 %v7022, %v7016
        %v7677 = vpack.c.b16 %v7029, %v7023
        %v7678 = vpack.c.b16 %v7030, %v7024
        %v7679 = vpack.c.b16 %v7031, %v7025
        %v7680 = vpack.c.b16 %v7032, %v7026
        %v7681 = vpack.c.b16 %v7033, %v7027
        %v7682 = vpack.c.b16 %v7034, %v7028
        %v7683 = vpack.c.b16 %v7041, %v7035
        %v7684 = vpack.c.b16 %v7042, %v7036
        %v7685 = vpack.c.b16 %v7043, %v7037
        %v7686 = vpack.c.b16 %v7044, %v7038
        %v7687 = vpack.c.b16 %v7045, %v7039
        %v7688 = vpack.c.b16 %v7046, %v7040
        %v7689 = vpack.c.b16 %v7053, %v7047
        %v7690 = vpack.c.b16 %v7054, %v7048
        %v7691 = vpack.c.b16 %v7055, %v7049
        %v7692 = vpack.c.b16 %v7056, %v7050
        %v7693 = vpack.c.b16 %v7057, %v7051
        %v7694 = vpack.c.b16 %v7058, %v7052
        %v7695 = vpack.c.b16 %v7065, %v7059
        %v7696 = vpack.c.b16 %v7066, %v7060
        %v7697 = vpack.c.b16 %v7067, %v7061
        %v7698 = vpack.c.b16 %v7068, %v7062
        %v7699 = vpack.c.b16 %v7069, %v7063
        %v7700 = vpack.c.b16 %v7070, %v7064
        %v7701 = vpack.c.b16 %v7077, %v7071
        %v7702 = vpack.c.b16 %v7078, %v7072
        %v7703 = vpack.c.b16 %v7079, %v7073
        %v7704 = vpack.c.b16 %v7080, %v7074
        %v7705 = vpack.c.b16 %v7081, %v7075
        %v7706 = vpack.c.b16 %v7082, %v7076
        %v7707 = vpack.c.b16 %v7089, %v7083
        %v7708 = vpack.c.b16 %v7090, %v7084
        %v7709 = vpack.c.b16 %v7091, %v7085
        %v7710 = vpack.c.b16 %v7092, %v7086
        %v7711 = vpack.c.b16 %v7093, %v7087
        %v7712 = vpack.c.b16 %v7094, %v7088
        %v7713 = vpack.c.b16 %v7101, %v7095
        %v7714 = vpack.c.b16 %v7102, %v7096
        %v7715 = vpack.c.b16 %v7103, %v7097
        %v7716 = vpack.c.b16 %v7104, %v7098
        %v7717 = vpack.c.b16 %v7105, %v7099
        %v7718 = vpack.c.b16 %v7106, %v7100
        %v7719 = vpack.c.b16 %v7113, %v7107
        %v7720 = vpack.c.b16 %v7114, %v7108
        %v7721 = vpack.c.b16 %v7115, %v7109
        %v7722 = vpack.c.b16 %v7116, %v7110
        %v7723 = vpack.c.b16 %v7117, %v7111
        %v7724 = vpack.c.b16 %v7118, %v7112
        %v7725 = vpack.c.b16 %v7125, %v7119
        %v7726 = vpack.c.b16 %v7126, %v7120
        %v7727 = vpack.c.b16 %v7127, %v7121
        %v7728 = vpack.c.b16 %v7128, %v7122
        %v7729 = vpack.c.b16 %v7129, %v7123
        %v7730 = vpack.c.b16 %v7130, %v7124
        %v7731 = vpack.c.b16 %v7137, %v7131
        %v7732 = vpack.c.b16 %v7138, %v7132
        %v7733 = vpack.c.b16 %v7139, %v7133
        %v7734 = vpack.c.b16 %v7140, %v7134
        %v7735 = vpack.c.b16 %v7141, %v7135
        %v7736 = vpack.c.b16 %v7142, %v7136
        %v7737 = vpack.c.b16 %v7149, %v7143
        %v7738 = vpack.c.b16 %v7150, %v7144
        %v7739 = vpack.c.b16 %v7151, %v7145
        %v7740 = vpack.c.b16 %v7152, %v7146
        %v7741 = vpack.c.b16 %v7153, %v7147
        %v7742 = vpack.c.b16 %v7154, %v7148
        %v7743 = vpack.c.b16 %v7161, %v7155
        %v7744 = vpack.c.b16 %v7162, %v7156
        %v7745 = vpack.c.b16 %v7163, %v7157
        %v7746 = vpack.c.b16 %v7164, %v7158
        %v7747 = vpack.c.b16 %v7165, %v7159
        %v7748 = vpack.c.b16 %v7166, %v7160
        %v7749 = vpack.c.b16 %v7173, %v7167
        %v7750 = vpack.c.b16 %v7174, %v7168
        %v7751 = vpack.c.b16 %v7175, %v7169
        %v7752 = vpack.c.b16 %v7176, %v7170
        %v7753 = vpack.c.b16 %v7177, %v7171
        %v7754 = vpack.c.b16 %v7178, %v7172
        %8331 = vmatprep.subr.bf16.mxu0 %v7222
        %8332 = vmatpush1.bf16.msra.mxu0 %v7221
        %8333 = vmatprep.subr.bf16.mxu0 %v7216
        %8334 = vmatpush1.bf16.msra.mxu0 %v7215
        %8335 = vmatprep.subr.bf16.mxu0 %v7210
        %8336 = vmatpush1.bf16.msra.mxu0 %v7209
        %8337 = vmatprep.subr.bf16.mxu0 %v7204
        %8338 = vmatpush1.bf16.msra.mxu0 %v7203
        %8339 = vmatprep.subr.bf16.mxu0 %v7198
        %8340 = vmatpush1.bf16.msra.mxu0 %v7197
        %8341 = vmatprep.subr.bf16.mxu0 %v7192
        %8342 = vmatpush1.bf16.msra.mxu0 %v7191
        %8343 = vmatprep.subr.bf16.mxu0 %v7186
        %8344 = vmatpush1.bf16.msra.mxu0 %v7185
        %8345 = vmatprep.subr.bf16.mxu0 %v7180
        %8346 = vmatpush1.bf16.msra.mxu0 %v7179
        %8347 = vmatprep.subr.bf16.mxu0 %v7270
        %8348 = vmatpush2.bf16.msra.mxu0 %v7269
        %8349 = vmatprep.subr.bf16.mxu0 %v7264
        %8350 = vmatpush2.bf16.msra.mxu0 %v7263
        %8351 = vmatprep.subr.bf16.mxu0 %v7258
        %8352 = vmatpush2.bf16.msra.mxu0 %v7257
        %8353 = vmatprep.subr.bf16.mxu0 %v7252
        %8354 = vmatpush2.bf16.msra.mxu0 %v7251
        %8355 = vmatprep.subr.bf16.mxu0 %v7246
        %8356 = vmatpush2.bf16.msra.mxu0 %v7245
        %8357 = vmatprep.subr.bf16.mxu0 %v7240
        %8358 = vmatpush2.bf16.msra.mxu0 %v7239
        %8359 = vmatprep.subr.bf16.mxu0 %v7234
        %8360 = vmatpush2.bf16.msra.mxu0 %v7233
        %8361 = vmatprep.subr.bf16.mxu0 %v7228
        %8362 = vmatpush2.bf16.msra.mxu0 %v7227
        %8363 = vmatprep.mubr.bf16.mxu0 %v4864
        %8364 = vmatmul.mubr.bf16.gmra.mxu0 %v4863
        %v8365 = vpop.f32.mrf.mxu0
        %v8366 = vadd.f32 0.0, %v8365
        %v8367 = vpop.f32.mrf.mxu0
        %v8368 = vadd.f32 0.0, %v8367
        %v8369 = vpop.f32.mrf.mxu0
        %v8370 = vadd.f32 0.0, %v8369
        %v8371 = vpop.f32.mrf.mxu0
        %v8372 = vadd.f32 0.0, %v8371
        %8373 = vdwg.mxu0
        %8374 = vmatprep.subr.bf16.mxu0 %v7318
        %8375 = vmatpush1.bf16.msra.mxu0 %v7317
        %8376 = vmatprep.subr.bf16.mxu0 %v7312
        %8377 = vmatpush1.bf16.msra.mxu0 %v7311
        %8378 = vmatprep.subr.bf16.mxu0 %v7306
        %8379 = vmatpush1.bf16.msra.mxu0 %v7305
        %8380 = vmatprep.subr.bf16.mxu0 %v7300
        %8381 = vmatpush1.bf16.msra.mxu0 %v7299
        %8382 = vmatprep.subr.bf16.mxu0 %v7294
        %8383 = vmatpush1.bf16.msra.mxu0 %v7293
        %8384 = vmatprep.subr.bf16.mxu0 %v7288
        %8385 = vmatpush1.bf16.msra.mxu0 %v7287
        %8386 = vmatprep.subr.bf16.mxu0 %v7282
        %8387 = vmatpush1.bf16.msra.mxu0 %v7281
        %8388 = vmatprep.subr.bf16.mxu0 %v7276
        %8389 = vmatpush1.bf16.msra.mxu0 %v7275
        %8390 = vmatprep.subr.bf16.mxu0 %v7366
        %8391 = vmatpush2.bf16.msra.mxu0 %v7365
        %8392 = vmatprep.subr.bf16.mxu0 %v7360
        %8393 = vmatpush2.bf16.msra.mxu0 %v7359
        %8394 = vmatprep.subr.bf16.mxu0 %v7354
        %8395 = vmatpush2.bf16.msra.mxu0 %v7353
        %8396 = vmatprep.subr.bf16.mxu0 %v7348
        %8397 = vmatpush2.bf16.msra.mxu0 %v7347
        %8398 = vmatprep.subr.bf16.mxu0 %v7342
        %8399 = vmatpush2.bf16.msra.mxu0 %v7341
        %8400 = vmatprep.subr.bf16.mxu0 %v7336
        %8401 = vmatpush2.bf16.msra.mxu0 %v7335
        %8402 = vmatprep.subr.bf16.mxu0 %v7330
        %8403 = vmatpush2.bf16.msra.mxu0 %v7329
        %8404 = vmatprep.subr.bf16.mxu0 %v7324
        %8405 = vmatpush2.bf16.msra.mxu0 %v7323
        %8406 = vmatprep.mubr.bf16.mxu0 %v4866
        %8407 = vmatmul.mubr.bf16.gmra.mxu0 %v4865
        %v8408 = vpop.f32.mrf.mxu0
        %v8409 = vadd.f32 %v8366, %v8408
        %v8410 = vpop.f32.mrf.mxu0
        %v8411 = vadd.f32 %v8368, %v8410
        %v8412 = vpop.f32.mrf.mxu0
        %v8413 = vadd.f32 %v8370, %v8412
        %v8414 = vpop.f32.mrf.mxu0
        %v8415 = vadd.f32 %v8372, %v8414
        %8416 = vdwg.mxu0
        %8417 = vmatprep.subr.bf16.mxu0 %v7414
        %8418 = vmatpush1.bf16.msra.mxu0 %v7413
        %8419 = vmatprep.subr.bf16.mxu0 %v7408
        %8420 = vmatpush1.bf16.msra.mxu0 %v7407
        %8421 = vmatprep.subr.bf16.mxu0 %v7402
        %8422 = vmatpush1.bf16.msra.mxu0 %v7401
        %8423 = vmatprep.subr.bf16.mxu0 %v7396
        %8424 = vmatpush1.bf16.msra.mxu0 %v7395
        %8425 = vmatprep.subr.bf16.mxu0 %v7390
        %8426 = vmatpush1.bf16.msra.mxu0 %v7389
        %8427 = vmatprep.subr.bf16.mxu0 %v7384
        %8428 = vmatpush1.bf16.msra.mxu0 %v7383
        %8429 = vmatprep.subr.bf16.mxu0 %v7378
        %8430 = vmatpush1.bf16.msra.mxu0 %v7377
        %8431 = vmatprep.subr.bf16.mxu0 %v7372
        %8432 = vmatpush1.bf16.msra.mxu0 %v7371
        %8433 = vmatprep.subr.bf16.mxu0 %v7462
        %8434 = vmatpush2.bf16.msra.mxu0 %v7461
        %8435 = vmatprep.subr.bf16.mxu0 %v7456
        %8436 = vmatpush2.bf16.msra.mxu0 %v7455
        %8437 = vmatprep.subr.bf16.mxu0 %v7450
        %8438 = vmatpush2.bf16.msra.mxu0 %v7449
        %8439 = vmatprep.subr.bf16.mxu0 %v7444
        %8440 = vmatpush2.bf16.msra.mxu0 %v7443
        %8441 = vmatprep.subr.bf16.mxu0 %v7438
        %8442 = vmatpush2.bf16.msra.mxu0 %v7437
        %8443 = vmatprep.subr.bf16.mxu0 %v7432
        %8444 = vmatpush2.bf16.msra.mxu0 %v7431
        %8445 = vmatprep.subr.bf16.mxu0 %v7426
        %8446 = vmatpush2.bf16.msra.mxu0 %v7425
        %8447 = vmatprep.subr.bf16.mxu0 %v7420
        %8448 = vmatpush2.bf16.msra.mxu0 %v7419
        %8449 = vmatprep.mubr.bf16.mxu0 %v4868
        %8450 = vmatmul.mubr.bf16.gmra.mxu0 %v4867
        %v8451 = vpop.f32.mrf.mxu0
        %v8452 = vadd.f32 %v8409, %v8451
        %v8453 = vpop.f32.mrf.mxu0
        %v8454 = vadd.f32 %v8411, %v8453
        %v8455 = vpop.f32.mrf.mxu0
        %v8456 = vadd.f32 %v8413, %v8455
        %v8457 = vpop.f32.mrf.mxu0
        %v8458 = vadd.f32 %v8415, %v8457
        %8459 = vdwg.mxu0
        %8460 = vmatprep.subr.bf16.mxu0 %v7510
        %8461 = vmatpush1.bf16.msra.mxu0 %v7509
        %8462 = vmatprep.subr.bf16.mxu0 %v7504
        %8463 = vmatpush1.bf16.msra.mxu0 %v7503
        %8464 = vmatprep.subr.bf16.mxu0 %v7498
        %8465 = vmatpush1.bf16.msra.mxu0 %v7497
        %8466 = vmatprep.subr.bf16.mxu0 %v7492
        %8467 = vmatpush1.bf16.msra.mxu0 %v7491
        %8468 = vmatprep.subr.bf16.mxu0 %v7486
        %8469 = vmatpush1.bf16.msra.mxu0 %v7485
        %8470 = vmatprep.subr.bf16.mxu0 %v7480
        %8471 = vmatpush1.bf16.msra.mxu0 %v7479
        %8472 = vmatprep.subr.bf16.mxu0 %v7474
        %8473 = vmatpush1.bf16.msra.mxu0 %v7473
        %8474 = vmatprep.subr.bf16.mxu0 %v7468
        %8475 = vmatpush1.bf16.msra.mxu0 %v7467
        %8476 = vmatprep.subr.bf16.mxu0 %v7558
        %8477 = vmatpush2.bf16.msra.mxu0 %v7557
        %8478 = vmatprep.subr.bf16.mxu0 %v7552
        %8479 = vmatpush2.bf16.msra.mxu0 %v7551
        %8480 = vmatprep.subr.bf16.mxu0 %v7546
        %8481 = vmatpush2.bf16.msra.mxu0 %v7545
        %8482 = vmatprep.subr.bf16.mxu0 %v7540
        %8483 = vmatpush2.bf16.msra.mxu0 %v7539
        %8484 = vmatprep.subr.bf16.mxu0 %v7534
        %8485 = vmatpush2.bf16.msra.mxu0 %v7533
        %8486 = vmatprep.subr.bf16.mxu0 %v7528
        %8487 = vmatpush2.bf16.msra.mxu0 %v7527
        %8488 = vmatprep.subr.bf16.mxu0 %v7522
        %8489 = vmatpush2.bf16.msra.mxu0 %v7521
        %8490 = vmatprep.subr.bf16.mxu0 %v7516
        %8491 = vmatpush2.bf16.msra.mxu0 %v7515
        %8492 = vmatprep.mubr.bf16.mxu0 %v4870
        %8493 = vmatmul.mubr.bf16.gmra.mxu0 %v4869
        %v8494 = vpop.f32.mrf.mxu0
        %v8495 = vadd.f32 %v8452, %v8494
        %v8496 = vpop.f32.mrf.mxu0
        %v8497 = vadd.f32 %v8454, %v8496
        %v8498 = vpop.f32.mrf.mxu0
        %v8499 = vadd.f32 %v8456, %v8498
        %v8500 = vpop.f32.mrf.mxu0
        %v8501 = vadd.f32 %v8458, %v8500
        %8502 = vdwg.mxu0
        %8503 = vmatprep.subr.bf16.mxu0 %v7606
        %8504 = vmatpush1.bf16.msra.mxu0 %v7605
        %8505 = vmatprep.subr.bf16.mxu0 %v7600
        %8506 = vmatpush1.bf16.msra.mxu0 %v7599
        %8507 = vmatprep.subr.bf16.mxu0 %v7594
        %8508 = vmatpush1.bf16.msra.mxu0 %v7593
        %8509 = vmatprep.subr.bf16.mxu0 %v7588
        %8510 = vmatpush1.bf16.msra.mxu0 %v7587
        %8511 = vmatprep.subr.bf16.mxu0 %v7582
        %8512 = vmatpush1.bf16.msra.mxu0 %v7581
        %8513 = vmatprep.subr.bf16.mxu0 %v7576
        %8514 = vmatpush1.bf16.msra.mxu0 %v7575
        %8515 = vmatprep.subr.bf16.mxu0 %v7570
        %8516 = vmatpush1.bf16.msra.mxu0 %v7569
        %8517 = vmatprep.subr.bf16.mxu0 %v7564
        %8518 = vmatpush1.bf16.msra.mxu0 %v7563
        %8519 = vmatprep.subr.bf16.mxu0 %v7654
        %8520 = vmatpush2.bf16.msra.mxu0 %v7653
        %8521 = vmatprep.subr.bf16.mxu0 %v7648
        %8522 = vmatpush2.bf16.msra.mxu0 %v7647
        %8523 = vmatprep.subr.bf16.mxu0 %v7642
        %8524 = vmatpush2.bf16.msra.mxu0 %v7641
        %8525 = vmatprep.subr.bf16.mxu0 %v7636
        %8526 = vmatpush2.bf16.msra.mxu0 %v7635
        %8527 = vmatprep.subr.bf16.mxu0 %v7630
        %8528 = vmatpush2.bf16.msra.mxu0 %v7629
        %8529 = vmatprep.subr.bf16.mxu0 %v7624
        %8530 = vmatpush2.bf16.msra.mxu0 %v7623
        %8531 = vmatprep.subr.bf16.mxu0 %v7618
        %8532 = vmatpush2.bf16.msra.mxu0 %v7617
        %8533 = vmatprep.subr.bf16.mxu0 %v7612
        %8534 = vmatpush2.bf16.msra.mxu0 %v7611
        %8535 = vmatprep.mubr.bf16.mxu0 %v4872
        %8536 = vmatmul.mubr.bf16.gmra.mxu0 %v4871
        %v8537 = vpop.f32.mrf.mxu0
        %v8538 = vadd.f32 %v8495, %v8537
        %v8539 = vpop.f32.mrf.mxu0
        %v8540 = vadd.f32 %v8497, %v8539
        %v8541 = vpop.f32.mrf.mxu0
        %v8542 = vadd.f32 %v8499, %v8541
        %v8543 = vpop.f32.mrf.mxu0
        %v8544 = vadd.f32 %v8501, %v8543
        %8545 = vdwg.mxu0
        %8546 = vmatprep.subr.bf16.mxu0 %v7702
        %8547 = vmatpush1.bf16.msra.mxu0 %v7701
        %8548 = vmatprep.subr.bf16.mxu0 %v7696
        %8549 = vmatpush1.bf16.msra.mxu0 %v7695
        %8550 = vmatprep.subr.bf16.mxu0 %v7690
        %8551 = vmatpush1.bf16.msra.mxu0 %v7689
        %8552 = vmatprep.subr.bf16.mxu0 %v7684
        %8553 = vmatpush1.bf16.msra.mxu0 %v7683
        %8554 = vmatprep.subr.bf16.mxu0 %v7678
        %8555 = vmatpush1.bf16.msra.mxu0 %v7677
        %8556 = vmatprep.subr.bf16.mxu0 %v7672
        %8557 = vmatpush1.bf16.msra.mxu0 %v7671
        %8558 = vmatprep.subr.bf16.mxu0 %v7666
        %8559 = vmatpush1.bf16.msra.mxu0 %v7665
        %8560 = vmatprep.subr.bf16.mxu0 %v7660
        %8561 = vmatpush1.bf16.msra.mxu0 %v7659
        %8562 = vmatprep.subr.bf16.mxu0 %v7750
        %8563 = vmatpush2.bf16.msra.mxu0 %v7749
        %8564 = vmatprep.subr.bf16.mxu0 %v7744
        %8565 = vmatpush2.bf16.msra.mxu0 %v7743
        %8566 = vmatprep.subr.bf16.mxu0 %v7738
        %8567 = vmatpush2.bf16.msra.mxu0 %v7737
        %8568 = vmatprep.subr.bf16.mxu0 %v7732
        %8569 = vmatpush2.bf16.msra.mxu0 %v7731
        %8570 = vmatprep.subr.bf16.mxu0 %v7726
        %8571 = vmatpush2.bf16.msra.mxu0 %v7725
        %8572 = vmatprep.subr.bf16.mxu0 %v7720
        %8573 = vmatpush2.bf16.msra.mxu0 %v7719
        %8574 = vmatprep.subr.bf16.mxu0 %v7714
        %8575 = vmatpush2.bf16.msra.mxu0 %v7713
        %8576 = vmatprep.subr.bf16.mxu0 %v7708
        %8577 = vmatpush2.bf16.msra.mxu0 %v7707
        %8578 = vmatprep.mubr.bf16.mxu0 %v4874
        %8579 = vmatmul.mubr.bf16.gmra.mxu0 %v4873
        %v8580 = vpop.f32.mrf.mxu0
        %v8581 = vadd.f32 %v8538, %v8580
        %v8582 = vpop.f32.mrf.mxu0
        %v8583 = vadd.f32 %v8540, %v8582
        %v8584 = vpop.f32.mrf.mxu0
        %v8585 = vadd.f32 %v8542, %v8584
        %v8586 = vpop.f32.mrf.mxu0
        %v8587 = vadd.f32 %v8544, %v8586
        %8588 = vdwg.mxu0
        %8589 = vmatprep.subr.bf16.mxu0 %v7224
        %8590 = vmatpush1.bf16.msra.mxu0 %v7223
        %8591 = vmatprep.subr.bf16.mxu0 %v7218
        %8592 = vmatpush1.bf16.msra.mxu0 %v7217
        %8593 = vmatprep.subr.bf16.mxu0 %v7212
        %8594 = vmatpush1.bf16.msra.mxu0 %v7211
        %8595 = vmatprep.subr.bf16.mxu0 %v7206
        %8596 = vmatpush1.bf16.msra.mxu0 %v7205
        %8597 = vmatprep.subr.bf16.mxu0 %v7200
        %8598 = vmatpush1.bf16.msra.mxu0 %v7199
        %8599 = vmatprep.subr.bf16.mxu0 %v7194
        %8600 = vmatpush1.bf16.msra.mxu0 %v7193
        %8601 = vmatprep.subr.bf16.mxu0 %v7188
        %8602 = vmatpush1.bf16.msra.mxu0 %v7187
        %8603 = vmatprep.subr.bf16.mxu0 %v7182
        %8604 = vmatpush1.bf16.msra.mxu0 %v7181
        %8605 = vmatprep.subr.bf16.mxu0 %v7272
        %8606 = vmatpush2.bf16.msra.mxu0 %v7271
        %8607 = vmatprep.subr.bf16.mxu0 %v7266
        %8608 = vmatpush2.bf16.msra.mxu0 %v7265
        %8609 = vmatprep.subr.bf16.mxu0 %v7260
        %8610 = vmatpush2.bf16.msra.mxu0 %v7259
        %8611 = vmatprep.subr.bf16.mxu0 %v7254
        %8612 = vmatpush2.bf16.msra.mxu0 %v7253
        %8613 = vmatprep.subr.bf16.mxu0 %v7248
        %8614 = vmatpush2.bf16.msra.mxu0 %v7247
        %8615 = vmatprep.subr.bf16.mxu0 %v7242
        %8616 = vmatpush2.bf16.msra.mxu0 %v7241
        %8617 = vmatprep.subr.bf16.mxu0 %v7236
        %8618 = vmatpush2.bf16.msra.mxu0 %v7235
        %8619 = vmatprep.subr.bf16.mxu0 %v7230
        %8620 = vmatpush2.bf16.msra.mxu0 %v7229
        %8621 = vmatprep.mubr.bf16.mxu0 %v4864
        %8622 = vmatmul.mubr.bf16.gmra.mxu0 %v4863
        %v8623 = vpop.f32.mrf.mxu0
        %v8624 = vadd.f32 0.0, %v8623
        %v8625 = vpop.f32.mrf.mxu0
        %v8626 = vadd.f32 0.0, %v8625
        %v8627 = vpop.f32.mrf.mxu0
        %v8628 = vadd.f32 0.0, %v8627
        %v8629 = vpop.f32.mrf.mxu0
        %v8630 = vadd.f32 0.0, %v8629
        %8631 = vdwg.mxu0
        %8632 = vmatprep.subr.bf16.mxu0 %v7320
        %8633 = vmatpush1.bf16.msra.mxu0 %v7319
        %8634 = vmatprep.subr.bf16.mxu0 %v7314
        %8635 = vmatpush1.bf16.msra.mxu0 %v7313
        %8636 = vmatprep.subr.bf16.mxu0 %v7308
        %8637 = vmatpush1.bf16.msra.mxu0 %v7307
        %8638 = vmatprep.subr.bf16.mxu0 %v7302
        %8639 = vmatpush1.bf16.msra.mxu0 %v7301
        %8640 = vmatprep.subr.bf16.mxu0 %v7296
        %8641 = vmatpush1.bf16.msra.mxu0 %v7295
        %8642 = vmatprep.subr.bf16.mxu0 %v7290
        %8643 = vmatpush1.bf16.msra.mxu0 %v7289
        %8644 = vmatprep.subr.bf16.mxu0 %v7284
        %8645 = vmatpush1.bf16.msra.mxu0 %v7283
        %8646 = vmatprep.subr.bf16.mxu0 %v7278
        %8647 = vmatpush1.bf16.msra.mxu0 %v7277
        %8648 = vmatprep.subr.bf16.mxu0 %v7368
        %8649 = vmatpush2.bf16.msra.mxu0 %v7367
        %8650 = vmatprep.subr.bf16.mxu0 %v7362
        %8651 = vmatpush2.bf16.msra.mxu0 %v7361
        %8652 = vmatprep.subr.bf16.mxu0 %v7356
        %8653 = vmatpush2.bf16.msra.mxu0 %v7355
        %8654 = vmatprep.subr.bf16.mxu0 %v7350
        %8655 = vmatpush2.bf16.msra.mxu0 %v7349
        %8656 = vmatprep.subr.bf16.mxu0 %v7344
        %8657 = vmatpush2.bf16.msra.mxu0 %v7343
        %8658 = vmatprep.subr.bf16.mxu0 %v7338
        %8659 = vmatpush2.bf16.msra.mxu0 %v7337
        %8660 = vmatprep.subr.bf16.mxu0 %v7332
        %8661 = vmatpush2.bf16.msra.mxu0 %v7331
        %8662 = vmatprep.subr.bf16.mxu0 %v7326
        %8663 = vmatpush2.bf16.msra.mxu0 %v7325
        %8664 = vmatprep.mubr.bf16.mxu0 %v4866
        %8665 = vmatmul.mubr.bf16.gmra.mxu0 %v4865
        %v8666 = vpop.f32.mrf.mxu0
        %v8667 = vadd.f32 %v8624, %v8666
        %v8668 = vpop.f32.mrf.mxu0
        %v8669 = vadd.f32 %v8626, %v8668
        %v8670 = vpop.f32.mrf.mxu0
        %v8671 = vadd.f32 %v8628, %v8670
        %v8672 = vpop.f32.mrf.mxu0
        %v8673 = vadd.f32 %v8630, %v8672
        %8674 = vdwg.mxu0
        %8675 = vmatprep.subr.bf16.mxu0 %v7416
        %8676 = vmatpush1.bf16.msra.mxu0 %v7415
        %8677 = vmatprep.subr.bf16.mxu0 %v7410
        %8678 = vmatpush1.bf16.msra.mxu0 %v7409
        %8679 = vmatprep.subr.bf16.mxu0 %v7404
        %8680 = vmatpush1.bf16.msra.mxu0 %v7403
        %8681 = vmatprep.subr.bf16.mxu0 %v7398
        %8682 = vmatpush1.bf16.msra.mxu0 %v7397
        %8683 = vmatprep.subr.bf16.mxu0 %v7392
        %8684 = vmatpush1.bf16.msra.mxu0 %v7391
        %8685 = vmatprep.subr.bf16.mxu0 %v7386
        %8686 = vmatpush1.bf16.msra.mxu0 %v7385
        %8687 = vmatprep.subr.bf16.mxu0 %v7380
        %8688 = vmatpush1.bf16.msra.mxu0 %v7379
        %8689 = vmatprep.subr.bf16.mxu0 %v7374
        %8690 = vmatpush1.bf16.msra.mxu0 %v7373
        %8691 = vmatprep.subr.bf16.mxu0 %v7464
        %8692 = vmatpush2.bf16.msra.mxu0 %v7463
        %8693 = vmatprep.subr.bf16.mxu0 %v7458
        %8694 = vmatpush2.bf16.msra.mxu0 %v7457
        %8695 = vmatprep.subr.bf16.mxu0 %v7452
        %8696 = vmatpush2.bf16.msra.mxu0 %v7451
        %8697 = vmatprep.subr.bf16.mxu0 %v7446
        %8698 = vmatpush2.bf16.msra.mxu0 %v7445
        %8699 = vmatprep.subr.bf16.mxu0 %v7440
        %8700 = vmatpush2.bf16.msra.mxu0 %v7439
        %8701 = vmatprep.subr.bf16.mxu0 %v7434
        %8702 = vmatpush2.bf16.msra.mxu0 %v7433
        %8703 = vmatprep.subr.bf16.mxu0 %v7428
        %8704 = vmatpush2.bf16.msra.mxu0 %v7427
        %8705 = vmatprep.subr.bf16.mxu0 %v7422
        %8706 = vmatpush2.bf16.msra.mxu0 %v7421
        %8707 = vmatprep.mubr.bf16.mxu0 %v4868
        %8708 = vmatmul.mubr.bf16.gmra.mxu0 %v4867
        %v8709 = vpop.f32.mrf.mxu0
        %v8710 = vadd.f32 %v8667, %v8709
        %v8711 = vpop.f32.mrf.mxu0
        %v8712 = vadd.f32 %v8669, %v8711
        %v8713 = vpop.f32.mrf.mxu0
        %v8714 = vadd.f32 %v8671, %v8713
        %v8715 = vpop.f32.mrf.mxu0
        %v8716 = vadd.f32 %v8673, %v8715
        %8717 = vdwg.mxu0
        %8718 = vmatprep.subr.bf16.mxu0 %v7512
        %8719 = vmatpush1.bf16.msra.mxu0 %v7511
        %8720 = vmatprep.subr.bf16.mxu0 %v7506
        %8721 = vmatpush1.bf16.msra.mxu0 %v7505
        %8722 = vmatprep.subr.bf16.mxu0 %v7500
        %8723 = vmatpush1.bf16.msra.mxu0 %v7499
        %8724 = vmatprep.subr.bf16.mxu0 %v7494
        %8725 = vmatpush1.bf16.msra.mxu0 %v7493
        %8726 = vmatprep.subr.bf16.mxu0 %v7488
        %8727 = vmatpush1.bf16.msra.mxu0 %v7487
        %8728 = vmatprep.subr.bf16.mxu0 %v7482
        %8729 = vmatpush1.bf16.msra.mxu0 %v7481
        %8730 = vmatprep.subr.bf16.mxu0 %v7476
        %8731 = vmatpush1.bf16.msra.mxu0 %v7475
        %8732 = vmatprep.subr.bf16.mxu0 %v7470
        %8733 = vmatpush1.bf16.msra.mxu0 %v7469
        %8734 = vmatprep.subr.bf16.mxu0 %v7560
        %8735 = vmatpush2.bf16.msra.mxu0 %v7559
        %8736 = vmatprep.subr.bf16.mxu0 %v7554
        %8737 = vmatpush2.bf16.msra.mxu0 %v7553
        %8738 = vmatprep.subr.bf16.mxu0 %v7548
        %8739 = vmatpush2.bf16.msra.mxu0 %v7547
        %8740 = vmatprep.subr.bf16.mxu0 %v7542
        %8741 = vmatpush2.bf16.msra.mxu0 %v7541
        %8742 = vmatprep.subr.bf16.mxu0 %v7536
        %8743 = vmatpush2.bf16.msra.mxu0 %v7535
        %8744 = vmatprep.subr.bf16.mxu0 %v7530
        %8745 = vmatpush2.bf16.msra.mxu0 %v7529
        %8746 = vmatprep.subr.bf16.mxu0 %v7524
        %8747 = vmatpush2.bf16.msra.mxu0 %v7523
        %8748 = vmatprep.subr.bf16.mxu0 %v7518
        %8749 = vmatpush2.bf16.msra.mxu0 %v7517
        %8750 = vmatprep.mubr.bf16.mxu0 %v4870
        %8751 = vmatmul.mubr.bf16.gmra.mxu0 %v4869
        %v8752 = vpop.f32.mrf.mxu0
        %v8753 = vadd.f32 %v8710, %v8752
        %v8754 = vpop.f32.mrf.mxu0
        %v8755 = vadd.f32 %v8712, %v8754
        %v8756 = vpop.f32.mrf.mxu0
        %v8757 = vadd.f32 %v8714, %v8756
        %v8758 = vpop.f32.mrf.mxu0
        %v8759 = vadd.f32 %v8716, %v8758
        %8760 = vdwg.mxu0
        %8761 = vmatprep.subr.bf16.mxu0 %v7608
        %8762 = vmatpush1.bf16.msra.mxu0 %v7607
        %8763 = vmatprep.subr.bf16.mxu0 %v7602
        %8764 = vmatpush1.bf16.msra.mxu0 %v7601
        %8765 = vmatprep.subr.bf16.mxu0 %v7596
        %8766 = vmatpush1.bf16.msra.mxu0 %v7595
        %8767 = vmatprep.subr.bf16.mxu0 %v7590
        %8768 = vmatpush1.bf16.msra.mxu0 %v7589
        %8769 = vmatprep.subr.bf16.mxu0 %v7584
        %8770 = vmatpush1.bf16.msra.mxu0 %v7583
        %8771 = vmatprep.subr.bf16.mxu0 %v7578
        %8772 = vmatpush1.bf16.msra.mxu0 %v7577
        %8773 = vmatprep.subr.bf16.mxu0 %v7572
        %8774 = vmatpush1.bf16.msra.mxu0 %v7571
        %8775 = vmatprep.subr.bf16.mxu0 %v7566
        %8776 = vmatpush1.bf16.msra.mxu0 %v7565
        %8777 = vmatprep.subr.bf16.mxu0 %v7656
        %8778 = vmatpush2.bf16.msra.mxu0 %v7655
        %8779 = vmatprep.subr.bf16.mxu0 %v7650
        %8780 = vmatpush2.bf16.msra.mxu0 %v7649
        %8781 = vmatprep.subr.bf16.mxu0 %v7644
        %8782 = vmatpush2.bf16.msra.mxu0 %v7643
        %8783 = vmatprep.subr.bf16.mxu0 %v7638
        %8784 = vmatpush2.bf16.msra.mxu0 %v7637
        %8785 = vmatprep.subr.bf16.mxu0 %v7632
        %8786 = vmatpush2.bf16.msra.mxu0 %v7631
        %8787 = vmatprep.subr.bf16.mxu0 %v7626
        %8788 = vmatpush2.bf16.msra.mxu0 %v7625
        %8789 = vmatprep.subr.bf16.mxu0 %v7620
        %8790 = vmatpush2.bf16.msra.mxu0 %v7619
        %8791 = vmatprep.subr.bf16.mxu0 %v7614
        %8792 = vmatpush2.bf16.msra.mxu0 %v7613
        %8793 = vmatprep.mubr.bf16.mxu0 %v4872
        %8794 = vmatmul.mubr.bf16.gmra.mxu0 %v4871
        %v8795 = vpop.f32.mrf.mxu0
        %v8796 = vadd.f32 %v8753, %v8795
        %v8797 = vpop.f32.mrf.mxu0
        %v8798 = vadd.f32 %v8755, %v8797
        %v8799 = vpop.f32.mrf.mxu0
        %v8800 = vadd.f32 %v8757, %v8799
        %v8801 = vpop.f32.mrf.mxu0
        %v8802 = vadd.f32 %v8759, %v8801
        %8803 = vdwg.mxu0
        %8804 = vmatprep.subr.bf16.mxu0 %v7704
        %8805 = vmatpush1.bf16.msra.mxu0 %v7703
        %8806 = vmatprep.subr.bf16.mxu0 %v7698
        %8807 = vmatpush1.bf16.msra.mxu0 %v7697
        %8808 = vmatprep.subr.bf16.mxu0 %v7692
        %8809 = vmatpush1.bf16.msra.mxu0 %v7691
        %8810 = vmatprep.subr.bf16.mxu0 %v7686
        %8811 = vmatpush1.bf16.msra.mxu0 %v7685
        %8812 = vmatprep.subr.bf16.mxu0 %v7680
        %8813 = vmatpush1.bf16.msra.mxu0 %v7679
        %8814 = vmatprep.subr.bf16.mxu0 %v7674
        %8815 = vmatpush1.bf16.msra.mxu0 %v7673
        %8816 = vmatprep.subr.bf16.mxu0 %v7668
        %8817 = vmatpush1.bf16.msra.mxu0 %v7667
        %8818 = vmatprep.subr.bf16.mxu0 %v7662
        %8819 = vmatpush1.bf16.msra.mxu0 %v7661
        %8820 = vmatprep.subr.bf16.mxu0 %v7752
        %8821 = vmatpush2.bf16.msra.mxu0 %v7751
        %8822 = vmatprep.subr.bf16.mxu0 %v7746
        %8823 = vmatpush2.bf16.msra.mxu0 %v7745
        %8824 = vmatprep.subr.bf16.mxu0 %v7740
        %8825 = vmatpush2.bf16.msra.mxu0 %v7739
        %8826 = vmatprep.subr.bf16.mxu0 %v7734
        %8827 = vmatpush2.bf16.msra.mxu0 %v7733
        %8828 = vmatprep.subr.bf16.mxu0 %v7728
        %8829 = vmatpush2.bf16.msra.mxu0 %v7727
        %8830 = vmatprep.subr.bf16.mxu0 %v7722
        %8831 = vmatpush2.bf16.msra.mxu0 %v7721
        %8832 = vmatprep.subr.bf16.mxu0 %v7716
        %8833 = vmatpush2.bf16.msra.mxu0 %v7715
        %8834 = vmatprep.subr.bf16.mxu0 %v7710
        %8835 = vmatpush2.bf16.msra.mxu0 %v7709
        %8836 = vmatprep.mubr.bf16.mxu0 %v4874
        %8837 = vmatmul.mubr.bf16.gmra.mxu0 %v4873
        %v8838 = vpop.f32.mrf.mxu0
        %v8839 = vadd.f32 %v8796, %v8838
        %v8840 = vpop.f32.mrf.mxu0
        %v8841 = vadd.f32 %v8798, %v8840
        %v8842 = vpop.f32.mrf.mxu0
        %v8843 = vadd.f32 %v8800, %v8842
        %v8844 = vpop.f32.mrf.mxu0
        %v8845 = vadd.f32 %v8802, %v8844
        %8846 = vdwg.mxu0
        %8847 = vmatprep.subr.bf16.mxu0 %v7226
        %8848 = vmatpush1.bf16.msra.mxu0 %v7225
        %8849 = vmatprep.subr.bf16.mxu0 %v7220
        %8850 = vmatpush1.bf16.msra.mxu0 %v7219
        %8851 = vmatprep.subr.bf16.mxu0 %v7214
        %8852 = vmatpush1.bf16.msra.mxu0 %v7213
        %8853 = vmatprep.subr.bf16.mxu0 %v7208
        %8854 = vmatpush1.bf16.msra.mxu0 %v7207
        %8855 = vmatprep.subr.bf16.mxu0 %v7202
        %8856 = vmatpush1.bf16.msra.mxu0 %v7201
        %8857 = vmatprep.subr.bf16.mxu0 %v7196
        %8858 = vmatpush1.bf16.msra.mxu0 %v7195
        %8859 = vmatprep.subr.bf16.mxu0 %v7190
        %8860 = vmatpush1.bf16.msra.mxu0 %v7189
        %8861 = vmatprep.subr.bf16.mxu0 %v7184
        %8862 = vmatpush1.bf16.msra.mxu0 %v7183
        %8863 = vmatprep.subr.bf16.mxu0 %v7274
        %8864 = vmatpush2.bf16.msra.mxu0 %v7273
        %8865 = vmatprep.subr.bf16.mxu0 %v7268
        %8866 = vmatpush2.bf16.msra.mxu0 %v7267
        %8867 = vmatprep.subr.bf16.mxu0 %v7262
        %8868 = vmatpush2.bf16.msra.mxu0 %v7261
        %8869 = vmatprep.subr.bf16.mxu0 %v7256
        %8870 = vmatpush2.bf16.msra.mxu0 %v7255
        %8871 = vmatprep.subr.bf16.mxu0 %v7250
        %8872 = vmatpush2.bf16.msra.mxu0 %v7249
        %8873 = vmatprep.subr.bf16.mxu0 %v7244
        %8874 = vmatpush2.bf16.msra.mxu0 %v7243
        %8875 = vmatprep.subr.bf16.mxu0 %v7238
        %8876 = vmatpush2.bf16.msra.mxu0 %v7237
        %8877 = vmatprep.subr.bf16.mxu0 %v7232
        %8878 = vmatpush2.bf16.msra.mxu0 %v7231
        %8879 = vmatprep.mubr.bf16.mxu0 %v4864
        %8880 = vmatmul.mubr.bf16.gmra.mxu0 %v4863
        %v8881 = vpop.f32.mrf.mxu0
        %v8882 = vadd.f32 0.0, %v8881
        %v8883 = vpop.f32.mrf.mxu0
        %v8884 = vadd.f32 0.0, %v8883
        %v8885 = vpop.f32.mrf.mxu0
        %v8886 = vadd.f32 0.0, %v8885
        %v8887 = vpop.f32.mrf.mxu0
        %v8888 = vadd.f32 0.0, %v8887
        %8889 = vdwg.mxu0
        %8890 = vmatprep.subr.bf16.mxu0 %v7322
        %8891 = vmatpush1.bf16.msra.mxu0 %v7321
        %8892 = vmatprep.subr.bf16.mxu0 %v7316
        %8893 = vmatpush1.bf16.msra.mxu0 %v7315
        %8894 = vmatprep.subr.bf16.mxu0 %v7310
        %8895 = vmatpush1.bf16.msra.mxu0 %v7309
        %8896 = vmatprep.subr.bf16.mxu0 %v7304
        %8897 = vmatpush1.bf16.msra.mxu0 %v7303
        %8898 = vmatprep.subr.bf16.mxu0 %v7298
        %8899 = vmatpush1.bf16.msra.mxu0 %v7297
        %8900 = vmatprep.subr.bf16.mxu0 %v7292
        %8901 = vmatpush1.bf16.msra.mxu0 %v7291
        %8902 = vmatprep.subr.bf16.mxu0 %v7286
        %8903 = vmatpush1.bf16.msra.mxu0 %v7285
        %8904 = vmatprep.subr.bf16.mxu0 %v7280
        %8905 = vmatpush1.bf16.msra.mxu0 %v7279
        %8906 = vmatprep.subr.bf16.mxu0 %v7370
        %8907 = vmatpush2.bf16.msra.mxu0 %v7369
        %8908 = vmatprep.subr.bf16.mxu0 %v7364
        %8909 = vmatpush2.bf16.msra.mxu0 %v7363
        %8910 = vmatprep.subr.bf16.mxu0 %v7358
        %8911 = vmatpush2.bf16.msra.mxu0 %v7357
        %8912 = vmatprep.subr.bf16.mxu0 %v7352
        %8913 = vmatpush2.bf16.msra.mxu0 %v7351
        %8914 = vmatprep.subr.bf16.mxu0 %v7346
        %8915 = vmatpush2.bf16.msra.mxu0 %v7345
        %8916 = vmatprep.subr.bf16.mxu0 %v7340
        %8917 = vmatpush2.bf16.msra.mxu0 %v7339
        %8918 = vmatprep.subr.bf16.mxu0 %v7334
        %8919 = vmatpush2.bf16.msra.mxu0 %v7333
        %8920 = vmatprep.subr.bf16.mxu0 %v7328
        %8921 = vmatpush2.bf16.msra.mxu0 %v7327
        %8922 = vmatprep.mubr.bf16.mxu0 %v4866
        %8923 = vmatmul.mubr.bf16.gmra.mxu0 %v4865
        %v8924 = vpop.f32.mrf.mxu0
        %v8925 = vadd.f32 %v8882, %v8924
        %v8926 = vpop.f32.mrf.mxu0
        %v8927 = vadd.f32 %v8884, %v8926
        %v8928 = vpop.f32.mrf.mxu0
        %v8929 = vadd.f32 %v8886, %v8928
        %v8930 = vpop.f32.mrf.mxu0
        %v8931 = vadd.f32 %v8888, %v8930
        %8932 = vdwg.mxu0
        %8933 = vmatprep.subr.bf16.mxu0 %v7418
        %8934 = vmatpush1.bf16.msra.mxu0 %v7417
        %8935 = vmatprep.subr.bf16.mxu0 %v7412
        %8936 = vmatpush1.bf16.msra.mxu0 %v7411
        %8937 = vmatprep.subr.bf16.mxu0 %v7406
        %8938 = vmatpush1.bf16.msra.mxu0 %v7405
        %8939 = vmatprep.subr.bf16.mxu0 %v7400
        %8940 = vmatpush1.bf16.msra.mxu0 %v7399
        %8941 = vmatprep.subr.bf16.mxu0 %v7394
        %8942 = vmatpush1.bf16.msra.mxu0 %v7393
        %8943 = vmatprep.subr.bf16.mxu0 %v7388
        %8944 = vmatpush1.bf16.msra.mxu0 %v7387
        %8945 = vmatprep.subr.bf16.mxu0 %v7382
        %8946 = vmatpush1.bf16.msra.mxu0 %v7381
        %8947 = vmatprep.subr.bf16.mxu0 %v7376
        %8948 = vmatpush1.bf16.msra.mxu0 %v7375
        %8949 = vmatprep.subr.bf16.mxu0 %v7466
        %8950 = vmatpush2.bf16.msra.mxu0 %v7465
        %8951 = vmatprep.subr.bf16.mxu0 %v7460
        %8952 = vmatpush2.bf16.msra.mxu0 %v7459
        %8953 = vmatprep.subr.bf16.mxu0 %v7454
        %8954 = vmatpush2.bf16.msra.mxu0 %v7453
        %8955 = vmatprep.subr.bf16.mxu0 %v7448
        %8956 = vmatpush2.bf16.msra.mxu0 %v7447
        %8957 = vmatprep.subr.bf16.mxu0 %v7442
        %8958 = vmatpush2.bf16.msra.mxu0 %v7441
        %8959 = vmatprep.subr.bf16.mxu0 %v7436
        %8960 = vmatpush2.bf16.msra.mxu0 %v7435
        %8961 = vmatprep.subr.bf16.mxu0 %v7430
        %8962 = vmatpush2.bf16.msra.mxu0 %v7429
        %8963 = vmatprep.subr.bf16.mxu0 %v7424
        %8964 = vmatpush2.bf16.msra.mxu0 %v7423
        %8965 = vmatprep.mubr.bf16.mxu0 %v4868
        %8966 = vmatmul.mubr.bf16.gmra.mxu0 %v4867
        %v8967 = vpop.f32.mrf.mxu0
        %v8968 = vadd.f32 %v8925, %v8967
        %v8969 = vpop.f32.mrf.mxu0
        %v8970 = vadd.f32 %v8927, %v8969
        %v8971 = vpop.f32.mrf.mxu0
        %v8972 = vadd.f32 %v8929, %v8971
        %v8973 = vpop.f32.mrf.mxu0
        %v8974 = vadd.f32 %v8931, %v8973
        %8975 = vdwg.mxu0
        %8976 = vmatprep.subr.bf16.mxu0 %v7514
        %8977 = vmatpush1.bf16.msra.mxu0 %v7513
        %8978 = vmatprep.subr.bf16.mxu0 %v7508
        %8979 = vmatpush1.bf16.msra.mxu0 %v7507
        %8980 = vmatprep.subr.bf16.mxu0 %v7502
        %8981 = vmatpush1.bf16.msra.mxu0 %v7501
        %8982 = vmatprep.subr.bf16.mxu0 %v7496
        %8983 = vmatpush1.bf16.msra.mxu0 %v7495
        %8984 = vmatprep.subr.bf16.mxu0 %v7490
        %8985 = vmatpush1.bf16.msra.mxu0 %v7489
        %8986 = vmatprep.subr.bf16.mxu0 %v7484
        %8987 = vmatpush1.bf16.msra.mxu0 %v7483
        %8988 = vmatprep.subr.bf16.mxu0 %v7478
        %8989 = vmatpush1.bf16.msra.mxu0 %v7477
        %8990 = vmatprep.subr.bf16.mxu0 %v7472
        %8991 = vmatpush1.bf16.msra.mxu0 %v7471
        %8992 = vmatprep.subr.bf16.mxu0 %v7562
        %8993 = vmatpush2.bf16.msra.mxu0 %v7561
        %8994 = vmatprep.subr.bf16.mxu0 %v7556
        %8995 = vmatpush2.bf16.msra.mxu0 %v7555
        %8996 = vmatprep.subr.bf16.mxu0 %v7550
        %8997 = vmatpush2.bf16.msra.mxu0 %v7549
        %8998 = vmatprep.subr.bf16.mxu0 %v7544
        %8999 = vmatpush2.bf16.msra.mxu0 %v7543
        %9000 = vmatprep.subr.bf16.mxu0 %v7538
        %9001 = vmatpush2.bf16.msra.mxu0 %v7537
        %9002 = vmatprep.subr.bf16.mxu0 %v7532
        %9003 = vmatpush2.bf16.msra.mxu0 %v7531
        %9004 = vmatprep.subr.bf16.mxu0 %v7526
        %9005 = vmatpush2.bf16.msra.mxu0 %v7525
        %9006 = vmatprep.subr.bf16.mxu0 %v7520
        %9007 = vmatpush2.bf16.msra.mxu0 %v7519
        %9008 = vmatprep.mubr.bf16.mxu0 %v4870
        %9009 = vmatmul.mubr.bf16.gmra.mxu0 %v4869
        %v9010 = vpop.f32.mrf.mxu0
        %v9011 = vadd.f32 %v8968, %v9010
        %v9012 = vpop.f32.mrf.mxu0
        %v9013 = vadd.f32 %v8970, %v9012
        %v9014 = vpop.f32.mrf.mxu0
        %v9015 = vadd.f32 %v8972, %v9014
        %v9016 = vpop.f32.mrf.mxu0
        %v9017 = vadd.f32 %v8974, %v9016
        %9018 = vdwg.mxu0
        %9019 = vmatprep.subr.bf16.mxu0 %v7610
        %9020 = vmatpush1.bf16.msra.mxu0 %v7609
        %9021 = vmatprep.subr.bf16.mxu0 %v7604
        %9022 = vmatpush1.bf16.msra.mxu0 %v7603
        %9023 = vmatprep.subr.bf16.mxu0 %v7598
        %9024 = vmatpush1.bf16.msra.mxu0 %v7597
        %9025 = vmatprep.subr.bf16.mxu0 %v7592
        %9026 = vmatpush1.bf16.msra.mxu0 %v7591
        %9027 = vmatprep.subr.bf16.mxu0 %v7586
        %9028 = vmatpush1.bf16.msra.mxu0 %v7585
        %9029 = vmatprep.subr.bf16.mxu0 %v7580
        %9030 = vmatpush1.bf16.msra.mxu0 %v7579
        %9031 = vmatprep.subr.bf16.mxu0 %v7574
        %9032 = vmatpush1.bf16.msra.mxu0 %v7573
        %9033 = vmatprep.subr.bf16.mxu0 %v7568
        %9034 = vmatpush1.bf16.msra.mxu0 %v7567
        %9035 = vmatprep.subr.bf16.mxu0 %v7658
        %9036 = vmatpush2.bf16.msra.mxu0 %v7657
        %9037 = vmatprep.subr.bf16.mxu0 %v7652
        %9038 = vmatpush2.bf16.msra.mxu0 %v7651
        %9039 = vmatprep.subr.bf16.mxu0 %v7646
        %9040 = vmatpush2.bf16.msra.mxu0 %v7645
        %9041 = vmatprep.subr.bf16.mxu0 %v7640
        %9042 = vmatpush2.bf16.msra.mxu0 %v7639
        %9043 = vmatprep.subr.bf16.mxu0 %v7634
        %9044 = vmatpush2.bf16.msra.mxu0 %v7633
        %9045 = vmatprep.subr.bf16.mxu0 %v7628
        %9046 = vmatpush2.bf16.msra.mxu0 %v7627
        %9047 = vmatprep.subr.bf16.mxu0 %v7622
        %9048 = vmatpush2.bf16.msra.mxu0 %v7621
        %9049 = vmatprep.subr.bf16.mxu0 %v7616
        %9050 = vmatpush2.bf16.msra.mxu0 %v7615
        %9051 = vmatprep.mubr.bf16.mxu0 %v4872
        %9052 = vmatmul.mubr.bf16.gmra.mxu0 %v4871
        %v9053 = vpop.f32.mrf.mxu0
        %v9054 = vadd.f32 %v9011, %v9053
        %v9055 = vpop.f32.mrf.mxu0
        %v9056 = vadd.f32 %v9013, %v9055
        %v9057 = vpop.f32.mrf.mxu0
        %v9058 = vadd.f32 %v9015, %v9057
        %v9059 = vpop.f32.mrf.mxu0
        %v9060 = vadd.f32 %v9017, %v9059
        %9061 = vdwg.mxu0
        %9062 = vmatprep.subr.bf16.mxu0 %v7706
        %9063 = vmatpush1.bf16.msra.mxu0 %v7705
        %9064 = vmatprep.subr.bf16.mxu0 %v7700
        %9065 = vmatpush1.bf16.msra.mxu0 %v7699
        %9066 = vmatprep.subr.bf16.mxu0 %v7694
        %9067 = vmatpush1.bf16.msra.mxu0 %v7693
        %9068 = vmatprep.subr.bf16.mxu0 %v7688
        %9069 = vmatpush1.bf16.msra.mxu0 %v7687
        %9070 = vmatprep.subr.bf16.mxu0 %v7682
        %9071 = vmatpush1.bf16.msra.mxu0 %v7681
        %9072 = vmatprep.subr.bf16.mxu0 %v7676
        %9073 = vmatpush1.bf16.msra.mxu0 %v7675
        %9074 = vmatprep.subr.bf16.mxu0 %v7670
        %9075 = vmatpush1.bf16.msra.mxu0 %v7669
        %9076 = vmatprep.subr.bf16.mxu0 %v7664
        %9077 = vmatpush1.bf16.msra.mxu0 %v7663
        %9078 = vmatprep.subr.bf16.mxu0 %v7754
        %9079 = vmatpush2.bf16.msra.mxu0 %v7753
        %9080 = vmatprep.subr.bf16.mxu0 %v7748
        %9081 = vmatpush2.bf16.msra.mxu0 %v7747
        %9082 = vmatprep.subr.bf16.mxu0 %v7742
        %9083 = vmatpush2.bf16.msra.mxu0 %v7741
        %9084 = vmatprep.subr.bf16.mxu0 %v7736
        %9085 = vmatpush2.bf16.msra.mxu0 %v7735
        %9086 = vmatprep.subr.bf16.mxu0 %v7730
        %9087 = vmatpush2.bf16.msra.mxu0 %v7729
        %9088 = vmatprep.subr.bf16.mxu0 %v7724
        %9089 = vmatpush2.bf16.msra.mxu0 %v7723
        %9090 = vmatprep.subr.bf16.mxu0 %v7718
        %9091 = vmatpush2.bf16.msra.mxu0 %v7717
        %9092 = vmatprep.subr.bf16.mxu0 %v7712
        %9093 = vmatpush2.bf16.msra.mxu0 %v7711
        %9094 = vmatprep.mubr.bf16.mxu0 %v4874
        %9095 = vmatmul.mubr.bf16.gmra.mxu0 %v4873
        %v9096 = vpop.f32.mrf.mxu0
        %v9097 = vadd.f32 %v9054, %v9096
        %v9098 = vpop.f32.mrf.mxu0
        %v9099 = vadd.f32 %v9056, %v9098
        %v9100 = vpop.f32.mrf.mxu0
        %v9101 = vadd.f32 %v9058, %v9100
        %v9102 = vpop.f32.mrf.mxu0
        %v9103 = vadd.f32 %v9060, %v9102
        %9104 = vdwg.mxu0
        %9105 = vst [vmem:[%s329] sm:$0xff] %v8581
        %9106 = vst [vmem:[%s329 + $0x8] sm:$0xff] %v8583
        %9107 = vst [vmem:[%s329 + $0x10] sm:$0xff] %v8839
        %9108 = vst [vmem:[%s329 + $0x18] sm:$0xff] %v8841
        %9109 = vst [vmem:[%s329 + $0x20] sm:$0xff] %v9097
        %9110 = vst [vmem:[%s329 + $0x28] sm:$0xff] %v9099
        %9111 = vst [vmem:[%s329 + $0x30] sm:$0xff] %v8585
        %9112 = vst [vmem:[%s329 + $0x38] sm:$0xff] %v8587
        %9113 = vst [vmem:[%s329 + $0x40] sm:$0xff] %v8843
        %9114 = vst [vmem:[%s329 + $0x48] sm:$0xff] %v8845
        %9115 = vst [vmem:[%s329 + $0x50] sm:$0xff] %v9101
        %9116 = vst [vmem:[%s329 + $0x58] sm:$0xff] %v9103
        %s9117 = sand.u32 %s151, 1
        %s9118 = scalar_lea.sflag [#allocation4], %s9117
        %s9119 = sand.u32 %s151, 1
        %s9120 = smul.addr %s9119, 96
        %s9121 = scalar_lea.vmem [#allocation10], %s9120
        // Predicated region
        $region53: #{tpu_custom_call.1} parent=35 // pred_check
          %p9122 = pneg %p161
        $region54: #{tpu_custom_call.1} parent=35 // pred_check_branch
          %9124 = sbr.rel (%p9122) target = $region56
        $region55: #{tpu_custom_call.1} parent=35 // pred_region
          %s9125 = smul.u32 2, %s30
          %s9127 = ssub.s32 1536, 1536
          %9128 = vsyncadd %s9118, %s9127
          %s9129 = smul.addr %s9125, 6
          %s9130 = smul.addr %s29, 12
          %s9131 = sadd.s32 %s9129, %s9130
          %s9132 = smul.addr %s9131, 128
          %s9133 = scalar_lea.hbm %s4, %s9132
          %s9134 = sshll.u32 %s9121, 4
          %s9135 = int_to_ptr.vmem [resolvable:$true] %s9134
          %9140 = dma.vmem_to_hbm [thread:$0]  %s9135, 1536, %s9133, %s9118, 768, 768, 48
        $region56: #{tpu_custom_call.1} parent=35 // pred_fallthru
          _
      $region36: #{tpu_custom_call.1} parent=5 // pred_fallthru
        _
      %p9141 = scmp.le.s32.totalorder 2, %s20
      // Predicated region
      $region57: #{tpu_custom_call.1} parent=5 // pred_check
        %p9142 = pneg %p9141
      $region58: #{tpu_custom_call.1} parent=5 // pred_check_branch
        %9144 = sbr.rel (%p9142) target = $region60
      $region59: #{tpu_custom_call.1} parent=5 // pred_region
        %s9145 = ssub.s32 %s20, 2
        // Predicated region
        $region61: #{tpu_custom_call.1} parent=59 // pred_check
          %p9146 = pneg %p167
        $region62: #{tpu_custom_call.1} parent=59 // pred_check_branch
          %9148 = sbr.rel (%p9146) target = $region64
        $region63: #{tpu_custom_call.1} parent=59 // pred_region
          %s9149 = sand.u32 %s152, 1
          %s9150 = scalar_lea.sflag [#allocation4], %s9149
          %s9151 = sand.u32 %s152, 1
          %s9152 = smul.addr %s9151, 96
          %s9153 = scalar_lea.vmem [#allocation10], %s9152
          %9154 = dma.done %s9150, 1536
        $region64: #{tpu_custom_call.1} parent=59 // pred_fallthru
          _
      $region60: #{tpu_custom_call.1} parent=5 // pred_fallthru
        _
    $region6: #{tpu_custom_call.1} parent=1 // loop_footer
      %s24 = sadd.s32 1, %s20
    $region7: #{tpu_custom_call.1} parent=1 // loop_footer_branch
      %19 = sbr.rel target = $region3
    $region8: #{tpu_custom_call.1} parent=1 // loop_exit
      _
    %9155 = vsyncpa [#allocation3], 1
    %s9156 = scalar_lea.sflag [#allocation3], 1
    %9157 = vsyncpa %s9156, 1
    %9158 = vsyncpa [#allocation6], 1
    %s9159 = scalar_lea.sflag [#allocation6], 1
    %9160 = vsyncpa %s9159, 1
    %9161 = vsyncpa [#allocation9], 1
    %s9162 = scalar_lea.sflag [#allocation9], 1
    %9163 = vsyncpa %s9162, 1
    %9164 = vsyncpa [#allocation4], 1
    %s9165 = scalar_lea.sflag [#allocation4], 1
    %9166 = vsyncpa %s9165, 1

</llo_original>
